<compile_context>
chip_gen: v7x
topology: tpu7x:2x2x1
jax: 0.10.0
libtpu: 0.0.40
codegen_flags: <defaults>
</compile_context>

<pallas_src>
import functools

import jax
import jax.numpy as jnp
from jax.experimental import pallas as pl
from jax.experimental.pallas import tpu as pltpu


def _self_attention_kernel(x_ref, wqkv_ref, wout_ref, bout_ref, o_ref, *,
                           b_blk, seq, heads, dim_head, fused_relayout,
                           approx_recip):
    # x_ref:    (b_blk*seq, D)                    token rows for this batch block
    # wqkv_ref: (D, 3*heads*dh)                   to_qkv weight (input->output);
    #                                             q columns pre-scaled by 1/sqrt(dh)
    # wout_ref: (inner, D) or (heads, dh, D)      to_out[0] weight
    # bout_ref: (1, D) f32                        to_out[0] bias
    # o_ref:    (rows, D) or lane-dense (rows*D//128, 128)
    rows = b_blk * seq
    dh = dim_head
    inner = heads * dh
    mxu_dt = wqkv_ref.dtype          # bf16 when the caller's x was f32

    x = x_ref[...].astype(mxu_dt)

    # ---- QKV projection: one wide MXU matmul (bf16 operands, f32 accum). ----
    qkv = jnp.dot(x, wqkv_ref[...], preferred_element_type=jnp.float32)
    # (rows, 3*inner); columns are [q | k | v], head-major inside each third.

    # ---- Head split -> (heads*b_blk, seq, dh) leading-batch layout. ----
    if fused_relayout:
        # Single relayout: (rows, 3*heads*dh) -> (3*heads, rows, dh).
        qkv = qkv.reshape(rows, 3 * heads, dh)
        qkv = jnp.transpose(qkv, (1, 0, 2)).reshape(3, heads * b_blk, seq, dh)
        q = qkv[0].astype(mxu_dt)
        k = qkv[1].astype(mxu_dt)
        v = qkv[2].astype(mxu_dt)
    else:
        # Portable fallback: per-head lane slices + stack (more copies).
        def take(base):
            parts = [qkv[:, base + h * dh: base + (h + 1) * dh]
                     for h in range(heads)]
            stacked = jnp.stack(parts, axis=0)              # (heads, rows, dh)
            return stacked.reshape(heads * b_blk, seq, dh).astype(mxu_dt)
        q, k, v = take(0), take(inner), take(2 * inner)

    # ---- Attention, batched over (head, batch); softmax math stays f32. ----
    s = jnp.einsum('gnd,gmd->gnm', q, k,
                   preferred_element_type=jnp.float32)              # (G, N, N)
    s = jnp.exp(s - jnp.max(s, axis=-1, keepdims=True))
    denom = jnp.sum(s, axis=-1, keepdims=True)
    inv = pl.reciprocal(denom, approx=True) if approx_recip else 1.0 / denom
    attn = (s * inv).astype(mxu_dt)
    out = jnp.einsum('gnm,gmd->gnd', attn, v,
                     preferred_element_type=jnp.float32)            # (G, N, dh)

    # ---- Merge heads + output projection + bias. ----
    if fused_relayout:
        out = out.reshape(heads, rows, dh)
        out = jnp.transpose(out, (1, 0, 2)).reshape(rows, inner)    # (rows, inner)
        y = jnp.dot(out.astype(mxu_dt), wout_ref[...],              # K = inner
                    preferred_element_type=jnp.float32)
    else:
        out_h = out.reshape(heads, rows, dh).astype(mxu_dt)
        y = jnp.einsum('hrd,hde->hre', out_h, wout_ref[...],        # K = dh
                       preferred_element_type=jnp.float32)
        y = jnp.sum(y, axis=0)
    y = y + bout_ref[...].astype(jnp.float32)
    o_ref[...] = y.astype(o_ref.dtype).reshape(o_ref.shape)

    # TODO(synk): dropout (to_out[1]; p=0.0 -> eval no-op) is not implemented.
    # TODO(synk): for seq in the thousands, add a second "arbitrary" grid axis
    # over KV tiles with running max/sum scratch (flash-style) so the (G,N,N)
    # scores never materialize; until then the block chooser + vmem_limit keep
    # the full-softmax working set inside v7x's 64 MiB VMEM.


def _num_tensorcores():
    """2 on chips with two TensorCores per chip (v7x), else 1 (v5e / v6e)."""
    try:
        kind = jax.devices()[0].device_kind.lower()
    except Exception:
        return 1
    return 2 if "v7" in kind else 1


def _vmem_estimate_bytes(b_blk, seq, dim, heads, dim_head, x_bytes, w_bytes):
    """Rough per-step VMEM working set of the kernel."""
    rows = b_blk * seq
    g = heads * b_blk
    inner = heads * dim_head
    return (
        2 * 2 * rows * dim * x_bytes                            # x/o blocks, double-buffered
        + 2 * (dim * 3 * inner + inner * dim + dim) * w_bytes   # weights, double-buffered
        + rows * 3 * inner * (4 + w_bytes)                      # qkv f32 + bf16 q/k/v
        + 2 * g * seq * seq * 4 + g * seq * seq * w_bytes       # scores / softmax temps
        + g * seq * dim_head * 4                                # attn @ v accumulator
        + rows * inner * w_bytes + rows * dim * 4)              # merged heads + y f32


def _vmem_limit_bytes(est):
    return int(max(32 << 20, min(2 * est, 64 << 20)))


def _choose_batch_block(batch, seq, *, num_cores, target_rows, fits_vmem):
    """Largest divisor of `batch` whose block (a) is sublane-aligned (rows % 8
    or full extent), (b) fits the VMEM budget, (c) stays near `target_rows`
    rows per step and (d) leaves >= num_cores grid steps on multi-core chips."""
    cands = [c for c in range(1, batch + 1)
             if batch % c == 0
             and ((c * seq) % 8 == 0 or c == batch)
             and fits_vmem(c)]
    if not cands:
        return batch
    small = [c for c in cands if c * seq <= target_rows] or [min(cands)]
    if num_cores > 1 and batch >= num_cores:
        multi = [c for c in small if batch // c >= num_cores]
        if multi:
            return max(multi)
    return max(small)


def self_attention(x, w_qkv, w_out, b_out, *, heads, dim_head,
                   compute_dtype=None, approx_recip=True):
    """x: (B, N, D). w_qkv: (D, 3*heads*dim_head) (input->output, i.e. W^T).
    w_out: (heads*dim_head, D). b_out: (1, D) or (D,).

    Matches SelfAttention.forward with project_out=True; for the Identity case
    (heads == 1 and dim_head == dim) pass an identity w_out and a zero b_out.
    MXU operands use `compute_dtype` (default: bf16 when x is f32);
    accumulation and softmax stay in f32.
    """
    B, N, D = x.shape
    inner = heads * dim_head
    scale = dim_head ** (-0.5)

    if compute_dtype is None:
        compute_dtype = jnp.bfloat16 if x.dtype == jnp.float32 else x.dtype
    x_bytes = x.dtype.itemsize
    w_bytes = jnp.dtype(compute_dtype).itemsize

    num_cores = _num_tensorcores()
    # v7x: smaller blocks (64 MiB VMEM) and >= 2 parallel grid steps so both
    # TensorCores get work; single-core chips take the biggest fitting block
    # (their grid is a serial loop, extra steps only add ~0.35us overhead each).
    target_rows = 256 if num_cores > 1 else 1024
    vmem_cap = 56 << 20                      # headroom under v7x's 64 MiB VMEM
    fits = lambda c: _vmem_estimate_bytes(c, N, D, heads, dim_head,
                                          x_bytes, w_bytes) <= vmem_cap
    b_blk = _choose_batch_block(B, N, num_cores=num_cores,
                                target_rows=target_rows, fits_vmem=fits)
    rows = b_blk * N
    grid = (B // b_blk,)

    # One-time parameter prep (weights only, not per-token activations): fold
    # the 1/sqrt(dh) scale into the q columns, cast to the MXU dtype, keep the
    # bias in f32 (it is added to the f32 accumulator).
    w_qkv_p = (w_qkv.astype(jnp.float32).at[:, :inner].multiply(scale)
               .astype(compute_dtype))
    w_out_p = w_out.astype(compute_dtype)                    # (inner, D)
    b_out_p = b_out.reshape(1, D).astype(jnp.float32)
    x2 = x.reshape(B * N, D)

    est = _vmem_estimate_bytes(b_blk, N, D, heads, dim_head, x_bytes, w_bytes)
    compiler_params = pltpu.CompilerParams(
        dimension_semantics=("parallel",),
        vmem_limit_bytes=_vmem_limit_bytes(est))
    cost = pl.CostEstimate(
        flops=(2 * B * N * D * 3 * inner            # qkv projection
               + 4 * B * heads * N * N * dim_head   # q.k^T and attn.v
               + 2 * B * N * inner * D),            # output projection
        transcendentals=B * heads * N * N,          # softmax exp
        bytes_accessed=(B * N * D * 2 * x_bytes
                        + (D * 3 * inner + inner * D + D) * w_bytes))

    # Lane-dense output store is only legal when the block folds cleanly into
    # (rows*D/128, 128) tiles (8-sublane / 128-lane divisibility).
    lane_dense_ok = (D % 128 != 0) and ((rows * D) % (8 * 128) == 0)

    def run(fused_relayout, lane_dense):
        if lane_dense:
            out_shape = jax.ShapeDtypeStruct((B * N * D // 128, 128), x.dtype)
            out_spec = pl.BlockSpec((rows * D // 128, 128), lambda i: (i, 0))
        else:
            out_shape = jax.ShapeDtypeStruct((B * N, D), x.dtype)
            out_spec = pl.BlockSpec((rows, D), lambda i: (i, 0))
        if fused_relayout:
            wout = w_out_p                                      # (inner, D)
            wout_spec = pl.BlockSpec((inner, D), lambda i: (0, 0))
        else:
            wout = w_out_p.reshape(heads, dim_head, D)          # per-head weight
            wout_spec = pl.BlockSpec((heads, dim_head, D), lambda i: (0, 0, 0))
        kernel = functools.partial(
            _self_attention_kernel, b_blk=b_blk, seq=N, heads=heads,
            dim_head=dim_head, fused_relayout=fused_relayout,
            approx_recip=approx_recip)
        y2 = pl.pallas_call(
            kernel,
            out_shape=out_shape,
            grid_spec=pltpu.PrefetchScalarGridSpec(
                num_scalar_prefetch=0,
                grid=grid,
                in_specs=[
                    pl.BlockSpec((rows, D), lambda i: (i, 0)),
                    pl.BlockSpec((D, 3 * inner), lambda i: (0, 0)),
                    wout_spec,
                    pl.BlockSpec((1, D), lambda i: (0, 0)),
                ],
                out_specs=out_spec),
            compiler_params=compiler_params,
            cost_estimate=cost,
        )(x2, w_qkv_p, wout, b_out_p)
        return y2.reshape(B, N, D)

    # Prefer the fused-relayout / lane-dense variant; fall back if this Mosaic
    # version rejects one of the in-kernel relayouts (compile-time failure).
    attempts = []
    if lane_dense_ok:
        attempts.append((True, True))
    attempts += [(True, False), (False, False)]
    err = None
    for fused_relayout, lane_dense in attempts:
        try:
            return run(fused_relayout, lane_dense)
        except Exception as e:   # noqa: BLE001 - lowering/compile fallback
            err = e
    raise err


def self_attention_ref(x, w_qkv, w_out, b_out, *, heads, dim_head,
                       compute_dtype=jnp.float32):
    """Pure-JAX reference reproducing the PyTorch forward.  `compute_dtype`
    casts the matmul operands (accumulation stays f32) so the kernel's bf16
    MXU numerics can also be checked tightly."""
    B, N, D = x.shape
    inner = heads * dim_head
    scale = dim_head ** (-0.5)
    c = lambda t: t.astype(compute_dtype)
    qkv = jnp.einsum('bnd,de->bne', c(x), c(w_qkv),
                     preferred_element_type=jnp.float32)
    q, k, v = jnp.split(qkv, 3, axis=-1)

    def split_heads(t):  # 'b n (h d) -> b h n d'
        return t.reshape(B, N, heads, dim_head).transpose(0, 2, 1, 3)

    q, k, v = map(split_heads, (q, k, v))
    dots = jnp.einsum('bhid,bhjd->bhij', c(q), c(k),
                      preferred_element_type=jnp.float32) * scale
    attn = jax.nn.softmax(dots, axis=-1)
    out = jnp.einsum('bhij,bhjd->bhid', c(attn), c(v),
                     preferred_element_type=jnp.float32)
    out = out.transpose(0, 2, 1, 3).reshape(B, N, inner)  # 'b h n d -> b n (h d)'
    y = jnp.einsum('bni,id->bnd', c(out), c(w_out),
                   preferred_element_type=jnp.float32) + b_out.astype(jnp.float32)
    return y.astype(x.dtype)


if __name__ == "__main__":
    # Small, module-consistent shapes (B chosen so batch-blocking is exercised).
    B, N, DIM = 8, 8, 32
    HEADS, DIM_HEAD = 2, 16
    INNER = HEADS * DIM_HEAD

    key = jax.random.PRNGKey(0)
    kx, kq, ko, kb = jax.random.split(key, 4)

    x = jax.random.normal(kx, (B, N, DIM), dtype=jnp.float32)
    # Deterministic synthetic parameters (Linear weights stored input->output).
    w_qkv = jax.random.normal(kq, (DIM, 3 * INNER), dtype=jnp.float32) * (DIM ** -0.5)
    w_out = jax.random.normal(ko, (INNER, DIM), dtype=jnp.float32) * (INNER ** -0.5)
    b_out = jax.random.normal(kb, (1, DIM), dtype=jnp.float32) * 0.02

    y = self_attention(x, w_qkv, w_out, b_out, heads=HEADS, dim_head=DIM_HEAD)
    jax.block_until_ready(y)
    assert y.shape == (B, N, DIM)

    # Check 1 (tight): against a reference that mirrors the kernel's bf16 MXU
    # operands with f32 accumulation; only the approx softmax reciprocal and
    # reduction order differ.
    y_bf = self_attention_ref(x, w_qkv, w_out, b_out, heads=HEADS,
                              dim_head=DIM_HEAD, compute_dtype=jnp.bfloat16)
    assert jnp.allclose(y, y_bf, atol=2e-2, rtol=2e-2), \
        float(jnp.max(jnp.abs(y - y_bf)))

    # Check 2 (semantic): against the exact f32 PyTorch-equivalent forward;
    # looser tolerance because bf16 MXU operands are intentional (perf review).
    y_f32 = self_attention_ref(x, w_qkv, w_out, b_out, heads=HEADS,
                               dim_head=DIM_HEAD, compute_dtype=jnp.float32)
    assert jnp.allclose(y, y_f32, atol=1e-1, rtol=1e-1), \
        float(jnp.max(jnp.abs(y - y_f32)))

    print("KERNEL_OK")
</pallas_src>

<mosaic_0001>
module attributes {stable_mosaic.version = 11 : i64} {
  func.func @_self_attention_kernel(%arg0: i32, %arg1: memref<64x32xf32, #tpu.memory_space<vmem>>, %arg2: memref<32x96xbf16, #tpu.memory_space<vmem>>, %arg3: memref<32x32xbf16, #tpu.memory_space<vmem>>, %arg4: memref<1x32xf32, #tpu.memory_space<vmem>>, %arg5: memref<16x128xf32, #tpu.memory_space<vmem>>) attributes {dimension_semantics = [#tpu.dimension_semantics<parallel>], iteration_bounds = array<i64: 1>, scalar_prefetch = 0 : i64, scratch_operands = 0 : i64, tpu.core_type = #tpu.core_type<tc>, window_params = [{transform_indices = @transform_0, window_bounds = array<i64: 64, 32>}, {pipeline_mode = #tpu.pipeline_mode<synchronous>, transform_indices = @transform_1, window_bounds = array<i64: 32, 96>}, {pipeline_mode = #tpu.pipeline_mode<synchronous>, transform_indices = @transform_2, window_bounds = array<i64: 32, 32>}, {pipeline_mode = #tpu.pipeline_mode<synchronous>, transform_indices = @transform_3, window_bounds = array<i64: 1, 32>}, {transform_indices = @transform_4, window_bounds = array<i64: 16, 128>}]} {
    %c0 = arith.constant 0 : index
    %c0_0 = arith.constant 0 : index
    %0 = vector.load %arg1[%c0, %c0_0] : memref<64x32xf32, #tpu.memory_space<vmem>>, vector<64x32xf32>
    %1 = arith.truncf %0 : vector<64x32xf32> to vector<64x32xbf16>
    %c0_1 = arith.constant 0 : index
    %c0_2 = arith.constant 0 : index
    %2 = vector.load %arg2[%c0_1, %c0_2] : memref<32x96xbf16, #tpu.memory_space<vmem>>, vector<32x96xbf16>
    %cst = arith.constant dense<0.000000e+00> : vector<64x96xf32>
    %3 = tpu.matmul %1, %2, %cst {dimension_numbers = #tpu.dot_dimension_numbers<[1], [0], [0], [1], [0, 0, 1, 1], [], []>} : vector<64x32xbf16>, vector<32x96xbf16>, vector<64x96xf32> -> vector<64x96xf32>
    %4 = vector.shape_cast %3 : vector<64x96xf32> to vector<64x6x16xf32>
    %5 = tpu.transpose %4, [1, 0, 2] : vector<64x6x16xf32> -> vector<6x64x16xf32>
    %6 = vector.shape_cast %5 : vector<6x64x16xf32> to vector<3x16x8x16xf32>
    %7 = vector.extract_strided_slice %6 {offsets = [0, 0, 0, 0], sizes = [1, 16, 8, 16], strides = [1, 1, 1, 1]} : vector<3x16x8x16xf32> to vector<1x16x8x16xf32>
    %8 = vector.shape_cast %7 : vector<1x16x8x16xf32> to vector<16x8x16xf32>
    %9 = arith.truncf %8 : vector<16x8x16xf32> to vector<16x8x16xbf16>
    %10 = vector.extract_strided_slice %6 {offsets = [1, 0, 0, 0], sizes = [1, 16, 8, 16], strides = [1, 1, 1, 1]} : vector<3x16x8x16xf32> to vector<1x16x8x16xf32>
    %11 = vector.shape_cast %10 : vector<1x16x8x16xf32> to vector<16x8x16xf32>
    %12 = arith.truncf %11 : vector<16x8x16xf32> to vector<16x8x16xbf16>
    %13 = vector.extract_strided_slice %6 {offsets = [2, 0, 0, 0], sizes = [1, 16, 8, 16], strides = [1, 1, 1, 1]} : vector<3x16x8x16xf32> to vector<1x16x8x16xf32>
    %14 = vector.shape_cast %13 : vector<1x16x8x16xf32> to vector<16x8x16xf32>
    %15 = arith.truncf %14 : vector<16x8x16xf32> to vector<16x8x16xbf16>
    "tpu.trace_start"() <{level = 10 : i32, message = "gnd,gmd->gnm"}> : () -> ()
    %cst_3 = arith.constant dense<0.000000e+00> : vector<16x8x8xf32>
    %16 = tpu.matmul %9, %12, %cst_3 {dimension_numbers = #tpu.dot_dimension_numbers<[2], [2], [1], [1], [0, 0, 0, 1, 1, 1], [0], [0]>} : vector<16x8x16xbf16>, vector<16x8x16xbf16>, vector<16x8x8xf32> -> vector<16x8x8xf32>
    "tpu.trace_stop"() : () -> ()
    %cst_4 = arith.constant dense<0xFF800000> : vector<16x8xf32>
    %17 = vector.multi_reduction <maximumf>, %16, %cst_4 [2] : vector<16x8x8xf32> to vector<16x8xf32>
    %18 = vector.shape_cast %17 : vector<16x8xf32> to vector<16x8x1xf32>
    %19 = vector.broadcast %18 : vector<16x8x1xf32> to vector<16x8x8xf32>
    %20 = arith.subf %16, %19 : vector<16x8x8xf32>
    %21 = math.exp %20 : vector<16x8x8xf32>
    %cst_5 = arith.constant dense<0.000000e+00> : vector<16x8xf32>
    %22 = vector.multi_reduction <add>, %21, %cst_5 [2] : vector<16x8x8xf32> to vector<16x8xf32>
    %23 = vector.shape_cast %22 : vector<16x8xf32> to vector<16x8x1xf32>
    %24 = tpu.reciprocal %23 {approx = true} : vector<16x8x1xf32> -> vector<16x8x1xf32>
    %25 = vector.broadcast %24 : vector<16x8x1xf32> to vector<16x8x8xf32>
    %26 = arith.mulf %21, %25 : vector<16x8x8xf32>
    %27 = arith.truncf %26 : vector<16x8x8xf32> to vector<16x8x8xbf16>
    "tpu.trace_start"() <{level = 10 : i32, message = "gnm,gmd->gnd"}> : () -> ()
    %cst_6 = arith.constant dense<0.000000e+00> : vector<16x8x16xf32>
    %28 = tpu.matmul %27, %15, %cst_6 {dimension_numbers = #tpu.dot_dimension_numbers<[2], [1], [1], [2], [0, 0, 0, 1, 1, 2], [0], [0]>} : vector<16x8x8xbf16>, vector<16x8x16xbf16>, vector<16x8x16xf32> -> vector<16x8x16xf32>
    "tpu.trace_stop"() : () -> ()
    %29 = vector.shape_cast %28 : vector<16x8x16xf32> to vector<2x64x16xf32>
    %30 = tpu.transpose %29, [1, 0, 2] : vector<2x64x16xf32> -> vector<64x2x16xf32>
    %31 = vector.shape_cast %30 : vector<64x2x16xf32> to vector<64x32xf32>
    %32 = arith.truncf %31 : vector<64x32xf32> to vector<64x32xbf16>
    %c0_7 = arith.constant 0 : index
    %c0_8 = arith.constant 0 : index
    %33 = vector.load %arg3[%c0_7, %c0_8] : memref<32x32xbf16, #tpu.memory_space<vmem>>, vector<32x32xbf16>
    %cst_9 = arith.constant dense<0.000000e+00> : vector<64x32xf32>
    %34 = tpu.matmul %32, %33, %cst_9 {dimension_numbers = #tpu.dot_dimension_numbers<[1], [0], [0], [1], [0, 0, 1, 1], [], []>} : vector<64x32xbf16>, vector<32x32xbf16>, vector<64x32xf32> -> vector<64x32xf32>
    %c0_10 = arith.constant 0 : index
    %c0_11 = arith.constant 0 : index
    %35 = vector.load %arg4[%c0_10, %c0_11] : memref<1x32xf32, #tpu.memory_space<vmem>>, vector<1x32xf32>
    %36 = vector.broadcast %35 : vector<1x32xf32> to vector<64x32xf32>
    %37 = arith.addf %34, %36 : vector<64x32xf32>
    %38 = vector.shape_cast %37 : vector<64x32xf32> to vector<16x128xf32>
    %c0_12 = arith.constant 0 : index
    %c0_13 = arith.constant 0 : index
    %39 = vector.load %arg5[%c0_12, %c0_13] : memref<16x128xf32, #tpu.memory_space<vmem>>, vector<16x128xf32>
    tpu.vector_store %arg5[%c0_12, %c0_13], %38 {strides = array<i32>} : memref<16x128xf32, #tpu.memory_space<vmem>>, vector<16x128xf32>,
    return
  }
  func.func @transform_0(%arg0: i32) -> (i32, i32) {
    %c0_i32 = arith.constant 0 : i32
    %c0_i32_0 = arith.constant 0 : i32
    return %arg0, %c0_i32 : i32, i32
  }
  func.func @transform_1(%arg0: i32) -> (i32, i32) {
    %c0_i32 = arith.constant 0 : i32
    %c0_i32_0 = arith.constant 0 : i32
    %c0_i32_1 = arith.constant 0 : i32
    return %c0_i32, %c0_i32_0 : i32, i32
  }
  func.func @transform_2(%arg0: i32) -> (i32, i32) {
    %c0_i32 = arith.constant 0 : i32
    %c0_i32_0 = arith.constant 0 : i32
    %c0_i32_1 = arith.constant 0 : i32
    return %c0_i32, %c0_i32_0 : i32, i32
  }
  func.func @transform_3(%arg0: i32) -> (i32, i32) {
    %c0_i32 = arith.constant 0 : i32
    %c0_i32_0 = arith.constant 0 : i32
    %c0_i32_1 = arith.constant 0 : i32
    return %c0_i32, %c0_i32_0 : i32, i32
  }
  func.func @transform_4(%arg0: i32) -> (i32, i32) {
    %c0_i32 = arith.constant 0 : i32
    %c0_i32_0 = arith.constant 0 : i32
    return %arg0, %c0_i32 : i32, i32
  }
}

module attributes {stable_mosaic.version = 11 : i64} {
  func.func @_self_attention_kernel(%arg0: i32, %arg1: memref<64x32xf32, #tpu.memory_space<vmem>>, %arg2: memref<32x96xbf16, #tpu.memory_space<vmem>>, %arg3: memref<32x32xbf16, #tpu.memory_space<vmem>>, %arg4: memref<1x32xf32, #tpu.memory_space<vmem>>, %arg5: memref<64x32xf32, #tpu.memory_space<vmem>>) attributes {dimension_semantics = [#tpu.dimension_semantics<parallel>], iteration_bounds = array<i64: 1>, scalar_prefetch = 0 : i64, scratch_operands = 0 : i64, tpu.core_type = #tpu.core_type<tc>, window_params = [{transform_indices = @transform_0, window_bounds = array<i64: 64, 32>}, {pipeline_mode = #tpu.pipeline_mode<synchronous>, transform_indices = @transform_1, window_bounds = array<i64: 32, 96>}, {pipeline_mode = #tpu.pipeline_mode<synchronous>, transform_indices = @transform_2, window_bounds = array<i64: 32, 32>}, {pipeline_mode = #tpu.pipeline_mode<synchronous>, transform_indices = @transform_3, window_bounds = array<i64: 1, 32>}, {transform_indices = @transform_4, window_bounds = array<i64: 64, 32>}]} {
    %c0 = arith.constant 0 : index
    %c0_0 = arith.constant 0 : index
    %0 = vector.load %arg1[%c0, %c0_0] : memref<64x32xf32, #tpu.memory_space<vmem>>, vector<64x32xf32>
    %1 = arith.truncf %0 : vector<64x32xf32> to vector<64x32xbf16>
    %c0_1 = arith.constant 0 : index
    %c0_2 = arith.constant 0 : index
    %2 = vector.load %arg2[%c0_1, %c0_2] : memref<32x96xbf16, #tpu.memory_space<vmem>>, vector<32x96xbf16>
    %cst = arith.constant dense<0.000000e+00> : vector<64x96xf32>
    %3 = tpu.matmul %1, %2, %cst {dimension_numbers = #tpu.dot_dimension_numbers<[1], [0], [0], [1], [0, 0, 1, 1], [], []>} : vector<64x32xbf16>, vector<32x96xbf16>, vector<64x96xf32> -> vector<64x96xf32>
    %4 = vector.shape_cast %3 : vector<64x96xf32> to vector<64x6x16xf32>
    %5 = tpu.transpose %4, [1, 0, 2] : vector<64x6x16xf32> -> vector<6x64x16xf32>
    %6 = vector.shape_cast %5 : vector<6x64x16xf32> to vector<3x16x8x16xf32>
    %7 = vector.extract_strided_slice %6 {offsets = [0, 0, 0, 0], sizes = [1, 16, 8, 16], strides = [1, 1, 1, 1]} : vector<3x16x8x16xf32> to vector<1x16x8x16xf32>
    %8 = vector.shape_cast %7 : vector<1x16x8x16xf32> to vector<16x8x16xf32>
    %9 = arith.truncf %8 : vector<16x8x16xf32> to vector<16x8x16xbf16>
    %10 = vector.extract_strided_slice %6 {offsets = [1, 0, 0, 0], sizes = [1, 16, 8, 16], strides = [1, 1, 1, 1]} : vector<3x16x8x16xf32> to vector<1x16x8x16xf32>
    %11 = vector.shape_cast %10 : vector<1x16x8x16xf32> to vector<16x8x16xf32>
    %12 = arith.truncf %11 : vector<16x8x16xf32> to vector<16x8x16xbf16>
    %13 = vector.extract_strided_slice %6 {offsets = [2, 0, 0, 0], sizes = [1, 16, 8, 16], strides = [1, 1, 1, 1]} : vector<3x16x8x16xf32> to vector<1x16x8x16xf32>
    %14 = vector.shape_cast %13 : vector<1x16x8x16xf32> to vector<16x8x16xf32>
    %15 = arith.truncf %14 : vector<16x8x16xf32> to vector<16x8x16xbf16>
    "tpu.trace_start"() <{level = 10 : i32, message = "gnd,gmd->gnm"}> : () -> ()
    %cst_3 = arith.constant dense<0.000000e+00> : vector<16x8x8xf32>
    %16 = tpu.matmul %9, %12, %cst_3 {dimension_numbers = #tpu.dot_dimension_numbers<[2], [2], [1], [1], [0, 0, 0, 1, 1, 1], [0], [0]>} : vector<16x8x16xbf16>, vector<16x8x16xbf16>, vector<16x8x8xf32> -> vector<16x8x8xf32>
    "tpu.trace_stop"() : () -> ()
    %cst_4 = arith.constant dense<0xFF800000> : vector<16x8xf32>
    %17 = vector.multi_reduction <maximumf>, %16, %cst_4 [2] : vector<16x8x8xf32> to vector<16x8xf32>
    %18 = vector.shape_cast %17 : vector<16x8xf32> to vector<16x8x1xf32>
    %19 = vector.broadcast %18 : vector<16x8x1xf32> to vector<16x8x8xf32>
    %20 = arith.subf %16, %19 : vector<16x8x8xf32>
    %21 = math.exp %20 : vector<16x8x8xf32>
    %cst_5 = arith.constant dense<0.000000e+00> : vector<16x8xf32>
    %22 = vector.multi_reduction <add>, %21, %cst_5 [2] : vector<16x8x8xf32> to vector<16x8xf32>
    %23 = vector.shape_cast %22 : vector<16x8xf32> to vector<16x8x1xf32>
    %24 = tpu.reciprocal %23 {approx = true} : vector<16x8x1xf32> -> vector<16x8x1xf32>
    %25 = vector.broadcast %24 : vector<16x8x1xf32> to vector<16x8x8xf32>
    %26 = arith.mulf %21, %25 : vector<16x8x8xf32>
    %27 = arith.truncf %26 : vector<16x8x8xf32> to vector<16x8x8xbf16>
    "tpu.trace_start"() <{level = 10 : i32, message = "gnm,gmd->gnd"}> : () -> ()
    %cst_6 = arith.constant dense<0.000000e+00> : vector<16x8x16xf32>
    %28 = tpu.matmul %27, %15, %cst_6 {dimension_numbers = #tpu.dot_dimension_numbers<[2], [1], [1], [2], [0, 0, 0, 1, 1, 2], [0], [0]>} : vector<16x8x8xbf16>, vector<16x8x16xbf16>, vector<16x8x16xf32> -> vector<16x8x16xf32>
    "tpu.trace_stop"() : () -> ()
    %29 = vector.shape_cast %28 : vector<16x8x16xf32> to vector<2x64x16xf32>
    %30 = tpu.transpose %29, [1, 0, 2] : vector<2x64x16xf32> -> vector<64x2x16xf32>
    %31 = vector.shape_cast %30 : vector<64x2x16xf32> to vector<64x32xf32>
    %32 = arith.truncf %31 : vector<64x32xf32> to vector<64x32xbf16>
    %c0_7 = arith.constant 0 : index
    %c0_8 = arith.constant 0 : index
    %33 = vector.load %arg3[%c0_7, %c0_8] : memref<32x32xbf16, #tpu.memory_space<vmem>>, vector<32x32xbf16>
    %cst_9 = arith.constant dense<0.000000e+00> : vector<64x32xf32>
    %34 = tpu.matmul %32, %33, %cst_9 {dimension_numbers = #tpu.dot_dimension_numbers<[1], [0], [0], [1], [0, 0, 1, 1], [], []>} : vector<64x32xbf16>, vector<32x32xbf16>, vector<64x32xf32> -> vector<64x32xf32>
    %c0_10 = arith.constant 0 : index
    %c0_11 = arith.constant 0 : index
    %35 = vector.load %arg4[%c0_10, %c0_11] : memref<1x32xf32, #tpu.memory_space<vmem>>, vector<1x32xf32>
    %36 = vector.broadcast %35 : vector<1x32xf32> to vector<64x32xf32>
    %37 = arith.addf %34, %36 : vector<64x32xf32>
    %c0_12 = arith.constant 0 : index
    %c0_13 = arith.constant 0 : index
    %38 = vector.load %arg5[%c0_12, %c0_13] : memref<64x32xf32, #tpu.memory_space<vmem>>, vector<64x32xf32>
    tpu.vector_store %arg5[%c0_12, %c0_13], %37 {strides = array<i32>} : memref<64x32xf32, #tpu.memory_space<vmem>>, vector<64x32xf32>,
    return
  }
  func.func @transform_0(%arg0: i32) -> (i32, i32) {
    %c0_i32 = arith.constant 0 : i32
    %c0_i32_0 = arith.constant 0 : i32
    return %arg0, %c0_i32 : i32, i32
  }
  func.func @transform_1(%arg0: i32) -> (i32, i32) {
    %c0_i32 = arith.constant 0 : i32
    %c0_i32_0 = arith.constant 0 : i32
    %c0_i32_1 = arith.constant 0 : i32
    return %c0_i32, %c0_i32_0 : i32, i32
  }
  func.func @transform_2(%arg0: i32) -> (i32, i32) {
    %c0_i32 = arith.constant 0 : i32
    %c0_i32_0 = arith.constant 0 : i32
    %c0_i32_1 = arith.constant 0 : i32
    return %c0_i32, %c0_i32_0 : i32, i32
  }
  func.func @transform_3(%arg0: i32) -> (i32, i32) {
    %c0_i32 = arith.constant 0 : i32
    %c0_i32_0 = arith.constant 0 : i32
    %c0_i32_1 = arith.constant 0 : i32
    return %c0_i32, %c0_i32_0 : i32, i32
  }
  func.func @transform_4(%arg0: i32) -> (i32, i32) {
    %c0_i32 = arith.constant 0 : i32
    %c0_i32_0 = arith.constant 0 : i32
    return %arg0, %c0_i32 : i32, i32
  }
}

module attributes {stable_mosaic.version = 11 : i64} {
  func.func @_self_attention_kernel(%arg0: i32, %arg1: memref<64x32xf32, #tpu.memory_space<vmem>>, %arg2: memref<32x96xbf16, #tpu.memory_space<vmem>>, %arg3: memref<2x16x32xbf16, #tpu.memory_space<vmem>>, %arg4: memref<1x32xf32, #tpu.memory_space<vmem>>, %arg5: memref<64x32xf32, #tpu.memory_space<vmem>>) attributes {dimension_semantics = [#tpu.dimension_semantics<parallel>], iteration_bounds = array<i64: 1>, scalar_prefetch = 0 : i64, scratch_operands = 0 : i64, tpu.core_type = #tpu.core_type<tc>, window_params = [{transform_indices = @transform_0, window_bounds = array<i64: 64, 32>}, {pipeline_mode = #tpu.pipeline_mode<synchronous>, transform_indices = @transform_1, window_bounds = array<i64: 32, 96>}, {pipeline_mode = #tpu.pipeline_mode<synchronous>, transform_indices = @transform_2, window_bounds = array<i64: 2, 16, 32>}, {pipeline_mode = #tpu.pipeline_mode<synchronous>, transform_indices = @transform_3, window_bounds = array<i64: 1, 32>}, {transform_indices = @transform_4, window_bounds = array<i64: 64, 32>}]} {
    %c0 = arith.constant 0 : index
    %c0_0 = arith.constant 0 : index
    %0 = vector.load %arg1[%c0, %c0_0] : memref<64x32xf32, #tpu.memory_space<vmem>>, vector<64x32xf32>
    %1 = arith.truncf %0 : vector<64x32xf32> to vector<64x32xbf16>
    %c0_1 = arith.constant 0 : index
    %c0_2 = arith.constant 0 : index
    %2 = vector.load %arg2[%c0_1, %c0_2] : memref<32x96xbf16, #tpu.memory_space<vmem>>, vector<32x96xbf16>
    %cst = arith.constant dense<0.000000e+00> : vector<64x96xf32>
    %3 = tpu.matmul %1, %2, %cst {dimension_numbers = #tpu.dot_dimension_numbers<[1], [0], [0], [1], [0, 0, 1, 1], [], []>} : vector<64x32xbf16>, vector<32x96xbf16>, vector<64x96xf32> -> vector<64x96xf32>
    %4 = vector.extract_strided_slice %3 {offsets = [0, 0], sizes = [64, 16], strides = [1, 1]} : vector<64x96xf32> to vector<64x16xf32>
    %5 = vector.extract_strided_slice %3 {offsets = [0, 16], sizes = [64, 16], strides = [1, 1]} : vector<64x96xf32> to vector<64x16xf32>
    %6 = vector.shape_cast %4 : vector<64x16xf32> to vector<1x64x16xf32>
    %7 = vector.shape_cast %5 : vector<64x16xf32> to vector<1x64x16xf32>
    %8 = tpu.concatenate %6, %7 in 0 : vector<1x64x16xf32>, vector<1x64x16xf32> -> vector<2x64x16xf32>
    %9 = vector.shape_cast %8 : vector<2x64x16xf32> to vector<16x8x16xf32>
    %10 = arith.truncf %9 : vector<16x8x16xf32> to vector<16x8x16xbf16>
    %11 = vector.extract_strided_slice %3 {offsets = [0, 32], sizes = [64, 16], strides = [1, 1]} : vector<64x96xf32> to vector<64x16xf32>
    %12 = vector.extract_strided_slice %3 {offsets = [0, 48], sizes = [64, 16], strides = [1, 1]} : vector<64x96xf32> to vector<64x16xf32>
    %13 = vector.shape_cast %11 : vector<64x16xf32> to vector<1x64x16xf32>
    %14 = vector.shape_cast %12 : vector<64x16xf32> to vector<1x64x16xf32>
    %15 = tpu.concatenate %13, %14 in 0 : vector<1x64x16xf32>, vector<1x64x16xf32> -> vector<2x64x16xf32>
    %16 = vector.shape_cast %15 : vector<2x64x16xf32> to vector<16x8x16xf32>
    %17 = arith.truncf %16 : vector<16x8x16xf32> to vector<16x8x16xbf16>
    %18 = vector.extract_strided_slice %3 {offsets = [0, 64], sizes = [64, 16], strides = [1, 1]} : vector<64x96xf32> to vector<64x16xf32>
    %19 = vector.extract_strided_slice %3 {offsets = [0, 80], sizes = [64, 16], strides = [1, 1]} : vector<64x96xf32> to vector<64x16xf32>
    %20 = vector.shape_cast %18 : vector<64x16xf32> to vector<1x64x16xf32>
    %21 = vector.shape_cast %19 : vector<64x16xf32> to vector<1x64x16xf32>
    %22 = tpu.concatenate %20, %21 in 0 : vector<1x64x16xf32>, vector<1x64x16xf32> -> vector<2x64x16xf32>
    %23 = vector.shape_cast %22 : vector<2x64x16xf32> to vector<16x8x16xf32>
    %24 = arith.truncf %23 : vector<16x8x16xf32> to vector<16x8x16xbf16>
    "tpu.trace_start"() <{level = 10 : i32, message = "gnd,gmd->gnm"}> : () -> ()
    %cst_3 = arith.constant dense<0.000000e+00> : vector<16x8x8xf32>
    %25 = tpu.matmul %10, %17, %cst_3 {dimension_numbers = #tpu.dot_dimension_numbers<[2], [2], [1], [1], [0, 0, 0, 1, 1, 1], [0], [0]>} : vector<16x8x16xbf16>, vector<16x8x16xbf16>, vector<16x8x8xf32> -> vector<16x8x8xf32>
    "tpu.trace_stop"() : () -> ()
    %cst_4 = arith.constant dense<0xFF800000> : vector<16x8xf32>
    %26 = vector.multi_reduction <maximumf>, %25, %cst_4 [2] : vector<16x8x8xf32> to vector<16x8xf32>
    %27 = vector.shape_cast %26 : vector<16x8xf32> to vector<16x8x1xf32>
    %28 = vector.broadcast %27 : vector<16x8x1xf32> to vector<16x8x8xf32>
    %29 = arith.subf %25, %28 : vector<16x8x8xf32>
    %30 = math.exp %29 : vector<16x8x8xf32>
    %cst_5 = arith.constant dense<0.000000e+00> : vector<16x8xf32>
    %31 = vector.multi_reduction <add>, %30, %cst_5 [2] : vector<16x8x8xf32> to vector<16x8xf32>
    %32 = vector.shape_cast %31 : vector<16x8xf32> to vector<16x8x1xf32>
    %33 = tpu.reciprocal %32 {approx = true} : vector<16x8x1xf32> -> vector<16x8x1xf32>
    %34 = vector.broadcast %33 : vector<16x8x1xf32> to vector<16x8x8xf32>
    %35 = arith.mulf %30, %34 : vector<16x8x8xf32>
    %36 = arith.truncf %35 : vector<16x8x8xf32> to vector<16x8x8xbf16>
    "tpu.trace_start"() <{level = 10 : i32, message = "gnm,gmd->gnd"}> : () -> ()
    %cst_6 = arith.constant dense<0.000000e+00> : vector<16x8x16xf32>
    %37 = tpu.matmul %36, %24, %cst_6 {dimension_numbers = #tpu.dot_dimension_numbers<[2], [1], [1], [2], [0, 0, 0, 1, 1, 2], [0], [0]>} : vector<16x8x8xbf16>, vector<16x8x16xbf16>, vector<16x8x16xf32> -> vector<16x8x16xf32>
    "tpu.trace_stop"() : () -> ()
    %38 = vector.shape_cast %37 : vector<16x8x16xf32> to vector<2x64x16xf32>
    %39 = arith.truncf %38 : vector<2x64x16xf32> to vector<2x64x16xbf16>
    %c0_7 = arith.constant 0 : index
    %c0_8 = arith.constant 0 : index
    %c0_9 = arith.constant 0 : index
    %40 = vector.load %arg3[%c0_7, %c0_8, %c0_9] : memref<2x16x32xbf16, #tpu.memory_space<vmem>>, vector<2x16x32xbf16>
    "tpu.trace_start"() <{level = 10 : i32, message = "hrd,hde->hre"}> : () -> ()
    %cst_10 = arith.constant dense<0.000000e+00> : vector<2x64x32xf32>
    %41 = tpu.matmul %39, %40, %cst_10 {dimension_numbers = #tpu.dot_dimension_numbers<[2], [1], [1], [2], [0, 0, 0, 1, 1, 2], [0], [0]>} : vector<2x64x16xbf16>, vector<2x16x32xbf16>, vector<2x64x32xf32> -> vector<2x64x32xf32>
    "tpu.trace_stop"() : () -> ()
    %cst_11 = arith.constant dense<0.000000e+00> : vector<64x32xf32>
    %42 = vector.multi_reduction <add>, %41, %cst_11 [0] : vector<2x64x32xf32> to vector<64x32xf32>
    %c0_12 = arith.constant 0 : index
    %c0_13 = arith.constant 0 : index
    %43 = vector.load %arg4[%c0_12, %c0_13] : memref<1x32xf32, #tpu.memory_space<vmem>>, vector<1x32xf32>
    %44 = vector.broadcast %43 : vector<1x32xf32> to vector<64x32xf32>
    %45 = arith.addf %42, %44 : vector<64x32xf32>
    %c0_14 = arith.constant 0 : index
    %c0_15 = arith.constant 0 : index
    %46 = vector.load %arg5[%c0_14, %c0_15] : memref<64x32xf32, #tpu.memory_space<vmem>>, vector<64x32xf32>
    tpu.vector_store %arg5[%c0_14, %c0_15], %45 {strides = array<i32>} : memref<64x32xf32, #tpu.memory_space<vmem>>, vector<64x32xf32>,
    return
  }
  func.func @transform_0(%arg0: i32) -> (i32, i32) {
    %c0_i32 = arith.constant 0 : i32
    %c0_i32_0 = arith.constant 0 : i32
    return %arg0, %c0_i32 : i32, i32
  }
  func.func @transform_1(%arg0: i32) -> (i32, i32) {
    %c0_i32 = arith.constant 0 : i32
    %c0_i32_0 = arith.constant 0 : i32
    %c0_i32_1 = arith.constant 0 : i32
    return %c0_i32, %c0_i32_0 : i32, i32
  }
  func.func @transform_2(%arg0: i32) -> (i32, i32, i32) {
    %c0_i32 = arith.constant 0 : i32
    %c0_i32_0 = arith.constant 0 : i32
    %c0_i32_1 = arith.constant 0 : i32
    %c0_i32_2 = arith.constant 0 : i32
    return %c0_i32, %c0_i32_0, %c0_i32_1 : i32, i32, i32
  }
  func.func @transform_3(%arg0: i32) -> (i32, i32) {
    %c0_i32 = arith.constant 0 : i32
    %c0_i32_0 = arith.constant 0 : i32
    %c0_i32_1 = arith.constant 0 : i32
    return %c0_i32, %c0_i32_0 : i32, i32
  }
  func.func @transform_4(%arg0: i32) -> (i32, i32) {
    %c0_i32 = arith.constant 0 : i32
    %c0_i32_0 = arith.constant 0 : i32
    return %arg0, %c0_i32 : i32, i32
  }
}

</mosaic_0001>

<llo_original>
// kernel: tpu_custom_call.1
$region0: #{tpu_custom_call.1}
  #allocation0 [shape = 'u32[]', space=smem, size = 0x4, offset = 0x4, fixed_abs, tag = 'smem constant byte address 0x4 - core index']
  #allocation1 [shape = 'u32[144,128]{1,0:T(1,128)}', space=vmem, size = 0x12000, scoped, tag = 'internal scratch']
  %s0 = inlined_call_operand.vmem [shape: f32[64,32], index: 0, kind: input, shape index: {}]
  %s1 = inlined_call_operand.vmem [shape: bf16[32,96], index: 1, kind: input, shape index: {}]
  %s2 = inlined_call_operand.vmem [shape: bf16[32,32], index: 2, kind: input, shape index: {}]
  %s3 = inlined_call_operand.vmem [shape: f32[1,32], index: 3, kind: input, shape index: {}]
  %s4 = inlined_call_operand.vmem [shape: f32[64,32], index: 4, kind: output, shape index: {}]
  %s5 = sld [smem:[#allocation0]]
  $region26: #{tpu_custom_call.1} parent=0
    _
  %s7 = ssub.s32 1, %s5
  %s8 = scalar_select 0, %s7, %s5
  // Predicated region
  $region2: #{tpu_custom_call.1} parent=0 // pred_check
    _
  $region3: #{tpu_custom_call.1} parent=0 // pred_check_branch
    %10 = sbr.rel (0) target = $region5
  $region4: #{tpu_custom_call.1} parent=0 // pred_region
    _
  $region5: #{tpu_custom_call.1} parent=0 // pred_fallthru
    _
  // Predicated region
  $region6: #{tpu_custom_call.1} parent=0 // pred_check
    _
  $region7: #{tpu_custom_call.1} parent=0 // pred_check_branch
    %12 = sbr.rel (0) target = $region9
  $region8: #{tpu_custom_call.1} parent=0 // pred_region
    _
  $region9: #{tpu_custom_call.1} parent=0 // pred_fallthru
    _
  // Predicated region
  $region10: #{tpu_custom_call.1} parent=0 // pred_check
    _
  $region11: #{tpu_custom_call.1} parent=0 // pred_check_branch
    %14 = sbr.rel (0) target = $region13
  $region12: #{tpu_custom_call.1} parent=0 // pred_region
    _
  $region13: #{tpu_custom_call.1} parent=0 // pred_fallthru
    _
  // Predicated region
  $region14: #{tpu_custom_call.1} parent=0 // pred_check
    _
  $region15: #{tpu_custom_call.1} parent=0 // pred_check_branch
    %16 = sbr.rel (0) target = $region17
  $region16: #{tpu_custom_call.1} parent=0 // pred_region
    _
  $region17: #{tpu_custom_call.1} parent=0 // pred_fallthru
    _
  %v18 = vld [vmem:[%s0] sm:$0xff]
  %v19 = vld [vmem:[%s0 + $0x8] sm:$0xff]
  %v20 = vld [vmem:[%s0 + $0x10] sm:$0xff]
  %v21 = vld [vmem:[%s0 + $0x18] sm:$0xff]
  %v22 = vld [vmem:[%s0 + $0x20] sm:$0xff]
  %v23 = vld [vmem:[%s0 + $0x28] sm:$0xff]
  %v24 = vld [vmem:[%s0 + $0x30] sm:$0xff]
  %v25 = vld [vmem:[%s0 + $0x38] sm:$0xff]
  %v26 = vpack.c.bf16 %v19, %v18
  %v27 = vpack.c.bf16 %v21, %v20
  %v28 = vpack.c.bf16 %v23, %v22
  %v29 = vpack.c.bf16 %v25, %v24
  %v30 = vld [vmem:[%s1] sm:$0xf]
  %v31 = vld [vmem:[%s1 + $0x4] sm:$0xf]
  %v32 = vld [vmem:[%s1 + $0x8] sm:$0xf]
  %v33 = vld [vmem:[%s1 + $0xc] sm:$0xf]
  %v38 = vunpack.c.l.b16 %v30
  %v39 = vunpack.c.l.b16 %v31
  %v40 = vunpack.c.l.b16 %v32
  %v41 = vunpack.c.l.b16 %v33
  %v42 = vpack.c.b16 %v39, %v38
  %v43 = vpack.c.b16 %v41, %v40
  %vm46 = vcmask 261120
  %v48 = vsel %vm46, %v26, 0
  %v51 = vsel %vm46, %v27, 0
  %v54 = vsel %vm46, %v28, 0
  %v57 = vsel %vm46, %v29, 0
  %59 = vmatprep.subr.bf16.mxu0 0
  %60 = vmatpush1.bf16.msra.mxu0 %v42
  %61 = vmatprep.subr.bf16.mxu0 0
  %62 = vmatpush1.bf16.msra.mxu0 %v43
  %63 = vmatprep.subr.bf16.mxu0 0
  %64 = vmatpush1.bf16.msra.mxu0 0
  %65 = vmatprep.subr.bf16.mxu0 0
  %66 = vmatpush1.bf16.msra.mxu0 0
  %67 = vmatprep.subr.bf16.mxu0 0
  %68 = vmatpush1.bf16.msra.mxu0 0
  %69 = vmatprep.subr.bf16.mxu0 0
  %70 = vmatpush1.bf16.msra.mxu0 0
  %71 = vmatprep.subr.bf16.mxu0 0
  %72 = vmatpush1.bf16.msra.mxu0 0
  %73 = vmatprep.subr.bf16.mxu0 0
  %74 = vmatpush1.bf16.msra.mxu0 0
  %75 = vmatprep.subr.bf16.mxu0 0
  %76 = vmatpush1.bf16.msra.mxu0 0
  %77 = vmatprep.subr.bf16.mxu0 0
  %78 = vmatpush1.bf16.msra.mxu0 0
  %79 = vmatprep.subr.bf16.mxu0 0
  %80 = vmatpush1.bf16.msra.mxu0 0
  %81 = vmatprep.subr.bf16.mxu0 0
  %82 = vmatpush1.bf16.msra.mxu0 0
  %83 = vmatprep.subr.bf16.mxu0 0
  %84 = vmatpush1.bf16.msra.mxu0 0
  %85 = vmatprep.subr.bf16.mxu0 0
  %86 = vmatpush1.bf16.msra.mxu0 0
  %87 = vmatprep.subr.bf16.mxu0 0
  %88 = vmatpush1.bf16.msra.mxu0 0
  %89 = vmatprep.subr.bf16.mxu0 0
  %90 = vmatpush1.bf16.msra.mxu0 0
  %91 = vmatprep.mubr.bf16.mxu0 0
  %92 = vmatmul.mubr.bf16.gmra.mrb[0].mxu0 %v48
  %v93 = vpop.f32.mrb[0].mxu0
  %v94 = vadd.f32 0.0, %v93
  %v95 = vpop.f32.mrb[0].mxu0
  %v96 = vpop.f32.mrb[0].mxu0
  %v97 = vadd.f32 0.0, %v96
  %v98 = vpop.f32.mrb[0].mxu0
  %99 = vmatprep.mubr.bf16.mxu0 0
  %100 = vmatmul.mubr.bf16.gmra.mrb[0].mxu0 %v51
  %v101 = vpop.f32.mrb[0].mxu0
  %v102 = vadd.f32 0.0, %v101
  %v103 = vpop.f32.mrb[0].mxu0
  %v104 = vpop.f32.mrb[0].mxu0
  %v105 = vadd.f32 0.0, %v104
  %v106 = vpop.f32.mrb[0].mxu0
  %107 = vmatprep.mubr.bf16.mxu0 0
  %108 = vmatmul.mubr.bf16.gmra.mrb[0].mxu0 %v54
  %v109 = vpop.f32.mrb[0].mxu0
  %v110 = vadd.f32 0.0, %v109
  %v111 = vpop.f32.mrb[0].mxu0
  %v112 = vpop.f32.mrb[0].mxu0
  %v113 = vadd.f32 0.0, %v112
  %v114 = vpop.f32.mrb[0].mxu0
  %115 = vmatprep.mubr.bf16.mxu0 0
  %116 = vmatmul.mubr.bf16.gmra.mrb[0].mxu0 %v57
  %v117 = vpop.f32.mrb[0].mxu0
  %v118 = vadd.f32 0.0, %v117
  %v119 = vpop.f32.mrb[0].mxu0
  %v120 = vpop.f32.mrb[0].mxu0
  %v121 = vadd.f32 0.0, %v120
  %v122 = vpop.f32.mrb[0].mxu0
  %123 = vdwg.mxu0
  %132 = vrot.lane.b32.xlu0 %v94, 112
  %v133 = vpop.permute.xlu0 %132
  %134 = vrot.lane.b32.xlu0 %v97, 112
  %v135 = vpop.permute.xlu0 %134
  %136 = vrot.lane.b32.xlu0 %v102, 112
  %v137 = vpop.permute.xlu0 %136
  %138 = vrot.lane.b32.xlu0 %v105, 112
  %v139 = vpop.permute.xlu0 %138
  %140 = vrot.lane.b32.xlu0 %v110, 112
  %v141 = vpop.permute.xlu0 %140
  %142 = vrot.lane.b32.xlu0 %v113, 112
  %v143 = vpop.permute.xlu0 %142
  %144 = vrot.lane.b32.xlu0 %v118, 112
  %v145 = vpop.permute.xlu0 %144
  %146 = vrot.lane.b32.xlu0 %v121, 112
  %v147 = vpop.permute.xlu0 %146
  %156 = vrot.lane.b32.xlu0 %v94, 96
  %v157 = vpop.permute.xlu0 %156
  %158 = vrot.lane.b32.xlu0 %v97, 96
  %v159 = vpop.permute.xlu0 %158
  %160 = vrot.lane.b32.xlu0 %v102, 96
  %v161 = vpop.permute.xlu0 %160
  %162 = vrot.lane.b32.xlu0 %v105, 96
  %v163 = vpop.permute.xlu0 %162
  %164 = vrot.lane.b32.xlu0 %v110, 96
  %v165 = vpop.permute.xlu0 %164
  %166 = vrot.lane.b32.xlu0 %v113, 96
  %v167 = vpop.permute.xlu0 %166
  %168 = vrot.lane.b32.xlu0 %v118, 96
  %v169 = vpop.permute.xlu0 %168
  %170 = vrot.lane.b32.xlu0 %v121, 96
  %v171 = vpop.permute.xlu0 %170
  %180 = vrot.lane.b32.xlu0 %v94, 80
  %v181 = vpop.permute.xlu0 %180
  %182 = vrot.lane.b32.xlu0 %v97, 80
  %v183 = vpop.permute.xlu0 %182
  %184 = vrot.lane.b32.xlu0 %v102, 80
  %v185 = vpop.permute.xlu0 %184
  %186 = vrot.lane.b32.xlu0 %v105, 80
  %v187 = vpop.permute.xlu0 %186
  %188 = vrot.lane.b32.xlu0 %v110, 80
  %v189 = vpop.permute.xlu0 %188
  %190 = vrot.lane.b32.xlu0 %v113, 80
  %v191 = vpop.permute.xlu0 %190
  %192 = vrot.lane.b32.xlu0 %v118, 80
  %v193 = vpop.permute.xlu0 %192
  %194 = vrot.lane.b32.xlu0 %v121, 80
  %v195 = vpop.permute.xlu0 %194
  %204 = vrot.lane.b32.xlu0 %v94, 64
  %v205 = vpop.permute.xlu0 %204
  %206 = vrot.lane.b32.xlu0 %v97, 64
  %v207 = vpop.permute.xlu0 %206
  %208 = vrot.lane.b32.xlu0 %v102, 64
  %v209 = vpop.permute.xlu0 %208
  %210 = vrot.lane.b32.xlu0 %v105, 64
  %v211 = vpop.permute.xlu0 %210
  %212 = vrot.lane.b32.xlu0 %v110, 64
  %v213 = vpop.permute.xlu0 %212
  %214 = vrot.lane.b32.xlu0 %v113, 64
  %v215 = vpop.permute.xlu0 %214
  %216 = vrot.lane.b32.xlu0 %v118, 64
  %v217 = vpop.permute.xlu0 %216
  %218 = vrot.lane.b32.xlu0 %v121, 64
  %v219 = vpop.permute.xlu0 %218
  %228 = vrot.lane.b32.xlu0 %v94, 48
  %v229 = vpop.permute.xlu0 %228
  %230 = vrot.lane.b32.xlu0 %v97, 48
  %v231 = vpop.permute.xlu0 %230
  %232 = vrot.lane.b32.xlu0 %v102, 48
  %v233 = vpop.permute.xlu0 %232
  %234 = vrot.lane.b32.xlu0 %v105, 48
  %v235 = vpop.permute.xlu0 %234
  %236 = vrot.lane.b32.xlu0 %v110, 48
  %v237 = vpop.permute.xlu0 %236
  %238 = vrot.lane.b32.xlu0 %v113, 48
  %v239 = vpop.permute.xlu0 %238
  %240 = vrot.lane.b32.xlu0 %v118, 48
  %v241 = vpop.permute.xlu0 %240
  %242 = vrot.lane.b32.xlu0 %v121, 48
  %v243 = vpop.permute.xlu0 %242
  %v252 = vcombine.low %v94, %v157
  %v253 = vcombine.high %v94, %v157
  %v255 = vunpack.c.l.s4 1983009808
  %v256 = vunpack.c.0.s8 %v255
  %v257 = vlaneseq
  %v258 = vshrl.u32 %v257, 7
  %v259 = vsub.s32 %v256, %v258
  %v260 = vrot.slane %v252, %v259
  %v262 = vunpack.c.l.s4 1983009808
  %v263 = vunpack.c.0.s8 %v262
  %v264 = vlaneseq
  %v265 = vshrl.u32 %v264, 7
  %v266 = vsub.s32 %v263, %v265
  %v267 = vrot.slane %v253, %v266
  %v268 = vcombine.low %v133, %v181
  %v269 = vcombine.high %v133, %v181
  %v271 = vunpack.c.l.s4 1983009808
  %v272 = vunpack.c.0.s8 %v271
  %v273 = vlaneseq
  %v274 = vshrl.u32 %v273, 7
  %v275 = vsub.s32 %v272, %v274
  %v276 = vrot.slane %v268, %v275
  %v278 = vunpack.c.l.s4 1983009808
  %v279 = vunpack.c.0.s8 %v278
  %v280 = vlaneseq
  %v281 = vshrl.u32 %v280, 7
  %v282 = vsub.s32 %v279, %v281
  %v283 = vrot.slane %v269, %v282
  %v284 = vcombine.high %v205, 0.0
  %v286 = vunpack.c.l.s4 1983009808
  %v287 = vunpack.c.0.s8 %v286
  %v288 = vlaneseq
  %v289 = vshrl.u32 %v288, 7
  %v290 = vsub.s32 %v287, %v289
  %v291 = vrot.slane %v205, %v290
  %v293 = vunpack.c.l.s4 1983009808
  %v294 = vunpack.c.0.s8 %v293
  %v295 = vlaneseq
  %v296 = vshrl.u32 %v295, 7
  %v297 = vsub.s32 %v294, %v296
  %v298 = vrot.slane %v284, %v297
  %v299 = vcombine.high %v229, 0.0
  %v301 = vunpack.c.l.s4 1983009808
  %v302 = vunpack.c.0.s8 %v301
  %v303 = vlaneseq
  %v304 = vshrl.u32 %v303, 7
  %v305 = vsub.s32 %v302, %v304
  %v306 = vrot.slane %v229, %v305
  %v308 = vunpack.c.l.s4 1983009808
  %v309 = vunpack.c.0.s8 %v308
  %v310 = vlaneseq
  %v311 = vshrl.u32 %v310, 7
  %v312 = vsub.s32 %v309, %v311
  %v313 = vrot.slane %v299, %v312
  %v314 = vcombine.low %v260, %v276
  %v315 = vcombine.high %v260, %v276
  %v317 = vunpack.c.l.s4 1934713408
  %v318 = vunpack.c.0.s8 %v317
  %v319 = vlaneseq
  %v320 = vshrl.u32 %v319, 7
  %v321 = vsub.s32 %v318, %v320
  %v322 = vrot.slane %v314, %v321
  %v324 = vunpack.c.l.s4 1934713408
  %v325 = vunpack.c.0.s8 %v324
  %v326 = vlaneseq
  %v327 = vshrl.u32 %v326, 7
  %v328 = vsub.s32 %v325, %v327
  %v329 = vrot.slane %v315, %v328
  %v330 = vcombine.low %v267, %v283
  %v331 = vcombine.high %v267, %v283
  %v333 = vunpack.c.l.s4 1934713408
  %v334 = vunpack.c.0.s8 %v333
  %v335 = vlaneseq
  %v336 = vshrl.u32 %v335, 7
  %v337 = vsub.s32 %v334, %v336
  %v338 = vrot.slane %v330, %v337
  %v340 = vunpack.c.l.s4 1934713408
  %v341 = vunpack.c.0.s8 %v340
  %v342 = vlaneseq
  %v343 = vshrl.u32 %v342, 7
  %v344 = vsub.s32 %v341, %v343
  %v345 = vrot.slane %v331, %v344
  %v346 = vcombine.low %v291, %v306
  %v347 = vcombine.high %v291, %v306
  %v349 = vunpack.c.l.s4 1934713408
  %v350 = vunpack.c.0.s8 %v349
  %v351 = vlaneseq
  %v352 = vshrl.u32 %v351, 7
  %v353 = vsub.s32 %v350, %v352
  %v354 = vrot.slane %v346, %v353
  %v356 = vunpack.c.l.s4 1934713408
  %v357 = vunpack.c.0.s8 %v356
  %v358 = vlaneseq
  %v359 = vshrl.u32 %v358, 7
  %v360 = vsub.s32 %v357, %v359
  %v361 = vrot.slane %v347, %v360
  %v362 = vcombine.low %v298, %v313
  %v363 = vcombine.high %v298, %v313
  %v365 = vunpack.c.l.s4 1934713408
  %v366 = vunpack.c.0.s8 %v365
  %v367 = vlaneseq
  %v368 = vshrl.u32 %v367, 7
  %v369 = vsub.s32 %v366, %v368
  %v370 = vrot.slane %v362, %v369
  %v372 = vunpack.c.l.s4 1934713408
  %v373 = vunpack.c.0.s8 %v372
  %v374 = vlaneseq
  %v375 = vshrl.u32 %v374, 7
  %v376 = vsub.s32 %v373, %v375
  %v377 = vrot.slane %v363, %v376
  %v378 = vcombine.low %v322, %v354
  %v379 = vcombine.high %v322, %v354
  %v380 = vcombine.low %v329, %v361
  %v381 = vcombine.high %v329, %v361
  %v382 = vcombine.low %v338, %v370
  %v383 = vcombine.high %v338, %v370
  %v384 = vcombine.low %v345, %v377
  %v385 = vcombine.high %v345, %v377
  %v386 = vcombine.low %v97, %v159
  %v387 = vcombine.high %v97, %v159
  %v389 = vunpack.c.l.s4 1983009808
  %v390 = vunpack.c.0.s8 %v389
  %v391 = vlaneseq
  %v392 = vshrl.u32 %v391, 7
  %v393 = vsub.s32 %v390, %v392
  %v394 = vrot.slane %v386, %v393
  %v396 = vunpack.c.l.s4 1983009808
  %v397 = vunpack.c.0.s8 %v396
  %v398 = vlaneseq
  %v399 = vshrl.u32 %v398, 7
  %v400 = vsub.s32 %v397, %v399
  %v401 = vrot.slane %v387, %v400
  %v402 = vcombine.low %v135, %v183
  %v403 = vcombine.high %v135, %v183
  %v405 = vunpack.c.l.s4 1983009808
  %v406 = vunpack.c.0.s8 %v405
  %v407 = vlaneseq
  %v408 = vshrl.u32 %v407, 7
  %v409 = vsub.s32 %v406, %v408
  %v410 = vrot.slane %v402, %v409
  %v412 = vunpack.c.l.s4 1983009808
  %v413 = vunpack.c.0.s8 %v412
  %v414 = vlaneseq
  %v415 = vshrl.u32 %v414, 7
  %v416 = vsub.s32 %v413, %v415
  %v417 = vrot.slane %v403, %v416
  %v418 = vcombine.high %v207, 0.0
  %v420 = vunpack.c.l.s4 1983009808
  %v421 = vunpack.c.0.s8 %v420
  %v422 = vlaneseq
  %v423 = vshrl.u32 %v422, 7
  %v424 = vsub.s32 %v421, %v423
  %v425 = vrot.slane %v207, %v424
  %v427 = vunpack.c.l.s4 1983009808
  %v428 = vunpack.c.0.s8 %v427
  %v429 = vlaneseq
  %v430 = vshrl.u32 %v429, 7
  %v431 = vsub.s32 %v428, %v430
  %v432 = vrot.slane %v418, %v431
  %v433 = vcombine.high %v231, 0.0
  %v435 = vunpack.c.l.s4 1983009808
  %v436 = vunpack.c.0.s8 %v435
  %v437 = vlaneseq
  %v438 = vshrl.u32 %v437, 7
  %v439 = vsub.s32 %v436, %v438
  %v440 = vrot.slane %v231, %v439
  %v442 = vunpack.c.l.s4 1983009808
  %v443 = vunpack.c.0.s8 %v442
  %v444 = vlaneseq
  %v445 = vshrl.u32 %v444, 7
  %v446 = vsub.s32 %v443, %v445
  %v447 = vrot.slane %v433, %v446
  %v448 = vcombine.low %v394, %v410
  %v449 = vcombine.high %v394, %v410
  %v451 = vunpack.c.l.s4 1934713408
  %v452 = vunpack.c.0.s8 %v451
  %v453 = vlaneseq
  %v454 = vshrl.u32 %v453, 7
  %v455 = vsub.s32 %v452, %v454
  %v456 = vrot.slane %v448, %v455
  %v458 = vunpack.c.l.s4 1934713408
  %v459 = vunpack.c.0.s8 %v458
  %v460 = vlaneseq
  %v461 = vshrl.u32 %v460, 7
  %v462 = vsub.s32 %v459, %v461
  %v463 = vrot.slane %v449, %v462
  %v464 = vcombine.low %v401, %v417
  %v465 = vcombine.high %v401, %v417
  %v467 = vunpack.c.l.s4 1934713408
  %v468 = vunpack.c.0.s8 %v467
  %v469 = vlaneseq
  %v470 = vshrl.u32 %v469, 7
  %v471 = vsub.s32 %v468, %v470
  %v472 = vrot.slane %v464, %v471
  %v474 = vunpack.c.l.s4 1934713408
  %v475 = vunpack.c.0.s8 %v474
  %v476 = vlaneseq
  %v477 = vshrl.u32 %v476, 7
  %v478 = vsub.s32 %v475, %v477
  %v479 = vrot.slane %v465, %v478
  %v480 = vcombine.low %v425, %v440
  %v481 = vcombine.high %v425, %v440
  %v483 = vunpack.c.l.s4 1934713408
  %v484 = vunpack.c.0.s8 %v483
  %v485 = vlaneseq
  %v486 = vshrl.u32 %v485, 7
  %v487 = vsub.s32 %v484, %v486
  %v488 = vrot.slane %v480, %v487
  %v490 = vunpack.c.l.s4 1934713408
  %v491 = vunpack.c.0.s8 %v490
  %v492 = vlaneseq
  %v493 = vshrl.u32 %v492, 7
  %v494 = vsub.s32 %v491, %v493
  %v495 = vrot.slane %v481, %v494
  %v496 = vcombine.low %v432, %v447
  %v497 = vcombine.high %v432, %v447
  %v499 = vunpack.c.l.s4 1934713408
  %v500 = vunpack.c.0.s8 %v499
  %v501 = vlaneseq
  %v502 = vshrl.u32 %v501, 7
  %v503 = vsub.s32 %v500, %v502
  %v504 = vrot.slane %v496, %v503
  %v506 = vunpack.c.l.s4 1934713408
  %v507 = vunpack.c.0.s8 %v506
  %v508 = vlaneseq
  %v509 = vshrl.u32 %v508, 7
  %v510 = vsub.s32 %v507, %v509
  %v511 = vrot.slane %v497, %v510
  %v512 = vcombine.low %v456, %v488
  %v513 = vcombine.high %v456, %v488
  %v514 = vcombine.low %v463, %v495
  %v515 = vcombine.high %v463, %v495
  %v516 = vcombine.low %v472, %v504
  %v517 = vcombine.high %v472, %v504
  %v518 = vcombine.low %v479, %v511
  %v519 = vcombine.high %v479, %v511
  %v520 = vcombine.low %v102, %v161
  %v521 = vcombine.high %v102, %v161
  %v523 = vunpack.c.l.s4 1983009808
  %v524 = vunpack.c.0.s8 %v523
  %v525 = vlaneseq
  %v526 = vshrl.u32 %v525, 7
  %v527 = vsub.s32 %v524, %v526
  %v528 = vrot.slane %v520, %v527
  %v530 = vunpack.c.l.s4 1983009808
  %v531 = vunpack.c.0.s8 %v530
  %v532 = vlaneseq
  %v533 = vshrl.u32 %v532, 7
  %v534 = vsub.s32 %v531, %v533
  %v535 = vrot.slane %v521, %v534
  %v536 = vcombine.low %v137, %v185
  %v537 = vcombine.high %v137, %v185
  %v539 = vunpack.c.l.s4 1983009808
  %v540 = vunpack.c.0.s8 %v539
  %v541 = vlaneseq
  %v542 = vshrl.u32 %v541, 7
  %v543 = vsub.s32 %v540, %v542
  %v544 = vrot.slane %v536, %v543
  %v546 = vunpack.c.l.s4 1983009808
  %v547 = vunpack.c.0.s8 %v546
  %v548 = vlaneseq
  %v549 = vshrl.u32 %v548, 7
  %v550 = vsub.s32 %v547, %v549
  %v551 = vrot.slane %v537, %v550
  %v552 = vcombine.high %v209, 0.0
  %v554 = vunpack.c.l.s4 1983009808
  %v555 = vunpack.c.0.s8 %v554
  %v556 = vlaneseq
  %v557 = vshrl.u32 %v556, 7
  %v558 = vsub.s32 %v555, %v557
  %v559 = vrot.slane %v209, %v558
  %v561 = vunpack.c.l.s4 1983009808
  %v562 = vunpack.c.0.s8 %v561
  %v563 = vlaneseq
  %v564 = vshrl.u32 %v563, 7
  %v565 = vsub.s32 %v562, %v564
  %v566 = vrot.slane %v552, %v565
  %v567 = vcombine.high %v233, 0.0
  %v569 = vunpack.c.l.s4 1983009808
  %v570 = vunpack.c.0.s8 %v569
  %v571 = vlaneseq
  %v572 = vshrl.u32 %v571, 7
  %v573 = vsub.s32 %v570, %v572
  %v574 = vrot.slane %v233, %v573
  %v576 = vunpack.c.l.s4 1983009808
  %v577 = vunpack.c.0.s8 %v576
  %v578 = vlaneseq
  %v579 = vshrl.u32 %v578, 7
  %v580 = vsub.s32 %v577, %v579
  %v581 = vrot.slane %v567, %v580
  %v582 = vcombine.low %v528, %v544
  %v583 = vcombine.high %v528, %v544
  %v585 = vunpack.c.l.s4 1934713408
  %v586 = vunpack.c.0.s8 %v585
  %v587 = vlaneseq
  %v588 = vshrl.u32 %v587, 7
  %v589 = vsub.s32 %v586, %v588
  %v590 = vrot.slane %v582, %v589
  %v592 = vunpack.c.l.s4 1934713408
  %v593 = vunpack.c.0.s8 %v592
  %v594 = vlaneseq
  %v595 = vshrl.u32 %v594, 7
  %v596 = vsub.s32 %v593, %v595
  %v597 = vrot.slane %v583, %v596
  %v598 = vcombine.low %v535, %v551
  %v599 = vcombine.high %v535, %v551
  %v601 = vunpack.c.l.s4 1934713408
  %v602 = vunpack.c.0.s8 %v601
  %v603 = vlaneseq
  %v604 = vshrl.u32 %v603, 7
  %v605 = vsub.s32 %v602, %v604
  %v606 = vrot.slane %v598, %v605
  %v608 = vunpack.c.l.s4 1934713408
  %v609 = vunpack.c.0.s8 %v608
  %v610 = vlaneseq
  %v611 = vshrl.u32 %v610, 7
  %v612 = vsub.s32 %v609, %v611
  %v613 = vrot.slane %v599, %v612
  %v614 = vcombine.low %v559, %v574
  %v615 = vcombine.high %v559, %v574
  %v617 = vunpack.c.l.s4 1934713408
  %v618 = vunpack.c.0.s8 %v617
  %v619 = vlaneseq
  %v620 = vshrl.u32 %v619, 7
  %v621 = vsub.s32 %v618, %v620
  %v622 = vrot.slane %v614, %v621
  %v624 = vunpack.c.l.s4 1934713408
  %v625 = vunpack.c.0.s8 %v624
  %v626 = vlaneseq
  %v627 = vshrl.u32 %v626, 7
  %v628 = vsub.s32 %v625, %v627
  %v629 = vrot.slane %v615, %v628
  %v630 = vcombine.low %v566, %v581
  %v631 = vcombine.high %v566, %v581
  %v633 = vunpack.c.l.s4 1934713408
  %v634 = vunpack.c.0.s8 %v633
  %v635 = vlaneseq
  %v636 = vshrl.u32 %v635, 7
  %v637 = vsub.s32 %v634, %v636
  %v638 = vrot.slane %v630, %v637
  %v640 = vunpack.c.l.s4 1934713408
  %v641 = vunpack.c.0.s8 %v640
  %v642 = vlaneseq
  %v643 = vshrl.u32 %v642, 7
  %v644 = vsub.s32 %v641, %v643
  %v645 = vrot.slane %v631, %v644
  %v646 = vcombine.low %v590, %v622
  %v647 = vcombine.high %v590, %v622
  %v648 = vcombine.low %v597, %v629
  %v649 = vcombine.high %v597, %v629
  %v650 = vcombine.low %v606, %v638
  %v651 = vcombine.high %v606, %v638
  %v652 = vcombine.low %v613, %v645
  %v653 = vcombine.high %v613, %v645
  %v654 = vcombine.low %v105, %v163
  %v655 = vcombine.high %v105, %v163
  %v657 = vunpack.c.l.s4 1983009808
  %v658 = vunpack.c.0.s8 %v657
  %v659 = vlaneseq
  %v660 = vshrl.u32 %v659, 7
  %v661 = vsub.s32 %v658, %v660
  %v662 = vrot.slane %v654, %v661
  %v664 = vunpack.c.l.s4 1983009808
  %v665 = vunpack.c.0.s8 %v664
  %v666 = vlaneseq
  %v667 = vshrl.u32 %v666, 7
  %v668 = vsub.s32 %v665, %v667
  %v669 = vrot.slane %v655, %v668
  %v670 = vcombine.low %v139, %v187
  %v671 = vcombine.high %v139, %v187
  %v673 = vunpack.c.l.s4 1983009808
  %v674 = vunpack.c.0.s8 %v673
  %v675 = vlaneseq
  %v676 = vshrl.u32 %v675, 7
  %v677 = vsub.s32 %v674, %v676
  %v678 = vrot.slane %v670, %v677
  %v680 = vunpack.c.l.s4 1983009808
  %v681 = vunpack.c.0.s8 %v680
  %v682 = vlaneseq
  %v683 = vshrl.u32 %v682, 7
  %v684 = vsub.s32 %v681, %v683
  %v685 = vrot.slane %v671, %v684
  %v686 = vcombine.high %v211, 0.0
  %v688 = vunpack.c.l.s4 1983009808
  %v689 = vunpack.c.0.s8 %v688
  %v690 = vlaneseq
  %v691 = vshrl.u32 %v690, 7
  %v692 = vsub.s32 %v689, %v691
  %v693 = vrot.slane %v211, %v692
  %v695 = vunpack.c.l.s4 1983009808
  %v696 = vunpack.c.0.s8 %v695
  %v697 = vlaneseq
  %v698 = vshrl.u32 %v697, 7
  %v699 = vsub.s32 %v696, %v698
  %v700 = vrot.slane %v686, %v699
  %v701 = vcombine.high %v235, 0.0
  %v703 = vunpack.c.l.s4 1983009808
  %v704 = vunpack.c.0.s8 %v703
  %v705 = vlaneseq
  %v706 = vshrl.u32 %v705, 7
  %v707 = vsub.s32 %v704, %v706
  %v708 = vrot.slane %v235, %v707
  %v710 = vunpack.c.l.s4 1983009808
  %v711 = vunpack.c.0.s8 %v710
  %v712 = vlaneseq
  %v713 = vshrl.u32 %v712, 7
  %v714 = vsub.s32 %v711, %v713
  %v715 = vrot.slane %v701, %v714
  %v716 = vcombine.low %v662, %v678
  %v717 = vcombine.high %v662, %v678
  %v719 = vunpack.c.l.s4 1934713408
  %v720 = vunpack.c.0.s8 %v719
  %v721 = vlaneseq
  %v722 = vshrl.u32 %v721, 7
  %v723 = vsub.s32 %v720, %v722
  %v724 = vrot.slane %v716, %v723
  %v726 = vunpack.c.l.s4 1934713408
  %v727 = vunpack.c.0.s8 %v726
  %v728 = vlaneseq
  %v729 = vshrl.u32 %v728, 7
  %v730 = vsub.s32 %v727, %v729
  %v731 = vrot.slane %v717, %v730
  %v732 = vcombine.low %v669, %v685
  %v733 = vcombine.high %v669, %v685
  %v735 = vunpack.c.l.s4 1934713408
  %v736 = vunpack.c.0.s8 %v735
  %v737 = vlaneseq
  %v738 = vshrl.u32 %v737, 7
  %v739 = vsub.s32 %v736, %v738
  %v740 = vrot.slane %v732, %v739
  %v742 = vunpack.c.l.s4 1934713408
  %v743 = vunpack.c.0.s8 %v742
  %v744 = vlaneseq
  %v745 = vshrl.u32 %v744, 7
  %v746 = vsub.s32 %v743, %v745
  %v747 = vrot.slane %v733, %v746
  %v748 = vcombine.low %v693, %v708
  %v749 = vcombine.high %v693, %v708
  %v751 = vunpack.c.l.s4 1934713408
  %v752 = vunpack.c.0.s8 %v751
  %v753 = vlaneseq
  %v754 = vshrl.u32 %v753, 7
  %v755 = vsub.s32 %v752, %v754
  %v756 = vrot.slane %v748, %v755
  %v758 = vunpack.c.l.s4 1934713408
  %v759 = vunpack.c.0.s8 %v758
  %v760 = vlaneseq
  %v761 = vshrl.u32 %v760, 7
  %v762 = vsub.s32 %v759, %v761
  %v763 = vrot.slane %v749, %v762
  %v764 = vcombine.low %v700, %v715
  %v765 = vcombine.high %v700, %v715
  %v767 = vunpack.c.l.s4 1934713408
  %v768 = vunpack.c.0.s8 %v767
  %v769 = vlaneseq
  %v770 = vshrl.u32 %v769, 7
  %v771 = vsub.s32 %v768, %v770
  %v772 = vrot.slane %v764, %v771
  %v774 = vunpack.c.l.s4 1934713408
  %v775 = vunpack.c.0.s8 %v774
  %v776 = vlaneseq
  %v777 = vshrl.u32 %v776, 7
  %v778 = vsub.s32 %v775, %v777
  %v779 = vrot.slane %v765, %v778
  %v780 = vcombine.low %v724, %v756
  %v781 = vcombine.high %v724, %v756
  %v782 = vcombine.low %v731, %v763
  %v783 = vcombine.high %v731, %v763
  %v784 = vcombine.low %v740, %v772
  %v785 = vcombine.high %v740, %v772
  %v786 = vcombine.low %v747, %v779
  %v787 = vcombine.high %v747, %v779
  %v788 = vcombine.low %v110, %v165
  %v789 = vcombine.high %v110, %v165
  %v791 = vunpack.c.l.s4 1983009808
  %v792 = vunpack.c.0.s8 %v791
  %v793 = vlaneseq
  %v794 = vshrl.u32 %v793, 7
  %v795 = vsub.s32 %v792, %v794
  %v796 = vrot.slane %v788, %v795
  %v798 = vunpack.c.l.s4 1983009808
  %v799 = vunpack.c.0.s8 %v798
  %v800 = vlaneseq
  %v801 = vshrl.u32 %v800, 7
  %v802 = vsub.s32 %v799, %v801
  %v803 = vrot.slane %v789, %v802
  %v804 = vcombine.low %v141, %v189
  %v805 = vcombine.high %v141, %v189
  %v807 = vunpack.c.l.s4 1983009808
  %v808 = vunpack.c.0.s8 %v807
  %v809 = vlaneseq
  %v810 = vshrl.u32 %v809, 7
  %v811 = vsub.s32 %v808, %v810
  %v812 = vrot.slane %v804, %v811
  %v814 = vunpack.c.l.s4 1983009808
  %v815 = vunpack.c.0.s8 %v814
  %v816 = vlaneseq
  %v817 = vshrl.u32 %v816, 7
  %v818 = vsub.s32 %v815, %v817
  %v819 = vrot.slane %v805, %v818
  %v820 = vcombine.high %v213, 0.0
  %v822 = vunpack.c.l.s4 1983009808
  %v823 = vunpack.c.0.s8 %v822
  %v824 = vlaneseq
  %v825 = vshrl.u32 %v824, 7
  %v826 = vsub.s32 %v823, %v825
  %v827 = vrot.slane %v213, %v826
  %v829 = vunpack.c.l.s4 1983009808
  %v830 = vunpack.c.0.s8 %v829
  %v831 = vlaneseq
  %v832 = vshrl.u32 %v831, 7
  %v833 = vsub.s32 %v830, %v832
  %v834 = vrot.slane %v820, %v833
  %v835 = vcombine.high %v237, 0.0
  %v837 = vunpack.c.l.s4 1983009808
  %v838 = vunpack.c.0.s8 %v837
  %v839 = vlaneseq
  %v840 = vshrl.u32 %v839, 7
  %v841 = vsub.s32 %v838, %v840
  %v842 = vrot.slane %v237, %v841
  %v844 = vunpack.c.l.s4 1983009808
  %v845 = vunpack.c.0.s8 %v844
  %v846 = vlaneseq
  %v847 = vshrl.u32 %v846, 7
  %v848 = vsub.s32 %v845, %v847
  %v849 = vrot.slane %v835, %v848
  %v850 = vcombine.low %v796, %v812
  %v851 = vcombine.high %v796, %v812
  %v853 = vunpack.c.l.s4 1934713408
  %v854 = vunpack.c.0.s8 %v853
  %v855 = vlaneseq
  %v856 = vshrl.u32 %v855, 7
  %v857 = vsub.s32 %v854, %v856
  %v858 = vrot.slane %v850, %v857
  %v860 = vunpack.c.l.s4 1934713408
  %v861 = vunpack.c.0.s8 %v860
  %v862 = vlaneseq
  %v863 = vshrl.u32 %v862, 7
  %v864 = vsub.s32 %v861, %v863
  %v865 = vrot.slane %v851, %v864
  %v866 = vcombine.low %v803, %v819
  %v867 = vcombine.high %v803, %v819
  %v869 = vunpack.c.l.s4 1934713408
  %v870 = vunpack.c.0.s8 %v869
  %v871 = vlaneseq
  %v872 = vshrl.u32 %v871, 7
  %v873 = vsub.s32 %v870, %v872
  %v874 = vrot.slane %v866, %v873
  %v876 = vunpack.c.l.s4 1934713408
  %v877 = vunpack.c.0.s8 %v876
  %v878 = vlaneseq
  %v879 = vshrl.u32 %v878, 7
  %v880 = vsub.s32 %v877, %v879
  %v881 = vrot.slane %v867, %v880
  %v882 = vcombine.low %v827, %v842
  %v883 = vcombine.high %v827, %v842
  %v885 = vunpack.c.l.s4 1934713408
  %v886 = vunpack.c.0.s8 %v885
  %v887 = vlaneseq
  %v888 = vshrl.u32 %v887, 7
  %v889 = vsub.s32 %v886, %v888
  %v890 = vrot.slane %v882, %v889
  %v892 = vunpack.c.l.s4 1934713408
  %v893 = vunpack.c.0.s8 %v892
  %v894 = vlaneseq
  %v895 = vshrl.u32 %v894, 7
  %v896 = vsub.s32 %v893, %v895
  %v897 = vrot.slane %v883, %v896
  %v898 = vcombine.low %v834, %v849
  %v899 = vcombine.high %v834, %v849
  %v901 = vunpack.c.l.s4 1934713408
  %v902 = vunpack.c.0.s8 %v901
  %v903 = vlaneseq
  %v904 = vshrl.u32 %v903, 7
  %v905 = vsub.s32 %v902, %v904
  %v906 = vrot.slane %v898, %v905
  %v908 = vunpack.c.l.s4 1934713408
  %v909 = vunpack.c.0.s8 %v908
  %v910 = vlaneseq
  %v911 = vshrl.u32 %v910, 7
  %v912 = vsub.s32 %v909, %v911
  %v913 = vrot.slane %v899, %v912
  %v914 = vcombine.low %v858, %v890
  %v915 = vcombine.high %v858, %v890
  %v916 = vcombine.low %v865, %v897
  %v917 = vcombine.high %v865, %v897
  %v918 = vcombine.low %v874, %v906
  %v919 = vcombine.high %v874, %v906
  %v920 = vcombine.low %v881, %v913
  %v921 = vcombine.high %v881, %v913
  %v922 = vcombine.low %v113, %v167
  %v923 = vcombine.high %v113, %v167
  %v925 = vunpack.c.l.s4 1983009808
  %v926 = vunpack.c.0.s8 %v925
  %v927 = vlaneseq
  %v928 = vshrl.u32 %v927, 7
  %v929 = vsub.s32 %v926, %v928
  %v930 = vrot.slane %v922, %v929
  %v932 = vunpack.c.l.s4 1983009808
  %v933 = vunpack.c.0.s8 %v932
  %v934 = vlaneseq
  %v935 = vshrl.u32 %v934, 7
  %v936 = vsub.s32 %v933, %v935
  %v937 = vrot.slane %v923, %v936
  %v938 = vcombine.low %v143, %v191
  %v939 = vcombine.high %v143, %v191
  %v941 = vunpack.c.l.s4 1983009808
  %v942 = vunpack.c.0.s8 %v941
  %v943 = vlaneseq
  %v944 = vshrl.u32 %v943, 7
  %v945 = vsub.s32 %v942, %v944
  %v946 = vrot.slane %v938, %v945
  %v948 = vunpack.c.l.s4 1983009808
  %v949 = vunpack.c.0.s8 %v948
  %v950 = vlaneseq
  %v951 = vshrl.u32 %v950, 7
  %v952 = vsub.s32 %v949, %v951
  %v953 = vrot.slane %v939, %v952
  %v954 = vcombine.high %v215, 0.0
  %v956 = vunpack.c.l.s4 1983009808
  %v957 = vunpack.c.0.s8 %v956
  %v958 = vlaneseq
  %v959 = vshrl.u32 %v958, 7
  %v960 = vsub.s32 %v957, %v959
  %v961 = vrot.slane %v215, %v960
  %v963 = vunpack.c.l.s4 1983009808
  %v964 = vunpack.c.0.s8 %v963
  %v965 = vlaneseq
  %v966 = vshrl.u32 %v965, 7
  %v967 = vsub.s32 %v964, %v966
  %v968 = vrot.slane %v954, %v967
  %v969 = vcombine.high %v239, 0.0
  %v971 = vunpack.c.l.s4 1983009808
  %v972 = vunpack.c.0.s8 %v971
  %v973 = vlaneseq
  %v974 = vshrl.u32 %v973, 7
  %v975 = vsub.s32 %v972, %v974
  %v976 = vrot.slane %v239, %v975
  %v978 = vunpack.c.l.s4 1983009808
  %v979 = vunpack.c.0.s8 %v978
  %v980 = vlaneseq
  %v981 = vshrl.u32 %v980, 7
  %v982 = vsub.s32 %v979, %v981
  %v983 = vrot.slane %v969, %v982
  %v984 = vcombine.low %v930, %v946
  %v985 = vcombine.high %v930, %v946
  %v987 = vunpack.c.l.s4 1934713408
  %v988 = vunpack.c.0.s8 %v987
  %v989 = vlaneseq
  %v990 = vshrl.u32 %v989, 7
  %v991 = vsub.s32 %v988, %v990
  %v992 = vrot.slane %v984, %v991
  %v994 = vunpack.c.l.s4 1934713408
  %v995 = vunpack.c.0.s8 %v994
  %v996 = vlaneseq
  %v997 = vshrl.u32 %v996, 7
  %v998 = vsub.s32 %v995, %v997
  %v999 = vrot.slane %v985, %v998
  %v1000 = vcombine.low %v937, %v953
  %v1001 = vcombine.high %v937, %v953
  %v1003 = vunpack.c.l.s4 1934713408
  %v1004 = vunpack.c.0.s8 %v1003
  %v1005 = vlaneseq
  %v1006 = vshrl.u32 %v1005, 7
  %v1007 = vsub.s32 %v1004, %v1006
  %v1008 = vrot.slane %v1000, %v1007
  %v1010 = vunpack.c.l.s4 1934713408
  %v1011 = vunpack.c.0.s8 %v1010
  %v1012 = vlaneseq
  %v1013 = vshrl.u32 %v1012, 7
  %v1014 = vsub.s32 %v1011, %v1013
  %v1015 = vrot.slane %v1001, %v1014
  %v1016 = vcombine.low %v961, %v976
  %v1017 = vcombine.high %v961, %v976
  %v1019 = vunpack.c.l.s4 1934713408
  %v1020 = vunpack.c.0.s8 %v1019
  %v1021 = vlaneseq
  %v1022 = vshrl.u32 %v1021, 7
  %v1023 = vsub.s32 %v1020, %v1022
  %v1024 = vrot.slane %v1016, %v1023
  %v1026 = vunpack.c.l.s4 1934713408
  %v1027 = vunpack.c.0.s8 %v1026
  %v1028 = vlaneseq
  %v1029 = vshrl.u32 %v1028, 7
  %v1030 = vsub.s32 %v1027, %v1029
  %v1031 = vrot.slane %v1017, %v1030
  %v1032 = vcombine.low %v968, %v983
  %v1033 = vcombine.high %v968, %v983
  %v1035 = vunpack.c.l.s4 1934713408
  %v1036 = vunpack.c.0.s8 %v1035
  %v1037 = vlaneseq
  %v1038 = vshrl.u32 %v1037, 7
  %v1039 = vsub.s32 %v1036, %v1038
  %v1040 = vrot.slane %v1032, %v1039
  %v1042 = vunpack.c.l.s4 1934713408
  %v1043 = vunpack.c.0.s8 %v1042
  %v1044 = vlaneseq
  %v1045 = vshrl.u32 %v1044, 7
  %v1046 = vsub.s32 %v1043, %v1045
  %v1047 = vrot.slane %v1033, %v1046
  %v1048 = vcombine.low %v992, %v1024
  %v1049 = vcombine.high %v992, %v1024
  %v1050 = vcombine.low %v999, %v1031
  %v1051 = vcombine.high %v999, %v1031
  %v1052 = vcombine.low %v1008, %v1040
  %v1053 = vcombine.high %v1008, %v1040
  %v1054 = vcombine.low %v1015, %v1047
  %v1055 = vcombine.high %v1015, %v1047
  %v1056 = vcombine.low %v118, %v169
  %v1057 = vcombine.high %v118, %v169
  %v1059 = vunpack.c.l.s4 1983009808
  %v1060 = vunpack.c.0.s8 %v1059
  %v1061 = vlaneseq
  %v1062 = vshrl.u32 %v1061, 7
  %v1063 = vsub.s32 %v1060, %v1062
  %v1064 = vrot.slane %v1056, %v1063
  %v1066 = vunpack.c.l.s4 1983009808
  %v1067 = vunpack.c.0.s8 %v1066
  %v1068 = vlaneseq
  %v1069 = vshrl.u32 %v1068, 7
  %v1070 = vsub.s32 %v1067, %v1069
  %v1071 = vrot.slane %v1057, %v1070
  %v1072 = vcombine.low %v145, %v193
  %v1073 = vcombine.high %v145, %v193
  %v1075 = vunpack.c.l.s4 1983009808
  %v1076 = vunpack.c.0.s8 %v1075
  %v1077 = vlaneseq
  %v1078 = vshrl.u32 %v1077, 7
  %v1079 = vsub.s32 %v1076, %v1078
  %v1080 = vrot.slane %v1072, %v1079
  %v1082 = vunpack.c.l.s4 1983009808
  %v1083 = vunpack.c.0.s8 %v1082
  %v1084 = vlaneseq
  %v1085 = vshrl.u32 %v1084, 7
  %v1086 = vsub.s32 %v1083, %v1085
  %v1087 = vrot.slane %v1073, %v1086
  %v1088 = vcombine.high %v217, 0.0
  %v1090 = vunpack.c.l.s4 1983009808
  %v1091 = vunpack.c.0.s8 %v1090
  %v1092 = vlaneseq
  %v1093 = vshrl.u32 %v1092, 7
  %v1094 = vsub.s32 %v1091, %v1093
  %v1095 = vrot.slane %v217, %v1094
  %v1097 = vunpack.c.l.s4 1983009808
  %v1098 = vunpack.c.0.s8 %v1097
  %v1099 = vlaneseq
  %v1100 = vshrl.u32 %v1099, 7
  %v1101 = vsub.s32 %v1098, %v1100
  %v1102 = vrot.slane %v1088, %v1101
  %v1103 = vcombine.high %v241, 0.0
  %v1105 = vunpack.c.l.s4 1983009808
  %v1106 = vunpack.c.0.s8 %v1105
  %v1107 = vlaneseq
  %v1108 = vshrl.u32 %v1107, 7
  %v1109 = vsub.s32 %v1106, %v1108
  %v1110 = vrot.slane %v241, %v1109
  %v1112 = vunpack.c.l.s4 1983009808
  %v1113 = vunpack.c.0.s8 %v1112
  %v1114 = vlaneseq
  %v1115 = vshrl.u32 %v1114, 7
  %v1116 = vsub.s32 %v1113, %v1115
  %v1117 = vrot.slane %v1103, %v1116
  %v1118 = vcombine.low %v1064, %v1080
  %v1119 = vcombine.high %v1064, %v1080
  %v1121 = vunpack.c.l.s4 1934713408
  %v1122 = vunpack.c.0.s8 %v1121
  %v1123 = vlaneseq
  %v1124 = vshrl.u32 %v1123, 7
  %v1125 = vsub.s32 %v1122, %v1124
  %v1126 = vrot.slane %v1118, %v1125
  %v1128 = vunpack.c.l.s4 1934713408
  %v1129 = vunpack.c.0.s8 %v1128
  %v1130 = vlaneseq
  %v1131 = vshrl.u32 %v1130, 7
  %v1132 = vsub.s32 %v1129, %v1131
  %v1133 = vrot.slane %v1119, %v1132
  %v1134 = vcombine.low %v1071, %v1087
  %v1135 = vcombine.high %v1071, %v1087
  %v1137 = vunpack.c.l.s4 1934713408
  %v1138 = vunpack.c.0.s8 %v1137
  %v1139 = vlaneseq
  %v1140 = vshrl.u32 %v1139, 7
  %v1141 = vsub.s32 %v1138, %v1140
  %v1142 = vrot.slane %v1134, %v1141
  %v1144 = vunpack.c.l.s4 1934713408
  %v1145 = vunpack.c.0.s8 %v1144
  %v1146 = vlaneseq
  %v1147 = vshrl.u32 %v1146, 7
  %v1148 = vsub.s32 %v1145, %v1147
  %v1149 = vrot.slane %v1135, %v1148
  %v1150 = vcombine.low %v1095, %v1110
  %v1151 = vcombine.high %v1095, %v1110
  %v1153 = vunpack.c.l.s4 1934713408
  %v1154 = vunpack.c.0.s8 %v1153
  %v1155 = vlaneseq
  %v1156 = vshrl.u32 %v1155, 7
  %v1157 = vsub.s32 %v1154, %v1156
  %v1158 = vrot.slane %v1150, %v1157
  %v1160 = vunpack.c.l.s4 1934713408
  %v1161 = vunpack.c.0.s8 %v1160
  %v1162 = vlaneseq
  %v1163 = vshrl.u32 %v1162, 7
  %v1164 = vsub.s32 %v1161, %v1163
  %v1165 = vrot.slane %v1151, %v1164
  %v1166 = vcombine.low %v1102, %v1117
  %v1167 = vcombine.high %v1102, %v1117
  %v1169 = vunpack.c.l.s4 1934713408
  %v1170 = vunpack.c.0.s8 %v1169
  %v1171 = vlaneseq
  %v1172 = vshrl.u32 %v1171, 7
  %v1173 = vsub.s32 %v1170, %v1172
  %v1174 = vrot.slane %v1166, %v1173
  %v1176 = vunpack.c.l.s4 1934713408
  %v1177 = vunpack.c.0.s8 %v1176
  %v1178 = vlaneseq
  %v1179 = vshrl.u32 %v1178, 7
  %v1180 = vsub.s32 %v1177, %v1179
  %v1181 = vrot.slane %v1167, %v1180
  %v1182 = vcombine.low %v1126, %v1158
  %v1183 = vcombine.high %v1126, %v1158
  %v1184 = vcombine.low %v1133, %v1165
  %v1185 = vcombine.high %v1133, %v1165
  %v1186 = vcombine.low %v1142, %v1174
  %v1187 = vcombine.high %v1142, %v1174
  %v1188 = vcombine.low %v1149, %v1181
  %v1189 = vcombine.high %v1149, %v1181
  %v1190 = vcombine.low %v121, %v171
  %v1191 = vcombine.high %v121, %v171
  %v1193 = vunpack.c.l.s4 1983009808
  %v1194 = vunpack.c.0.s8 %v1193
  %v1195 = vlaneseq
  %v1196 = vshrl.u32 %v1195, 7
  %v1197 = vsub.s32 %v1194, %v1196
  %v1198 = vrot.slane %v1190, %v1197
  %v1200 = vunpack.c.l.s4 1983009808
  %v1201 = vunpack.c.0.s8 %v1200
  %v1202 = vlaneseq
  %v1203 = vshrl.u32 %v1202, 7
  %v1204 = vsub.s32 %v1201, %v1203
  %v1205 = vrot.slane %v1191, %v1204
  %v1206 = vcombine.low %v147, %v195
  %v1207 = vcombine.high %v147, %v195
  %v1209 = vunpack.c.l.s4 1983009808
  %v1210 = vunpack.c.0.s8 %v1209
  %v1211 = vlaneseq
  %v1212 = vshrl.u32 %v1211, 7
  %v1213 = vsub.s32 %v1210, %v1212
  %v1214 = vrot.slane %v1206, %v1213
  %v1216 = vunpack.c.l.s4 1983009808
  %v1217 = vunpack.c.0.s8 %v1216
  %v1218 = vlaneseq
  %v1219 = vshrl.u32 %v1218, 7
  %v1220 = vsub.s32 %v1217, %v1219
  %v1221 = vrot.slane %v1207, %v1220
  %v1222 = vcombine.high %v219, 0.0
  %v1224 = vunpack.c.l.s4 1983009808
  %v1225 = vunpack.c.0.s8 %v1224
  %v1226 = vlaneseq
  %v1227 = vshrl.u32 %v1226, 7
  %v1228 = vsub.s32 %v1225, %v1227
  %v1229 = vrot.slane %v219, %v1228
  %v1231 = vunpack.c.l.s4 1983009808
  %v1232 = vunpack.c.0.s8 %v1231
  %v1233 = vlaneseq
  %v1234 = vshrl.u32 %v1233, 7
  %v1235 = vsub.s32 %v1232, %v1234
  %v1236 = vrot.slane %v1222, %v1235
  %v1237 = vcombine.high %v243, 0.0
  %v1239 = vunpack.c.l.s4 1983009808
  %v1240 = vunpack.c.0.s8 %v1239
  %v1241 = vlaneseq
  %v1242 = vshrl.u32 %v1241, 7
  %v1243 = vsub.s32 %v1240, %v1242
  %v1244 = vrot.slane %v243, %v1243
  %v1246 = vunpack.c.l.s4 1983009808
  %v1247 = vunpack.c.0.s8 %v1246
  %v1248 = vlaneseq
  %v1249 = vshrl.u32 %v1248, 7
  %v1250 = vsub.s32 %v1247, %v1249
  %v1251 = vrot.slane %v1237, %v1250
  %v1252 = vcombine.low %v1198, %v1214
  %v1253 = vcombine.high %v1198, %v1214
  %v1255 = vunpack.c.l.s4 1934713408
  %v1256 = vunpack.c.0.s8 %v1255
  %v1257 = vlaneseq
  %v1258 = vshrl.u32 %v1257, 7
  %v1259 = vsub.s32 %v1256, %v1258
  %v1260 = vrot.slane %v1252, %v1259
  %v1262 = vunpack.c.l.s4 1934713408
  %v1263 = vunpack.c.0.s8 %v1262
  %v1264 = vlaneseq
  %v1265 = vshrl.u32 %v1264, 7
  %v1266 = vsub.s32 %v1263, %v1265
  %v1267 = vrot.slane %v1253, %v1266
  %v1268 = vcombine.low %v1205, %v1221
  %v1269 = vcombine.high %v1205, %v1221
  %v1271 = vunpack.c.l.s4 1934713408
  %v1272 = vunpack.c.0.s8 %v1271
  %v1273 = vlaneseq
  %v1274 = vshrl.u32 %v1273, 7
  %v1275 = vsub.s32 %v1272, %v1274
  %v1276 = vrot.slane %v1268, %v1275
  %v1278 = vunpack.c.l.s4 1934713408
  %v1279 = vunpack.c.0.s8 %v1278
  %v1280 = vlaneseq
  %v1281 = vshrl.u32 %v1280, 7
  %v1282 = vsub.s32 %v1279, %v1281
  %v1283 = vrot.slane %v1269, %v1282
  %v1284 = vcombine.low %v1229, %v1244
  %v1285 = vcombine.high %v1229, %v1244
  %v1287 = vunpack.c.l.s4 1934713408
  %v1288 = vunpack.c.0.s8 %v1287
  %v1289 = vlaneseq
  %v1290 = vshrl.u32 %v1289, 7
  %v1291 = vsub.s32 %v1288, %v1290
  %v1292 = vrot.slane %v1284, %v1291
  %v1294 = vunpack.c.l.s4 1934713408
  %v1295 = vunpack.c.0.s8 %v1294
  %v1296 = vlaneseq
  %v1297 = vshrl.u32 %v1296, 7
  %v1298 = vsub.s32 %v1295, %v1297
  %v1299 = vrot.slane %v1285, %v1298
  %v1300 = vcombine.low %v1236, %v1251
  %v1301 = vcombine.high %v1236, %v1251
  %v1303 = vunpack.c.l.s4 1934713408
  %v1304 = vunpack.c.0.s8 %v1303
  %v1305 = vlaneseq
  %v1306 = vshrl.u32 %v1305, 7
  %v1307 = vsub.s32 %v1304, %v1306
  %v1308 = vrot.slane %v1300, %v1307
  %v1310 = vunpack.c.l.s4 1934713408
  %v1311 = vunpack.c.0.s8 %v1310
  %v1312 = vlaneseq
  %v1313 = vshrl.u32 %v1312, 7
  %v1314 = vsub.s32 %v1311, %v1313
  %v1315 = vrot.slane %v1301, %v1314
  %v1316 = vcombine.low %v1260, %v1292
  %v1317 = vcombine.high %v1260, %v1292
  %v1318 = vcombine.low %v1267, %v1299
  %v1319 = vcombine.high %v1267, %v1299
  %v1320 = vcombine.low %v1276, %v1308
  %v1321 = vcombine.high %v1276, %v1308
  %v1322 = vcombine.low %v1283, %v1315
  %v1323 = vcombine.high %v1283, %v1315
  %v1324 = vcombine.low %v378, %v380
  %v1325 = vcombine.high %v378, %v380
  %v1327 = vunpack.c.l.s4 1983009808
  %v1328 = vunpack.c.0.s8 %v1327
  %v1329 = vlaneseq
  %v1330 = vshrl.u32 %v1329, 7
  %v1331 = vsub.s32 %v1328, %v1330
  %v1332 = vrot.slane %v1324, %v1331
  %v1334 = vunpack.c.l.s4 1983009808
  %v1335 = vunpack.c.0.s8 %v1334
  %v1336 = vlaneseq
  %v1337 = vshrl.u32 %v1336, 7
  %v1338 = vsub.s32 %v1335, %v1337
  %v1339 = vrot.slane %v1325, %v1338
  %v1340 = vcombine.low %v379, %v381
  %v1341 = vcombine.high %v379, %v381
  %v1343 = vunpack.c.l.s4 1983009808
  %v1344 = vunpack.c.0.s8 %v1343
  %v1345 = vlaneseq
  %v1346 = vshrl.u32 %v1345, 7
  %v1347 = vsub.s32 %v1344, %v1346
  %v1348 = vrot.slane %v1340, %v1347
  %v1350 = vunpack.c.l.s4 1983009808
  %v1351 = vunpack.c.0.s8 %v1350
  %v1352 = vlaneseq
  %v1353 = vshrl.u32 %v1352, 7
  %v1354 = vsub.s32 %v1351, %v1353
  %v1355 = vrot.slane %v1341, %v1354
  %v1356 = vcombine.low %v382, %v384
  %v1357 = vcombine.high %v382, %v384
  %v1359 = vunpack.c.l.s4 1983009808
  %v1360 = vunpack.c.0.s8 %v1359
  %v1361 = vlaneseq
  %v1362 = vshrl.u32 %v1361, 7
  %v1363 = vsub.s32 %v1360, %v1362
  %v1364 = vrot.slane %v1356, %v1363
  %v1366 = vunpack.c.l.s4 1983009808
  %v1367 = vunpack.c.0.s8 %v1366
  %v1368 = vlaneseq
  %v1369 = vshrl.u32 %v1368, 7
  %v1370 = vsub.s32 %v1367, %v1369
  %v1371 = vrot.slane %v1357, %v1370
  %v1372 = vcombine.low %v383, %v385
  %v1373 = vcombine.high %v383, %v385
  %v1375 = vunpack.c.l.s4 1983009808
  %v1376 = vunpack.c.0.s8 %v1375
  %v1377 = vlaneseq
  %v1378 = vshrl.u32 %v1377, 7
  %v1379 = vsub.s32 %v1376, %v1378
  %v1380 = vrot.slane %v1372, %v1379
  %v1382 = vunpack.c.l.s4 1983009808
  %v1383 = vunpack.c.0.s8 %v1382
  %v1384 = vlaneseq
  %v1385 = vshrl.u32 %v1384, 7
  %v1386 = vsub.s32 %v1383, %v1385
  %v1387 = vrot.slane %v1373, %v1386
  %v1388 = vcombine.low %v1332, %v1348
  %v1389 = vcombine.high %v1332, %v1348
  %v1391 = vunpack.c.l.s4 1934713408
  %v1392 = vunpack.c.0.s8 %v1391
  %v1393 = vlaneseq
  %v1394 = vshrl.u32 %v1393, 7
  %v1395 = vsub.s32 %v1392, %v1394
  %v1396 = vrot.slane %v1388, %v1395
  %v1398 = vunpack.c.l.s4 1934713408
  %v1399 = vunpack.c.0.s8 %v1398
  %v1400 = vlaneseq
  %v1401 = vshrl.u32 %v1400, 7
  %v1402 = vsub.s32 %v1399, %v1401
  %v1403 = vrot.slane %v1389, %v1402
  %v1404 = vcombine.low %v1339, %v1355
  %v1406 = vunpack.c.l.s4 1934713408
  %v1407 = vunpack.c.0.s8 %v1406
  %v1408 = vlaneseq
  %v1409 = vshrl.u32 %v1408, 7
  %v1410 = vsub.s32 %v1407, %v1409
  %v1411 = vrot.slane %v1404, %v1410
  %v1412 = vcombine.low %v1364, %v1380
  %v1413 = vcombine.high %v1364, %v1380
  %v1415 = vunpack.c.l.s4 1934713408
  %v1416 = vunpack.c.0.s8 %v1415
  %v1417 = vlaneseq
  %v1418 = vshrl.u32 %v1417, 7
  %v1419 = vsub.s32 %v1416, %v1418
  %v1420 = vrot.slane %v1412, %v1419
  %v1422 = vunpack.c.l.s4 1934713408
  %v1423 = vunpack.c.0.s8 %v1422
  %v1424 = vlaneseq
  %v1425 = vshrl.u32 %v1424, 7
  %v1426 = vsub.s32 %v1423, %v1425
  %v1427 = vrot.slane %v1413, %v1426
  %v1428 = vcombine.low %v1371, %v1387
  %v1430 = vunpack.c.l.s4 1934713408
  %v1431 = vunpack.c.0.s8 %v1430
  %v1432 = vlaneseq
  %v1433 = vshrl.u32 %v1432, 7
  %v1434 = vsub.s32 %v1431, %v1433
  %v1435 = vrot.slane %v1428, %v1434
  %v1436 = vcombine.low %v1396, %v1420
  %v1437 = vcombine.high %v1396, %v1420
  %v1438 = vcombine.low %v1403, %v1427
  %v1439 = vcombine.high %v1403, %v1427
  %v1440 = vcombine.low %v1411, %v1435
  %v1441 = vcombine.high %v1411, %v1435
  %v1442 = vcombine.low %v512, %v514
  %v1443 = vcombine.high %v512, %v514
  %v1445 = vunpack.c.l.s4 1983009808
  %v1446 = vunpack.c.0.s8 %v1445
  %v1447 = vlaneseq
  %v1448 = vshrl.u32 %v1447, 7
  %v1449 = vsub.s32 %v1446, %v1448
  %v1450 = vrot.slane %v1442, %v1449
  %v1452 = vunpack.c.l.s4 1983009808
  %v1453 = vunpack.c.0.s8 %v1452
  %v1454 = vlaneseq
  %v1455 = vshrl.u32 %v1454, 7
  %v1456 = vsub.s32 %v1453, %v1455
  %v1457 = vrot.slane %v1443, %v1456
  %v1458 = vcombine.low %v513, %v515
  %v1459 = vcombine.high %v513, %v515
  %v1461 = vunpack.c.l.s4 1983009808
  %v1462 = vunpack.c.0.s8 %v1461
  %v1463 = vlaneseq
  %v1464 = vshrl.u32 %v1463, 7
  %v1465 = vsub.s32 %v1462, %v1464
  %v1466 = vrot.slane %v1458, %v1465
  %v1468 = vunpack.c.l.s4 1983009808
  %v1469 = vunpack.c.0.s8 %v1468
  %v1470 = vlaneseq
  %v1471 = vshrl.u32 %v1470, 7
  %v1472 = vsub.s32 %v1469, %v1471
  %v1473 = vrot.slane %v1459, %v1472
  %v1474 = vcombine.low %v516, %v518
  %v1475 = vcombine.high %v516, %v518
  %v1477 = vunpack.c.l.s4 1983009808
  %v1478 = vunpack.c.0.s8 %v1477
  %v1479 = vlaneseq
  %v1480 = vshrl.u32 %v1479, 7
  %v1481 = vsub.s32 %v1478, %v1480
  %v1482 = vrot.slane %v1474, %v1481
  %v1484 = vunpack.c.l.s4 1983009808
  %v1485 = vunpack.c.0.s8 %v1484
  %v1486 = vlaneseq
  %v1487 = vshrl.u32 %v1486, 7
  %v1488 = vsub.s32 %v1485, %v1487
  %v1489 = vrot.slane %v1475, %v1488
  %v1490 = vcombine.low %v517, %v519
  %v1491 = vcombine.high %v517, %v519
  %v1493 = vunpack.c.l.s4 1983009808
  %v1494 = vunpack.c.0.s8 %v1493
  %v1495 = vlaneseq
  %v1496 = vshrl.u32 %v1495, 7
  %v1497 = vsub.s32 %v1494, %v1496
  %v1498 = vrot.slane %v1490, %v1497
  %v1500 = vunpack.c.l.s4 1983009808
  %v1501 = vunpack.c.0.s8 %v1500
  %v1502 = vlaneseq
  %v1503 = vshrl.u32 %v1502, 7
  %v1504 = vsub.s32 %v1501, %v1503
  %v1505 = vrot.slane %v1491, %v1504
  %v1506 = vcombine.low %v1450, %v1466
  %v1507 = vcombine.high %v1450, %v1466
  %v1509 = vunpack.c.l.s4 1934713408
  %v1510 = vunpack.c.0.s8 %v1509
  %v1511 = vlaneseq
  %v1512 = vshrl.u32 %v1511, 7
  %v1513 = vsub.s32 %v1510, %v1512
  %v1514 = vrot.slane %v1506, %v1513
  %v1516 = vunpack.c.l.s4 1934713408
  %v1517 = vunpack.c.0.s8 %v1516
  %v1518 = vlaneseq
  %v1519 = vshrl.u32 %v1518, 7
  %v1520 = vsub.s32 %v1517, %v1519
  %v1521 = vrot.slane %v1507, %v1520
  %v1522 = vcombine.low %v1457, %v1473
  %v1524 = vunpack.c.l.s4 1934713408
  %v1525 = vunpack.c.0.s8 %v1524
  %v1526 = vlaneseq
  %v1527 = vshrl.u32 %v1526, 7
  %v1528 = vsub.s32 %v1525, %v1527
  %v1529 = vrot.slane %v1522, %v1528
  %v1530 = vcombine.low %v1482, %v1498
  %v1531 = vcombine.high %v1482, %v1498
  %v1533 = vunpack.c.l.s4 1934713408
  %v1534 = vunpack.c.0.s8 %v1533
  %v1535 = vlaneseq
  %v1536 = vshrl.u32 %v1535, 7
  %v1537 = vsub.s32 %v1534, %v1536
  %v1538 = vrot.slane %v1530, %v1537
  %v1540 = vunpack.c.l.s4 1934713408
  %v1541 = vunpack.c.0.s8 %v1540
  %v1542 = vlaneseq
  %v1543 = vshrl.u32 %v1542, 7
  %v1544 = vsub.s32 %v1541, %v1543
  %v1545 = vrot.slane %v1531, %v1544
  %v1546 = vcombine.low %v1489, %v1505
  %v1548 = vunpack.c.l.s4 1934713408
  %v1549 = vunpack.c.0.s8 %v1548
  %v1550 = vlaneseq
  %v1551 = vshrl.u32 %v1550, 7
  %v1552 = vsub.s32 %v1549, %v1551
  %v1553 = vrot.slane %v1546, %v1552
  %v1554 = vcombine.low %v1514, %v1538
  %v1555 = vcombine.high %v1514, %v1538
  %v1556 = vcombine.low %v1521, %v1545
  %v1557 = vcombine.high %v1521, %v1545
  %v1558 = vcombine.low %v1529, %v1553
  %v1559 = vcombine.high %v1529, %v1553
  %v1560 = vcombine.low %v646, %v648
  %v1561 = vcombine.high %v646, %v648
  %v1563 = vunpack.c.l.s4 1983009808
  %v1564 = vunpack.c.0.s8 %v1563
  %v1565 = vlaneseq
  %v1566 = vshrl.u32 %v1565, 7
  %v1567 = vsub.s32 %v1564, %v1566
  %v1568 = vrot.slane %v1560, %v1567
  %v1570 = vunpack.c.l.s4 1983009808
  %v1571 = vunpack.c.0.s8 %v1570
  %v1572 = vlaneseq
  %v1573 = vshrl.u32 %v1572, 7
  %v1574 = vsub.s32 %v1571, %v1573
  %v1575 = vrot.slane %v1561, %v1574
  %v1576 = vcombine.low %v647, %v649
  %v1577 = vcombine.high %v647, %v649
  %v1579 = vunpack.c.l.s4 1983009808
  %v1580 = vunpack.c.0.s8 %v1579
  %v1581 = vlaneseq
  %v1582 = vshrl.u32 %v1581, 7
  %v1583 = vsub.s32 %v1580, %v1582
  %v1584 = vrot.slane %v1576, %v1583
  %v1586 = vunpack.c.l.s4 1983009808
  %v1587 = vunpack.c.0.s8 %v1586
  %v1588 = vlaneseq
  %v1589 = vshrl.u32 %v1588, 7
  %v1590 = vsub.s32 %v1587, %v1589
  %v1591 = vrot.slane %v1577, %v1590
  %v1592 = vcombine.low %v650, %v652
  %v1593 = vcombine.high %v650, %v652
  %v1595 = vunpack.c.l.s4 1983009808
  %v1596 = vunpack.c.0.s8 %v1595
  %v1597 = vlaneseq
  %v1598 = vshrl.u32 %v1597, 7
  %v1599 = vsub.s32 %v1596, %v1598
  %v1600 = vrot.slane %v1592, %v1599
  %v1602 = vunpack.c.l.s4 1983009808
  %v1603 = vunpack.c.0.s8 %v1602
  %v1604 = vlaneseq
  %v1605 = vshrl.u32 %v1604, 7
  %v1606 = vsub.s32 %v1603, %v1605
  %v1607 = vrot.slane %v1593, %v1606
  %v1608 = vcombine.low %v651, %v653
  %v1609 = vcombine.high %v651, %v653
  %v1611 = vunpack.c.l.s4 1983009808
  %v1612 = vunpack.c.0.s8 %v1611
  %v1613 = vlaneseq
  %v1614 = vshrl.u32 %v1613, 7
  %v1615 = vsub.s32 %v1612, %v1614
  %v1616 = vrot.slane %v1608, %v1615
  %v1618 = vunpack.c.l.s4 1983009808
  %v1619 = vunpack.c.0.s8 %v1618
  %v1620 = vlaneseq
  %v1621 = vshrl.u32 %v1620, 7
  %v1622 = vsub.s32 %v1619, %v1621
  %v1623 = vrot.slane %v1609, %v1622
  %v1624 = vcombine.low %v1568, %v1584
  %v1625 = vcombine.high %v1568, %v1584
  %v1627 = vunpack.c.l.s4 1934713408
  %v1628 = vunpack.c.0.s8 %v1627
  %v1629 = vlaneseq
  %v1630 = vshrl.u32 %v1629, 7
  %v1631 = vsub.s32 %v1628, %v1630
  %v1632 = vrot.slane %v1624, %v1631
  %v1634 = vunpack.c.l.s4 1934713408
  %v1635 = vunpack.c.0.s8 %v1634
  %v1636 = vlaneseq
  %v1637 = vshrl.u32 %v1636, 7
  %v1638 = vsub.s32 %v1635, %v1637
  %v1639 = vrot.slane %v1625, %v1638
  %v1640 = vcombine.low %v1575, %v1591
  %v1642 = vunpack.c.l.s4 1934713408
  %v1643 = vunpack.c.0.s8 %v1642
  %v1644 = vlaneseq
  %v1645 = vshrl.u32 %v1644, 7
  %v1646 = vsub.s32 %v1643, %v1645
  %v1647 = vrot.slane %v1640, %v1646
  %v1648 = vcombine.low %v1600, %v1616
  %v1649 = vcombine.high %v1600, %v1616
  %v1651 = vunpack.c.l.s4 1934713408
  %v1652 = vunpack.c.0.s8 %v1651
  %v1653 = vlaneseq
  %v1654 = vshrl.u32 %v1653, 7
  %v1655 = vsub.s32 %v1652, %v1654
  %v1656 = vrot.slane %v1648, %v1655
  %v1658 = vunpack.c.l.s4 1934713408
  %v1659 = vunpack.c.0.s8 %v1658
  %v1660 = vlaneseq
  %v1661 = vshrl.u32 %v1660, 7
  %v1662 = vsub.s32 %v1659, %v1661
  %v1663 = vrot.slane %v1649, %v1662
  %v1664 = vcombine.low %v1607, %v1623
  %v1666 = vunpack.c.l.s4 1934713408
  %v1667 = vunpack.c.0.s8 %v1666
  %v1668 = vlaneseq
  %v1669 = vshrl.u32 %v1668, 7
  %v1670 = vsub.s32 %v1667, %v1669
  %v1671 = vrot.slane %v1664, %v1670
  %v1672 = vcombine.low %v1632, %v1656
  %v1673 = vcombine.high %v1632, %v1656
  %v1674 = vcombine.low %v1639, %v1663
  %v1675 = vcombine.high %v1639, %v1663
  %v1676 = vcombine.low %v1647, %v1671
  %v1677 = vcombine.high %v1647, %v1671
  %v1678 = vcombine.low %v780, %v782
  %v1679 = vcombine.high %v780, %v782
  %v1681 = vunpack.c.l.s4 1983009808
  %v1682 = vunpack.c.0.s8 %v1681
  %v1683 = vlaneseq
  %v1684 = vshrl.u32 %v1683, 7
  %v1685 = vsub.s32 %v1682, %v1684
  %v1686 = vrot.slane %v1678, %v1685
  %v1688 = vunpack.c.l.s4 1983009808
  %v1689 = vunpack.c.0.s8 %v1688
  %v1690 = vlaneseq
  %v1691 = vshrl.u32 %v1690, 7
  %v1692 = vsub.s32 %v1689, %v1691
  %v1693 = vrot.slane %v1679, %v1692
  %v1694 = vcombine.low %v781, %v783
  %v1695 = vcombine.high %v781, %v783
  %v1697 = vunpack.c.l.s4 1983009808
  %v1698 = vunpack.c.0.s8 %v1697
  %v1699 = vlaneseq
  %v1700 = vshrl.u32 %v1699, 7
  %v1701 = vsub.s32 %v1698, %v1700
  %v1702 = vrot.slane %v1694, %v1701
  %v1704 = vunpack.c.l.s4 1983009808
  %v1705 = vunpack.c.0.s8 %v1704
  %v1706 = vlaneseq
  %v1707 = vshrl.u32 %v1706, 7
  %v1708 = vsub.s32 %v1705, %v1707
  %v1709 = vrot.slane %v1695, %v1708
  %v1710 = vcombine.low %v784, %v786
  %v1711 = vcombine.high %v784, %v786
  %v1713 = vunpack.c.l.s4 1983009808
  %v1714 = vunpack.c.0.s8 %v1713
  %v1715 = vlaneseq
  %v1716 = vshrl.u32 %v1715, 7
  %v1717 = vsub.s32 %v1714, %v1716
  %v1718 = vrot.slane %v1710, %v1717
  %v1720 = vunpack.c.l.s4 1983009808
  %v1721 = vunpack.c.0.s8 %v1720
  %v1722 = vlaneseq
  %v1723 = vshrl.u32 %v1722, 7
  %v1724 = vsub.s32 %v1721, %v1723
  %v1725 = vrot.slane %v1711, %v1724
  %v1726 = vcombine.low %v785, %v787
  %v1727 = vcombine.high %v785, %v787
  %v1729 = vunpack.c.l.s4 1983009808
  %v1730 = vunpack.c.0.s8 %v1729
  %v1731 = vlaneseq
  %v1732 = vshrl.u32 %v1731, 7
  %v1733 = vsub.s32 %v1730, %v1732
  %v1734 = vrot.slane %v1726, %v1733
  %v1736 = vunpack.c.l.s4 1983009808
  %v1737 = vunpack.c.0.s8 %v1736
  %v1738 = vlaneseq
  %v1739 = vshrl.u32 %v1738, 7
  %v1740 = vsub.s32 %v1737, %v1739
  %v1741 = vrot.slane %v1727, %v1740
  %v1742 = vcombine.low %v1686, %v1702
  %v1743 = vcombine.high %v1686, %v1702
  %v1745 = vunpack.c.l.s4 1934713408
  %v1746 = vunpack.c.0.s8 %v1745
  %v1747 = vlaneseq
  %v1748 = vshrl.u32 %v1747, 7
  %v1749 = vsub.s32 %v1746, %v1748
  %v1750 = vrot.slane %v1742, %v1749
  %v1752 = vunpack.c.l.s4 1934713408
  %v1753 = vunpack.c.0.s8 %v1752
  %v1754 = vlaneseq
  %v1755 = vshrl.u32 %v1754, 7
  %v1756 = vsub.s32 %v1753, %v1755
  %v1757 = vrot.slane %v1743, %v1756
  %v1758 = vcombine.low %v1693, %v1709
  %v1760 = vunpack.c.l.s4 1934713408
  %v1761 = vunpack.c.0.s8 %v1760
  %v1762 = vlaneseq
  %v1763 = vshrl.u32 %v1762, 7
  %v1764 = vsub.s32 %v1761, %v1763
  %v1765 = vrot.slane %v1758, %v1764
  %v1766 = vcombine.low %v1718, %v1734
  %v1767 = vcombine.high %v1718, %v1734
  %v1769 = vunpack.c.l.s4 1934713408
  %v1770 = vunpack.c.0.s8 %v1769
  %v1771 = vlaneseq
  %v1772 = vshrl.u32 %v1771, 7
  %v1773 = vsub.s32 %v1770, %v1772
  %v1774 = vrot.slane %v1766, %v1773
  %v1776 = vunpack.c.l.s4 1934713408
  %v1777 = vunpack.c.0.s8 %v1776
  %v1778 = vlaneseq
  %v1779 = vshrl.u32 %v1778, 7
  %v1780 = vsub.s32 %v1777, %v1779
  %v1781 = vrot.slane %v1767, %v1780
  %v1782 = vcombine.low %v1725, %v1741
  %v1784 = vunpack.c.l.s4 1934713408
  %v1785 = vunpack.c.0.s8 %v1784
  %v1786 = vlaneseq
  %v1787 = vshrl.u32 %v1786, 7
  %v1788 = vsub.s32 %v1785, %v1787
  %v1789 = vrot.slane %v1782, %v1788
  %v1790 = vcombine.low %v1750, %v1774
  %v1791 = vcombine.high %v1750, %v1774
  %v1792 = vcombine.low %v1757, %v1781
  %v1793 = vcombine.high %v1757, %v1781
  %v1794 = vcombine.low %v1765, %v1789
  %v1795 = vcombine.high %v1765, %v1789
  %v1796 = vcombine.low %v914, %v916
  %v1797 = vcombine.high %v914, %v916
  %v1799 = vunpack.c.l.s4 1983009808
  %v1800 = vunpack.c.0.s8 %v1799
  %v1801 = vlaneseq
  %v1802 = vshrl.u32 %v1801, 7
  %v1803 = vsub.s32 %v1800, %v1802
  %v1804 = vrot.slane %v1796, %v1803
  %v1806 = vunpack.c.l.s4 1983009808
  %v1807 = vunpack.c.0.s8 %v1806
  %v1808 = vlaneseq
  %v1809 = vshrl.u32 %v1808, 7
  %v1810 = vsub.s32 %v1807, %v1809
  %v1811 = vrot.slane %v1797, %v1810
  %v1812 = vcombine.low %v915, %v917
  %v1813 = vcombine.high %v915, %v917
  %v1815 = vunpack.c.l.s4 1983009808
  %v1816 = vunpack.c.0.s8 %v1815
  %v1817 = vlaneseq
  %v1818 = vshrl.u32 %v1817, 7
  %v1819 = vsub.s32 %v1816, %v1818
  %v1820 = vrot.slane %v1812, %v1819
  %v1822 = vunpack.c.l.s4 1983009808
  %v1823 = vunpack.c.0.s8 %v1822
  %v1824 = vlaneseq
  %v1825 = vshrl.u32 %v1824, 7
  %v1826 = vsub.s32 %v1823, %v1825
  %v1827 = vrot.slane %v1813, %v1826
  %v1828 = vcombine.low %v918, %v920
  %v1829 = vcombine.high %v918, %v920
  %v1831 = vunpack.c.l.s4 1983009808
  %v1832 = vunpack.c.0.s8 %v1831
  %v1833 = vlaneseq
  %v1834 = vshrl.u32 %v1833, 7
  %v1835 = vsub.s32 %v1832, %v1834
  %v1836 = vrot.slane %v1828, %v1835
  %v1838 = vunpack.c.l.s4 1983009808
  %v1839 = vunpack.c.0.s8 %v1838
  %v1840 = vlaneseq
  %v1841 = vshrl.u32 %v1840, 7
  %v1842 = vsub.s32 %v1839, %v1841
  %v1843 = vrot.slane %v1829, %v1842
  %v1844 = vcombine.low %v919, %v921
  %v1845 = vcombine.high %v919, %v921
  %v1847 = vunpack.c.l.s4 1983009808
  %v1848 = vunpack.c.0.s8 %v1847
  %v1849 = vlaneseq
  %v1850 = vshrl.u32 %v1849, 7
  %v1851 = vsub.s32 %v1848, %v1850
  %v1852 = vrot.slane %v1844, %v1851
  %v1854 = vunpack.c.l.s4 1983009808
  %v1855 = vunpack.c.0.s8 %v1854
  %v1856 = vlaneseq
  %v1857 = vshrl.u32 %v1856, 7
  %v1858 = vsub.s32 %v1855, %v1857
  %v1859 = vrot.slane %v1845, %v1858
  %v1860 = vcombine.low %v1804, %v1820
  %v1861 = vcombine.high %v1804, %v1820
  %v1863 = vunpack.c.l.s4 1934713408
  %v1864 = vunpack.c.0.s8 %v1863
  %v1865 = vlaneseq
  %v1866 = vshrl.u32 %v1865, 7
  %v1867 = vsub.s32 %v1864, %v1866
  %v1868 = vrot.slane %v1860, %v1867
  %v1870 = vunpack.c.l.s4 1934713408
  %v1871 = vunpack.c.0.s8 %v1870
  %v1872 = vlaneseq
  %v1873 = vshrl.u32 %v1872, 7
  %v1874 = vsub.s32 %v1871, %v1873
  %v1875 = vrot.slane %v1861, %v1874
  %v1876 = vcombine.low %v1811, %v1827
  %v1878 = vunpack.c.l.s4 1934713408
  %v1879 = vunpack.c.0.s8 %v1878
  %v1880 = vlaneseq
  %v1881 = vshrl.u32 %v1880, 7
  %v1882 = vsub.s32 %v1879, %v1881
  %v1883 = vrot.slane %v1876, %v1882
  %v1884 = vcombine.low %v1836, %v1852
  %v1885 = vcombine.high %v1836, %v1852
  %v1887 = vunpack.c.l.s4 1934713408
  %v1888 = vunpack.c.0.s8 %v1887
  %v1889 = vlaneseq
  %v1890 = vshrl.u32 %v1889, 7
  %v1891 = vsub.s32 %v1888, %v1890
  %v1892 = vrot.slane %v1884, %v1891
  %v1894 = vunpack.c.l.s4 1934713408
  %v1895 = vunpack.c.0.s8 %v1894
  %v1896 = vlaneseq
  %v1897 = vshrl.u32 %v1896, 7
  %v1898 = vsub.s32 %v1895, %v1897
  %v1899 = vrot.slane %v1885, %v1898
  %v1900 = vcombine.low %v1843, %v1859
  %v1902 = vunpack.c.l.s4 1934713408
  %v1903 = vunpack.c.0.s8 %v1902
  %v1904 = vlaneseq
  %v1905 = vshrl.u32 %v1904, 7
  %v1906 = vsub.s32 %v1903, %v1905
  %v1907 = vrot.slane %v1900, %v1906
  %v1908 = vcombine.low %v1868, %v1892
  %v1909 = vcombine.high %v1868, %v1892
  %v1910 = vcombine.low %v1875, %v1899
  %v1911 = vcombine.high %v1875, %v1899
  %v1912 = vcombine.low %v1883, %v1907
  %v1913 = vcombine.high %v1883, %v1907
  %v1914 = vcombine.low %v1048, %v1050
  %v1915 = vcombine.high %v1048, %v1050
  %v1917 = vunpack.c.l.s4 1983009808
  %v1918 = vunpack.c.0.s8 %v1917
  %v1919 = vlaneseq
  %v1920 = vshrl.u32 %v1919, 7
  %v1921 = vsub.s32 %v1918, %v1920
  %v1922 = vrot.slane %v1914, %v1921
  %v1924 = vunpack.c.l.s4 1983009808
  %v1925 = vunpack.c.0.s8 %v1924
  %v1926 = vlaneseq
  %v1927 = vshrl.u32 %v1926, 7
  %v1928 = vsub.s32 %v1925, %v1927
  %v1929 = vrot.slane %v1915, %v1928
  %v1930 = vcombine.low %v1049, %v1051
  %v1931 = vcombine.high %v1049, %v1051
  %v1933 = vunpack.c.l.s4 1983009808
  %v1934 = vunpack.c.0.s8 %v1933
  %v1935 = vlaneseq
  %v1936 = vshrl.u32 %v1935, 7
  %v1937 = vsub.s32 %v1934, %v1936
  %v1938 = vrot.slane %v1930, %v1937
  %v1940 = vunpack.c.l.s4 1983009808
  %v1941 = vunpack.c.0.s8 %v1940
  %v1942 = vlaneseq
  %v1943 = vshrl.u32 %v1942, 7
  %v1944 = vsub.s32 %v1941, %v1943
  %v1945 = vrot.slane %v1931, %v1944
  %v1946 = vcombine.low %v1052, %v1054
  %v1947 = vcombine.high %v1052, %v1054
  %v1949 = vunpack.c.l.s4 1983009808
  %v1950 = vunpack.c.0.s8 %v1949
  %v1951 = vlaneseq
  %v1952 = vshrl.u32 %v1951, 7
  %v1953 = vsub.s32 %v1950, %v1952
  %v1954 = vrot.slane %v1946, %v1953
  %v1956 = vunpack.c.l.s4 1983009808
  %v1957 = vunpack.c.0.s8 %v1956
  %v1958 = vlaneseq
  %v1959 = vshrl.u32 %v1958, 7
  %v1960 = vsub.s32 %v1957, %v1959
  %v1961 = vrot.slane %v1947, %v1960
  %v1962 = vcombine.low %v1053, %v1055
  %v1963 = vcombine.high %v1053, %v1055
  %v1965 = vunpack.c.l.s4 1983009808
  %v1966 = vunpack.c.0.s8 %v1965
  %v1967 = vlaneseq
  %v1968 = vshrl.u32 %v1967, 7
  %v1969 = vsub.s32 %v1966, %v1968
  %v1970 = vrot.slane %v1962, %v1969
  %v1972 = vunpack.c.l.s4 1983009808
  %v1973 = vunpack.c.0.s8 %v1972
  %v1974 = vlaneseq
  %v1975 = vshrl.u32 %v1974, 7
  %v1976 = vsub.s32 %v1973, %v1975
  %v1977 = vrot.slane %v1963, %v1976
  %v1978 = vcombine.low %v1922, %v1938
  %v1979 = vcombine.high %v1922, %v1938
  %v1981 = vunpack.c.l.s4 1934713408
  %v1982 = vunpack.c.0.s8 %v1981
  %v1983 = vlaneseq
  %v1984 = vshrl.u32 %v1983, 7
  %v1985 = vsub.s32 %v1982, %v1984
  %v1986 = vrot.slane %v1978, %v1985
  %v1988 = vunpack.c.l.s4 1934713408
  %v1989 = vunpack.c.0.s8 %v1988
  %v1990 = vlaneseq
  %v1991 = vshrl.u32 %v1990, 7
  %v1992 = vsub.s32 %v1989, %v1991
  %v1993 = vrot.slane %v1979, %v1992
  %v1994 = vcombine.low %v1929, %v1945
  %v1996 = vunpack.c.l.s4 1934713408
  %v1997 = vunpack.c.0.s8 %v1996
  %v1998 = vlaneseq
  %v1999 = vshrl.u32 %v1998, 7
  %v2000 = vsub.s32 %v1997, %v1999
  %v2001 = vrot.slane %v1994, %v2000
  %v2002 = vcombine.low %v1954, %v1970
  %v2003 = vcombine.high %v1954, %v1970
  %v2005 = vunpack.c.l.s4 1934713408
  %v2006 = vunpack.c.0.s8 %v2005
  %v2007 = vlaneseq
  %v2008 = vshrl.u32 %v2007, 7
  %v2009 = vsub.s32 %v2006, %v2008
  %v2010 = vrot.slane %v2002, %v2009
  %v2012 = vunpack.c.l.s4 1934713408
  %v2013 = vunpack.c.0.s8 %v2012
  %v2014 = vlaneseq
  %v2015 = vshrl.u32 %v2014, 7
  %v2016 = vsub.s32 %v2013, %v2015
  %v2017 = vrot.slane %v2003, %v2016
  %v2018 = vcombine.low %v1961, %v1977
  %v2020 = vunpack.c.l.s4 1934713408
  %v2021 = vunpack.c.0.s8 %v2020
  %v2022 = vlaneseq
  %v2023 = vshrl.u32 %v2022, 7
  %v2024 = vsub.s32 %v2021, %v2023
  %v2025 = vrot.slane %v2018, %v2024
  %v2026 = vcombine.low %v1986, %v2010
  %v2027 = vcombine.high %v1986, %v2010
  %v2028 = vcombine.low %v1993, %v2017
  %v2029 = vcombine.high %v1993, %v2017
  %v2030 = vcombine.low %v2001, %v2025
  %v2031 = vcombine.high %v2001, %v2025
  %v2032 = vcombine.low %v1182, %v1184
  %v2033 = vcombine.high %v1182, %v1184
  %v2035 = vunpack.c.l.s4 1983009808
  %v2036 = vunpack.c.0.s8 %v2035
  %v2037 = vlaneseq
  %v2038 = vshrl.u32 %v2037, 7
  %v2039 = vsub.s32 %v2036, %v2038
  %v2040 = vrot.slane %v2032, %v2039
  %v2042 = vunpack.c.l.s4 1983009808
  %v2043 = vunpack.c.0.s8 %v2042
  %v2044 = vlaneseq
  %v2045 = vshrl.u32 %v2044, 7
  %v2046 = vsub.s32 %v2043, %v2045
  %v2047 = vrot.slane %v2033, %v2046
  %v2048 = vcombine.low %v1183, %v1185
  %v2049 = vcombine.high %v1183, %v1185
  %v2051 = vunpack.c.l.s4 1983009808
  %v2052 = vunpack.c.0.s8 %v2051
  %v2053 = vlaneseq
  %v2054 = vshrl.u32 %v2053, 7
  %v2055 = vsub.s32 %v2052, %v2054
  %v2056 = vrot.slane %v2048, %v2055
  %v2058 = vunpack.c.l.s4 1983009808
  %v2059 = vunpack.c.0.s8 %v2058
  %v2060 = vlaneseq
  %v2061 = vshrl.u32 %v2060, 7
  %v2062 = vsub.s32 %v2059, %v2061
  %v2063 = vrot.slane %v2049, %v2062
  %v2064 = vcombine.low %v1186, %v1188
  %v2065 = vcombine.high %v1186, %v1188
  %v2067 = vunpack.c.l.s4 1983009808
  %v2068 = vunpack.c.0.s8 %v2067
  %v2069 = vlaneseq
  %v2070 = vshrl.u32 %v2069, 7
  %v2071 = vsub.s32 %v2068, %v2070
  %v2072 = vrot.slane %v2064, %v2071
  %v2074 = vunpack.c.l.s4 1983009808
  %v2075 = vunpack.c.0.s8 %v2074
  %v2076 = vlaneseq
  %v2077 = vshrl.u32 %v2076, 7
  %v2078 = vsub.s32 %v2075, %v2077
  %v2079 = vrot.slane %v2065, %v2078
  %v2080 = vcombine.low %v1187, %v1189
  %v2081 = vcombine.high %v1187, %v1189
  %v2083 = vunpack.c.l.s4 1983009808
  %v2084 = vunpack.c.0.s8 %v2083
  %v2085 = vlaneseq
  %v2086 = vshrl.u32 %v2085, 7
  %v2087 = vsub.s32 %v2084, %v2086
  %v2088 = vrot.slane %v2080, %v2087
  %v2090 = vunpack.c.l.s4 1983009808
  %v2091 = vunpack.c.0.s8 %v2090
  %v2092 = vlaneseq
  %v2093 = vshrl.u32 %v2092, 7
  %v2094 = vsub.s32 %v2091, %v2093
  %v2095 = vrot.slane %v2081, %v2094
  %v2096 = vcombine.low %v2040, %v2056
  %v2097 = vcombine.high %v2040, %v2056
  %v2099 = vunpack.c.l.s4 1934713408
  %v2100 = vunpack.c.0.s8 %v2099
  %v2101 = vlaneseq
  %v2102 = vshrl.u32 %v2101, 7
  %v2103 = vsub.s32 %v2100, %v2102
  %v2104 = vrot.slane %v2096, %v2103
  %v2106 = vunpack.c.l.s4 1934713408
  %v2107 = vunpack.c.0.s8 %v2106
  %v2108 = vlaneseq
  %v2109 = vshrl.u32 %v2108, 7
  %v2110 = vsub.s32 %v2107, %v2109
  %v2111 = vrot.slane %v2097, %v2110
  %v2112 = vcombine.low %v2047, %v2063
  %v2114 = vunpack.c.l.s4 1934713408
  %v2115 = vunpack.c.0.s8 %v2114
  %v2116 = vlaneseq
  %v2117 = vshrl.u32 %v2116, 7
  %v2118 = vsub.s32 %v2115, %v2117
  %v2119 = vrot.slane %v2112, %v2118
  %v2120 = vcombine.low %v2072, %v2088
  %v2121 = vcombine.high %v2072, %v2088
  %v2123 = vunpack.c.l.s4 1934713408
  %v2124 = vunpack.c.0.s8 %v2123
  %v2125 = vlaneseq
  %v2126 = vshrl.u32 %v2125, 7
  %v2127 = vsub.s32 %v2124, %v2126
  %v2128 = vrot.slane %v2120, %v2127
  %v2130 = vunpack.c.l.s4 1934713408
  %v2131 = vunpack.c.0.s8 %v2130
  %v2132 = vlaneseq
  %v2133 = vshrl.u32 %v2132, 7
  %v2134 = vsub.s32 %v2131, %v2133
  %v2135 = vrot.slane %v2121, %v2134
  %v2136 = vcombine.low %v2079, %v2095
  %v2138 = vunpack.c.l.s4 1934713408
  %v2139 = vunpack.c.0.s8 %v2138
  %v2140 = vlaneseq
  %v2141 = vshrl.u32 %v2140, 7
  %v2142 = vsub.s32 %v2139, %v2141
  %v2143 = vrot.slane %v2136, %v2142
  %v2144 = vcombine.low %v2104, %v2128
  %v2145 = vcombine.high %v2104, %v2128
  %v2146 = vcombine.low %v2111, %v2135
  %v2147 = vcombine.high %v2111, %v2135
  %v2148 = vcombine.low %v2119, %v2143
  %v2149 = vcombine.high %v2119, %v2143
  %v2150 = vcombine.low %v1316, %v1318
  %v2151 = vcombine.high %v1316, %v1318
  %v2153 = vunpack.c.l.s4 1983009808
  %v2154 = vunpack.c.0.s8 %v2153
  %v2155 = vlaneseq
  %v2156 = vshrl.u32 %v2155, 7
  %v2157 = vsub.s32 %v2154, %v2156
  %v2158 = vrot.slane %v2150, %v2157
  %v2160 = vunpack.c.l.s4 1983009808
  %v2161 = vunpack.c.0.s8 %v2160
  %v2162 = vlaneseq
  %v2163 = vshrl.u32 %v2162, 7
  %v2164 = vsub.s32 %v2161, %v2163
  %v2165 = vrot.slane %v2151, %v2164
  %v2166 = vcombine.low %v1317, %v1319
  %v2167 = vcombine.high %v1317, %v1319
  %v2169 = vunpack.c.l.s4 1983009808
  %v2170 = vunpack.c.0.s8 %v2169
  %v2171 = vlaneseq
  %v2172 = vshrl.u32 %v2171, 7
  %v2173 = vsub.s32 %v2170, %v2172
  %v2174 = vrot.slane %v2166, %v2173
  %v2176 = vunpack.c.l.s4 1983009808
  %v2177 = vunpack.c.0.s8 %v2176
  %v2178 = vlaneseq
  %v2179 = vshrl.u32 %v2178, 7
  %v2180 = vsub.s32 %v2177, %v2179
  %v2181 = vrot.slane %v2167, %v2180
  %v2182 = vcombine.low %v1320, %v1322
  %v2183 = vcombine.high %v1320, %v1322
  %v2185 = vunpack.c.l.s4 1983009808
  %v2186 = vunpack.c.0.s8 %v2185
  %v2187 = vlaneseq
  %v2188 = vshrl.u32 %v2187, 7
  %v2189 = vsub.s32 %v2186, %v2188
  %v2190 = vrot.slane %v2182, %v2189
  %v2192 = vunpack.c.l.s4 1983009808
  %v2193 = vunpack.c.0.s8 %v2192
  %v2194 = vlaneseq
  %v2195 = vshrl.u32 %v2194, 7
  %v2196 = vsub.s32 %v2193, %v2195
  %v2197 = vrot.slane %v2183, %v2196
  %v2198 = vcombine.low %v1321, %v1323
  %v2199 = vcombine.high %v1321, %v1323
  %v2201 = vunpack.c.l.s4 1983009808
  %v2202 = vunpack.c.0.s8 %v2201
  %v2203 = vlaneseq
  %v2204 = vshrl.u32 %v2203, 7
  %v2205 = vsub.s32 %v2202, %v2204
  %v2206 = vrot.slane %v2198, %v2205
  %v2208 = vunpack.c.l.s4 1983009808
  %v2209 = vunpack.c.0.s8 %v2208
  %v2210 = vlaneseq
  %v2211 = vshrl.u32 %v2210, 7
  %v2212 = vsub.s32 %v2209, %v2211
  %v2213 = vrot.slane %v2199, %v2212
  %v2214 = vcombine.low %v2158, %v2174
  %v2215 = vcombine.high %v2158, %v2174
  %v2217 = vunpack.c.l.s4 1934713408
  %v2218 = vunpack.c.0.s8 %v2217
  %v2219 = vlaneseq
  %v2220 = vshrl.u32 %v2219, 7
  %v2221 = vsub.s32 %v2218, %v2220
  %v2222 = vrot.slane %v2214, %v2221
  %v2224 = vunpack.c.l.s4 1934713408
  %v2225 = vunpack.c.0.s8 %v2224
  %v2226 = vlaneseq
  %v2227 = vshrl.u32 %v2226, 7
  %v2228 = vsub.s32 %v2225, %v2227
  %v2229 = vrot.slane %v2215, %v2228
  %v2230 = vcombine.low %v2165, %v2181
  %v2232 = vunpack.c.l.s4 1934713408
  %v2233 = vunpack.c.0.s8 %v2232
  %v2234 = vlaneseq
  %v2235 = vshrl.u32 %v2234, 7
  %v2236 = vsub.s32 %v2233, %v2235
  %v2237 = vrot.slane %v2230, %v2236
  %v2238 = vcombine.low %v2190, %v2206
  %v2239 = vcombine.high %v2190, %v2206
  %v2241 = vunpack.c.l.s4 1934713408
  %v2242 = vunpack.c.0.s8 %v2241
  %v2243 = vlaneseq
  %v2244 = vshrl.u32 %v2243, 7
  %v2245 = vsub.s32 %v2242, %v2244
  %v2246 = vrot.slane %v2238, %v2245
  %v2248 = vunpack.c.l.s4 1934713408
  %v2249 = vunpack.c.0.s8 %v2248
  %v2250 = vlaneseq
  %v2251 = vshrl.u32 %v2250, 7
  %v2252 = vsub.s32 %v2249, %v2251
  %v2253 = vrot.slane %v2239, %v2252
  %v2254 = vcombine.low %v2197, %v2213
  %v2256 = vunpack.c.l.s4 1934713408
  %v2257 = vunpack.c.0.s8 %v2256
  %v2258 = vlaneseq
  %v2259 = vshrl.u32 %v2258, 7
  %v2260 = vsub.s32 %v2257, %v2259
  %v2261 = vrot.slane %v2254, %v2260
  %v2262 = vcombine.low %v2222, %v2246
  %v2263 = vcombine.high %v2222, %v2246
  %v2264 = vcombine.low %v2229, %v2253
  %v2265 = vcombine.high %v2229, %v2253
  %v2266 = vcombine.low %v2237, %v2261
  %v2267 = vcombine.high %v2237, %v2261
  %v2268 = vpack.c.bf16 %v1436, %v1436
  %v2269 = vpack.c.bf16 %v1554, %v1554
  %v2270 = vpack.c.bf16 %v1672, %v1672
  %v2271 = vpack.c.bf16 %v1790, %v1790
  %v2272 = vpack.c.bf16 %v1908, %v1908
  %v2273 = vpack.c.bf16 %v2026, %v2026
  %v2274 = vpack.c.bf16 %v2144, %v2144
  %v2275 = vpack.c.bf16 %v2262, %v2262
  %v2276 = vpack.c.bf16 %v1437, %v1437
  %v2277 = vpack.c.bf16 %v1555, %v1555
  %v2278 = vpack.c.bf16 %v1673, %v1673
  %v2279 = vpack.c.bf16 %v1791, %v1791
  %v2280 = vpack.c.bf16 %v1909, %v1909
  %v2281 = vpack.c.bf16 %v2027, %v2027
  %v2282 = vpack.c.bf16 %v2145, %v2145
  %v2283 = vpack.c.bf16 %v2263, %v2263
  %v2284 = vpack.c.bf16 %v1438, %v1438
  %v2285 = vpack.c.bf16 %v1556, %v1556
  %v2286 = vpack.c.bf16 %v1674, %v1674
  %v2287 = vpack.c.bf16 %v1792, %v1792
  %v2288 = vpack.c.bf16 %v1910, %v1910
  %v2289 = vpack.c.bf16 %v2028, %v2028
  %v2290 = vpack.c.bf16 %v2146, %v2146
  %v2291 = vpack.c.bf16 %v2264, %v2264
  %v2292 = vpack.c.bf16 %v1439, %v1439
  %v2293 = vpack.c.bf16 %v1557, %v1557
  %v2294 = vpack.c.bf16 %v1675, %v1675
  %v2295 = vpack.c.bf16 %v1793, %v1793
  %v2296 = vpack.c.bf16 %v1911, %v1911
  %v2297 = vpack.c.bf16 %v2029, %v2029
  %v2298 = vpack.c.bf16 %v2147, %v2147
  %v2299 = vpack.c.bf16 %v2265, %v2265
  %v2300 = vpack.c.bf16 %v1440, %v1440
  %v2301 = vpack.c.bf16 %v1558, %v1558
  %v2302 = vpack.c.bf16 %v1676, %v1676
  %v2303 = vpack.c.bf16 %v1794, %v1794
  %v2304 = vpack.c.bf16 %v1912, %v1912
  %v2305 = vpack.c.bf16 %v2030, %v2030
  %v2306 = vpack.c.bf16 %v2148, %v2148
  %v2307 = vpack.c.bf16 %v2266, %v2266
  %v2308 = vpack.c.bf16 %v1441, %v1441
  %v2309 = vpack.c.bf16 %v1559, %v1559
  %v2310 = vpack.c.bf16 %v1677, %v1677
  %v2311 = vpack.c.bf16 %v1795, %v1795
  %v2312 = vpack.c.bf16 %v1913, %v1913
  %v2313 = vpack.c.bf16 %v2031, %v2031
  %v2314 = vpack.c.bf16 %v2149, %v2149
  %v2315 = vpack.c.bf16 %v2267, %v2267
  %vm2316 = vcmask 130048
  %v2318 = vsel %vm2316, %v2268, 0
  %v2321 = vsel %vm2316, %v2284, 0
  %2323 = vmatprep.subr.bf16.mxu0 0
  %2324 = vmatpush1.bf16.xpose.msra.mxu0 %v2321
  %2325 = vmatprep.subr.bf16.mxu0 0
  %2326 = vmatpush1.bf16.xpose.msra.mxu0 0
  %2327 = vmatprep.subr.bf16.mxu0 0
  %2328 = vmatpush1.bf16.xpose.msra.mxu0 0
  %2329 = vmatprep.subr.bf16.mxu0 0
  %2330 = vmatpush1.bf16.xpose.msra.mxu0 0
  %2331 = vmatprep.subr.bf16.mxu0 0
  %2332 = vmatpush1.bf16.xpose.msra.mxu0 0
  %2333 = vmatprep.subr.bf16.mxu0 0
  %2334 = vmatpush1.bf16.xpose.msra.mxu0 0
  %2335 = vmatprep.subr.bf16.mxu0 0
  %2336 = vmatpush1.bf16.xpose.msra.mxu0 0
  %2337 = vmatprep.subr.bf16.mxu0 0
  %2338 = vmatpush1.bf16.xpose.msra.mxu0 0
  %2339 = vmatprep.subr.bf16.mxu0 0
  %2340 = vmatpush1.bf16.xpose.msra.mxu0 0
  %2341 = vmatprep.subr.bf16.mxu0 0
  %2342 = vmatpush1.bf16.xpose.msra.mxu0 0
  %2343 = vmatprep.subr.bf16.mxu0 0
  %2344 = vmatpush1.bf16.xpose.msra.mxu0 0
  %2345 = vmatprep.subr.bf16.mxu0 0
  %2346 = vmatpush1.bf16.xpose.msra.mxu0 0
  %2347 = vmatprep.subr.bf16.mxu0 0
  %2348 = vmatpush1.bf16.xpose.msra.mxu0 0
  %2349 = vmatprep.subr.bf16.mxu0 0
  %2350 = vmatpush1.bf16.xpose.msra.mxu0 0
  %2351 = vmatprep.subr.bf16.mxu0 0
  %2352 = vmatpush1.bf16.xpose.msra.mxu0 0
  %2353 = vmatprep.subr.bf16.mxu0 0
  %2354 = vmatpush1.bf16.xpose.msra.mxu0 0
  %2355 = vmatprep.mubr.bf16.mxu0 0
  %2356 = vmatmul.mubr.bf16.gmra.mrb[0].mxu0 %v2318
  %v2357 = vpop.f32.mrb[0].mxu0
  %v2358 = vadd.f32 0.0, %v2357
  %v2359 = vpop.f32.mrb[0].mxu0
  %v2360 = vpop.f32.mrb[0].mxu0
  %v2361 = vpop.f32.mrb[0].mxu0
  %2362 = vdwg.mxu0
  %v2364 = vsel %vm2316, %v2269, 0
  %v2367 = vsel %vm2316, %v2285, 0
  %2369 = vmatprep.subr.bf16.mxu0 0
  %2370 = vmatpush1.bf16.xpose.msra.mxu0 %v2367
  %2371 = vmatprep.subr.bf16.mxu0 0
  %2372 = vmatpush1.bf16.xpose.msra.mxu0 0
  %2373 = vmatprep.subr.bf16.mxu0 0
  %2374 = vmatpush1.bf16.xpose.msra.mxu0 0
  %2375 = vmatprep.subr.bf16.mxu0 0
  %2376 = vmatpush1.bf16.xpose.msra.mxu0 0
  %2377 = vmatprep.subr.bf16.mxu0 0
  %2378 = vmatpush1.bf16.xpose.msra.mxu0 0
  %2379 = vmatprep.subr.bf16.mxu0 0
  %2380 = vmatpush1.bf16.xpose.msra.mxu0 0
  %2381 = vmatprep.subr.bf16.mxu0 0
  %2382 = vmatpush1.bf16.xpose.msra.mxu0 0
  %2383 = vmatprep.subr.bf16.mxu0 0
  %2384 = vmatpush1.bf16.xpose.msra.mxu0 0
  %2385 = vmatprep.subr.bf16.mxu0 0
  %2386 = vmatpush1.bf16.xpose.msra.mxu0 0
  %2387 = vmatprep.subr.bf16.mxu0 0
  %2388 = vmatpush1.bf16.xpose.msra.mxu0 0
  %2389 = vmatprep.subr.bf16.mxu0 0
  %2390 = vmatpush1.bf16.xpose.msra.mxu0 0
  %2391 = vmatprep.subr.bf16.mxu0 0
  %2392 = vmatpush1.bf16.xpose.msra.mxu0 0
  %2393 = vmatprep.subr.bf16.mxu0 0
  %2394 = vmatpush1.bf16.xpose.msra.mxu0 0
  %2395 = vmatprep.subr.bf16.mxu0 0
  %2396 = vmatpush1.bf16.xpose.msra.mxu0 0
  %2397 = vmatprep.subr.bf16.mxu0 0
  %2398 = vmatpush1.bf16.xpose.msra.mxu0 0
  %2399 = vmatprep.subr.bf16.mxu0 0
  %2400 = vmatpush1.bf16.xpose.msra.mxu0 0
  %2401 = vmatprep.mubr.bf16.mxu0 0
  %2402 = vmatmul.mubr.bf16.gmra.mrb[0].mxu0 %v2364
  %v2403 = vpop.f32.mrb[0].mxu0
  %v2404 = vadd.f32 0.0, %v2403
  %v2405 = vpop.f32.mrb[0].mxu0
  %v2406 = vpop.f32.mrb[0].mxu0
  %v2407 = vpop.f32.mrb[0].mxu0
  %2408 = vdwg.mxu0
  %v2410 = vsel %vm2316, %v2270, 0
  %v2413 = vsel %vm2316, %v2286, 0
  %2415 = vmatprep.subr.bf16.mxu0 0
  %2416 = vmatpush1.bf16.xpose.msra.mxu0 %v2413
  %2417 = vmatprep.subr.bf16.mxu0 0
  %2418 = vmatpush1.bf16.xpose.msra.mxu0 0
  %2419 = vmatprep.subr.bf16.mxu0 0
  %2420 = vmatpush1.bf16.xpose.msra.mxu0 0
  %2421 = vmatprep.subr.bf16.mxu0 0
  %2422 = vmatpush1.bf16.xpose.msra.mxu0 0
  %2423 = vmatprep.subr.bf16.mxu0 0
  %2424 = vmatpush1.bf16.xpose.msra.mxu0 0
  %2425 = vmatprep.subr.bf16.mxu0 0
  %2426 = vmatpush1.bf16.xpose.msra.mxu0 0
  %2427 = vmatprep.subr.bf16.mxu0 0
  %2428 = vmatpush1.bf16.xpose.msra.mxu0 0
  %2429 = vmatprep.subr.bf16.mxu0 0
  %2430 = vmatpush1.bf16.xpose.msra.mxu0 0
  %2431 = vmatprep.subr.bf16.mxu0 0
  %2432 = vmatpush1.bf16.xpose.msra.mxu0 0
  %2433 = vmatprep.subr.bf16.mxu0 0
  %2434 = vmatpush1.bf16.xpose.msra.mxu0 0
  %2435 = vmatprep.subr.bf16.mxu0 0
  %2436 = vmatpush1.bf16.xpose.msra.mxu0 0
  %2437 = vmatprep.subr.bf16.mxu0 0
  %2438 = vmatpush1.bf16.xpose.msra.mxu0 0
  %2439 = vmatprep.subr.bf16.mxu0 0
  %2440 = vmatpush1.bf16.xpose.msra.mxu0 0
  %2441 = vmatprep.subr.bf16.mxu0 0
  %2442 = vmatpush1.bf16.xpose.msra.mxu0 0
  %2443 = vmatprep.subr.bf16.mxu0 0
  %2444 = vmatpush1.bf16.xpose.msra.mxu0 0
  %2445 = vmatprep.subr.bf16.mxu0 0
  %2446 = vmatpush1.bf16.xpose.msra.mxu0 0
  %2447 = vmatprep.mubr.bf16.mxu0 0
  %2448 = vmatmul.mubr.bf16.gmra.mrb[0].mxu0 %v2410
  %v2449 = vpop.f32.mrb[0].mxu0
  %v2450 = vadd.f32 0.0, %v2449
  %v2451 = vpop.f32.mrb[0].mxu0
  %v2452 = vpop.f32.mrb[0].mxu0
  %v2453 = vpop.f32.mrb[0].mxu0
  %2454 = vdwg.mxu0
  %v2456 = vsel %vm2316, %v2271, 0
  %v2459 = vsel %vm2316, %v2287, 0
  %2461 = vmatprep.subr.bf16.mxu0 0
  %2462 = vmatpush1.bf16.xpose.msra.mxu0 %v2459
  %2463 = vmatprep.subr.bf16.mxu0 0
  %2464 = vmatpush1.bf16.xpose.msra.mxu0 0
  %2465 = vmatprep.subr.bf16.mxu0 0
  %2466 = vmatpush1.bf16.xpose.msra.mxu0 0
  %2467 = vmatprep.subr.bf16.mxu0 0
  %2468 = vmatpush1.bf16.xpose.msra.mxu0 0
  %2469 = vmatprep.subr.bf16.mxu0 0
  %2470 = vmatpush1.bf16.xpose.msra.mxu0 0
  %2471 = vmatprep.subr.bf16.mxu0 0
  %2472 = vmatpush1.bf16.xpose.msra.mxu0 0
  %2473 = vmatprep.subr.bf16.mxu0 0
  %2474 = vmatpush1.bf16.xpose.msra.mxu0 0
  %2475 = vmatprep.subr.bf16.mxu0 0
  %2476 = vmatpush1.bf16.xpose.msra.mxu0 0
  %2477 = vmatprep.subr.bf16.mxu0 0
  %2478 = vmatpush1.bf16.xpose.msra.mxu0 0
  %2479 = vmatprep.subr.bf16.mxu0 0
  %2480 = vmatpush1.bf16.xpose.msra.mxu0 0
  %2481 = vmatprep.subr.bf16.mxu0 0
  %2482 = vmatpush1.bf16.xpose.msra.mxu0 0
  %2483 = vmatprep.subr.bf16.mxu0 0
  %2484 = vmatpush1.bf16.xpose.msra.mxu0 0
  %2485 = vmatprep.subr.bf16.mxu0 0
  %2486 = vmatpush1.bf16.xpose.msra.mxu0 0
  %2487 = vmatprep.subr.bf16.mxu0 0
  %2488 = vmatpush1.bf16.xpose.msra.mxu0 0
  %2489 = vmatprep.subr.bf16.mxu0 0
  %2490 = vmatpush1.bf16.xpose.msra.mxu0 0
  %2491 = vmatprep.subr.bf16.mxu0 0
  %2492 = vmatpush1.bf16.xpose.msra.mxu0 0
  %2493 = vmatprep.mubr.bf16.mxu0 0
  %2494 = vmatmul.mubr.bf16.gmra.mrb[0].mxu0 %v2456
  %v2495 = vpop.f32.mrb[0].mxu0
  %v2496 = vadd.f32 0.0, %v2495
  %v2497 = vpop.f32.mrb[0].mxu0
  %v2498 = vpop.f32.mrb[0].mxu0
  %v2499 = vpop.f32.mrb[0].mxu0
  %2500 = vdwg.mxu0
  %v2502 = vsel %vm2316, %v2272, 0
  %v2505 = vsel %vm2316, %v2288, 0
  %2507 = vmatprep.subr.bf16.mxu0 0
  %2508 = vmatpush1.bf16.xpose.msra.mxu0 %v2505
  %2509 = vmatprep.subr.bf16.mxu0 0
  %2510 = vmatpush1.bf16.xpose.msra.mxu0 0
  %2511 = vmatprep.subr.bf16.mxu0 0
  %2512 = vmatpush1.bf16.xpose.msra.mxu0 0
  %2513 = vmatprep.subr.bf16.mxu0 0
  %2514 = vmatpush1.bf16.xpose.msra.mxu0 0
  %2515 = vmatprep.subr.bf16.mxu0 0
  %2516 = vmatpush1.bf16.xpose.msra.mxu0 0
  %2517 = vmatprep.subr.bf16.mxu0 0
  %2518 = vmatpush1.bf16.xpose.msra.mxu0 0
  %2519 = vmatprep.subr.bf16.mxu0 0
  %2520 = vmatpush1.bf16.xpose.msra.mxu0 0
  %2521 = vmatprep.subr.bf16.mxu0 0
  %2522 = vmatpush1.bf16.xpose.msra.mxu0 0
  %2523 = vmatprep.subr.bf16.mxu0 0
  %2524 = vmatpush1.bf16.xpose.msra.mxu0 0
  %2525 = vmatprep.subr.bf16.mxu0 0
  %2526 = vmatpush1.bf16.xpose.msra.mxu0 0
  %2527 = vmatprep.subr.bf16.mxu0 0
  %2528 = vmatpush1.bf16.xpose.msra.mxu0 0
  %2529 = vmatprep.subr.bf16.mxu0 0
  %2530 = vmatpush1.bf16.xpose.msra.mxu0 0
  %2531 = vmatprep.subr.bf16.mxu0 0
  %2532 = vmatpush1.bf16.xpose.msra.mxu0 0
  %2533 = vmatprep.subr.bf16.mxu0 0
  %2534 = vmatpush1.bf16.xpose.msra.mxu0 0
  %2535 = vmatprep.subr.bf16.mxu0 0
  %2536 = vmatpush1.bf16.xpose.msra.mxu0 0
  %2537 = vmatprep.subr.bf16.mxu0 0
  %2538 = vmatpush1.bf16.xpose.msra.mxu0 0
  %2539 = vmatprep.mubr.bf16.mxu0 0
  %2540 = vmatmul.mubr.bf16.gmra.mrb[0].mxu0 %v2502
  %v2541 = vpop.f32.mrb[0].mxu0
  %v2542 = vadd.f32 0.0, %v2541
  %v2543 = vpop.f32.mrb[0].mxu0
  %v2544 = vpop.f32.mrb[0].mxu0
  %v2545 = vpop.f32.mrb[0].mxu0
  %2546 = vdwg.mxu0
  %v2548 = vsel %vm2316, %v2273, 0
  %v2551 = vsel %vm2316, %v2289, 0
  %2553 = vmatprep.subr.bf16.mxu0 0
  %2554 = vmatpush1.bf16.xpose.msra.mxu0 %v2551
  %2555 = vmatprep.subr.bf16.mxu0 0
  %2556 = vmatpush1.bf16.xpose.msra.mxu0 0
  %2557 = vmatprep.subr.bf16.mxu0 0
  %2558 = vmatpush1.bf16.xpose.msra.mxu0 0
  %2559 = vmatprep.subr.bf16.mxu0 0
  %2560 = vmatpush1.bf16.xpose.msra.mxu0 0
  %2561 = vmatprep.subr.bf16.mxu0 0
  %2562 = vmatpush1.bf16.xpose.msra.mxu0 0
  %2563 = vmatprep.subr.bf16.mxu0 0
  %2564 = vmatpush1.bf16.xpose.msra.mxu0 0
  %2565 = vmatprep.subr.bf16.mxu0 0
  %2566 = vmatpush1.bf16.xpose.msra.mxu0 0
  %2567 = vmatprep.subr.bf16.mxu0 0
  %2568 = vmatpush1.bf16.xpose.msra.mxu0 0
  %2569 = vmatprep.subr.bf16.mxu0 0
  %2570 = vmatpush1.bf16.xpose.msra.mxu0 0
  %2571 = vmatprep.subr.bf16.mxu0 0
  %2572 = vmatpush1.bf16.xpose.msra.mxu0 0
  %2573 = vmatprep.subr.bf16.mxu0 0
  %2574 = vmatpush1.bf16.xpose.msra.mxu0 0
  %2575 = vmatprep.subr.bf16.mxu0 0
  %2576 = vmatpush1.bf16.xpose.msra.mxu0 0
  %2577 = vmatprep.subr.bf16.mxu0 0
  %2578 = vmatpush1.bf16.xpose.msra.mxu0 0
  %2579 = vmatprep.subr.bf16.mxu0 0
  %2580 = vmatpush1.bf16.xpose.msra.mxu0 0
  %2581 = vmatprep.subr.bf16.mxu0 0
  %2582 = vmatpush1.bf16.xpose.msra.mxu0 0
  %2583 = vmatprep.subr.bf16.mxu0 0
  %2584 = vmatpush1.bf16.xpose.msra.mxu0 0
  %2585 = vmatprep.mubr.bf16.mxu0 0
  %2586 = vmatmul.mubr.bf16.gmra.mrb[0].mxu0 %v2548
  %v2587 = vpop.f32.mrb[0].mxu0
  %v2588 = vadd.f32 0.0, %v2587
  %v2589 = vpop.f32.mrb[0].mxu0
  %v2590 = vpop.f32.mrb[0].mxu0
  %v2591 = vpop.f32.mrb[0].mxu0
  %2592 = vdwg.mxu0
  %v2594 = vsel %vm2316, %v2274, 0
  %v2597 = vsel %vm2316, %v2290, 0
  %2599 = vmatprep.subr.bf16.mxu0 0
  %2600 = vmatpush1.bf16.xpose.msra.mxu0 %v2597
  %2601 = vmatprep.subr.bf16.mxu0 0
  %2602 = vmatpush1.bf16.xpose.msra.mxu0 0
  %2603 = vmatprep.subr.bf16.mxu0 0
  %2604 = vmatpush1.bf16.xpose.msra.mxu0 0
  %2605 = vmatprep.subr.bf16.mxu0 0
  %2606 = vmatpush1.bf16.xpose.msra.mxu0 0
  %2607 = vmatprep.subr.bf16.mxu0 0
  %2608 = vmatpush1.bf16.xpose.msra.mxu0 0
  %2609 = vmatprep.subr.bf16.mxu0 0
  %2610 = vmatpush1.bf16.xpose.msra.mxu0 0
  %2611 = vmatprep.subr.bf16.mxu0 0
  %2612 = vmatpush1.bf16.xpose.msra.mxu0 0
  %2613 = vmatprep.subr.bf16.mxu0 0
  %2614 = vmatpush1.bf16.xpose.msra.mxu0 0
  %2615 = vmatprep.subr.bf16.mxu0 0
  %2616 = vmatpush1.bf16.xpose.msra.mxu0 0
  %2617 = vmatprep.subr.bf16.mxu0 0
  %2618 = vmatpush1.bf16.xpose.msra.mxu0 0
  %2619 = vmatprep.subr.bf16.mxu0 0
  %2620 = vmatpush1.bf16.xpose.msra.mxu0 0
  %2621 = vmatprep.subr.bf16.mxu0 0
  %2622 = vmatpush1.bf16.xpose.msra.mxu0 0
  %2623 = vmatprep.subr.bf16.mxu0 0
  %2624 = vmatpush1.bf16.xpose.msra.mxu0 0
  %2625 = vmatprep.subr.bf16.mxu0 0
  %2626 = vmatpush1.bf16.xpose.msra.mxu0 0
  %2627 = vmatprep.subr.bf16.mxu0 0
  %2628 = vmatpush1.bf16.xpose.msra.mxu0 0
  %2629 = vmatprep.subr.bf16.mxu0 0
  %2630 = vmatpush1.bf16.xpose.msra.mxu0 0
  %2631 = vmatprep.mubr.bf16.mxu0 0
  %2632 = vmatmul.mubr.bf16.gmra.mrb[0].mxu0 %v2594
  %v2633 = vpop.f32.mrb[0].mxu0
  %v2634 = vadd.f32 0.0, %v2633
  %v2635 = vpop.f32.mrb[0].mxu0
  %v2636 = vpop.f32.mrb[0].mxu0
  %v2637 = vpop.f32.mrb[0].mxu0
  %2638 = vdwg.mxu0
  %v2640 = vsel %vm2316, %v2275, 0
  %v2643 = vsel %vm2316, %v2291, 0
  %2645 = vmatprep.subr.bf16.mxu0 0
  %2646 = vmatpush1.bf16.xpose.msra.mxu0 %v2643
  %2647 = vmatprep.subr.bf16.mxu0 0
  %2648 = vmatpush1.bf16.xpose.msra.mxu0 0
  %2649 = vmatprep.subr.bf16.mxu0 0
  %2650 = vmatpush1.bf16.xpose.msra.mxu0 0
  %2651 = vmatprep.subr.bf16.mxu0 0
  %2652 = vmatpush1.bf16.xpose.msra.mxu0 0
  %2653 = vmatprep.subr.bf16.mxu0 0
  %2654 = vmatpush1.bf16.xpose.msra.mxu0 0
  %2655 = vmatprep.subr.bf16.mxu0 0
  %2656 = vmatpush1.bf16.xpose.msra.mxu0 0
  %2657 = vmatprep.subr.bf16.mxu0 0
  %2658 = vmatpush1.bf16.xpose.msra.mxu0 0
  %2659 = vmatprep.subr.bf16.mxu0 0
  %2660 = vmatpush1.bf16.xpose.msra.mxu0 0
  %2661 = vmatprep.subr.bf16.mxu0 0
  %2662 = vmatpush1.bf16.xpose.msra.mxu0 0
  %2663 = vmatprep.subr.bf16.mxu0 0
  %2664 = vmatpush1.bf16.xpose.msra.mxu0 0
  %2665 = vmatprep.subr.bf16.mxu0 0
  %2666 = vmatpush1.bf16.xpose.msra.mxu0 0
  %2667 = vmatprep.subr.bf16.mxu0 0
  %2668 = vmatpush1.bf16.xpose.msra.mxu0 0
  %2669 = vmatprep.subr.bf16.mxu0 0
  %2670 = vmatpush1.bf16.xpose.msra.mxu0 0
  %2671 = vmatprep.subr.bf16.mxu0 0
  %2672 = vmatpush1.bf16.xpose.msra.mxu0 0
  %2673 = vmatprep.subr.bf16.mxu0 0
  %2674 = vmatpush1.bf16.xpose.msra.mxu0 0
  %2675 = vmatprep.subr.bf16.mxu0 0
  %2676 = vmatpush1.bf16.xpose.msra.mxu0 0
  %2677 = vmatprep.mubr.bf16.mxu0 0
  %2678 = vmatmul.mubr.bf16.gmra.mrb[0].mxu0 %v2640
  %v2679 = vpop.f32.mrb[0].mxu0
  %v2680 = vadd.f32 0.0, %v2679
  %v2681 = vpop.f32.mrb[0].mxu0
  %v2682 = vpop.f32.mrb[0].mxu0
  %v2683 = vpop.f32.mrb[0].mxu0
  %2684 = vdwg.mxu0
  %v2686 = vsel %vm2316, %v2276, 0
  %v2689 = vsel %vm2316, %v2292, 0
  %2691 = vmatprep.subr.bf16.mxu0 0
  %2692 = vmatpush1.bf16.xpose.msra.mxu0 %v2689
  %2693 = vmatprep.subr.bf16.mxu0 0
  %2694 = vmatpush1.bf16.xpose.msra.mxu0 0
  %2695 = vmatprep.subr.bf16.mxu0 0
  %2696 = vmatpush1.bf16.xpose.msra.mxu0 0
  %2697 = vmatprep.subr.bf16.mxu0 0
  %2698 = vmatpush1.bf16.xpose.msra.mxu0 0
  %2699 = vmatprep.subr.bf16.mxu0 0
  %2700 = vmatpush1.bf16.xpose.msra.mxu0 0
  %2701 = vmatprep.subr.bf16.mxu0 0
  %2702 = vmatpush1.bf16.xpose.msra.mxu0 0
  %2703 = vmatprep.subr.bf16.mxu0 0
  %2704 = vmatpush1.bf16.xpose.msra.mxu0 0
  %2705 = vmatprep.subr.bf16.mxu0 0
  %2706 = vmatpush1.bf16.xpose.msra.mxu0 0
  %2707 = vmatprep.subr.bf16.mxu0 0
  %2708 = vmatpush1.bf16.xpose.msra.mxu0 0
  %2709 = vmatprep.subr.bf16.mxu0 0
  %2710 = vmatpush1.bf16.xpose.msra.mxu0 0
  %2711 = vmatprep.subr.bf16.mxu0 0
  %2712 = vmatpush1.bf16.xpose.msra.mxu0 0
  %2713 = vmatprep.subr.bf16.mxu0 0
  %2714 = vmatpush1.bf16.xpose.msra.mxu0 0
  %2715 = vmatprep.subr.bf16.mxu0 0
  %2716 = vmatpush1.bf16.xpose.msra.mxu0 0
  %2717 = vmatprep.subr.bf16.mxu0 0
  %2718 = vmatpush1.bf16.xpose.msra.mxu0 0
  %2719 = vmatprep.subr.bf16.mxu0 0
  %2720 = vmatpush1.bf16.xpose.msra.mxu0 0
  %2721 = vmatprep.subr.bf16.mxu0 0
  %2722 = vmatpush1.bf16.xpose.msra.mxu0 0
  %2723 = vmatprep.mubr.bf16.mxu0 0
  %2724 = vmatmul.mubr.bf16.gmra.mrb[0].mxu0 %v2686
  %v2725 = vpop.f32.mrb[0].mxu0
  %v2726 = vadd.f32 0.0, %v2725
  %v2727 = vpop.f32.mrb[0].mxu0
  %v2728 = vpop.f32.mrb[0].mxu0
  %v2729 = vpop.f32.mrb[0].mxu0
  %2730 = vdwg.mxu0
  %v2732 = vsel %vm2316, %v2277, 0
  %v2735 = vsel %vm2316, %v2293, 0
  %2737 = vmatprep.subr.bf16.mxu0 0
  %2738 = vmatpush1.bf16.xpose.msra.mxu0 %v2735
  %2739 = vmatprep.subr.bf16.mxu0 0
  %2740 = vmatpush1.bf16.xpose.msra.mxu0 0
  %2741 = vmatprep.subr.bf16.mxu0 0
  %2742 = vmatpush1.bf16.xpose.msra.mxu0 0
  %2743 = vmatprep.subr.bf16.mxu0 0
  %2744 = vmatpush1.bf16.xpose.msra.mxu0 0
  %2745 = vmatprep.subr.bf16.mxu0 0
  %2746 = vmatpush1.bf16.xpose.msra.mxu0 0
  %2747 = vmatprep.subr.bf16.mxu0 0
  %2748 = vmatpush1.bf16.xpose.msra.mxu0 0
  %2749 = vmatprep.subr.bf16.mxu0 0
  %2750 = vmatpush1.bf16.xpose.msra.mxu0 0
  %2751 = vmatprep.subr.bf16.mxu0 0
  %2752 = vmatpush1.bf16.xpose.msra.mxu0 0
  %2753 = vmatprep.subr.bf16.mxu0 0
  %2754 = vmatpush1.bf16.xpose.msra.mxu0 0
  %2755 = vmatprep.subr.bf16.mxu0 0
  %2756 = vmatpush1.bf16.xpose.msra.mxu0 0
  %2757 = vmatprep.subr.bf16.mxu0 0
  %2758 = vmatpush1.bf16.xpose.msra.mxu0 0
  %2759 = vmatprep.subr.bf16.mxu0 0
  %2760 = vmatpush1.bf16.xpose.msra.mxu0 0
  %2761 = vmatprep.subr.bf16.mxu0 0
  %2762 = vmatpush1.bf16.xpose.msra.mxu0 0
  %2763 = vmatprep.subr.bf16.mxu0 0
  %2764 = vmatpush1.bf16.xpose.msra.mxu0 0
  %2765 = vmatprep.subr.bf16.mxu0 0
  %2766 = vmatpush1.bf16.xpose.msra.mxu0 0
  %2767 = vmatprep.subr.bf16.mxu0 0
  %2768 = vmatpush1.bf16.xpose.msra.mxu0 0
  %2769 = vmatprep.mubr.bf16.mxu0 0
  %2770 = vmatmul.mubr.bf16.gmra.mrb[0].mxu0 %v2732
  %v2771 = vpop.f32.mrb[0].mxu0
  %v2772 = vadd.f32 0.0, %v2771
  %v2773 = vpop.f32.mrb[0].mxu0
  %v2774 = vpop.f32.mrb[0].mxu0
  %v2775 = vpop.f32.mrb[0].mxu0
  %2776 = vdwg.mxu0
  %v2778 = vsel %vm2316, %v2278, 0
  %v2781 = vsel %vm2316, %v2294, 0
  %2783 = vmatprep.subr.bf16.mxu0 0
  %2784 = vmatpush1.bf16.xpose.msra.mxu0 %v2781
  %2785 = vmatprep.subr.bf16.mxu0 0
  %2786 = vmatpush1.bf16.xpose.msra.mxu0 0
  %2787 = vmatprep.subr.bf16.mxu0 0
  %2788 = vmatpush1.bf16.xpose.msra.mxu0 0
  %2789 = vmatprep.subr.bf16.mxu0 0
  %2790 = vmatpush1.bf16.xpose.msra.mxu0 0
  %2791 = vmatprep.subr.bf16.mxu0 0
  %2792 = vmatpush1.bf16.xpose.msra.mxu0 0
  %2793 = vmatprep.subr.bf16.mxu0 0
  %2794 = vmatpush1.bf16.xpose.msra.mxu0 0
  %2795 = vmatprep.subr.bf16.mxu0 0
  %2796 = vmatpush1.bf16.xpose.msra.mxu0 0
  %2797 = vmatprep.subr.bf16.mxu0 0
  %2798 = vmatpush1.bf16.xpose.msra.mxu0 0
  %2799 = vmatprep.subr.bf16.mxu0 0
  %2800 = vmatpush1.bf16.xpose.msra.mxu0 0
  %2801 = vmatprep.subr.bf16.mxu0 0
  %2802 = vmatpush1.bf16.xpose.msra.mxu0 0
  %2803 = vmatprep.subr.bf16.mxu0 0
  %2804 = vmatpush1.bf16.xpose.msra.mxu0 0
  %2805 = vmatprep.subr.bf16.mxu0 0
  %2806 = vmatpush1.bf16.xpose.msra.mxu0 0
  %2807 = vmatprep.subr.bf16.mxu0 0
  %2808 = vmatpush1.bf16.xpose.msra.mxu0 0
  %2809 = vmatprep.subr.bf16.mxu0 0
  %2810 = vmatpush1.bf16.xpose.msra.mxu0 0
  %2811 = vmatprep.subr.bf16.mxu0 0
  %2812 = vmatpush1.bf16.xpose.msra.mxu0 0
  %2813 = vmatprep.subr.bf16.mxu0 0
  %2814 = vmatpush1.bf16.xpose.msra.mxu0 0
  %2815 = vmatprep.mubr.bf16.mxu0 0
  %2816 = vmatmul.mubr.bf16.gmra.mrb[0].mxu0 %v2778
  %v2817 = vpop.f32.mrb[0].mxu0
  %v2818 = vadd.f32 0.0, %v2817
  %v2819 = vpop.f32.mrb[0].mxu0
  %v2820 = vpop.f32.mrb[0].mxu0
  %v2821 = vpop.f32.mrb[0].mxu0
  %2822 = vdwg.mxu0
  %v2824 = vsel %vm2316, %v2279, 0
  %v2827 = vsel %vm2316, %v2295, 0
  %2829 = vmatprep.subr.bf16.mxu0 0
  %2830 = vmatpush1.bf16.xpose.msra.mxu0 %v2827
  %2831 = vmatprep.subr.bf16.mxu0 0
  %2832 = vmatpush1.bf16.xpose.msra.mxu0 0
  %2833 = vmatprep.subr.bf16.mxu0 0
  %2834 = vmatpush1.bf16.xpose.msra.mxu0 0
  %2835 = vmatprep.subr.bf16.mxu0 0
  %2836 = vmatpush1.bf16.xpose.msra.mxu0 0
  %2837 = vmatprep.subr.bf16.mxu0 0
  %2838 = vmatpush1.bf16.xpose.msra.mxu0 0
  %2839 = vmatprep.subr.bf16.mxu0 0
  %2840 = vmatpush1.bf16.xpose.msra.mxu0 0
  %2841 = vmatprep.subr.bf16.mxu0 0
  %2842 = vmatpush1.bf16.xpose.msra.mxu0 0
  %2843 = vmatprep.subr.bf16.mxu0 0
  %2844 = vmatpush1.bf16.xpose.msra.mxu0 0
  %2845 = vmatprep.subr.bf16.mxu0 0
  %2846 = vmatpush1.bf16.xpose.msra.mxu0 0
  %2847 = vmatprep.subr.bf16.mxu0 0
  %2848 = vmatpush1.bf16.xpose.msra.mxu0 0
  %2849 = vmatprep.subr.bf16.mxu0 0
  %2850 = vmatpush1.bf16.xpose.msra.mxu0 0
  %2851 = vmatprep.subr.bf16.mxu0 0
  %2852 = vmatpush1.bf16.xpose.msra.mxu0 0
  %2853 = vmatprep.subr.bf16.mxu0 0
  %2854 = vmatpush1.bf16.xpose.msra.mxu0 0
  %2855 = vmatprep.subr.bf16.mxu0 0
  %2856 = vmatpush1.bf16.xpose.msra.mxu0 0
  %2857 = vmatprep.subr.bf16.mxu0 0
  %2858 = vmatpush1.bf16.xpose.msra.mxu0 0
  %2859 = vmatprep.subr.bf16.mxu0 0
  %2860 = vmatpush1.bf16.xpose.msra.mxu0 0
  %2861 = vmatprep.mubr.bf16.mxu0 0
  %2862 = vmatmul.mubr.bf16.gmra.mrb[0].mxu0 %v2824
  %v2863 = vpop.f32.mrb[0].mxu0
  %v2864 = vadd.f32 0.0, %v2863
  %v2865 = vpop.f32.mrb[0].mxu0
  %v2866 = vpop.f32.mrb[0].mxu0
  %v2867 = vpop.f32.mrb[0].mxu0
  %2868 = vdwg.mxu0
  %v2870 = vsel %vm2316, %v2280, 0
  %v2873 = vsel %vm2316, %v2296, 0
  %2875 = vmatprep.subr.bf16.mxu0 0
  %2876 = vmatpush1.bf16.xpose.msra.mxu0 %v2873
  %2877 = vmatprep.subr.bf16.mxu0 0
  %2878 = vmatpush1.bf16.xpose.msra.mxu0 0
  %2879 = vmatprep.subr.bf16.mxu0 0
  %2880 = vmatpush1.bf16.xpose.msra.mxu0 0
  %2881 = vmatprep.subr.bf16.mxu0 0
  %2882 = vmatpush1.bf16.xpose.msra.mxu0 0
  %2883 = vmatprep.subr.bf16.mxu0 0
  %2884 = vmatpush1.bf16.xpose.msra.mxu0 0
  %2885 = vmatprep.subr.bf16.mxu0 0
  %2886 = vmatpush1.bf16.xpose.msra.mxu0 0
  %2887 = vmatprep.subr.bf16.mxu0 0
  %2888 = vmatpush1.bf16.xpose.msra.mxu0 0
  %2889 = vmatprep.subr.bf16.mxu0 0
  %2890 = vmatpush1.bf16.xpose.msra.mxu0 0
  %2891 = vmatprep.subr.bf16.mxu0 0
  %2892 = vmatpush1.bf16.xpose.msra.mxu0 0
  %2893 = vmatprep.subr.bf16.mxu0 0
  %2894 = vmatpush1.bf16.xpose.msra.mxu0 0
  %2895 = vmatprep.subr.bf16.mxu0 0
  %2896 = vmatpush1.bf16.xpose.msra.mxu0 0
  %2897 = vmatprep.subr.bf16.mxu0 0
  %2898 = vmatpush1.bf16.xpose.msra.mxu0 0
  %2899 = vmatprep.subr.bf16.mxu0 0
  %2900 = vmatpush1.bf16.xpose.msra.mxu0 0
  %2901 = vmatprep.subr.bf16.mxu0 0
  %2902 = vmatpush1.bf16.xpose.msra.mxu0 0
  %2903 = vmatprep.subr.bf16.mxu0 0
  %2904 = vmatpush1.bf16.xpose.msra.mxu0 0
  %2905 = vmatprep.subr.bf16.mxu0 0
  %2906 = vmatpush1.bf16.xpose.msra.mxu0 0
  %2907 = vmatprep.mubr.bf16.mxu0 0
  %2908 = vmatmul.mubr.bf16.gmra.mrb[0].mxu0 %v2870
  %v2909 = vpop.f32.mrb[0].mxu0
  %v2910 = vadd.f32 0.0, %v2909
  %v2911 = vpop.f32.mrb[0].mxu0
  %v2912 = vpop.f32.mrb[0].mxu0
  %v2913 = vpop.f32.mrb[0].mxu0
  %2914 = vdwg.mxu0
  %v2916 = vsel %vm2316, %v2281, 0
  %v2919 = vsel %vm2316, %v2297, 0
  %2921 = vmatprep.subr.bf16.mxu0 0
  %2922 = vmatpush1.bf16.xpose.msra.mxu0 %v2919
  %2923 = vmatprep.subr.bf16.mxu0 0
  %2924 = vmatpush1.bf16.xpose.msra.mxu0 0
  %2925 = vmatprep.subr.bf16.mxu0 0
  %2926 = vmatpush1.bf16.xpose.msra.mxu0 0
  %2927 = vmatprep.subr.bf16.mxu0 0
  %2928 = vmatpush1.bf16.xpose.msra.mxu0 0
  %2929 = vmatprep.subr.bf16.mxu0 0
  %2930 = vmatpush1.bf16.xpose.msra.mxu0 0
  %2931 = vmatprep.subr.bf16.mxu0 0
  %2932 = vmatpush1.bf16.xpose.msra.mxu0 0
  %2933 = vmatprep.subr.bf16.mxu0 0
  %2934 = vmatpush1.bf16.xpose.msra.mxu0 0
  %2935 = vmatprep.subr.bf16.mxu0 0
  %2936 = vmatpush1.bf16.xpose.msra.mxu0 0
  %2937 = vmatprep.subr.bf16.mxu0 0
  %2938 = vmatpush1.bf16.xpose.msra.mxu0 0
  %2939 = vmatprep.subr.bf16.mxu0 0
  %2940 = vmatpush1.bf16.xpose.msra.mxu0 0
  %2941 = vmatprep.subr.bf16.mxu0 0
  %2942 = vmatpush1.bf16.xpose.msra.mxu0 0
  %2943 = vmatprep.subr.bf16.mxu0 0
  %2944 = vmatpush1.bf16.xpose.msra.mxu0 0
  %2945 = vmatprep.subr.bf16.mxu0 0
  %2946 = vmatpush1.bf16.xpose.msra.mxu0 0
  %2947 = vmatprep.subr.bf16.mxu0 0
  %2948 = vmatpush1.bf16.xpose.msra.mxu0 0
  %2949 = vmatprep.subr.bf16.mxu0 0
  %2950 = vmatpush1.bf16.xpose.msra.mxu0 0
  %2951 = vmatprep.subr.bf16.mxu0 0
  %2952 = vmatpush1.bf16.xpose.msra.mxu0 0
  %2953 = vmatprep.mubr.bf16.mxu0 0
  %2954 = vmatmul.mubr.bf16.gmra.mrb[0].mxu0 %v2916
  %v2955 = vpop.f32.mrb[0].mxu0
  %v2956 = vadd.f32 0.0, %v2955
  %v2957 = vpop.f32.mrb[0].mxu0
  %v2958 = vpop.f32.mrb[0].mxu0
  %v2959 = vpop.f32.mrb[0].mxu0
  %2960 = vdwg.mxu0
  %v2962 = vsel %vm2316, %v2282, 0
  %v2965 = vsel %vm2316, %v2298, 0
  %2967 = vmatprep.subr.bf16.mxu0 0
  %2968 = vmatpush1.bf16.xpose.msra.mxu0 %v2965
  %2969 = vmatprep.subr.bf16.mxu0 0
  %2970 = vmatpush1.bf16.xpose.msra.mxu0 0
  %2971 = vmatprep.subr.bf16.mxu0 0
  %2972 = vmatpush1.bf16.xpose.msra.mxu0 0
  %2973 = vmatprep.subr.bf16.mxu0 0
  %2974 = vmatpush1.bf16.xpose.msra.mxu0 0
  %2975 = vmatprep.subr.bf16.mxu0 0
  %2976 = vmatpush1.bf16.xpose.msra.mxu0 0
  %2977 = vmatprep.subr.bf16.mxu0 0
  %2978 = vmatpush1.bf16.xpose.msra.mxu0 0
  %2979 = vmatprep.subr.bf16.mxu0 0
  %2980 = vmatpush1.bf16.xpose.msra.mxu0 0
  %2981 = vmatprep.subr.bf16.mxu0 0
  %2982 = vmatpush1.bf16.xpose.msra.mxu0 0
  %2983 = vmatprep.subr.bf16.mxu0 0
  %2984 = vmatpush1.bf16.xpose.msra.mxu0 0
  %2985 = vmatprep.subr.bf16.mxu0 0
  %2986 = vmatpush1.bf16.xpose.msra.mxu0 0
  %2987 = vmatprep.subr.bf16.mxu0 0
  %2988 = vmatpush1.bf16.xpose.msra.mxu0 0
  %2989 = vmatprep.subr.bf16.mxu0 0
  %2990 = vmatpush1.bf16.xpose.msra.mxu0 0
  %2991 = vmatprep.subr.bf16.mxu0 0
  %2992 = vmatpush1.bf16.xpose.msra.mxu0 0
  %2993 = vmatprep.subr.bf16.mxu0 0
  %2994 = vmatpush1.bf16.xpose.msra.mxu0 0
  %2995 = vmatprep.subr.bf16.mxu0 0
  %2996 = vmatpush1.bf16.xpose.msra.mxu0 0
  %2997 = vmatprep.subr.bf16.mxu0 0
  %2998 = vmatpush1.bf16.xpose.msra.mxu0 0
  %2999 = vmatprep.mubr.bf16.mxu0 0
  %3000 = vmatmul.mubr.bf16.gmra.mrb[0].mxu0 %v2962
  %v3001 = vpop.f32.mrb[0].mxu0
  %v3002 = vadd.f32 0.0, %v3001
  %v3003 = vpop.f32.mrb[0].mxu0
  %v3004 = vpop.f32.mrb[0].mxu0
  %v3005 = vpop.f32.mrb[0].mxu0
  %3006 = vdwg.mxu0
  %v3008 = vsel %vm2316, %v2283, 0
  %v3011 = vsel %vm2316, %v2299, 0
  %3013 = vmatprep.subr.bf16.mxu0 0
  %3014 = vmatpush1.bf16.xpose.msra.mxu0 %v3011
  %3015 = vmatprep.subr.bf16.mxu0 0
  %3016 = vmatpush1.bf16.xpose.msra.mxu0 0
  %3017 = vmatprep.subr.bf16.mxu0 0
  %3018 = vmatpush1.bf16.xpose.msra.mxu0 0
  %3019 = vmatprep.subr.bf16.mxu0 0
  %3020 = vmatpush1.bf16.xpose.msra.mxu0 0
  %3021 = vmatprep.subr.bf16.mxu0 0
  %3022 = vmatpush1.bf16.xpose.msra.mxu0 0
  %3023 = vmatprep.subr.bf16.mxu0 0
  %3024 = vmatpush1.bf16.xpose.msra.mxu0 0
  %3025 = vmatprep.subr.bf16.mxu0 0
  %3026 = vmatpush1.bf16.xpose.msra.mxu0 0
  %3027 = vmatprep.subr.bf16.mxu0 0
  %3028 = vmatpush1.bf16.xpose.msra.mxu0 0
  %3029 = vmatprep.subr.bf16.mxu0 0
  %3030 = vmatpush1.bf16.xpose.msra.mxu0 0
  %3031 = vmatprep.subr.bf16.mxu0 0
  %3032 = vmatpush1.bf16.xpose.msra.mxu0 0
  %3033 = vmatprep.subr.bf16.mxu0 0
  %3034 = vmatpush1.bf16.xpose.msra.mxu0 0
  %3035 = vmatprep.subr.bf16.mxu0 0
  %3036 = vmatpush1.bf16.xpose.msra.mxu0 0
  %3037 = vmatprep.subr.bf16.mxu0 0
  %3038 = vmatpush1.bf16.xpose.msra.mxu0 0
  %3039 = vmatprep.subr.bf16.mxu0 0
  %3040 = vmatpush1.bf16.xpose.msra.mxu0 0
  %3041 = vmatprep.subr.bf16.mxu0 0
  %3042 = vmatpush1.bf16.xpose.msra.mxu0 0
  %3043 = vmatprep.subr.bf16.mxu0 0
  %3044 = vmatpush1.bf16.xpose.msra.mxu0 0
  %3045 = vmatprep.mubr.bf16.mxu0 0
  %3046 = vmatmul.mubr.bf16.gmra.mrb[0].mxu0 %v3008
  %v3047 = vpop.f32.mrb[0].mxu0
  %v3048 = vadd.f32 0.0, %v3047
  %v3049 = vpop.f32.mrb[0].mxu0
  %v3050 = vpop.f32.mrb[0].mxu0
  %v3051 = vpop.f32.mrb[0].mxu0
  %3052 = vdwg.mxu0
  %vm3053 = vcmask 64512
  %v3054 = vsel %vm3053, %v2358, -inf
  %3055 = vmax.xlane.f32.xlu0 %v3054
  %v3056 = vpop.xlane.xlu0 %3055
  %v3057 = vsel %vm3053, %v2404, -inf
  %3058 = vmax.xlane.f32.xlu0 %v3057
  %v3059 = vpop.xlane.xlu0 %3058
  %v3060 = vsel %vm3053, %v2450, -inf
  %3061 = vmax.xlane.f32.xlu0 %v3060
  %v3062 = vpop.xlane.xlu0 %3061
  %v3063 = vsel %vm3053, %v2496, -inf
  %3064 = vmax.xlane.f32.xlu0 %v3063
  %v3065 = vpop.xlane.xlu0 %3064
  %v3066 = vsel %vm3053, %v2542, -inf
  %3067 = vmax.xlane.f32.xlu0 %v3066
  %v3068 = vpop.xlane.xlu0 %3067
  %v3069 = vsel %vm3053, %v2588, -inf
  %3070 = vmax.xlane.f32.xlu0 %v3069
  %v3071 = vpop.xlane.xlu0 %3070
  %v3072 = vsel %vm3053, %v2634, -inf
  %3073 = vmax.xlane.f32.xlu0 %v3072
  %v3074 = vpop.xlane.xlu0 %3073
  %v3075 = vsel %vm3053, %v2680, -inf
  %3076 = vmax.xlane.f32.xlu0 %v3075
  %v3077 = vpop.xlane.xlu0 %3076
  %v3078 = vsel %vm3053, %v2726, -inf
  %3079 = vmax.xlane.f32.xlu0 %v3078
  %v3080 = vpop.xlane.xlu0 %3079
  %v3081 = vsel %vm3053, %v2772, -inf
  %3082 = vmax.xlane.f32.xlu0 %v3081
  %v3083 = vpop.xlane.xlu0 %3082
  %v3084 = vsel %vm3053, %v2818, -inf
  %3085 = vmax.xlane.f32.xlu0 %v3084
  %v3086 = vpop.xlane.xlu0 %3085
  %v3087 = vsel %vm3053, %v2864, -inf
  %3088 = vmax.xlane.f32.xlu0 %v3087
  %v3089 = vpop.xlane.xlu0 %3088
  %v3090 = vsel %vm3053, %v2910, -inf
  %3091 = vmax.xlane.f32.xlu0 %v3090
  %v3092 = vpop.xlane.xlu0 %3091
  %v3093 = vsel %vm3053, %v2956, -inf
  %3094 = vmax.xlane.f32.xlu0 %v3093
  %v3095 = vpop.xlane.xlu0 %3094
  %v3096 = vsel %vm3053, %v3002, -inf
  %3097 = vmax.xlane.f32.xlu0 %v3096
  %v3098 = vpop.xlane.xlu0 %3097
  %v3099 = vsel %vm3053, %v3048, -inf
  %3100 = vmax.xlane.f32.xlu0 %v3099
  %v3101 = vpop.xlane.xlu0 %3100
  %v3102 = vsub.f32 %v2358, %v3056
  %v3103 = vsub.f32 %v2404, %v3059
  %v3104 = vsub.f32 %v2450, %v3062
  %v3105 = vsub.f32 %v2496, %v3065
  %v3106 = vsub.f32 %v2542, %v3068
  %v3107 = vsub.f32 %v2588, %v3071
  %v3108 = vsub.f32 %v2634, %v3074
  %v3109 = vsub.f32 %v2680, %v3077
  %v3110 = vsub.f32 %v2726, %v3080
  %v3111 = vsub.f32 %v2772, %v3083
  %v3112 = vsub.f32 %v2818, %v3086
  %v3113 = vsub.f32 %v2864, %v3089
  %v3114 = vsub.f32 %v2910, %v3092
  %v3115 = vsub.f32 %v2956, %v3095
  %v3116 = vsub.f32 %v3002, %v3098
  %v3117 = vsub.f32 %v3048, %v3101
  %v3118 = vmul.f32 %v3102, 1.442695
  %v3119 = vpow.pop %v3118
  %v3120 = vmul.f32 %v3103, 1.442695
  %v3121 = vpow.pop %v3120
  %v3122 = vmul.f32 %v3104, 1.442695
  %v3123 = vpow.pop %v3122
  %v3124 = vmul.f32 %v3105, 1.442695
  %v3125 = vpow.pop %v3124
  %v3126 = vmul.f32 %v3106, 1.442695
  %v3127 = vpow.pop %v3126
  %v3128 = vmul.f32 %v3107, 1.442695
  %v3129 = vpow.pop %v3128
  %v3130 = vmul.f32 %v3108, 1.442695
  %v3131 = vpow.pop %v3130
  %v3132 = vmul.f32 %v3109, 1.442695
  %v3133 = vpow.pop %v3132
  %v3134 = vmul.f32 %v3110, 1.442695
  %v3135 = vpow.pop %v3134
  %v3136 = vmul.f32 %v3111, 1.442695
  %v3137 = vpow.pop %v3136
  %v3138 = vmul.f32 %v3112, 1.442695
  %v3139 = vpow.pop %v3138
  %v3140 = vmul.f32 %v3113, 1.442695
  %v3141 = vpow.pop %v3140
  %v3142 = vmul.f32 %v3114, 1.442695
  %v3143 = vpow.pop %v3142
  %v3144 = vmul.f32 %v3115, 1.442695
  %v3145 = vpow.pop %v3144
  %v3146 = vmul.f32 %v3116, 1.442695
  %v3147 = vpow.pop %v3146
  %v3148 = vmul.f32 %v3117, 1.442695
  %v3149 = vpow.pop %v3148
  %v3150 = vsel %vm3053, %v3119, 0.0
  %3151 = vadd.xlane.f32.xlu0 %v3150
  %v3152 = vpop.xlane.xlu0 %3151
  %v3153 = vsel %vm3053, %v3121, 0.0
  %3154 = vadd.xlane.f32.xlu0 %v3153
  %v3155 = vpop.xlane.xlu0 %3154
  %v3156 = vsel %vm3053, %v3123, 0.0
  %3157 = vadd.xlane.f32.xlu0 %v3156
  %v3158 = vpop.xlane.xlu0 %3157
  %v3159 = vsel %vm3053, %v3125, 0.0
  %3160 = vadd.xlane.f32.xlu0 %v3159
  %v3161 = vpop.xlane.xlu0 %3160
  %v3162 = vsel %vm3053, %v3127, 0.0
  %3163 = vadd.xlane.f32.xlu0 %v3162
  %v3164 = vpop.xlane.xlu0 %3163
  %v3165 = vsel %vm3053, %v3129, 0.0
  %3166 = vadd.xlane.f32.xlu0 %v3165
  %v3167 = vpop.xlane.xlu0 %3166
  %v3168 = vsel %vm3053, %v3131, 0.0
  %3169 = vadd.xlane.f32.xlu0 %v3168
  %v3170 = vpop.xlane.xlu0 %3169
  %v3171 = vsel %vm3053, %v3133, 0.0
  %3172 = vadd.xlane.f32.xlu0 %v3171
  %v3173 = vpop.xlane.xlu0 %3172
  %v3174 = vsel %vm3053, %v3135, 0.0
  %3175 = vadd.xlane.f32.xlu0 %v3174
  %v3176 = vpop.xlane.xlu0 %3175
  %v3177 = vsel %vm3053, %v3137, 0.0
  %3178 = vadd.xlane.f32.xlu0 %v3177
  %v3179 = vpop.xlane.xlu0 %3178
  %v3180 = vsel %vm3053, %v3139, 0.0
  %3181 = vadd.xlane.f32.xlu0 %v3180
  %v3182 = vpop.xlane.xlu0 %3181
  %v3183 = vsel %vm3053, %v3141, 0.0
  %3184 = vadd.xlane.f32.xlu0 %v3183
  %v3185 = vpop.xlane.xlu0 %3184
  %v3186 = vsel %vm3053, %v3143, 0.0
  %3187 = vadd.xlane.f32.xlu0 %v3186
  %v3188 = vpop.xlane.xlu0 %3187
  %v3189 = vsel %vm3053, %v3145, 0.0
  %3190 = vadd.xlane.f32.xlu0 %v3189
  %v3191 = vpop.xlane.xlu0 %3190
  %v3192 = vsel %vm3053, %v3147, 0.0
  %3193 = vadd.xlane.f32.xlu0 %v3192
  %v3194 = vpop.xlane.xlu0 %3193
  %v3195 = vsel %vm3053, %v3149, 0.0
  %3196 = vadd.xlane.f32.xlu0 %v3195
  %v3197 = vpop.xlane.xlu0 %3196
  %v3198 = vrcp.pop %v3152
  %v3199 = vrcp.pop %v3155
  %v3200 = vrcp.pop %v3158
  %v3201 = vrcp.pop %v3161
  %v3202 = vrcp.pop %v3164
  %v3203 = vrcp.pop %v3167
  %v3204 = vrcp.pop %v3170
  %v3205 = vrcp.pop %v3173
  %v3206 = vrcp.pop %v3176
  %v3207 = vrcp.pop %v3179
  %v3208 = vrcp.pop %v3182
  %v3209 = vrcp.pop %v3185
  %v3210 = vrcp.pop %v3188
  %v3211 = vrcp.pop %v3191
  %v3212 = vrcp.pop %v3194
  %v3213 = vrcp.pop %v3197
  %v3214 = vmul.f32 %v3119, %v3198
  %v3215 = vmul.f32 %v3121, %v3199
  %v3216 = vmul.f32 %v3123, %v3200
  %v3217 = vmul.f32 %v3125, %v3201
  %v3218 = vmul.f32 %v3127, %v3202
  %v3219 = vmul.f32 %v3129, %v3203
  %v3220 = vmul.f32 %v3131, %v3204
  %v3221 = vmul.f32 %v3133, %v3205
  %v3222 = vmul.f32 %v3135, %v3206
  %v3223 = vmul.f32 %v3137, %v3207
  %v3224 = vmul.f32 %v3139, %v3208
  %v3225 = vmul.f32 %v3141, %v3209
  %v3226 = vmul.f32 %v3143, %v3210
  %v3227 = vmul.f32 %v3145, %v3211
  %v3228 = vmul.f32 %v3147, %v3212
  %v3229 = vmul.f32 %v3149, %v3213
  %v3230 = vpack.c.bf16 %v3214, %v3214
  %v3231 = vpack.c.bf16 %v3215, %v3215
  %v3232 = vpack.c.bf16 %v3216, %v3216
  %v3233 = vpack.c.bf16 %v3217, %v3217
  %v3234 = vpack.c.bf16 %v3218, %v3218
  %v3235 = vpack.c.bf16 %v3219, %v3219
  %v3236 = vpack.c.bf16 %v3220, %v3220
  %v3237 = vpack.c.bf16 %v3221, %v3221
  %v3238 = vpack.c.bf16 %v3222, %v3222
  %v3239 = vpack.c.bf16 %v3223, %v3223
  %v3240 = vpack.c.bf16 %v3224, %v3224
  %v3241 = vpack.c.bf16 %v3225, %v3225
  %v3242 = vpack.c.bf16 %v3226, %v3226
  %v3243 = vpack.c.bf16 %v3227, %v3227
  %v3244 = vpack.c.bf16 %v3228, %v3228
  %v3245 = vpack.c.bf16 %v3229, %v3229
  %v3247 = vsel %vm3053, %v3230, 0
  %vm3249 = vcmask 1043456
  %v3251 = vsel %vm3249, %v2300, 0
  %3253 = vmatprep.subr.bf16.mxu0 0
  %3254 = vmatpush1.bf16.msra.mxu0 %v3251
  %3255 = vmatprep.subr.bf16.mxu0 0
  %3256 = vmatpush1.bf16.msra.mxu0 0
  %3257 = vmatprep.subr.bf16.mxu0 0
  %3258 = vmatpush1.bf16.msra.mxu0 0
  %3259 = vmatprep.subr.bf16.mxu0 0
  %3260 = vmatpush1.bf16.msra.mxu0 0
  %3261 = vmatprep.subr.bf16.mxu0 0
  %3262 = vmatpush1.bf16.msra.mxu0 0
  %3263 = vmatprep.subr.bf16.mxu0 0
  %3264 = vmatpush1.bf16.msra.mxu0 0
  %3265 = vmatprep.subr.bf16.mxu0 0
  %3266 = vmatpush1.bf16.msra.mxu0 0
  %3267 = vmatprep.subr.bf16.mxu0 0
  %3268 = vmatpush1.bf16.msra.mxu0 0
  %3269 = vmatprep.subr.bf16.mxu0 0
  %3270 = vmatpush1.bf16.msra.mxu0 0
  %3271 = vmatprep.subr.bf16.mxu0 0
  %3272 = vmatpush1.bf16.msra.mxu0 0
  %3273 = vmatprep.subr.bf16.mxu0 0
  %3274 = vmatpush1.bf16.msra.mxu0 0
  %3275 = vmatprep.subr.bf16.mxu0 0
  %3276 = vmatpush1.bf16.msra.mxu0 0
  %3277 = vmatprep.subr.bf16.mxu0 0
  %3278 = vmatpush1.bf16.msra.mxu0 0
  %3279 = vmatprep.subr.bf16.mxu0 0
  %3280 = vmatpush1.bf16.msra.mxu0 0
  %3281 = vmatprep.subr.bf16.mxu0 0
  %3282 = vmatpush1.bf16.msra.mxu0 0
  %3283 = vmatprep.subr.bf16.mxu0 0
  %3284 = vmatpush1.bf16.msra.mxu0 0
  %3285 = vmatprep.mubr.bf16.mxu0 0
  %3286 = vmatmul.mubr.bf16.gmra.mrb[0].mxu0 %v3247
  %v3287 = vpop.f32.mrb[0].mxu0
  %v3288 = vadd.f32 0.0, %v3287
  %v3289 = vpop.f32.mrb[0].mxu0
  %v3290 = vpop.f32.mrb[0].mxu0
  %v3291 = vpop.f32.mrb[0].mxu0
  %3292 = vdwg.mxu0
  %v3294 = vsel %vm3053, %v3231, 0
  %v3297 = vsel %vm3249, %v2301, 0
  %3299 = vmatprep.subr.bf16.mxu0 0
  %3300 = vmatpush1.bf16.msra.mxu0 %v3297
  %3301 = vmatprep.subr.bf16.mxu0 0
  %3302 = vmatpush1.bf16.msra.mxu0 0
  %3303 = vmatprep.subr.bf16.mxu0 0
  %3304 = vmatpush1.bf16.msra.mxu0 0
  %3305 = vmatprep.subr.bf16.mxu0 0
  %3306 = vmatpush1.bf16.msra.mxu0 0
  %3307 = vmatprep.subr.bf16.mxu0 0
  %3308 = vmatpush1.bf16.msra.mxu0 0
  %3309 = vmatprep.subr.bf16.mxu0 0
  %3310 = vmatpush1.bf16.msra.mxu0 0
  %3311 = vmatprep.subr.bf16.mxu0 0
  %3312 = vmatpush1.bf16.msra.mxu0 0
  %3313 = vmatprep.subr.bf16.mxu0 0
  %3314 = vmatpush1.bf16.msra.mxu0 0
  %3315 = vmatprep.subr.bf16.mxu0 0
  %3316 = vmatpush1.bf16.msra.mxu0 0
  %3317 = vmatprep.subr.bf16.mxu0 0
  %3318 = vmatpush1.bf16.msra.mxu0 0
  %3319 = vmatprep.subr.bf16.mxu0 0
  %3320 = vmatpush1.bf16.msra.mxu0 0
  %3321 = vmatprep.subr.bf16.mxu0 0
  %3322 = vmatpush1.bf16.msra.mxu0 0
  %3323 = vmatprep.subr.bf16.mxu0 0
  %3324 = vmatpush1.bf16.msra.mxu0 0
  %3325 = vmatprep.subr.bf16.mxu0 0
  %3326 = vmatpush1.bf16.msra.mxu0 0
  %3327 = vmatprep.subr.bf16.mxu0 0
  %3328 = vmatpush1.bf16.msra.mxu0 0
  %3329 = vmatprep.subr.bf16.mxu0 0
  %3330 = vmatpush1.bf16.msra.mxu0 0
  %3331 = vmatprep.mubr.bf16.mxu0 0
  %3332 = vmatmul.mubr.bf16.gmra.mrb[0].mxu0 %v3294
  %v3333 = vpop.f32.mrb[0].mxu0
  %v3334 = vadd.f32 0.0, %v3333
  %v3335 = vpop.f32.mrb[0].mxu0
  %v3336 = vpop.f32.mrb[0].mxu0
  %v3337 = vpop.f32.mrb[0].mxu0
  %3338 = vdwg.mxu0
  %v3340 = vsel %vm3053, %v3232, 0
  %v3343 = vsel %vm3249, %v2302, 0
  %3345 = vmatprep.subr.bf16.mxu0 0
  %3346 = vmatpush1.bf16.msra.mxu0 %v3343
  %3347 = vmatprep.subr.bf16.mxu0 0
  %3348 = vmatpush1.bf16.msra.mxu0 0
  %3349 = vmatprep.subr.bf16.mxu0 0
  %3350 = vmatpush1.bf16.msra.mxu0 0
  %3351 = vmatprep.subr.bf16.mxu0 0
  %3352 = vmatpush1.bf16.msra.mxu0 0
  %3353 = vmatprep.subr.bf16.mxu0 0
  %3354 = vmatpush1.bf16.msra.mxu0 0
  %3355 = vmatprep.subr.bf16.mxu0 0
  %3356 = vmatpush1.bf16.msra.mxu0 0
  %3357 = vmatprep.subr.bf16.mxu0 0
  %3358 = vmatpush1.bf16.msra.mxu0 0
  %3359 = vmatprep.subr.bf16.mxu0 0
  %3360 = vmatpush1.bf16.msra.mxu0 0
  %3361 = vmatprep.subr.bf16.mxu0 0
  %3362 = vmatpush1.bf16.msra.mxu0 0
  %3363 = vmatprep.subr.bf16.mxu0 0
  %3364 = vmatpush1.bf16.msra.mxu0 0
  %3365 = vmatprep.subr.bf16.mxu0 0
  %3366 = vmatpush1.bf16.msra.mxu0 0
  %3367 = vmatprep.subr.bf16.mxu0 0
  %3368 = vmatpush1.bf16.msra.mxu0 0
  %3369 = vmatprep.subr.bf16.mxu0 0
  %3370 = vmatpush1.bf16.msra.mxu0 0
  %3371 = vmatprep.subr.bf16.mxu0 0
  %3372 = vmatpush1.bf16.msra.mxu0 0
  %3373 = vmatprep.subr.bf16.mxu0 0
  %3374 = vmatpush1.bf16.msra.mxu0 0
  %3375 = vmatprep.subr.bf16.mxu0 0
  %3376 = vmatpush1.bf16.msra.mxu0 0
  %3377 = vmatprep.mubr.bf16.mxu0 0
  %3378 = vmatmul.mubr.bf16.gmra.mrb[0].mxu0 %v3340
  %v3379 = vpop.f32.mrb[0].mxu0
  %v3380 = vadd.f32 0.0, %v3379
  %v3381 = vpop.f32.mrb[0].mxu0
  %v3382 = vpop.f32.mrb[0].mxu0
  %v3383 = vpop.f32.mrb[0].mxu0
  %3384 = vdwg.mxu0
  %v3386 = vsel %vm3053, %v3233, 0
  %v3389 = vsel %vm3249, %v2303, 0
  %3391 = vmatprep.subr.bf16.mxu0 0
  %3392 = vmatpush1.bf16.msra.mxu0 %v3389
  %3393 = vmatprep.subr.bf16.mxu0 0
  %3394 = vmatpush1.bf16.msra.mxu0 0
  %3395 = vmatprep.subr.bf16.mxu0 0
  %3396 = vmatpush1.bf16.msra.mxu0 0
  %3397 = vmatprep.subr.bf16.mxu0 0
  %3398 = vmatpush1.bf16.msra.mxu0 0
  %3399 = vmatprep.subr.bf16.mxu0 0
  %3400 = vmatpush1.bf16.msra.mxu0 0
  %3401 = vmatprep.subr.bf16.mxu0 0
  %3402 = vmatpush1.bf16.msra.mxu0 0
  %3403 = vmatprep.subr.bf16.mxu0 0
  %3404 = vmatpush1.bf16.msra.mxu0 0
  %3405 = vmatprep.subr.bf16.mxu0 0
  %3406 = vmatpush1.bf16.msra.mxu0 0
  %3407 = vmatprep.subr.bf16.mxu0 0
  %3408 = vmatpush1.bf16.msra.mxu0 0
  %3409 = vmatprep.subr.bf16.mxu0 0
  %3410 = vmatpush1.bf16.msra.mxu0 0
  %3411 = vmatprep.subr.bf16.mxu0 0
  %3412 = vmatpush1.bf16.msra.mxu0 0
  %3413 = vmatprep.subr.bf16.mxu0 0
  %3414 = vmatpush1.bf16.msra.mxu0 0
  %3415 = vmatprep.subr.bf16.mxu0 0
  %3416 = vmatpush1.bf16.msra.mxu0 0
  %3417 = vmatprep.subr.bf16.mxu0 0
  %3418 = vmatpush1.bf16.msra.mxu0 0
  %3419 = vmatprep.subr.bf16.mxu0 0
  %3420 = vmatpush1.bf16.msra.mxu0 0
  %3421 = vmatprep.subr.bf16.mxu0 0
  %3422 = vmatpush1.bf16.msra.mxu0 0
  %3423 = vmatprep.mubr.bf16.mxu0 0
  %3424 = vmatmul.mubr.bf16.gmra.mrb[0].mxu0 %v3386
  %v3425 = vpop.f32.mrb[0].mxu0
  %v3426 = vadd.f32 0.0, %v3425
  %v3427 = vpop.f32.mrb[0].mxu0
  %v3428 = vpop.f32.mrb[0].mxu0
  %v3429 = vpop.f32.mrb[0].mxu0
  %3430 = vdwg.mxu0
  %v3432 = vsel %vm3053, %v3234, 0
  %v3435 = vsel %vm3249, %v2304, 0
  %3437 = vmatprep.subr.bf16.mxu0 0
  %3438 = vmatpush1.bf16.msra.mxu0 %v3435
  %3439 = vmatprep.subr.bf16.mxu0 0
  %3440 = vmatpush1.bf16.msra.mxu0 0
  %3441 = vmatprep.subr.bf16.mxu0 0
  %3442 = vmatpush1.bf16.msra.mxu0 0
  %3443 = vmatprep.subr.bf16.mxu0 0
  %3444 = vmatpush1.bf16.msra.mxu0 0
  %3445 = vmatprep.subr.bf16.mxu0 0
  %3446 = vmatpush1.bf16.msra.mxu0 0
  %3447 = vmatprep.subr.bf16.mxu0 0
  %3448 = vmatpush1.bf16.msra.mxu0 0
  %3449 = vmatprep.subr.bf16.mxu0 0
  %3450 = vmatpush1.bf16.msra.mxu0 0
  %3451 = vmatprep.subr.bf16.mxu0 0
  %3452 = vmatpush1.bf16.msra.mxu0 0
  %3453 = vmatprep.subr.bf16.mxu0 0
  %3454 = vmatpush1.bf16.msra.mxu0 0
  %3455 = vmatprep.subr.bf16.mxu0 0
  %3456 = vmatpush1.bf16.msra.mxu0 0
  %3457 = vmatprep.subr.bf16.mxu0 0
  %3458 = vmatpush1.bf16.msra.mxu0 0
  %3459 = vmatprep.subr.bf16.mxu0 0
  %3460 = vmatpush1.bf16.msra.mxu0 0
  %3461 = vmatprep.subr.bf16.mxu0 0
  %3462 = vmatpush1.bf16.msra.mxu0 0
  %3463 = vmatprep.subr.bf16.mxu0 0
  %3464 = vmatpush1.bf16.msra.mxu0 0
  %3465 = vmatprep.subr.bf16.mxu0 0
  %3466 = vmatpush1.bf16.msra.mxu0 0
  %3467 = vmatprep.subr.bf16.mxu0 0
  %3468 = vmatpush1.bf16.msra.mxu0 0
  %3469 = vmatprep.mubr.bf16.mxu0 0
  %3470 = vmatmul.mubr.bf16.gmra.mrb[0].mxu0 %v3432
  %v3471 = vpop.f32.mrb[0].mxu0
  %v3472 = vadd.f32 0.0, %v3471
  %v3473 = vpop.f32.mrb[0].mxu0
  %v3474 = vpop.f32.mrb[0].mxu0
  %v3475 = vpop.f32.mrb[0].mxu0
  %3476 = vdwg.mxu0
  %v3478 = vsel %vm3053, %v3235, 0
  %v3481 = vsel %vm3249, %v2305, 0
  %3483 = vmatprep.subr.bf16.mxu0 0
  %3484 = vmatpush1.bf16.msra.mxu0 %v3481
  %3485 = vmatprep.subr.bf16.mxu0 0
  %3486 = vmatpush1.bf16.msra.mxu0 0
  %3487 = vmatprep.subr.bf16.mxu0 0
  %3488 = vmatpush1.bf16.msra.mxu0 0
  %3489 = vmatprep.subr.bf16.mxu0 0
  %3490 = vmatpush1.bf16.msra.mxu0 0
  %3491 = vmatprep.subr.bf16.mxu0 0
  %3492 = vmatpush1.bf16.msra.mxu0 0
  %3493 = vmatprep.subr.bf16.mxu0 0
  %3494 = vmatpush1.bf16.msra.mxu0 0
  %3495 = vmatprep.subr.bf16.mxu0 0
  %3496 = vmatpush1.bf16.msra.mxu0 0
  %3497 = vmatprep.subr.bf16.mxu0 0
  %3498 = vmatpush1.bf16.msra.mxu0 0
  %3499 = vmatprep.subr.bf16.mxu0 0
  %3500 = vmatpush1.bf16.msra.mxu0 0
  %3501 = vmatprep.subr.bf16.mxu0 0
  %3502 = vmatpush1.bf16.msra.mxu0 0
  %3503 = vmatprep.subr.bf16.mxu0 0
  %3504 = vmatpush1.bf16.msra.mxu0 0
  %3505 = vmatprep.subr.bf16.mxu0 0
  %3506 = vmatpush1.bf16.msra.mxu0 0
  %3507 = vmatprep.subr.bf16.mxu0 0
  %3508 = vmatpush1.bf16.msra.mxu0 0
  %3509 = vmatprep.subr.bf16.mxu0 0
  %3510 = vmatpush1.bf16.msra.mxu0 0
  %3511 = vmatprep.subr.bf16.mxu0 0
  %3512 = vmatpush1.bf16.msra.mxu0 0
  %3513 = vmatprep.subr.bf16.mxu0 0
  %3514 = vmatpush1.bf16.msra.mxu0 0
  %3515 = vmatprep.mubr.bf16.mxu0 0
  %3516 = vmatmul.mubr.bf16.gmra.mrb[0].mxu0 %v3478
  %v3517 = vpop.f32.mrb[0].mxu0
  %v3518 = vadd.f32 0.0, %v3517
  %v3519 = vpop.f32.mrb[0].mxu0
  %v3520 = vpop.f32.mrb[0].mxu0
  %v3521 = vpop.f32.mrb[0].mxu0
  %3522 = vdwg.mxu0
  %v3524 = vsel %vm3053, %v3236, 0
  %v3527 = vsel %vm3249, %v2306, 0
  %3529 = vmatprep.subr.bf16.mxu0 0
  %3530 = vmatpush1.bf16.msra.mxu0 %v3527
  %3531 = vmatprep.subr.bf16.mxu0 0
  %3532 = vmatpush1.bf16.msra.mxu0 0
  %3533 = vmatprep.subr.bf16.mxu0 0
  %3534 = vmatpush1.bf16.msra.mxu0 0
  %3535 = vmatprep.subr.bf16.mxu0 0
  %3536 = vmatpush1.bf16.msra.mxu0 0
  %3537 = vmatprep.subr.bf16.mxu0 0
  %3538 = vmatpush1.bf16.msra.mxu0 0
  %3539 = vmatprep.subr.bf16.mxu0 0
  %3540 = vmatpush1.bf16.msra.mxu0 0
  %3541 = vmatprep.subr.bf16.mxu0 0
  %3542 = vmatpush1.bf16.msra.mxu0 0
  %3543 = vmatprep.subr.bf16.mxu0 0
  %3544 = vmatpush1.bf16.msra.mxu0 0
  %3545 = vmatprep.subr.bf16.mxu0 0
  %3546 = vmatpush1.bf16.msra.mxu0 0
  %3547 = vmatprep.subr.bf16.mxu0 0
  %3548 = vmatpush1.bf16.msra.mxu0 0
  %3549 = vmatprep.subr.bf16.mxu0 0
  %3550 = vmatpush1.bf16.msra.mxu0 0
  %3551 = vmatprep.subr.bf16.mxu0 0
  %3552 = vmatpush1.bf16.msra.mxu0 0
  %3553 = vmatprep.subr.bf16.mxu0 0
  %3554 = vmatpush1.bf16.msra.mxu0 0
  %3555 = vmatprep.subr.bf16.mxu0 0
  %3556 = vmatpush1.bf16.msra.mxu0 0
  %3557 = vmatprep.subr.bf16.mxu0 0
  %3558 = vmatpush1.bf16.msra.mxu0 0
  %3559 = vmatprep.subr.bf16.mxu0 0
  %3560 = vmatpush1.bf16.msra.mxu0 0
  %3561 = vmatprep.mubr.bf16.mxu0 0
  %3562 = vmatmul.mubr.bf16.gmra.mrb[0].mxu0 %v3524
  %v3563 = vpop.f32.mrb[0].mxu0
  %v3564 = vadd.f32 0.0, %v3563
  %v3565 = vpop.f32.mrb[0].mxu0
  %v3566 = vpop.f32.mrb[0].mxu0
  %v3567 = vpop.f32.mrb[0].mxu0
  %3568 = vdwg.mxu0
  %v3570 = vsel %vm3053, %v3237, 0
  %v3573 = vsel %vm3249, %v2307, 0
  %3575 = vmatprep.subr.bf16.mxu0 0
  %3576 = vmatpush1.bf16.msra.mxu0 %v3573
  %3577 = vmatprep.subr.bf16.mxu0 0
  %3578 = vmatpush1.bf16.msra.mxu0 0
  %3579 = vmatprep.subr.bf16.mxu0 0
  %3580 = vmatpush1.bf16.msra.mxu0 0
  %3581 = vmatprep.subr.bf16.mxu0 0
  %3582 = vmatpush1.bf16.msra.mxu0 0
  %3583 = vmatprep.subr.bf16.mxu0 0
  %3584 = vmatpush1.bf16.msra.mxu0 0
  %3585 = vmatprep.subr.bf16.mxu0 0
  %3586 = vmatpush1.bf16.msra.mxu0 0
  %3587 = vmatprep.subr.bf16.mxu0 0
  %3588 = vmatpush1.bf16.msra.mxu0 0
  %3589 = vmatprep.subr.bf16.mxu0 0
  %3590 = vmatpush1.bf16.msra.mxu0 0
  %3591 = vmatprep.subr.bf16.mxu0 0
  %3592 = vmatpush1.bf16.msra.mxu0 0
  %3593 = vmatprep.subr.bf16.mxu0 0
  %3594 = vmatpush1.bf16.msra.mxu0 0
  %3595 = vmatprep.subr.bf16.mxu0 0
  %3596 = vmatpush1.bf16.msra.mxu0 0
  %3597 = vmatprep.subr.bf16.mxu0 0
  %3598 = vmatpush1.bf16.msra.mxu0 0
  %3599 = vmatprep.subr.bf16.mxu0 0
  %3600 = vmatpush1.bf16.msra.mxu0 0
  %3601 = vmatprep.subr.bf16.mxu0 0
  %3602 = vmatpush1.bf16.msra.mxu0 0
  %3603 = vmatprep.subr.bf16.mxu0 0
  %3604 = vmatpush1.bf16.msra.mxu0 0
  %3605 = vmatprep.subr.bf16.mxu0 0
  %3606 = vmatpush1.bf16.msra.mxu0 0
  %3607 = vmatprep.mubr.bf16.mxu0 0
  %3608 = vmatmul.mubr.bf16.gmra.mrb[0].mxu0 %v3570
  %v3609 = vpop.f32.mrb[0].mxu0
  %v3610 = vadd.f32 0.0, %v3609
  %v3611 = vpop.f32.mrb[0].mxu0
  %v3612 = vpop.f32.mrb[0].mxu0
  %v3613 = vpop.f32.mrb[0].mxu0
  %3614 = vdwg.mxu0
  %v3616 = vsel %vm3053, %v3238, 0
  %v3619 = vsel %vm3249, %v2308, 0
  %3621 = vmatprep.subr.bf16.mxu0 0
  %3622 = vmatpush1.bf16.msra.mxu0 %v3619
  %3623 = vmatprep.subr.bf16.mxu0 0
  %3624 = vmatpush1.bf16.msra.mxu0 0
  %3625 = vmatprep.subr.bf16.mxu0 0
  %3626 = vmatpush1.bf16.msra.mxu0 0
  %3627 = vmatprep.subr.bf16.mxu0 0
  %3628 = vmatpush1.bf16.msra.mxu0 0
  %3629 = vmatprep.subr.bf16.mxu0 0
  %3630 = vmatpush1.bf16.msra.mxu0 0
  %3631 = vmatprep.subr.bf16.mxu0 0
  %3632 = vmatpush1.bf16.msra.mxu0 0
  %3633 = vmatprep.subr.bf16.mxu0 0
  %3634 = vmatpush1.bf16.msra.mxu0 0
  %3635 = vmatprep.subr.bf16.mxu0 0
  %3636 = vmatpush1.bf16.msra.mxu0 0
  %3637 = vmatprep.subr.bf16.mxu0 0
  %3638 = vmatpush1.bf16.msra.mxu0 0
  %3639 = vmatprep.subr.bf16.mxu0 0
  %3640 = vmatpush1.bf16.msra.mxu0 0
  %3641 = vmatprep.subr.bf16.mxu0 0
  %3642 = vmatpush1.bf16.msra.mxu0 0
  %3643 = vmatprep.subr.bf16.mxu0 0
  %3644 = vmatpush1.bf16.msra.mxu0 0
  %3645 = vmatprep.subr.bf16.mxu0 0
  %3646 = vmatpush1.bf16.msra.mxu0 0
  %3647 = vmatprep.subr.bf16.mxu0 0
  %3648 = vmatpush1.bf16.msra.mxu0 0
  %3649 = vmatprep.subr.bf16.mxu0 0
  %3650 = vmatpush1.bf16.msra.mxu0 0
  %3651 = vmatprep.subr.bf16.mxu0 0
  %3652 = vmatpush1.bf16.msra.mxu0 0
  %3653 = vmatprep.mubr.bf16.mxu0 0
  %3654 = vmatmul.mubr.bf16.gmra.mrb[0].mxu0 %v3616
  %v3655 = vpop.f32.mrb[0].mxu0
  %v3656 = vadd.f32 0.0, %v3655
  %v3657 = vpop.f32.mrb[0].mxu0
  %v3658 = vpop.f32.mrb[0].mxu0
  %v3659 = vpop.f32.mrb[0].mxu0
  %3660 = vdwg.mxu0
  %v3662 = vsel %vm3053, %v3239, 0
  %v3665 = vsel %vm3249, %v2309, 0
  %3667 = vmatprep.subr.bf16.mxu0 0
  %3668 = vmatpush1.bf16.msra.mxu0 %v3665
  %3669 = vmatprep.subr.bf16.mxu0 0
  %3670 = vmatpush1.bf16.msra.mxu0 0
  %3671 = vmatprep.subr.bf16.mxu0 0
  %3672 = vmatpush1.bf16.msra.mxu0 0
  %3673 = vmatprep.subr.bf16.mxu0 0
  %3674 = vmatpush1.bf16.msra.mxu0 0
  %3675 = vmatprep.subr.bf16.mxu0 0
  %3676 = vmatpush1.bf16.msra.mxu0 0
  %3677 = vmatprep.subr.bf16.mxu0 0
  %3678 = vmatpush1.bf16.msra.mxu0 0
  %3679 = vmatprep.subr.bf16.mxu0 0
  %3680 = vmatpush1.bf16.msra.mxu0 0
  %3681 = vmatprep.subr.bf16.mxu0 0
  %3682 = vmatpush1.bf16.msra.mxu0 0
  %3683 = vmatprep.subr.bf16.mxu0 0
  %3684 = vmatpush1.bf16.msra.mxu0 0
  %3685 = vmatprep.subr.bf16.mxu0 0
  %3686 = vmatpush1.bf16.msra.mxu0 0
  %3687 = vmatprep.subr.bf16.mxu0 0
  %3688 = vmatpush1.bf16.msra.mxu0 0
  %3689 = vmatprep.subr.bf16.mxu0 0
  %3690 = vmatpush1.bf16.msra.mxu0 0
  %3691 = vmatprep.subr.bf16.mxu0 0
  %3692 = vmatpush1.bf16.msra.mxu0 0
  %3693 = vmatprep.subr.bf16.mxu0 0
  %3694 = vmatpush1.bf16.msra.mxu0 0
  %3695 = vmatprep.subr.bf16.mxu0 0
  %3696 = vmatpush1.bf16.msra.mxu0 0
  %3697 = vmatprep.subr.bf16.mxu0 0
  %3698 = vmatpush1.bf16.msra.mxu0 0
  %3699 = vmatprep.mubr.bf16.mxu0 0
  %3700 = vmatmul.mubr.bf16.gmra.mrb[0].mxu0 %v3662
  %v3701 = vpop.f32.mrb[0].mxu0
  %v3702 = vadd.f32 0.0, %v3701
  %v3703 = vpop.f32.mrb[0].mxu0
  %v3704 = vpop.f32.mrb[0].mxu0
  %v3705 = vpop.f32.mrb[0].mxu0
  %3706 = vdwg.mxu0
  %v3708 = vsel %vm3053, %v3240, 0
  %v3711 = vsel %vm3249, %v2310, 0
  %3713 = vmatprep.subr.bf16.mxu0 0
  %3714 = vmatpush1.bf16.msra.mxu0 %v3711
  %3715 = vmatprep.subr.bf16.mxu0 0
  %3716 = vmatpush1.bf16.msra.mxu0 0
  %3717 = vmatprep.subr.bf16.mxu0 0
  %3718 = vmatpush1.bf16.msra.mxu0 0
  %3719 = vmatprep.subr.bf16.mxu0 0
  %3720 = vmatpush1.bf16.msra.mxu0 0
  %3721 = vmatprep.subr.bf16.mxu0 0
  %3722 = vmatpush1.bf16.msra.mxu0 0
  %3723 = vmatprep.subr.bf16.mxu0 0
  %3724 = vmatpush1.bf16.msra.mxu0 0
  %3725 = vmatprep.subr.bf16.mxu0 0
  %3726 = vmatpush1.bf16.msra.mxu0 0
  %3727 = vmatprep.subr.bf16.mxu0 0
  %3728 = vmatpush1.bf16.msra.mxu0 0
  %3729 = vmatprep.subr.bf16.mxu0 0
  %3730 = vmatpush1.bf16.msra.mxu0 0
  %3731 = vmatprep.subr.bf16.mxu0 0
  %3732 = vmatpush1.bf16.msra.mxu0 0
  %3733 = vmatprep.subr.bf16.mxu0 0
  %3734 = vmatpush1.bf16.msra.mxu0 0
  %3735 = vmatprep.subr.bf16.mxu0 0
  %3736 = vmatpush1.bf16.msra.mxu0 0
  %3737 = vmatprep.subr.bf16.mxu0 0
  %3738 = vmatpush1.bf16.msra.mxu0 0
  %3739 = vmatprep.subr.bf16.mxu0 0
  %3740 = vmatpush1.bf16.msra.mxu0 0
  %3741 = vmatprep.subr.bf16.mxu0 0
  %3742 = vmatpush1.bf16.msra.mxu0 0
  %3743 = vmatprep.subr.bf16.mxu0 0
  %3744 = vmatpush1.bf16.msra.mxu0 0
  %3745 = vmatprep.mubr.bf16.mxu0 0
  %3746 = vmatmul.mubr.bf16.gmra.mrb[0].mxu0 %v3708
  %v3747 = vpop.f32.mrb[0].mxu0
  %v3748 = vadd.f32 0.0, %v3747
  %v3749 = vpop.f32.mrb[0].mxu0
  %v3750 = vpop.f32.mrb[0].mxu0
  %v3751 = vpop.f32.mrb[0].mxu0
  %3752 = vdwg.mxu0
  %v3754 = vsel %vm3053, %v3241, 0
  %v3757 = vsel %vm3249, %v2311, 0
  %3759 = vmatprep.subr.bf16.mxu0 0
  %3760 = vmatpush1.bf16.msra.mxu0 %v3757
  %3761 = vmatprep.subr.bf16.mxu0 0
  %3762 = vmatpush1.bf16.msra.mxu0 0
  %3763 = vmatprep.subr.bf16.mxu0 0
  %3764 = vmatpush1.bf16.msra.mxu0 0
  %3765 = vmatprep.subr.bf16.mxu0 0
  %3766 = vmatpush1.bf16.msra.mxu0 0
  %3767 = vmatprep.subr.bf16.mxu0 0
  %3768 = vmatpush1.bf16.msra.mxu0 0
  %3769 = vmatprep.subr.bf16.mxu0 0
  %3770 = vmatpush1.bf16.msra.mxu0 0
  %3771 = vmatprep.subr.bf16.mxu0 0
  %3772 = vmatpush1.bf16.msra.mxu0 0
  %3773 = vmatprep.subr.bf16.mxu0 0
  %3774 = vmatpush1.bf16.msra.mxu0 0
  %3775 = vmatprep.subr.bf16.mxu0 0
  %3776 = vmatpush1.bf16.msra.mxu0 0
  %3777 = vmatprep.subr.bf16.mxu0 0
  %3778 = vmatpush1.bf16.msra.mxu0 0
  %3779 = vmatprep.subr.bf16.mxu0 0
  %3780 = vmatpush1.bf16.msra.mxu0 0
  %3781 = vmatprep.subr.bf16.mxu0 0
  %3782 = vmatpush1.bf16.msra.mxu0 0
  %3783 = vmatprep.subr.bf16.mxu0 0
  %3784 = vmatpush1.bf16.msra.mxu0 0
  %3785 = vmatprep.subr.bf16.mxu0 0
  %3786 = vmatpush1.bf16.msra.mxu0 0
  %3787 = vmatprep.subr.bf16.mxu0 0
  %3788 = vmatpush1.bf16.msra.mxu0 0
  %3789 = vmatprep.subr.bf16.mxu0 0
  %3790 = vmatpush1.bf16.msra.mxu0 0
  %3791 = vmatprep.mubr.bf16.mxu0 0
  %3792 = vmatmul.mubr.bf16.gmra.mrb[0].mxu0 %v3754
  %v3793 = vpop.f32.mrb[0].mxu0
  %v3794 = vadd.f32 0.0, %v3793
  %v3795 = vpop.f32.mrb[0].mxu0
  %v3796 = vpop.f32.mrb[0].mxu0
  %v3797 = vpop.f32.mrb[0].mxu0
  %3798 = vdwg.mxu0
  %v3800 = vsel %vm3053, %v3242, 0
  %v3803 = vsel %vm3249, %v2312, 0
  %3805 = vmatprep.subr.bf16.mxu0 0
  %3806 = vmatpush1.bf16.msra.mxu0 %v3803
  %3807 = vmatprep.subr.bf16.mxu0 0
  %3808 = vmatpush1.bf16.msra.mxu0 0
  %3809 = vmatprep.subr.bf16.mxu0 0
  %3810 = vmatpush1.bf16.msra.mxu0 0
  %3811 = vmatprep.subr.bf16.mxu0 0
  %3812 = vmatpush1.bf16.msra.mxu0 0
  %3813 = vmatprep.subr.bf16.mxu0 0
  %3814 = vmatpush1.bf16.msra.mxu0 0
  %3815 = vmatprep.subr.bf16.mxu0 0
  %3816 = vmatpush1.bf16.msra.mxu0 0
  %3817 = vmatprep.subr.bf16.mxu0 0
  %3818 = vmatpush1.bf16.msra.mxu0 0
  %3819 = vmatprep.subr.bf16.mxu0 0
  %3820 = vmatpush1.bf16.msra.mxu0 0
  %3821 = vmatprep.subr.bf16.mxu0 0
  %3822 = vmatpush1.bf16.msra.mxu0 0
  %3823 = vmatprep.subr.bf16.mxu0 0
  %3824 = vmatpush1.bf16.msra.mxu0 0
  %3825 = vmatprep.subr.bf16.mxu0 0
  %3826 = vmatpush1.bf16.msra.mxu0 0
  %3827 = vmatprep.subr.bf16.mxu0 0
  %3828 = vmatpush1.bf16.msra.mxu0 0
  %3829 = vmatprep.subr.bf16.mxu0 0
  %3830 = vmatpush1.bf16.msra.mxu0 0
  %3831 = vmatprep.subr.bf16.mxu0 0
  %3832 = vmatpush1.bf16.msra.mxu0 0
  %3833 = vmatprep.subr.bf16.mxu0 0
  %3834 = vmatpush1.bf16.msra.mxu0 0
  %3835 = vmatprep.subr.bf16.mxu0 0
  %3836 = vmatpush1.bf16.msra.mxu0 0
  %3837 = vmatprep.mubr.bf16.mxu0 0
  %3838 = vmatmul.mubr.bf16.gmra.mrb[0].mxu0 %v3800
  %v3839 = vpop.f32.mrb[0].mxu0
  %v3840 = vadd.f32 0.0, %v3839
  %v3841 = vpop.f32.mrb[0].mxu0
  %v3842 = vpop.f32.mrb[0].mxu0
  %v3843 = vpop.f32.mrb[0].mxu0
  %3844 = vdwg.mxu0
  %v3846 = vsel %vm3053, %v3243, 0
  %v3849 = vsel %vm3249, %v2313, 0
  %3851 = vmatprep.subr.bf16.mxu0 0
  %3852 = vmatpush1.bf16.msra.mxu0 %v3849
  %3853 = vmatprep.subr.bf16.mxu0 0
  %3854 = vmatpush1.bf16.msra.mxu0 0
  %3855 = vmatprep.subr.bf16.mxu0 0
  %3856 = vmatpush1.bf16.msra.mxu0 0
  %3857 = vmatprep.subr.bf16.mxu0 0
  %3858 = vmatpush1.bf16.msra.mxu0 0
  %3859 = vmatprep.subr.bf16.mxu0 0
  %3860 = vmatpush1.bf16.msra.mxu0 0
  %3861 = vmatprep.subr.bf16.mxu0 0
  %3862 = vmatpush1.bf16.msra.mxu0 0
  %3863 = vmatprep.subr.bf16.mxu0 0
  %3864 = vmatpush1.bf16.msra.mxu0 0
  %3865 = vmatprep.subr.bf16.mxu0 0
  %3866 = vmatpush1.bf16.msra.mxu0 0
  %3867 = vmatprep.subr.bf16.mxu0 0
  %3868 = vmatpush1.bf16.msra.mxu0 0
  %3869 = vmatprep.subr.bf16.mxu0 0
  %3870 = vmatpush1.bf16.msra.mxu0 0
  %3871 = vmatprep.subr.bf16.mxu0 0
  %3872 = vmatpush1.bf16.msra.mxu0 0
  %3873 = vmatprep.subr.bf16.mxu0 0
  %3874 = vmatpush1.bf16.msra.mxu0 0
  %3875 = vmatprep.subr.bf16.mxu0 0
  %3876 = vmatpush1.bf16.msra.mxu0 0
  %3877 = vmatprep.subr.bf16.mxu0 0
  %3878 = vmatpush1.bf16.msra.mxu0 0
  %3879 = vmatprep.subr.bf16.mxu0 0
  %3880 = vmatpush1.bf16.msra.mxu0 0
  %3881 = vmatprep.subr.bf16.mxu0 0
  %3882 = vmatpush1.bf16.msra.mxu0 0
  %3883 = vmatprep.mubr.bf16.mxu0 0
  %3884 = vmatmul.mubr.bf16.gmra.mrb[0].mxu0 %v3846
  %v3885 = vpop.f32.mrb[0].mxu0
  %v3886 = vadd.f32 0.0, %v3885
  %v3887 = vpop.f32.mrb[0].mxu0
  %v3888 = vpop.f32.mrb[0].mxu0
  %v3889 = vpop.f32.mrb[0].mxu0
  %3890 = vdwg.mxu0
  %v3892 = vsel %vm3053, %v3244, 0
  %v3895 = vsel %vm3249, %v2314, 0
  %3897 = vmatprep.subr.bf16.mxu0 0
  %3898 = vmatpush1.bf16.msra.mxu0 %v3895
  %3899 = vmatprep.subr.bf16.mxu0 0
  %3900 = vmatpush1.bf16.msra.mxu0 0
  %3901 = vmatprep.subr.bf16.mxu0 0
  %3902 = vmatpush1.bf16.msra.mxu0 0
  %3903 = vmatprep.subr.bf16.mxu0 0
  %3904 = vmatpush1.bf16.msra.mxu0 0
  %3905 = vmatprep.subr.bf16.mxu0 0
  %3906 = vmatpush1.bf16.msra.mxu0 0
  %3907 = vmatprep.subr.bf16.mxu0 0
  %3908 = vmatpush1.bf16.msra.mxu0 0
  %3909 = vmatprep.subr.bf16.mxu0 0
  %3910 = vmatpush1.bf16.msra.mxu0 0
  %3911 = vmatprep.subr.bf16.mxu0 0
  %3912 = vmatpush1.bf16.msra.mxu0 0
  %3913 = vmatprep.subr.bf16.mxu0 0
  %3914 = vmatpush1.bf16.msra.mxu0 0
  %3915 = vmatprep.subr.bf16.mxu0 0
  %3916 = vmatpush1.bf16.msra.mxu0 0
  %3917 = vmatprep.subr.bf16.mxu0 0
  %3918 = vmatpush1.bf16.msra.mxu0 0
  %3919 = vmatprep.subr.bf16.mxu0 0
  %3920 = vmatpush1.bf16.msra.mxu0 0
  %3921 = vmatprep.subr.bf16.mxu0 0
  %3922 = vmatpush1.bf16.msra.mxu0 0
  %3923 = vmatprep.subr.bf16.mxu0 0
  %3924 = vmatpush1.bf16.msra.mxu0 0
  %3925 = vmatprep.subr.bf16.mxu0 0
  %3926 = vmatpush1.bf16.msra.mxu0 0
  %3927 = vmatprep.subr.bf16.mxu0 0
  %3928 = vmatpush1.bf16.msra.mxu0 0
  %3929 = vmatprep.mubr.bf16.mxu0 0
  %3930 = vmatmul.mubr.bf16.gmra.mrb[0].mxu0 %v3892
  %v3931 = vpop.f32.mrb[0].mxu0
  %v3932 = vadd.f32 0.0, %v3931
  %v3933 = vpop.f32.mrb[0].mxu0
  %v3934 = vpop.f32.mrb[0].mxu0
  %v3935 = vpop.f32.mrb[0].mxu0
  %3936 = vdwg.mxu0
  %v3938 = vsel %vm3053, %v3245, 0
  %v3941 = vsel %vm3249, %v2315, 0
  %3943 = vmatprep.subr.bf16.mxu0 0
  %3944 = vmatpush1.bf16.msra.mxu0 %v3941
  %3945 = vmatprep.subr.bf16.mxu0 0
  %3946 = vmatpush1.bf16.msra.mxu0 0
  %3947 = vmatprep.subr.bf16.mxu0 0
  %3948 = vmatpush1.bf16.msra.mxu0 0
  %3949 = vmatprep.subr.bf16.mxu0 0
  %3950 = vmatpush1.bf16.msra.mxu0 0
  %3951 = vmatprep.subr.bf16.mxu0 0
  %3952 = vmatpush1.bf16.msra.mxu0 0
  %3953 = vmatprep.subr.bf16.mxu0 0
  %3954 = vmatpush1.bf16.msra.mxu0 0
  %3955 = vmatprep.subr.bf16.mxu0 0
  %3956 = vmatpush1.bf16.msra.mxu0 0
  %3957 = vmatprep.subr.bf16.mxu0 0
  %3958 = vmatpush1.bf16.msra.mxu0 0
  %3959 = vmatprep.subr.bf16.mxu0 0
  %3960 = vmatpush1.bf16.msra.mxu0 0
  %3961 = vmatprep.subr.bf16.mxu0 0
  %3962 = vmatpush1.bf16.msra.mxu0 0
  %3963 = vmatprep.subr.bf16.mxu0 0
  %3964 = vmatpush1.bf16.msra.mxu0 0
  %3965 = vmatprep.subr.bf16.mxu0 0
  %3966 = vmatpush1.bf16.msra.mxu0 0
  %3967 = vmatprep.subr.bf16.mxu0 0
  %3968 = vmatpush1.bf16.msra.mxu0 0
  %3969 = vmatprep.subr.bf16.mxu0 0
  %3970 = vmatpush1.bf16.msra.mxu0 0
  %3971 = vmatprep.subr.bf16.mxu0 0
  %3972 = vmatpush1.bf16.msra.mxu0 0
  %3973 = vmatprep.subr.bf16.mxu0 0
  %3974 = vmatpush1.bf16.msra.mxu0 0
  %3975 = vmatprep.mubr.bf16.mxu0 0
  %3976 = vmatmul.mubr.bf16.gmra.mrb[0].mxu0 %v3938
  %v3977 = vpop.f32.mrb[0].mxu0
  %v3978 = vadd.f32 0.0, %v3977
  %v3979 = vpop.f32.mrb[0].mxu0
  %v3980 = vpop.f32.mrb[0].mxu0
  %v3981 = vpop.f32.mrb[0].mxu0
  %3982 = vdwg.mxu0
  %v3983 = vcombine.high %v3288, 0.0
  %v3985 = vunpack.c.l.s4 1983009808
  %v3986 = vunpack.c.0.s8 %v3985
  %v3987 = vlaneseq
  %v3988 = vshrl.u32 %v3987, 7
  %v3989 = vsub.s32 %v3986, %v3988
  %v3990 = vrot.slane %v3288, %v3989
  %v3992 = vunpack.c.l.s4 1983009808
  %v3993 = vunpack.c.0.s8 %v3992
  %v3994 = vlaneseq
  %v3995 = vshrl.u32 %v3994, 7
  %v3996 = vsub.s32 %v3993, %v3995
  %v3997 = vrot.slane %v3983, %v3996
  %v3998 = vcombine.high %v3656, 0.0
  %v4000 = vunpack.c.l.s4 1983009808
  %v4001 = vunpack.c.0.s8 %v4000
  %v4002 = vlaneseq
  %v4003 = vshrl.u32 %v4002, 7
  %v4004 = vsub.s32 %v4001, %v4003
  %v4005 = vrot.slane %v3656, %v4004
  %v4007 = vunpack.c.l.s4 1983009808
  %v4008 = vunpack.c.0.s8 %v4007
  %v4009 = vlaneseq
  %v4010 = vshrl.u32 %v4009, 7
  %v4011 = vsub.s32 %v4008, %v4010
  %v4012 = vrot.slane %v3998, %v4011
  %v4013 = vcombine.low %v3990, %v4005
  %v4014 = vcombine.high %v3990, %v4005
  %v4016 = vunpack.c.l.s4 1934713408
  %v4017 = vunpack.c.0.s8 %v4016
  %v4018 = vlaneseq
  %v4019 = vshrl.u32 %v4018, 7
  %v4020 = vsub.s32 %v4017, %v4019
  %v4021 = vrot.slane %v4013, %v4020
  %v4023 = vunpack.c.l.s4 1934713408
  %v4024 = vunpack.c.0.s8 %v4023
  %v4025 = vlaneseq
  %v4026 = vshrl.u32 %v4025, 7
  %v4027 = vsub.s32 %v4024, %v4026
  %v4028 = vrot.slane %v4014, %v4027
  %v4029 = vcombine.low %v3997, %v4012
  %v4030 = vcombine.high %v3997, %v4012
  %v4032 = vunpack.c.l.s4 1934713408
  %v4033 = vunpack.c.0.s8 %v4032
  %v4034 = vlaneseq
  %v4035 = vshrl.u32 %v4034, 7
  %v4036 = vsub.s32 %v4033, %v4035
  %v4037 = vrot.slane %v4029, %v4036
  %v4039 = vunpack.c.l.s4 1934713408
  %v4040 = vunpack.c.0.s8 %v4039
  %v4041 = vlaneseq
  %v4042 = vshrl.u32 %v4041, 7
  %v4043 = vsub.s32 %v4040, %v4042
  %v4044 = vrot.slane %v4030, %v4043
  %v4045 = vcombine.high %v4021, 0.0
  %v4046 = vcombine.high %v4028, 0.0
  %v4047 = vcombine.high %v4037, 0.0
  %v4048 = vcombine.high %v4044, 0.0
  %v4049 = vcombine.high %v3334, 0.0
  %v4051 = vunpack.c.l.s4 1983009808
  %v4052 = vunpack.c.0.s8 %v4051
  %v4053 = vlaneseq
  %v4054 = vshrl.u32 %v4053, 7
  %v4055 = vsub.s32 %v4052, %v4054
  %v4056 = vrot.slane %v3334, %v4055
  %v4058 = vunpack.c.l.s4 1983009808
  %v4059 = vunpack.c.0.s8 %v4058
  %v4060 = vlaneseq
  %v4061 = vshrl.u32 %v4060, 7
  %v4062 = vsub.s32 %v4059, %v4061
  %v4063 = vrot.slane %v4049, %v4062
  %v4064 = vcombine.high %v3702, 0.0
  %v4066 = vunpack.c.l.s4 1983009808
  %v4067 = vunpack.c.0.s8 %v4066
  %v4068 = vlaneseq
  %v4069 = vshrl.u32 %v4068, 7
  %v4070 = vsub.s32 %v4067, %v4069
  %v4071 = vrot.slane %v3702, %v4070
  %v4073 = vunpack.c.l.s4 1983009808
  %v4074 = vunpack.c.0.s8 %v4073
  %v4075 = vlaneseq
  %v4076 = vshrl.u32 %v4075, 7
  %v4077 = vsub.s32 %v4074, %v4076
  %v4078 = vrot.slane %v4064, %v4077
  %v4079 = vcombine.low %v4056, %v4071
  %v4080 = vcombine.high %v4056, %v4071
  %v4082 = vunpack.c.l.s4 1934713408
  %v4083 = vunpack.c.0.s8 %v4082
  %v4084 = vlaneseq
  %v4085 = vshrl.u32 %v4084, 7
  %v4086 = vsub.s32 %v4083, %v4085
  %v4087 = vrot.slane %v4079, %v4086
  %v4089 = vunpack.c.l.s4 1934713408
  %v4090 = vunpack.c.0.s8 %v4089
  %v4091 = vlaneseq
  %v4092 = vshrl.u32 %v4091, 7
  %v4093 = vsub.s32 %v4090, %v4092
  %v4094 = vrot.slane %v4080, %v4093
  %v4095 = vcombine.low %v4063, %v4078
  %v4096 = vcombine.high %v4063, %v4078
  %v4098 = vunpack.c.l.s4 1934713408
  %v4099 = vunpack.c.0.s8 %v4098
  %v4100 = vlaneseq
  %v4101 = vshrl.u32 %v4100, 7
  %v4102 = vsub.s32 %v4099, %v4101
  %v4103 = vrot.slane %v4095, %v4102
  %v4105 = vunpack.c.l.s4 1934713408
  %v4106 = vunpack.c.0.s8 %v4105
  %v4107 = vlaneseq
  %v4108 = vshrl.u32 %v4107, 7
  %v4109 = vsub.s32 %v4106, %v4108
  %v4110 = vrot.slane %v4096, %v4109
  %v4111 = vcombine.high %v4087, 0.0
  %v4112 = vcombine.high %v4094, 0.0
  %v4113 = vcombine.high %v4103, 0.0
  %v4114 = vcombine.high %v4110, 0.0
  %v4115 = vcombine.high %v3380, 0.0
  %v4117 = vunpack.c.l.s4 1983009808
  %v4118 = vunpack.c.0.s8 %v4117
  %v4119 = vlaneseq
  %v4120 = vshrl.u32 %v4119, 7
  %v4121 = vsub.s32 %v4118, %v4120
  %v4122 = vrot.slane %v3380, %v4121
  %v4124 = vunpack.c.l.s4 1983009808
  %v4125 = vunpack.c.0.s8 %v4124
  %v4126 = vlaneseq
  %v4127 = vshrl.u32 %v4126, 7
  %v4128 = vsub.s32 %v4125, %v4127
  %v4129 = vrot.slane %v4115, %v4128
  %v4130 = vcombine.high %v3748, 0.0
  %v4132 = vunpack.c.l.s4 1983009808
  %v4133 = vunpack.c.0.s8 %v4132
  %v4134 = vlaneseq
  %v4135 = vshrl.u32 %v4134, 7
  %v4136 = vsub.s32 %v4133, %v4135
  %v4137 = vrot.slane %v3748, %v4136
  %v4139 = vunpack.c.l.s4 1983009808
  %v4140 = vunpack.c.0.s8 %v4139
  %v4141 = vlaneseq
  %v4142 = vshrl.u32 %v4141, 7
  %v4143 = vsub.s32 %v4140, %v4142
  %v4144 = vrot.slane %v4130, %v4143
  %v4145 = vcombine.low %v4122, %v4137
  %v4146 = vcombine.high %v4122, %v4137
  %v4148 = vunpack.c.l.s4 1934713408
  %v4149 = vunpack.c.0.s8 %v4148
  %v4150 = vlaneseq
  %v4151 = vshrl.u32 %v4150, 7
  %v4152 = vsub.s32 %v4149, %v4151
  %v4153 = vrot.slane %v4145, %v4152
  %v4155 = vunpack.c.l.s4 1934713408
  %v4156 = vunpack.c.0.s8 %v4155
  %v4157 = vlaneseq
  %v4158 = vshrl.u32 %v4157, 7
  %v4159 = vsub.s32 %v4156, %v4158
  %v4160 = vrot.slane %v4146, %v4159
  %v4161 = vcombine.low %v4129, %v4144
  %v4162 = vcombine.high %v4129, %v4144
  %v4164 = vunpack.c.l.s4 1934713408
  %v4165 = vunpack.c.0.s8 %v4164
  %v4166 = vlaneseq
  %v4167 = vshrl.u32 %v4166, 7
  %v4168 = vsub.s32 %v4165, %v4167
  %v4169 = vrot.slane %v4161, %v4168
  %v4171 = vunpack.c.l.s4 1934713408
  %v4172 = vunpack.c.0.s8 %v4171
  %v4173 = vlaneseq
  %v4174 = vshrl.u32 %v4173, 7
  %v4175 = vsub.s32 %v4172, %v4174
  %v4176 = vrot.slane %v4162, %v4175
  %v4177 = vcombine.high %v4153, 0.0
  %v4178 = vcombine.high %v4160, 0.0
  %v4179 = vcombine.high %v4169, 0.0
  %v4180 = vcombine.high %v4176, 0.0
  %v4181 = vcombine.high %v3426, 0.0
  %v4183 = vunpack.c.l.s4 1983009808
  %v4184 = vunpack.c.0.s8 %v4183
  %v4185 = vlaneseq
  %v4186 = vshrl.u32 %v4185, 7
  %v4187 = vsub.s32 %v4184, %v4186
  %v4188 = vrot.slane %v3426, %v4187
  %v4190 = vunpack.c.l.s4 1983009808
  %v4191 = vunpack.c.0.s8 %v4190
  %v4192 = vlaneseq
  %v4193 = vshrl.u32 %v4192, 7
  %v4194 = vsub.s32 %v4191, %v4193
  %v4195 = vrot.slane %v4181, %v4194
  %v4196 = vcombine.high %v3794, 0.0
  %v4198 = vunpack.c.l.s4 1983009808
  %v4199 = vunpack.c.0.s8 %v4198
  %v4200 = vlaneseq
  %v4201 = vshrl.u32 %v4200, 7
  %v4202 = vsub.s32 %v4199, %v4201
  %v4203 = vrot.slane %v3794, %v4202
  %v4205 = vunpack.c.l.s4 1983009808
  %v4206 = vunpack.c.0.s8 %v4205
  %v4207 = vlaneseq
  %v4208 = vshrl.u32 %v4207, 7
  %v4209 = vsub.s32 %v4206, %v4208
  %v4210 = vrot.slane %v4196, %v4209
  %v4211 = vcombine.low %v4188, %v4203
  %v4212 = vcombine.high %v4188, %v4203
  %v4214 = vunpack.c.l.s4 1934713408
  %v4215 = vunpack.c.0.s8 %v4214
  %v4216 = vlaneseq
  %v4217 = vshrl.u32 %v4216, 7
  %v4218 = vsub.s32 %v4215, %v4217
  %v4219 = vrot.slane %v4211, %v4218
  %v4221 = vunpack.c.l.s4 1934713408
  %v4222 = vunpack.c.0.s8 %v4221
  %v4223 = vlaneseq
  %v4224 = vshrl.u32 %v4223, 7
  %v4225 = vsub.s32 %v4222, %v4224
  %v4226 = vrot.slane %v4212, %v4225
  %v4227 = vcombine.low %v4195, %v4210
  %v4228 = vcombine.high %v4195, %v4210
  %v4230 = vunpack.c.l.s4 1934713408
  %v4231 = vunpack.c.0.s8 %v4230
  %v4232 = vlaneseq
  %v4233 = vshrl.u32 %v4232, 7
  %v4234 = vsub.s32 %v4231, %v4233
  %v4235 = vrot.slane %v4227, %v4234
  %v4237 = vunpack.c.l.s4 1934713408
  %v4238 = vunpack.c.0.s8 %v4237
  %v4239 = vlaneseq
  %v4240 = vshrl.u32 %v4239, 7
  %v4241 = vsub.s32 %v4238, %v4240
  %v4242 = vrot.slane %v4228, %v4241
  %v4243 = vcombine.high %v4219, 0.0
  %v4244 = vcombine.high %v4226, 0.0
  %v4245 = vcombine.high %v4235, 0.0
  %v4246 = vcombine.high %v4242, 0.0
  %v4247 = vcombine.high %v3472, 0.0
  %v4249 = vunpack.c.l.s4 1983009808
  %v4250 = vunpack.c.0.s8 %v4249
  %v4251 = vlaneseq
  %v4252 = vshrl.u32 %v4251, 7
  %v4253 = vsub.s32 %v4250, %v4252
  %v4254 = vrot.slane %v3472, %v4253
  %v4256 = vunpack.c.l.s4 1983009808
  %v4257 = vunpack.c.0.s8 %v4256
  %v4258 = vlaneseq
  %v4259 = vshrl.u32 %v4258, 7
  %v4260 = vsub.s32 %v4257, %v4259
  %v4261 = vrot.slane %v4247, %v4260
  %v4262 = vcombine.high %v3840, 0.0
  %v4264 = vunpack.c.l.s4 1983009808
  %v4265 = vunpack.c.0.s8 %v4264
  %v4266 = vlaneseq
  %v4267 = vshrl.u32 %v4266, 7
  %v4268 = vsub.s32 %v4265, %v4267
  %v4269 = vrot.slane %v3840, %v4268
  %v4271 = vunpack.c.l.s4 1983009808
  %v4272 = vunpack.c.0.s8 %v4271
  %v4273 = vlaneseq
  %v4274 = vshrl.u32 %v4273, 7
  %v4275 = vsub.s32 %v4272, %v4274
  %v4276 = vrot.slane %v4262, %v4275
  %v4277 = vcombine.low %v4254, %v4269
  %v4278 = vcombine.high %v4254, %v4269
  %v4280 = vunpack.c.l.s4 1934713408
  %v4281 = vunpack.c.0.s8 %v4280
  %v4282 = vlaneseq
  %v4283 = vshrl.u32 %v4282, 7
  %v4284 = vsub.s32 %v4281, %v4283
  %v4285 = vrot.slane %v4277, %v4284
  %v4287 = vunpack.c.l.s4 1934713408
  %v4288 = vunpack.c.0.s8 %v4287
  %v4289 = vlaneseq
  %v4290 = vshrl.u32 %v4289, 7
  %v4291 = vsub.s32 %v4288, %v4290
  %v4292 = vrot.slane %v4278, %v4291
  %v4293 = vcombine.low %v4261, %v4276
  %v4294 = vcombine.high %v4261, %v4276
  %v4296 = vunpack.c.l.s4 1934713408
  %v4297 = vunpack.c.0.s8 %v4296
  %v4298 = vlaneseq
  %v4299 = vshrl.u32 %v4298, 7
  %v4300 = vsub.s32 %v4297, %v4299
  %v4301 = vrot.slane %v4293, %v4300
  %v4303 = vunpack.c.l.s4 1934713408
  %v4304 = vunpack.c.0.s8 %v4303
  %v4305 = vlaneseq
  %v4306 = vshrl.u32 %v4305, 7
  %v4307 = vsub.s32 %v4304, %v4306
  %v4308 = vrot.slane %v4294, %v4307
  %v4309 = vcombine.high %v4285, 0.0
  %v4310 = vcombine.high %v4292, 0.0
  %v4311 = vcombine.high %v4301, 0.0
  %v4312 = vcombine.high %v4308, 0.0
  %v4313 = vcombine.high %v3518, 0.0
  %v4315 = vunpack.c.l.s4 1983009808
  %v4316 = vunpack.c.0.s8 %v4315
  %v4317 = vlaneseq
  %v4318 = vshrl.u32 %v4317, 7
  %v4319 = vsub.s32 %v4316, %v4318
  %v4320 = vrot.slane %v3518, %v4319
  %v4322 = vunpack.c.l.s4 1983009808
  %v4323 = vunpack.c.0.s8 %v4322
  %v4324 = vlaneseq
  %v4325 = vshrl.u32 %v4324, 7
  %v4326 = vsub.s32 %v4323, %v4325
  %v4327 = vrot.slane %v4313, %v4326
  %v4328 = vcombine.high %v3886, 0.0
  %v4330 = vunpack.c.l.s4 1983009808
  %v4331 = vunpack.c.0.s8 %v4330
  %v4332 = vlaneseq
  %v4333 = vshrl.u32 %v4332, 7
  %v4334 = vsub.s32 %v4331, %v4333
  %v4335 = vrot.slane %v3886, %v4334
  %v4337 = vunpack.c.l.s4 1983009808
  %v4338 = vunpack.c.0.s8 %v4337
  %v4339 = vlaneseq
  %v4340 = vshrl.u32 %v4339, 7
  %v4341 = vsub.s32 %v4338, %v4340
  %v4342 = vrot.slane %v4328, %v4341
  %v4343 = vcombine.low %v4320, %v4335
  %v4344 = vcombine.high %v4320, %v4335
  %v4346 = vunpack.c.l.s4 1934713408
  %v4347 = vunpack.c.0.s8 %v4346
  %v4348 = vlaneseq
  %v4349 = vshrl.u32 %v4348, 7
  %v4350 = vsub.s32 %v4347, %v4349
  %v4351 = vrot.slane %v4343, %v4350
  %v4353 = vunpack.c.l.s4 1934713408
  %v4354 = vunpack.c.0.s8 %v4353
  %v4355 = vlaneseq
  %v4356 = vshrl.u32 %v4355, 7
  %v4357 = vsub.s32 %v4354, %v4356
  %v4358 = vrot.slane %v4344, %v4357
  %v4359 = vcombine.low %v4327, %v4342
  %v4360 = vcombine.high %v4327, %v4342
  %v4362 = vunpack.c.l.s4 1934713408
  %v4363 = vunpack.c.0.s8 %v4362
  %v4364 = vlaneseq
  %v4365 = vshrl.u32 %v4364, 7
  %v4366 = vsub.s32 %v4363, %v4365
  %v4367 = vrot.slane %v4359, %v4366
  %v4369 = vunpack.c.l.s4 1934713408
  %v4370 = vunpack.c.0.s8 %v4369
  %v4371 = vlaneseq
  %v4372 = vshrl.u32 %v4371, 7
  %v4373 = vsub.s32 %v4370, %v4372
  %v4374 = vrot.slane %v4360, %v4373
  %v4375 = vcombine.high %v4351, 0.0
  %v4376 = vcombine.high %v4358, 0.0
  %v4377 = vcombine.high %v4367, 0.0
  %v4378 = vcombine.high %v4374, 0.0
  %v4379 = vcombine.high %v3564, 0.0
  %v4381 = vunpack.c.l.s4 1983009808
  %v4382 = vunpack.c.0.s8 %v4381
  %v4383 = vlaneseq
  %v4384 = vshrl.u32 %v4383, 7
  %v4385 = vsub.s32 %v4382, %v4384
  %v4386 = vrot.slane %v3564, %v4385
  %v4388 = vunpack.c.l.s4 1983009808
  %v4389 = vunpack.c.0.s8 %v4388
  %v4390 = vlaneseq
  %v4391 = vshrl.u32 %v4390, 7
  %v4392 = vsub.s32 %v4389, %v4391
  %v4393 = vrot.slane %v4379, %v4392
  %v4394 = vcombine.high %v3932, 0.0
  %v4396 = vunpack.c.l.s4 1983009808
  %v4397 = vunpack.c.0.s8 %v4396
  %v4398 = vlaneseq
  %v4399 = vshrl.u32 %v4398, 7
  %v4400 = vsub.s32 %v4397, %v4399
  %v4401 = vrot.slane %v3932, %v4400
  %v4403 = vunpack.c.l.s4 1983009808
  %v4404 = vunpack.c.0.s8 %v4403
  %v4405 = vlaneseq
  %v4406 = vshrl.u32 %v4405, 7
  %v4407 = vsub.s32 %v4404, %v4406
  %v4408 = vrot.slane %v4394, %v4407
  %v4409 = vcombine.low %v4386, %v4401
  %v4410 = vcombine.high %v4386, %v4401
  %v4412 = vunpack.c.l.s4 1934713408
  %v4413 = vunpack.c.0.s8 %v4412
  %v4414 = vlaneseq
  %v4415 = vshrl.u32 %v4414, 7
  %v4416 = vsub.s32 %v4413, %v4415
  %v4417 = vrot.slane %v4409, %v4416
  %v4419 = vunpack.c.l.s4 1934713408
  %v4420 = vunpack.c.0.s8 %v4419
  %v4421 = vlaneseq
  %v4422 = vshrl.u32 %v4421, 7
  %v4423 = vsub.s32 %v4420, %v4422
  %v4424 = vrot.slane %v4410, %v4423
  %v4425 = vcombine.low %v4393, %v4408
  %v4426 = vcombine.high %v4393, %v4408
  %v4428 = vunpack.c.l.s4 1934713408
  %v4429 = vunpack.c.0.s8 %v4428
  %v4430 = vlaneseq
  %v4431 = vshrl.u32 %v4430, 7
  %v4432 = vsub.s32 %v4429, %v4431
  %v4433 = vrot.slane %v4425, %v4432
  %v4435 = vunpack.c.l.s4 1934713408
  %v4436 = vunpack.c.0.s8 %v4435
  %v4437 = vlaneseq
  %v4438 = vshrl.u32 %v4437, 7
  %v4439 = vsub.s32 %v4436, %v4438
  %v4440 = vrot.slane %v4426, %v4439
  %v4441 = vcombine.high %v4417, 0.0
  %v4442 = vcombine.high %v4424, 0.0
  %v4443 = vcombine.high %v4433, 0.0
  %v4444 = vcombine.high %v4440, 0.0
  %v4445 = vcombine.high %v3610, 0.0
  %v4447 = vunpack.c.l.s4 1983009808
  %v4448 = vunpack.c.0.s8 %v4447
  %v4449 = vlaneseq
  %v4450 = vshrl.u32 %v4449, 7
  %v4451 = vsub.s32 %v4448, %v4450
  %v4452 = vrot.slane %v3610, %v4451
  %v4454 = vunpack.c.l.s4 1983009808
  %v4455 = vunpack.c.0.s8 %v4454
  %v4456 = vlaneseq
  %v4457 = vshrl.u32 %v4456, 7
  %v4458 = vsub.s32 %v4455, %v4457
  %v4459 = vrot.slane %v4445, %v4458
  %v4460 = vcombine.high %v3978, 0.0
  %v4462 = vunpack.c.l.s4 1983009808
  %v4463 = vunpack.c.0.s8 %v4462
  %v4464 = vlaneseq
  %v4465 = vshrl.u32 %v4464, 7
  %v4466 = vsub.s32 %v4463, %v4465
  %v4467 = vrot.slane %v3978, %v4466
  %v4469 = vunpack.c.l.s4 1983009808
  %v4470 = vunpack.c.0.s8 %v4469
  %v4471 = vlaneseq
  %v4472 = vshrl.u32 %v4471, 7
  %v4473 = vsub.s32 %v4470, %v4472
  %v4474 = vrot.slane %v4460, %v4473
  %v4475 = vcombine.low %v4452, %v4467
  %v4476 = vcombine.high %v4452, %v4467
  %v4478 = vunpack.c.l.s4 1934713408
  %v4479 = vunpack.c.0.s8 %v4478
  %v4480 = vlaneseq
  %v4481 = vshrl.u32 %v4480, 7
  %v4482 = vsub.s32 %v4479, %v4481
  %v4483 = vrot.slane %v4475, %v4482
  %v4485 = vunpack.c.l.s4 1934713408
  %v4486 = vunpack.c.0.s8 %v4485
  %v4487 = vlaneseq
  %v4488 = vshrl.u32 %v4487, 7
  %v4489 = vsub.s32 %v4486, %v4488
  %v4490 = vrot.slane %v4476, %v4489
  %v4491 = vcombine.low %v4459, %v4474
  %v4492 = vcombine.high %v4459, %v4474
  %v4494 = vunpack.c.l.s4 1934713408
  %v4495 = vunpack.c.0.s8 %v4494
  %v4496 = vlaneseq
  %v4497 = vshrl.u32 %v4496, 7
  %v4498 = vsub.s32 %v4495, %v4497
  %v4499 = vrot.slane %v4491, %v4498
  %v4501 = vunpack.c.l.s4 1934713408
  %v4502 = vunpack.c.0.s8 %v4501
  %v4503 = vlaneseq
  %v4504 = vshrl.u32 %v4503, 7
  %v4505 = vsub.s32 %v4502, %v4504
  %v4506 = vrot.slane %v4492, %v4505
  %v4507 = vcombine.high %v4483, 0.0
  %v4508 = vcombine.high %v4490, 0.0
  %v4509 = vcombine.high %v4499, 0.0
  %v4510 = vcombine.high %v4506, 0.0
  %v4511 = vcombine.low %v4021, %v4028
  %v4513 = vunpack.c.l.s4 1983009808
  %v4514 = vunpack.c.0.s8 %v4513
  %v4515 = vlaneseq
  %v4516 = vshrl.u32 %v4515, 7
  %v4517 = vsub.s32 %v4514, %v4516
  %v4518 = vrot.slane %v4511, %v4517
  %v4519 = vcombine.low %v4045, %v4046
  %v4521 = vunpack.c.l.s4 1983009808
  %v4522 = vunpack.c.0.s8 %v4521
  %v4523 = vlaneseq
  %v4524 = vshrl.u32 %v4523, 7
  %v4525 = vsub.s32 %v4522, %v4524
  %v4526 = vrot.slane %v4519, %v4525
  %v4527 = vcombine.low %v4037, %v4044
  %v4529 = vunpack.c.l.s4 1983009808
  %v4530 = vunpack.c.0.s8 %v4529
  %v4531 = vlaneseq
  %v4532 = vshrl.u32 %v4531, 7
  %v4533 = vsub.s32 %v4530, %v4532
  %v4534 = vrot.slane %v4527, %v4533
  %v4535 = vcombine.low %v4047, %v4048
  %v4537 = vunpack.c.l.s4 1983009808
  %v4538 = vunpack.c.0.s8 %v4537
  %v4539 = vlaneseq
  %v4540 = vshrl.u32 %v4539, 7
  %v4541 = vsub.s32 %v4538, %v4540
  %v4542 = vrot.slane %v4535, %v4541
  %v4543 = vcombine.low %v4518, %v4526
  %v4545 = vunpack.c.l.s4 1934713408
  %v4546 = vunpack.c.0.s8 %v4545
  %v4547 = vlaneseq
  %v4548 = vshrl.u32 %v4547, 7
  %v4549 = vsub.s32 %v4546, %v4548
  %v4550 = vrot.slane %v4543, %v4549
  %v4551 = vcombine.low %v4534, %v4542
  %v4553 = vunpack.c.l.s4 1934713408
  %v4554 = vunpack.c.0.s8 %v4553
  %v4555 = vlaneseq
  %v4556 = vshrl.u32 %v4555, 7
  %v4557 = vsub.s32 %v4554, %v4556
  %v4558 = vrot.slane %v4551, %v4557
  %v4559 = vcombine.low %v4550, %v4558
  %v4560 = vcombine.high %v4550, %v4558
  %v4561 = vcombine.low %v4087, %v4094
  %v4563 = vunpack.c.l.s4 1983009808
  %v4564 = vunpack.c.0.s8 %v4563
  %v4565 = vlaneseq
  %v4566 = vshrl.u32 %v4565, 7
  %v4567 = vsub.s32 %v4564, %v4566
  %v4568 = vrot.slane %v4561, %v4567
  %v4569 = vcombine.low %v4111, %v4112
  %v4571 = vunpack.c.l.s4 1983009808
  %v4572 = vunpack.c.0.s8 %v4571
  %v4573 = vlaneseq
  %v4574 = vshrl.u32 %v4573, 7
  %v4575 = vsub.s32 %v4572, %v4574
  %v4576 = vrot.slane %v4569, %v4575
  %v4577 = vcombine.low %v4103, %v4110
  %v4579 = vunpack.c.l.s4 1983009808
  %v4580 = vunpack.c.0.s8 %v4579
  %v4581 = vlaneseq
  %v4582 = vshrl.u32 %v4581, 7
  %v4583 = vsub.s32 %v4580, %v4582
  %v4584 = vrot.slane %v4577, %v4583
  %v4585 = vcombine.low %v4113, %v4114
  %v4587 = vunpack.c.l.s4 1983009808
  %v4588 = vunpack.c.0.s8 %v4587
  %v4589 = vlaneseq
  %v4590 = vshrl.u32 %v4589, 7
  %v4591 = vsub.s32 %v4588, %v4590
  %v4592 = vrot.slane %v4585, %v4591
  %v4593 = vcombine.low %v4568, %v4576
  %v4595 = vunpack.c.l.s4 1934713408
  %v4596 = vunpack.c.0.s8 %v4595
  %v4597 = vlaneseq
  %v4598 = vshrl.u32 %v4597, 7
  %v4599 = vsub.s32 %v4596, %v4598
  %v4600 = vrot.slane %v4593, %v4599
  %v4601 = vcombine.low %v4584, %v4592
  %v4603 = vunpack.c.l.s4 1934713408
  %v4604 = vunpack.c.0.s8 %v4603
  %v4605 = vlaneseq
  %v4606 = vshrl.u32 %v4605, 7
  %v4607 = vsub.s32 %v4604, %v4606
  %v4608 = vrot.slane %v4601, %v4607
  %v4609 = vcombine.low %v4600, %v4608
  %v4610 = vcombine.high %v4600, %v4608
  %v4611 = vcombine.low %v4153, %v4160
  %v4613 = vunpack.c.l.s4 1983009808
  %v4614 = vunpack.c.0.s8 %v4613
  %v4615 = vlaneseq
  %v4616 = vshrl.u32 %v4615, 7
  %v4617 = vsub.s32 %v4614, %v4616
  %v4618 = vrot.slane %v4611, %v4617
  %v4619 = vcombine.low %v4177, %v4178
  %v4621 = vunpack.c.l.s4 1983009808
  %v4622 = vunpack.c.0.s8 %v4621
  %v4623 = vlaneseq
  %v4624 = vshrl.u32 %v4623, 7
  %v4625 = vsub.s32 %v4622, %v4624
  %v4626 = vrot.slane %v4619, %v4625
  %v4627 = vcombine.low %v4169, %v4176
  %v4629 = vunpack.c.l.s4 1983009808
  %v4630 = vunpack.c.0.s8 %v4629
  %v4631 = vlaneseq
  %v4632 = vshrl.u32 %v4631, 7
  %v4633 = vsub.s32 %v4630, %v4632
  %v4634 = vrot.slane %v4627, %v4633
  %v4635 = vcombine.low %v4179, %v4180
  %v4637 = vunpack.c.l.s4 1983009808
  %v4638 = vunpack.c.0.s8 %v4637
  %v4639 = vlaneseq
  %v4640 = vshrl.u32 %v4639, 7
  %v4641 = vsub.s32 %v4638, %v4640
  %v4642 = vrot.slane %v4635, %v4641
  %v4643 = vcombine.low %v4618, %v4626
  %v4645 = vunpack.c.l.s4 1934713408
  %v4646 = vunpack.c.0.s8 %v4645
  %v4647 = vlaneseq
  %v4648 = vshrl.u32 %v4647, 7
  %v4649 = vsub.s32 %v4646, %v4648
  %v4650 = vrot.slane %v4643, %v4649
  %v4651 = vcombine.low %v4634, %v4642
  %v4653 = vunpack.c.l.s4 1934713408
  %v4654 = vunpack.c.0.s8 %v4653
  %v4655 = vlaneseq
  %v4656 = vshrl.u32 %v4655, 7
  %v4657 = vsub.s32 %v4654, %v4656
  %v4658 = vrot.slane %v4651, %v4657
  %v4659 = vcombine.low %v4650, %v4658
  %v4660 = vcombine.high %v4650, %v4658
  %v4661 = vcombine.low %v4219, %v4226
  %v4663 = vunpack.c.l.s4 1983009808
  %v4664 = vunpack.c.0.s8 %v4663
  %v4665 = vlaneseq
  %v4666 = vshrl.u32 %v4665, 7
  %v4667 = vsub.s32 %v4664, %v4666
  %v4668 = vrot.slane %v4661, %v4667
  %v4669 = vcombine.low %v4243, %v4244
  %v4671 = vunpack.c.l.s4 1983009808
  %v4672 = vunpack.c.0.s8 %v4671
  %v4673 = vlaneseq
  %v4674 = vshrl.u32 %v4673, 7
  %v4675 = vsub.s32 %v4672, %v4674
  %v4676 = vrot.slane %v4669, %v4675
  %v4677 = vcombine.low %v4235, %v4242
  %v4679 = vunpack.c.l.s4 1983009808
  %v4680 = vunpack.c.0.s8 %v4679
  %v4681 = vlaneseq
  %v4682 = vshrl.u32 %v4681, 7
  %v4683 = vsub.s32 %v4680, %v4682
  %v4684 = vrot.slane %v4677, %v4683
  %v4685 = vcombine.low %v4245, %v4246
  %v4687 = vunpack.c.l.s4 1983009808
  %v4688 = vunpack.c.0.s8 %v4687
  %v4689 = vlaneseq
  %v4690 = vshrl.u32 %v4689, 7
  %v4691 = vsub.s32 %v4688, %v4690
  %v4692 = vrot.slane %v4685, %v4691
  %v4693 = vcombine.low %v4668, %v4676
  %v4695 = vunpack.c.l.s4 1934713408
  %v4696 = vunpack.c.0.s8 %v4695
  %v4697 = vlaneseq
  %v4698 = vshrl.u32 %v4697, 7
  %v4699 = vsub.s32 %v4696, %v4698
  %v4700 = vrot.slane %v4693, %v4699
  %v4701 = vcombine.low %v4684, %v4692
  %v4703 = vunpack.c.l.s4 1934713408
  %v4704 = vunpack.c.0.s8 %v4703
  %v4705 = vlaneseq
  %v4706 = vshrl.u32 %v4705, 7
  %v4707 = vsub.s32 %v4704, %v4706
  %v4708 = vrot.slane %v4701, %v4707
  %v4709 = vcombine.low %v4700, %v4708
  %v4710 = vcombine.high %v4700, %v4708
  %v4711 = vcombine.low %v4285, %v4292
  %v4713 = vunpack.c.l.s4 1983009808
  %v4714 = vunpack.c.0.s8 %v4713
  %v4715 = vlaneseq
  %v4716 = vshrl.u32 %v4715, 7
  %v4717 = vsub.s32 %v4714, %v4716
  %v4718 = vrot.slane %v4711, %v4717
  %v4719 = vcombine.low %v4309, %v4310
  %v4721 = vunpack.c.l.s4 1983009808
  %v4722 = vunpack.c.0.s8 %v4721
  %v4723 = vlaneseq
  %v4724 = vshrl.u32 %v4723, 7
  %v4725 = vsub.s32 %v4722, %v4724
  %v4726 = vrot.slane %v4719, %v4725
  %v4727 = vcombine.low %v4301, %v4308
  %v4729 = vunpack.c.l.s4 1983009808
  %v4730 = vunpack.c.0.s8 %v4729
  %v4731 = vlaneseq
  %v4732 = vshrl.u32 %v4731, 7
  %v4733 = vsub.s32 %v4730, %v4732
  %v4734 = vrot.slane %v4727, %v4733
  %v4735 = vcombine.low %v4311, %v4312
  %v4737 = vunpack.c.l.s4 1983009808
  %v4738 = vunpack.c.0.s8 %v4737
  %v4739 = vlaneseq
  %v4740 = vshrl.u32 %v4739, 7
  %v4741 = vsub.s32 %v4738, %v4740
  %v4742 = vrot.slane %v4735, %v4741
  %v4743 = vcombine.low %v4718, %v4726
  %v4745 = vunpack.c.l.s4 1934713408
  %v4746 = vunpack.c.0.s8 %v4745
  %v4747 = vlaneseq
  %v4748 = vshrl.u32 %v4747, 7
  %v4749 = vsub.s32 %v4746, %v4748
  %v4750 = vrot.slane %v4743, %v4749
  %v4751 = vcombine.low %v4734, %v4742
  %v4753 = vunpack.c.l.s4 1934713408
  %v4754 = vunpack.c.0.s8 %v4753
  %v4755 = vlaneseq
  %v4756 = vshrl.u32 %v4755, 7
  %v4757 = vsub.s32 %v4754, %v4756
  %v4758 = vrot.slane %v4751, %v4757
  %v4759 = vcombine.low %v4750, %v4758
  %v4760 = vcombine.high %v4750, %v4758
  %v4761 = vcombine.low %v4351, %v4358
  %v4763 = vunpack.c.l.s4 1983009808
  %v4764 = vunpack.c.0.s8 %v4763
  %v4765 = vlaneseq
  %v4766 = vshrl.u32 %v4765, 7
  %v4767 = vsub.s32 %v4764, %v4766
  %v4768 = vrot.slane %v4761, %v4767
  %v4769 = vcombine.low %v4375, %v4376
  %v4771 = vunpack.c.l.s4 1983009808
  %v4772 = vunpack.c.0.s8 %v4771
  %v4773 = vlaneseq
  %v4774 = vshrl.u32 %v4773, 7
  %v4775 = vsub.s32 %v4772, %v4774
  %v4776 = vrot.slane %v4769, %v4775
  %v4777 = vcombine.low %v4367, %v4374
  %v4779 = vunpack.c.l.s4 1983009808
  %v4780 = vunpack.c.0.s8 %v4779
  %v4781 = vlaneseq
  %v4782 = vshrl.u32 %v4781, 7
  %v4783 = vsub.s32 %v4780, %v4782
  %v4784 = vrot.slane %v4777, %v4783
  %v4785 = vcombine.low %v4377, %v4378
  %v4787 = vunpack.c.l.s4 1983009808
  %v4788 = vunpack.c.0.s8 %v4787
  %v4789 = vlaneseq
  %v4790 = vshrl.u32 %v4789, 7
  %v4791 = vsub.s32 %v4788, %v4790
  %v4792 = vrot.slane %v4785, %v4791
  %v4793 = vcombine.low %v4768, %v4776
  %v4795 = vunpack.c.l.s4 1934713408
  %v4796 = vunpack.c.0.s8 %v4795
  %v4797 = vlaneseq
  %v4798 = vshrl.u32 %v4797, 7
  %v4799 = vsub.s32 %v4796, %v4798
  %v4800 = vrot.slane %v4793, %v4799
  %v4801 = vcombine.low %v4784, %v4792
  %v4803 = vunpack.c.l.s4 1934713408
  %v4804 = vunpack.c.0.s8 %v4803
  %v4805 = vlaneseq
  %v4806 = vshrl.u32 %v4805, 7
  %v4807 = vsub.s32 %v4804, %v4806
  %v4808 = vrot.slane %v4801, %v4807
  %v4809 = vcombine.low %v4800, %v4808
  %v4810 = vcombine.high %v4800, %v4808
  %v4811 = vcombine.low %v4417, %v4424
  %v4813 = vunpack.c.l.s4 1983009808
  %v4814 = vunpack.c.0.s8 %v4813
  %v4815 = vlaneseq
  %v4816 = vshrl.u32 %v4815, 7
  %v4817 = vsub.s32 %v4814, %v4816
  %v4818 = vrot.slane %v4811, %v4817
  %v4819 = vcombine.low %v4441, %v4442
  %v4821 = vunpack.c.l.s4 1983009808
  %v4822 = vunpack.c.0.s8 %v4821
  %v4823 = vlaneseq
  %v4824 = vshrl.u32 %v4823, 7
  %v4825 = vsub.s32 %v4822, %v4824
  %v4826 = vrot.slane %v4819, %v4825
  %v4827 = vcombine.low %v4433, %v4440
  %v4829 = vunpack.c.l.s4 1983009808
  %v4830 = vunpack.c.0.s8 %v4829
  %v4831 = vlaneseq
  %v4832 = vshrl.u32 %v4831, 7
  %v4833 = vsub.s32 %v4830, %v4832
  %v4834 = vrot.slane %v4827, %v4833
  %v4835 = vcombine.low %v4443, %v4444
  %v4837 = vunpack.c.l.s4 1983009808
  %v4838 = vunpack.c.0.s8 %v4837
  %v4839 = vlaneseq
  %v4840 = vshrl.u32 %v4839, 7
  %v4841 = vsub.s32 %v4838, %v4840
  %v4842 = vrot.slane %v4835, %v4841
  %v4843 = vcombine.low %v4818, %v4826
  %v4845 = vunpack.c.l.s4 1934713408
  %v4846 = vunpack.c.0.s8 %v4845
  %v4847 = vlaneseq
  %v4848 = vshrl.u32 %v4847, 7
  %v4849 = vsub.s32 %v4846, %v4848
  %v4850 = vrot.slane %v4843, %v4849
  %v4851 = vcombine.low %v4834, %v4842
  %v4853 = vunpack.c.l.s4 1934713408
  %v4854 = vunpack.c.0.s8 %v4853
  %v4855 = vlaneseq
  %v4856 = vshrl.u32 %v4855, 7
  %v4857 = vsub.s32 %v4854, %v4856
  %v4858 = vrot.slane %v4851, %v4857
  %v4859 = vcombine.low %v4850, %v4858
  %v4860 = vcombine.high %v4850, %v4858
  %v4861 = vcombine.low %v4483, %v4490
  %v4863 = vunpack.c.l.s4 1983009808
  %v4864 = vunpack.c.0.s8 %v4863
  %v4865 = vlaneseq
  %v4866 = vshrl.u32 %v4865, 7
  %v4867 = vsub.s32 %v4864, %v4866
  %v4868 = vrot.slane %v4861, %v4867
  %v4869 = vcombine.low %v4507, %v4508
  %v4871 = vunpack.c.l.s4 1983009808
  %v4872 = vunpack.c.0.s8 %v4871
  %v4873 = vlaneseq
  %v4874 = vshrl.u32 %v4873, 7
  %v4875 = vsub.s32 %v4872, %v4874
  %v4876 = vrot.slane %v4869, %v4875
  %v4877 = vcombine.low %v4499, %v4506
  %v4879 = vunpack.c.l.s4 1983009808
  %v4880 = vunpack.c.0.s8 %v4879
  %v4881 = vlaneseq
  %v4882 = vshrl.u32 %v4881, 7
  %v4883 = vsub.s32 %v4880, %v4882
  %v4884 = vrot.slane %v4877, %v4883
  %v4885 = vcombine.low %v4509, %v4510
  %v4887 = vunpack.c.l.s4 1983009808
  %v4888 = vunpack.c.0.s8 %v4887
  %v4889 = vlaneseq
  %v4890 = vshrl.u32 %v4889, 7
  %v4891 = vsub.s32 %v4888, %v4890
  %v4892 = vrot.slane %v4885, %v4891
  %v4893 = vcombine.low %v4868, %v4876
  %v4895 = vunpack.c.l.s4 1934713408
  %v4896 = vunpack.c.0.s8 %v4895
  %v4897 = vlaneseq
  %v4898 = vshrl.u32 %v4897, 7
  %v4899 = vsub.s32 %v4896, %v4898
  %v4900 = vrot.slane %v4893, %v4899
  %v4901 = vcombine.low %v4884, %v4892
  %v4903 = vunpack.c.l.s4 1934713408
  %v4904 = vunpack.c.0.s8 %v4903
  %v4905 = vlaneseq
  %v4906 = vshrl.u32 %v4905, 7
  %v4907 = vsub.s32 %v4904, %v4906
  %v4908 = vrot.slane %v4901, %v4907
  %v4909 = vcombine.low %v4900, %v4908
  %v4910 = vcombine.high %v4900, %v4908
  %4919 = vrot.lane.b32.xlu0 %v4560, 16
  %v4920 = vpop.permute.xlu0 %4919
  %4921 = vrot.lane.b32.xlu0 %v4610, 16
  %v4922 = vpop.permute.xlu0 %4921
  %4923 = vrot.lane.b32.xlu0 %v4660, 16
  %v4924 = vpop.permute.xlu0 %4923
  %4925 = vrot.lane.b32.xlu0 %v4710, 16
  %v4926 = vpop.permute.xlu0 %4925
  %4927 = vrot.lane.b32.xlu0 %v4760, 16
  %v4928 = vpop.permute.xlu0 %4927
  %4929 = vrot.lane.b32.xlu0 %v4810, 16
  %v4930 = vpop.permute.xlu0 %4929
  %4931 = vrot.lane.b32.xlu0 %v4860, 16
  %v4932 = vpop.permute.xlu0 %4931
  %4933 = vrot.lane.b32.xlu0 %v4910, 16
  %v4934 = vpop.permute.xlu0 %4933
  %v4943 = vsel %vm2316, %v4559, %v4920
  %v4944 = vsel %vm2316, %v4609, %v4922
  %v4945 = vsel %vm2316, %v4659, %v4924
  %v4946 = vsel %vm2316, %v4709, %v4926
  %v4947 = vsel %vm2316, %v4759, %v4928
  %v4948 = vsel %vm2316, %v4809, %v4930
  %v4949 = vsel %vm2316, %v4859, %v4932
  %v4950 = vsel %vm2316, %v4909, %v4934
  %v4951 = vpack.c.bf16 %v4944, %v4943
  %v4952 = vpack.c.bf16 %v4946, %v4945
  %v4953 = vpack.c.bf16 %v4948, %v4947
  %v4954 = vpack.c.bf16 %v4950, %v4949
  %v4955 = vld [vmem:[%s2] sm:$0xf]
  %v4956 = vld [vmem:[%s2 + $0x4] sm:$0xf]
  %v4957 = vld [vmem:[%s2 + $0x8] sm:$0xf]
  %v4958 = vld [vmem:[%s2 + $0xc] sm:$0xf]
  %v4959 = vld [vmem:[%s3] sm:$0x1]
  %v4961 = vlaneseq
  %v4962 = vshrl.u32 %v4961, 7
  %v4963 = vsub.s32 0, %v4962
  %v4964 = vrot.slane %v4959, %v4963
  %v4970 = vunpack.c.l.b16 %v4955
  %v4971 = vunpack.c.l.b16 %v4956
  %v4972 = vunpack.c.l.b16 %v4957
  %v4973 = vunpack.c.l.b16 %v4958
  %v4974 = vpack.c.b16 %v4971, %v4970
  %v4975 = vpack.c.b16 %v4973, %v4972
  %v4979 = vsel %vm46, %v4951, 0
  %v4982 = vsel %vm46, %v4952, 0
  %v4985 = vsel %vm46, %v4953, 0
  %v4988 = vsel %vm46, %v4954, 0
  %4990 = vmatprep.subr.bf16.mxu0 0
  %4991 = vmatpush1.bf16.msra.mxu0 %v4974
  %4992 = vmatprep.subr.bf16.mxu0 0
  %4993 = vmatpush1.bf16.msra.mxu0 %v4975
  %4994 = vmatprep.subr.bf16.mxu0 0
  %4995 = vmatpush1.bf16.msra.mxu0 0
  %4996 = vmatprep.subr.bf16.mxu0 0
  %4997 = vmatpush1.bf16.msra.mxu0 0
  %4998 = vmatprep.subr.bf16.mxu0 0
  %4999 = vmatpush1.bf16.msra.mxu0 0
  %5000 = vmatprep.subr.bf16.mxu0 0
  %5001 = vmatpush1.bf16.msra.mxu0 0
  %5002 = vmatprep.subr.bf16.mxu0 0
  %5003 = vmatpush1.bf16.msra.mxu0 0
  %5004 = vmatprep.subr.bf16.mxu0 0
  %5005 = vmatpush1.bf16.msra.mxu0 0
  %5006 = vmatprep.subr.bf16.mxu0 0
  %5007 = vmatpush1.bf16.msra.mxu0 0
  %5008 = vmatprep.subr.bf16.mxu0 0
  %5009 = vmatpush1.bf16.msra.mxu0 0
  %5010 = vmatprep.subr.bf16.mxu0 0
  %5011 = vmatpush1.bf16.msra.mxu0 0
  %5012 = vmatprep.subr.bf16.mxu0 0
  %5013 = vmatpush1.bf16.msra.mxu0 0
  %5014 = vmatprep.subr.bf16.mxu0 0
  %5015 = vmatpush1.bf16.msra.mxu0 0
  %5016 = vmatprep.subr.bf16.mxu0 0
  %5017 = vmatpush1.bf16.msra.mxu0 0
  %5018 = vmatprep.subr.bf16.mxu0 0
  %5019 = vmatpush1.bf16.msra.mxu0 0
  %5020 = vmatprep.subr.bf16.mxu0 0
  %5021 = vmatpush1.bf16.msra.mxu0 0
  %5022 = vmatprep.mubr.bf16.mxu0 0
  %5023 = vmatmul.mubr.bf16.gmra.mrb[0].mxu0 %v4979
  %v5024 = vpop.f32.mrb[0].mxu0
  %v5025 = vadd.f32 %v4964, %v5024
  %v5026 = vpop.f32.mrb[0].mxu0
  %v5027 = vpop.f32.mrb[0].mxu0
  %v5028 = vadd.f32 %v4964, %v5027
  %v5029 = vpop.f32.mrb[0].mxu0
  %5030 = vmatprep.mubr.bf16.mxu0 0
  %5031 = vmatmul.mubr.bf16.gmra.mrb[0].mxu0 %v4982
  %v5032 = vpop.f32.mrb[0].mxu0
  %v5033 = vadd.f32 %v4964, %v5032
  %v5034 = vpop.f32.mrb[0].mxu0
  %v5035 = vpop.f32.mrb[0].mxu0
  %v5036 = vadd.f32 %v4964, %v5035
  %v5037 = vpop.f32.mrb[0].mxu0
  %5038 = vmatprep.mubr.bf16.mxu0 0
  %5039 = vmatmul.mubr.bf16.gmra.mrb[0].mxu0 %v4985
  %v5040 = vpop.f32.mrb[0].mxu0
  %v5041 = vadd.f32 %v4964, %v5040
  %v5042 = vpop.f32.mrb[0].mxu0
  %v5043 = vpop.f32.mrb[0].mxu0
  %v5044 = vadd.f32 %v4964, %v5043
  %v5045 = vpop.f32.mrb[0].mxu0
  %5046 = vmatprep.mubr.bf16.mxu0 0
  %5047 = vmatmul.mubr.bf16.gmra.mrb[0].mxu0 %v4988
  %v5048 = vpop.f32.mrb[0].mxu0
  %v5049 = vadd.f32 %v4964, %v5048
  %v5050 = vpop.f32.mrb[0].mxu0
  %v5051 = vpop.f32.mrb[0].mxu0
  %v5052 = vadd.f32 %v4964, %v5051
  %v5053 = vpop.f32.mrb[0].mxu0
  %5054 = vdwg.mxu0
  %5055 = vst.msk [vmem:[%s4] sm:$0xff] %vm46, %v5025
  %5056 = vst.msk [vmem:[%s4 + $0x8] sm:$0xff] %vm46, %v5028
  %5057 = vst.msk [vmem:[%s4 + $0x10] sm:$0xff] %vm46, %v5033
  %5058 = vst.msk [vmem:[%s4 + $0x18] sm:$0xff] %vm46, %v5036
  %5059 = vst.msk [vmem:[%s4 + $0x20] sm:$0xff] %vm46, %v5041
  %5060 = vst.msk [vmem:[%s4 + $0x28] sm:$0xff] %vm46, %v5044
  %5061 = vst.msk [vmem:[%s4 + $0x30] sm:$0xff] %vm46, %v5049
  %5062 = vst.msk [vmem:[%s4 + $0x38] sm:$0xff] %vm46, %v5052
  // Predicated region
  $region18: #{tpu_custom_call.1} parent=0 // pred_check
    _
  $region19: #{tpu_custom_call.1} parent=0 // pred_check_branch
    %5064 = sbr.rel (0) target = $region21
  $region20: #{tpu_custom_call.1} parent=0 // pred_region
    _
  $region21: #{tpu_custom_call.1} parent=0 // pred_fallthru
    _
  // Predicated region
  $region22: #{tpu_custom_call.1} parent=0 // pred_check
    _
  $region23: #{tpu_custom_call.1} parent=0 // pred_check_branch
    %5066 = sbr.rel (0) target = $region25
  $region24: #{tpu_custom_call.1} parent=0 // pred_region
    _
  $region25: #{tpu_custom_call.1} parent=0 // pred_fallthru
    _

// kernel: tpu_custom_call.1
$region0: #{tpu_custom_call.1}
  #allocation0 [shape = 'u32[]', space=smem, size = 0x4, offset = 0x4, fixed_abs, tag = 'smem constant byte address 0x4 - core index']
  #allocation1 [shape = 'u32[144,128]{1,0:T(1,128)}', space=vmem, size = 0x12000, scoped, tag = 'internal scratch']
  %s0 = inlined_call_operand.vmem [shape: f32[64,32], index: 0, kind: input, shape index: {}]
  %s1 = inlined_call_operand.vmem [shape: bf16[32,96], index: 1, kind: input, shape index: {}]
  %s2 = inlined_call_operand.vmem [shape: bf16[2,16,32], index: 2, kind: input, shape index: {}]
  %s3 = inlined_call_operand.vmem [shape: f32[1,32], index: 3, kind: input, shape index: {}]
  %s4 = inlined_call_operand.vmem [shape: f32[64,32], index: 4, kind: output, shape index: {}]
  %s5 = sld [smem:[#allocation0]]
  $region26: #{tpu_custom_call.1} parent=0
    _
  %s7 = ssub.s32 1, %s5
  %s8 = scalar_select 0, %s7, %s5
  // Predicated region
  $region2: #{tpu_custom_call.1} parent=0 // pred_check
    _
  $region3: #{tpu_custom_call.1} parent=0 // pred_check_branch
    %10 = sbr.rel (0) target = $region5
  $region4: #{tpu_custom_call.1} parent=0 // pred_region
    _
  $region5: #{tpu_custom_call.1} parent=0 // pred_fallthru
    _
  // Predicated region
  $region6: #{tpu_custom_call.1} parent=0 // pred_check
    _
  $region7: #{tpu_custom_call.1} parent=0 // pred_check_branch
    %12 = sbr.rel (0) target = $region9
  $region8: #{tpu_custom_call.1} parent=0 // pred_region
    _
  $region9: #{tpu_custom_call.1} parent=0 // pred_fallthru
    _
  // Predicated region
  $region10: #{tpu_custom_call.1} parent=0 // pred_check
    _
  $region11: #{tpu_custom_call.1} parent=0 // pred_check_branch
    %14 = sbr.rel (0) target = $region13
  $region12: #{tpu_custom_call.1} parent=0 // pred_region
    _
  $region13: #{tpu_custom_call.1} parent=0 // pred_fallthru
    _
  // Predicated region
  $region14: #{tpu_custom_call.1} parent=0 // pred_check
    _
  $region15: #{tpu_custom_call.1} parent=0 // pred_check_branch
    %16 = sbr.rel (0) target = $region17
  $region16: #{tpu_custom_call.1} parent=0 // pred_region
    _
  $region17: #{tpu_custom_call.1} parent=0 // pred_fallthru
    _
  %v18 = vld [vmem:[%s0] sm:$0xff]
  %v19 = vld [vmem:[%s0 + $0x8] sm:$0xff]
  %v20 = vld [vmem:[%s0 + $0x10] sm:$0xff]
  %v21 = vld [vmem:[%s0 + $0x18] sm:$0xff]
  %v22 = vld [vmem:[%s0 + $0x20] sm:$0xff]
  %v23 = vld [vmem:[%s0 + $0x28] sm:$0xff]
  %v24 = vld [vmem:[%s0 + $0x30] sm:$0xff]
  %v25 = vld [vmem:[%s0 + $0x38] sm:$0xff]
  %v26 = vpack.c.bf16 %v19, %v18
  %v27 = vpack.c.bf16 %v21, %v20
  %v28 = vpack.c.bf16 %v23, %v22
  %v29 = vpack.c.bf16 %v25, %v24
  %v30 = vld [vmem:[%s1] sm:$0xf]
  %v31 = vld [vmem:[%s1 + $0x4] sm:$0xf]
  %v32 = vld [vmem:[%s1 + $0x8] sm:$0xf]
  %v33 = vld [vmem:[%s1 + $0xc] sm:$0xf]
  %v38 = vunpack.c.l.b16 %v30
  %v39 = vunpack.c.l.b16 %v31
  %v40 = vunpack.c.l.b16 %v32
  %v41 = vunpack.c.l.b16 %v33
  %v42 = vpack.c.b16 %v39, %v38
  %v43 = vpack.c.b16 %v41, %v40
  %vm46 = vcmask 261120
  %v48 = vsel %vm46, %v26, 0
  %v51 = vsel %vm46, %v27, 0
  %v54 = vsel %vm46, %v28, 0
  %v57 = vsel %vm46, %v29, 0
  %59 = vmatprep.subr.bf16.mxu0 0
  %60 = vmatpush1.bf16.msra.mxu0 %v42
  %61 = vmatprep.subr.bf16.mxu0 0
  %62 = vmatpush1.bf16.msra.mxu0 %v43
  %63 = vmatprep.subr.bf16.mxu0 0
  %64 = vmatpush1.bf16.msra.mxu0 0
  %65 = vmatprep.subr.bf16.mxu0 0
  %66 = vmatpush1.bf16.msra.mxu0 0
  %67 = vmatprep.subr.bf16.mxu0 0
  %68 = vmatpush1.bf16.msra.mxu0 0
  %69 = vmatprep.subr.bf16.mxu0 0
  %70 = vmatpush1.bf16.msra.mxu0 0
  %71 = vmatprep.subr.bf16.mxu0 0
  %72 = vmatpush1.bf16.msra.mxu0 0
  %73 = vmatprep.subr.bf16.mxu0 0
  %74 = vmatpush1.bf16.msra.mxu0 0
  %75 = vmatprep.subr.bf16.mxu0 0
  %76 = vmatpush1.bf16.msra.mxu0 0
  %77 = vmatprep.subr.bf16.mxu0 0
  %78 = vmatpush1.bf16.msra.mxu0 0
  %79 = vmatprep.subr.bf16.mxu0 0
  %80 = vmatpush1.bf16.msra.mxu0 0
  %81 = vmatprep.subr.bf16.mxu0 0
  %82 = vmatpush1.bf16.msra.mxu0 0
  %83 = vmatprep.subr.bf16.mxu0 0
  %84 = vmatpush1.bf16.msra.mxu0 0
  %85 = vmatprep.subr.bf16.mxu0 0
  %86 = vmatpush1.bf16.msra.mxu0 0
  %87 = vmatprep.subr.bf16.mxu0 0
  %88 = vmatpush1.bf16.msra.mxu0 0
  %89 = vmatprep.subr.bf16.mxu0 0
  %90 = vmatpush1.bf16.msra.mxu0 0
  %91 = vmatprep.mubr.bf16.mxu0 0
  %92 = vmatmul.mubr.bf16.gmra.mrb[0].mxu0 %v48
  %v93 = vpop.f32.mrb[0].mxu0
  %v94 = vadd.f32 0.0, %v93
  %v95 = vpop.f32.mrb[0].mxu0
  %v96 = vpop.f32.mrb[0].mxu0
  %v97 = vadd.f32 0.0, %v96
  %v98 = vpop.f32.mrb[0].mxu0
  %99 = vmatprep.mubr.bf16.mxu0 0
  %100 = vmatmul.mubr.bf16.gmra.mrb[0].mxu0 %v51
  %v101 = vpop.f32.mrb[0].mxu0
  %v102 = vadd.f32 0.0, %v101
  %v103 = vpop.f32.mrb[0].mxu0
  %v104 = vpop.f32.mrb[0].mxu0
  %v105 = vadd.f32 0.0, %v104
  %v106 = vpop.f32.mrb[0].mxu0
  %107 = vmatprep.mubr.bf16.mxu0 0
  %108 = vmatmul.mubr.bf16.gmra.mrb[0].mxu0 %v54
  %v109 = vpop.f32.mrb[0].mxu0
  %v110 = vadd.f32 0.0, %v109
  %v111 = vpop.f32.mrb[0].mxu0
  %v112 = vpop.f32.mrb[0].mxu0
  %v113 = vadd.f32 0.0, %v112
  %v114 = vpop.f32.mrb[0].mxu0
  %115 = vmatprep.mubr.bf16.mxu0 0
  %116 = vmatmul.mubr.bf16.gmra.mrb[0].mxu0 %v57
  %v117 = vpop.f32.mrb[0].mxu0
  %v118 = vadd.f32 0.0, %v117
  %v119 = vpop.f32.mrb[0].mxu0
  %v120 = vpop.f32.mrb[0].mxu0
  %v121 = vadd.f32 0.0, %v120
  %v122 = vpop.f32.mrb[0].mxu0
  %123 = vdwg.mxu0
  %132 = vrot.lane.b32.xlu0 %v94, 112
  %v133 = vpop.permute.xlu0 %132
  %134 = vrot.lane.b32.xlu0 %v97, 112
  %v135 = vpop.permute.xlu0 %134
  %136 = vrot.lane.b32.xlu0 %v102, 112
  %v137 = vpop.permute.xlu0 %136
  %138 = vrot.lane.b32.xlu0 %v105, 112
  %v139 = vpop.permute.xlu0 %138
  %140 = vrot.lane.b32.xlu0 %v110, 112
  %v141 = vpop.permute.xlu0 %140
  %142 = vrot.lane.b32.xlu0 %v113, 112
  %v143 = vpop.permute.xlu0 %142
  %144 = vrot.lane.b32.xlu0 %v118, 112
  %v145 = vpop.permute.xlu0 %144
  %146 = vrot.lane.b32.xlu0 %v121, 112
  %v147 = vpop.permute.xlu0 %146
  %v156 = vpack.c.bf16 %v94, %v94
  %v157 = vpack.c.bf16 %v97, %v97
  %v158 = vpack.c.bf16 %v102, %v102
  %v159 = vpack.c.bf16 %v105, %v105
  %v160 = vpack.c.bf16 %v110, %v110
  %v161 = vpack.c.bf16 %v113, %v113
  %v162 = vpack.c.bf16 %v118, %v118
  %v163 = vpack.c.bf16 %v121, %v121
  %v164 = vpack.c.bf16 %v133, %v133
  %v165 = vpack.c.bf16 %v135, %v135
  %v166 = vpack.c.bf16 %v137, %v137
  %v167 = vpack.c.bf16 %v139, %v139
  %v168 = vpack.c.bf16 %v141, %v141
  %v169 = vpack.c.bf16 %v143, %v143
  %v170 = vpack.c.bf16 %v145, %v145
  %v171 = vpack.c.bf16 %v147, %v147
  %173 = vrot.lane.b32.xlu0 %v156, 96
  %v174 = vpop.permute.xlu0 %173
  %vm175 = vcmask 130048
  %v177 = vsel %vm175, %v156, 0
  %v180 = vsel %vm175, %v174, 0
  %182 = vmatprep.subr.bf16.mxu0 0
  %183 = vmatpush1.bf16.xpose.msra.mxu0 %v180
  %184 = vmatprep.subr.bf16.mxu0 0
  %185 = vmatpush1.bf16.xpose.msra.mxu0 0
  %186 = vmatprep.subr.bf16.mxu0 0
  %187 = vmatpush1.bf16.xpose.msra.mxu0 0
  %188 = vmatprep.subr.bf16.mxu0 0
  %189 = vmatpush1.bf16.xpose.msra.mxu0 0
  %190 = vmatprep.subr.bf16.mxu0 0
  %191 = vmatpush1.bf16.xpose.msra.mxu0 0
  %192 = vmatprep.subr.bf16.mxu0 0
  %193 = vmatpush1.bf16.xpose.msra.mxu0 0
  %194 = vmatprep.subr.bf16.mxu0 0
  %195 = vmatpush1.bf16.xpose.msra.mxu0 0
  %196 = vmatprep.subr.bf16.mxu0 0
  %197 = vmatpush1.bf16.xpose.msra.mxu0 0
  %198 = vmatprep.subr.bf16.mxu0 0
  %199 = vmatpush1.bf16.xpose.msra.mxu0 0
  %200 = vmatprep.subr.bf16.mxu0 0
  %201 = vmatpush1.bf16.xpose.msra.mxu0 0
  %202 = vmatprep.subr.bf16.mxu0 0
  %203 = vmatpush1.bf16.xpose.msra.mxu0 0
  %204 = vmatprep.subr.bf16.mxu0 0
  %205 = vmatpush1.bf16.xpose.msra.mxu0 0
  %206 = vmatprep.subr.bf16.mxu0 0
  %207 = vmatpush1.bf16.xpose.msra.mxu0 0
  %208 = vmatprep.subr.bf16.mxu0 0
  %209 = vmatpush1.bf16.xpose.msra.mxu0 0
  %210 = vmatprep.subr.bf16.mxu0 0
  %211 = vmatpush1.bf16.xpose.msra.mxu0 0
  %212 = vmatprep.subr.bf16.mxu0 0
  %213 = vmatpush1.bf16.xpose.msra.mxu0 0
  %214 = vmatprep.mubr.bf16.mxu0 0
  %215 = vmatmul.mubr.bf16.gmra.mrb[0].mxu0 %v177
  %v216 = vpop.f32.mrb[0].mxu0
  %v217 = vadd.f32 0.0, %v216
  %v218 = vpop.f32.mrb[0].mxu0
  %v219 = vpop.f32.mrb[0].mxu0
  %v220 = vpop.f32.mrb[0].mxu0
  %221 = vdwg.mxu0
  %223 = vrot.lane.b32.xlu0 %v157, 96
  %v224 = vpop.permute.xlu0 %223
  %v226 = vsel %vm175, %v157, 0
  %v229 = vsel %vm175, %v224, 0
  %231 = vmatprep.subr.bf16.mxu0 0
  %232 = vmatpush1.bf16.xpose.msra.mxu0 %v229
  %233 = vmatprep.subr.bf16.mxu0 0
  %234 = vmatpush1.bf16.xpose.msra.mxu0 0
  %235 = vmatprep.subr.bf16.mxu0 0
  %236 = vmatpush1.bf16.xpose.msra.mxu0 0
  %237 = vmatprep.subr.bf16.mxu0 0
  %238 = vmatpush1.bf16.xpose.msra.mxu0 0
  %239 = vmatprep.subr.bf16.mxu0 0
  %240 = vmatpush1.bf16.xpose.msra.mxu0 0
  %241 = vmatprep.subr.bf16.mxu0 0
  %242 = vmatpush1.bf16.xpose.msra.mxu0 0
  %243 = vmatprep.subr.bf16.mxu0 0
  %244 = vmatpush1.bf16.xpose.msra.mxu0 0
  %245 = vmatprep.subr.bf16.mxu0 0
  %246 = vmatpush1.bf16.xpose.msra.mxu0 0
  %247 = vmatprep.subr.bf16.mxu0 0
  %248 = vmatpush1.bf16.xpose.msra.mxu0 0
  %249 = vmatprep.subr.bf16.mxu0 0
  %250 = vmatpush1.bf16.xpose.msra.mxu0 0
  %251 = vmatprep.subr.bf16.mxu0 0
  %252 = vmatpush1.bf16.xpose.msra.mxu0 0
  %253 = vmatprep.subr.bf16.mxu0 0
  %254 = vmatpush1.bf16.xpose.msra.mxu0 0
  %255 = vmatprep.subr.bf16.mxu0 0
  %256 = vmatpush1.bf16.xpose.msra.mxu0 0
  %257 = vmatprep.subr.bf16.mxu0 0
  %258 = vmatpush1.bf16.xpose.msra.mxu0 0
  %259 = vmatprep.subr.bf16.mxu0 0
  %260 = vmatpush1.bf16.xpose.msra.mxu0 0
  %261 = vmatprep.subr.bf16.mxu0 0
  %262 = vmatpush1.bf16.xpose.msra.mxu0 0
  %263 = vmatprep.mubr.bf16.mxu0 0
  %264 = vmatmul.mubr.bf16.gmra.mrb[0].mxu0 %v226
  %v265 = vpop.f32.mrb[0].mxu0
  %v266 = vadd.f32 0.0, %v265
  %v267 = vpop.f32.mrb[0].mxu0
  %v268 = vpop.f32.mrb[0].mxu0
  %v269 = vpop.f32.mrb[0].mxu0
  %270 = vdwg.mxu0
  %272 = vrot.lane.b32.xlu0 %v158, 96
  %v273 = vpop.permute.xlu0 %272
  %v275 = vsel %vm175, %v158, 0
  %v278 = vsel %vm175, %v273, 0
  %280 = vmatprep.subr.bf16.mxu0 0
  %281 = vmatpush1.bf16.xpose.msra.mxu0 %v278
  %282 = vmatprep.subr.bf16.mxu0 0
  %283 = vmatpush1.bf16.xpose.msra.mxu0 0
  %284 = vmatprep.subr.bf16.mxu0 0
  %285 = vmatpush1.bf16.xpose.msra.mxu0 0
  %286 = vmatprep.subr.bf16.mxu0 0
  %287 = vmatpush1.bf16.xpose.msra.mxu0 0
  %288 = vmatprep.subr.bf16.mxu0 0
  %289 = vmatpush1.bf16.xpose.msra.mxu0 0
  %290 = vmatprep.subr.bf16.mxu0 0
  %291 = vmatpush1.bf16.xpose.msra.mxu0 0
  %292 = vmatprep.subr.bf16.mxu0 0
  %293 = vmatpush1.bf16.xpose.msra.mxu0 0
  %294 = vmatprep.subr.bf16.mxu0 0
  %295 = vmatpush1.bf16.xpose.msra.mxu0 0
  %296 = vmatprep.subr.bf16.mxu0 0
  %297 = vmatpush1.bf16.xpose.msra.mxu0 0
  %298 = vmatprep.subr.bf16.mxu0 0
  %299 = vmatpush1.bf16.xpose.msra.mxu0 0
  %300 = vmatprep.subr.bf16.mxu0 0
  %301 = vmatpush1.bf16.xpose.msra.mxu0 0
  %302 = vmatprep.subr.bf16.mxu0 0
  %303 = vmatpush1.bf16.xpose.msra.mxu0 0
  %304 = vmatprep.subr.bf16.mxu0 0
  %305 = vmatpush1.bf16.xpose.msra.mxu0 0
  %306 = vmatprep.subr.bf16.mxu0 0
  %307 = vmatpush1.bf16.xpose.msra.mxu0 0
  %308 = vmatprep.subr.bf16.mxu0 0
  %309 = vmatpush1.bf16.xpose.msra.mxu0 0
  %310 = vmatprep.subr.bf16.mxu0 0
  %311 = vmatpush1.bf16.xpose.msra.mxu0 0
  %312 = vmatprep.mubr.bf16.mxu0 0
  %313 = vmatmul.mubr.bf16.gmra.mrb[0].mxu0 %v275
  %v314 = vpop.f32.mrb[0].mxu0
  %v315 = vadd.f32 0.0, %v314
  %v316 = vpop.f32.mrb[0].mxu0
  %v317 = vpop.f32.mrb[0].mxu0
  %v318 = vpop.f32.mrb[0].mxu0
  %319 = vdwg.mxu0
  %321 = vrot.lane.b32.xlu0 %v159, 96
  %v322 = vpop.permute.xlu0 %321
  %v324 = vsel %vm175, %v159, 0
  %v327 = vsel %vm175, %v322, 0
  %329 = vmatprep.subr.bf16.mxu0 0
  %330 = vmatpush1.bf16.xpose.msra.mxu0 %v327
  %331 = vmatprep.subr.bf16.mxu0 0
  %332 = vmatpush1.bf16.xpose.msra.mxu0 0
  %333 = vmatprep.subr.bf16.mxu0 0
  %334 = vmatpush1.bf16.xpose.msra.mxu0 0
  %335 = vmatprep.subr.bf16.mxu0 0
  %336 = vmatpush1.bf16.xpose.msra.mxu0 0
  %337 = vmatprep.subr.bf16.mxu0 0
  %338 = vmatpush1.bf16.xpose.msra.mxu0 0
  %339 = vmatprep.subr.bf16.mxu0 0
  %340 = vmatpush1.bf16.xpose.msra.mxu0 0
  %341 = vmatprep.subr.bf16.mxu0 0
  %342 = vmatpush1.bf16.xpose.msra.mxu0 0
  %343 = vmatprep.subr.bf16.mxu0 0
  %344 = vmatpush1.bf16.xpose.msra.mxu0 0
  %345 = vmatprep.subr.bf16.mxu0 0
  %346 = vmatpush1.bf16.xpose.msra.mxu0 0
  %347 = vmatprep.subr.bf16.mxu0 0
  %348 = vmatpush1.bf16.xpose.msra.mxu0 0
  %349 = vmatprep.subr.bf16.mxu0 0
  %350 = vmatpush1.bf16.xpose.msra.mxu0 0
  %351 = vmatprep.subr.bf16.mxu0 0
  %352 = vmatpush1.bf16.xpose.msra.mxu0 0
  %353 = vmatprep.subr.bf16.mxu0 0
  %354 = vmatpush1.bf16.xpose.msra.mxu0 0
  %355 = vmatprep.subr.bf16.mxu0 0
  %356 = vmatpush1.bf16.xpose.msra.mxu0 0
  %357 = vmatprep.subr.bf16.mxu0 0
  %358 = vmatpush1.bf16.xpose.msra.mxu0 0
  %359 = vmatprep.subr.bf16.mxu0 0
  %360 = vmatpush1.bf16.xpose.msra.mxu0 0
  %361 = vmatprep.mubr.bf16.mxu0 0
  %362 = vmatmul.mubr.bf16.gmra.mrb[0].mxu0 %v324
  %v363 = vpop.f32.mrb[0].mxu0
  %v364 = vadd.f32 0.0, %v363
  %v365 = vpop.f32.mrb[0].mxu0
  %v366 = vpop.f32.mrb[0].mxu0
  %v367 = vpop.f32.mrb[0].mxu0
  %368 = vdwg.mxu0
  %370 = vrot.lane.b32.xlu0 %v160, 96
  %v371 = vpop.permute.xlu0 %370
  %v373 = vsel %vm175, %v160, 0
  %v376 = vsel %vm175, %v371, 0
  %378 = vmatprep.subr.bf16.mxu0 0
  %379 = vmatpush1.bf16.xpose.msra.mxu0 %v376
  %380 = vmatprep.subr.bf16.mxu0 0
  %381 = vmatpush1.bf16.xpose.msra.mxu0 0
  %382 = vmatprep.subr.bf16.mxu0 0
  %383 = vmatpush1.bf16.xpose.msra.mxu0 0
  %384 = vmatprep.subr.bf16.mxu0 0
  %385 = vmatpush1.bf16.xpose.msra.mxu0 0
  %386 = vmatprep.subr.bf16.mxu0 0
  %387 = vmatpush1.bf16.xpose.msra.mxu0 0
  %388 = vmatprep.subr.bf16.mxu0 0
  %389 = vmatpush1.bf16.xpose.msra.mxu0 0
  %390 = vmatprep.subr.bf16.mxu0 0
  %391 = vmatpush1.bf16.xpose.msra.mxu0 0
  %392 = vmatprep.subr.bf16.mxu0 0
  %393 = vmatpush1.bf16.xpose.msra.mxu0 0
  %394 = vmatprep.subr.bf16.mxu0 0
  %395 = vmatpush1.bf16.xpose.msra.mxu0 0
  %396 = vmatprep.subr.bf16.mxu0 0
  %397 = vmatpush1.bf16.xpose.msra.mxu0 0
  %398 = vmatprep.subr.bf16.mxu0 0
  %399 = vmatpush1.bf16.xpose.msra.mxu0 0
  %400 = vmatprep.subr.bf16.mxu0 0
  %401 = vmatpush1.bf16.xpose.msra.mxu0 0
  %402 = vmatprep.subr.bf16.mxu0 0
  %403 = vmatpush1.bf16.xpose.msra.mxu0 0
  %404 = vmatprep.subr.bf16.mxu0 0
  %405 = vmatpush1.bf16.xpose.msra.mxu0 0
  %406 = vmatprep.subr.bf16.mxu0 0
  %407 = vmatpush1.bf16.xpose.msra.mxu0 0
  %408 = vmatprep.subr.bf16.mxu0 0
  %409 = vmatpush1.bf16.xpose.msra.mxu0 0
  %410 = vmatprep.mubr.bf16.mxu0 0
  %411 = vmatmul.mubr.bf16.gmra.mrb[0].mxu0 %v373
  %v412 = vpop.f32.mrb[0].mxu0
  %v413 = vadd.f32 0.0, %v412
  %v414 = vpop.f32.mrb[0].mxu0
  %v415 = vpop.f32.mrb[0].mxu0
  %v416 = vpop.f32.mrb[0].mxu0
  %417 = vdwg.mxu0
  %419 = vrot.lane.b32.xlu0 %v161, 96
  %v420 = vpop.permute.xlu0 %419
  %v422 = vsel %vm175, %v161, 0
  %v425 = vsel %vm175, %v420, 0
  %427 = vmatprep.subr.bf16.mxu0 0
  %428 = vmatpush1.bf16.xpose.msra.mxu0 %v425
  %429 = vmatprep.subr.bf16.mxu0 0
  %430 = vmatpush1.bf16.xpose.msra.mxu0 0
  %431 = vmatprep.subr.bf16.mxu0 0
  %432 = vmatpush1.bf16.xpose.msra.mxu0 0
  %433 = vmatprep.subr.bf16.mxu0 0
  %434 = vmatpush1.bf16.xpose.msra.mxu0 0
  %435 = vmatprep.subr.bf16.mxu0 0
  %436 = vmatpush1.bf16.xpose.msra.mxu0 0
  %437 = vmatprep.subr.bf16.mxu0 0
  %438 = vmatpush1.bf16.xpose.msra.mxu0 0
  %439 = vmatprep.subr.bf16.mxu0 0
  %440 = vmatpush1.bf16.xpose.msra.mxu0 0
  %441 = vmatprep.subr.bf16.mxu0 0
  %442 = vmatpush1.bf16.xpose.msra.mxu0 0
  %443 = vmatprep.subr.bf16.mxu0 0
  %444 = vmatpush1.bf16.xpose.msra.mxu0 0
  %445 = vmatprep.subr.bf16.mxu0 0
  %446 = vmatpush1.bf16.xpose.msra.mxu0 0
  %447 = vmatprep.subr.bf16.mxu0 0
  %448 = vmatpush1.bf16.xpose.msra.mxu0 0
  %449 = vmatprep.subr.bf16.mxu0 0
  %450 = vmatpush1.bf16.xpose.msra.mxu0 0
  %451 = vmatprep.subr.bf16.mxu0 0
  %452 = vmatpush1.bf16.xpose.msra.mxu0 0
  %453 = vmatprep.subr.bf16.mxu0 0
  %454 = vmatpush1.bf16.xpose.msra.mxu0 0
  %455 = vmatprep.subr.bf16.mxu0 0
  %456 = vmatpush1.bf16.xpose.msra.mxu0 0
  %457 = vmatprep.subr.bf16.mxu0 0
  %458 = vmatpush1.bf16.xpose.msra.mxu0 0
  %459 = vmatprep.mubr.bf16.mxu0 0
  %460 = vmatmul.mubr.bf16.gmra.mrb[0].mxu0 %v422
  %v461 = vpop.f32.mrb[0].mxu0
  %v462 = vadd.f32 0.0, %v461
  %v463 = vpop.f32.mrb[0].mxu0
  %v464 = vpop.f32.mrb[0].mxu0
  %v465 = vpop.f32.mrb[0].mxu0
  %466 = vdwg.mxu0
  %468 = vrot.lane.b32.xlu0 %v162, 96
  %v469 = vpop.permute.xlu0 %468
  %v471 = vsel %vm175, %v162, 0
  %v474 = vsel %vm175, %v469, 0
  %476 = vmatprep.subr.bf16.mxu0 0
  %477 = vmatpush1.bf16.xpose.msra.mxu0 %v474
  %478 = vmatprep.subr.bf16.mxu0 0
  %479 = vmatpush1.bf16.xpose.msra.mxu0 0
  %480 = vmatprep.subr.bf16.mxu0 0
  %481 = vmatpush1.bf16.xpose.msra.mxu0 0
  %482 = vmatprep.subr.bf16.mxu0 0
  %483 = vmatpush1.bf16.xpose.msra.mxu0 0
  %484 = vmatprep.subr.bf16.mxu0 0
  %485 = vmatpush1.bf16.xpose.msra.mxu0 0
  %486 = vmatprep.subr.bf16.mxu0 0
  %487 = vmatpush1.bf16.xpose.msra.mxu0 0
  %488 = vmatprep.subr.bf16.mxu0 0
  %489 = vmatpush1.bf16.xpose.msra.mxu0 0
  %490 = vmatprep.subr.bf16.mxu0 0
  %491 = vmatpush1.bf16.xpose.msra.mxu0 0
  %492 = vmatprep.subr.bf16.mxu0 0
  %493 = vmatpush1.bf16.xpose.msra.mxu0 0
  %494 = vmatprep.subr.bf16.mxu0 0
  %495 = vmatpush1.bf16.xpose.msra.mxu0 0
  %496 = vmatprep.subr.bf16.mxu0 0
  %497 = vmatpush1.bf16.xpose.msra.mxu0 0
  %498 = vmatprep.subr.bf16.mxu0 0
  %499 = vmatpush1.bf16.xpose.msra.mxu0 0
  %500 = vmatprep.subr.bf16.mxu0 0
  %501 = vmatpush1.bf16.xpose.msra.mxu0 0
  %502 = vmatprep.subr.bf16.mxu0 0
  %503 = vmatpush1.bf16.xpose.msra.mxu0 0
  %504 = vmatprep.subr.bf16.mxu0 0
  %505 = vmatpush1.bf16.xpose.msra.mxu0 0
  %506 = vmatprep.subr.bf16.mxu0 0
  %507 = vmatpush1.bf16.xpose.msra.mxu0 0
  %508 = vmatprep.mubr.bf16.mxu0 0
  %509 = vmatmul.mubr.bf16.gmra.mrb[0].mxu0 %v471
  %v510 = vpop.f32.mrb[0].mxu0
  %v511 = vadd.f32 0.0, %v510
  %v512 = vpop.f32.mrb[0].mxu0
  %v513 = vpop.f32.mrb[0].mxu0
  %v514 = vpop.f32.mrb[0].mxu0
  %515 = vdwg.mxu0
  %517 = vrot.lane.b32.xlu0 %v163, 96
  %v518 = vpop.permute.xlu0 %517
  %v520 = vsel %vm175, %v163, 0
  %v523 = vsel %vm175, %v518, 0
  %525 = vmatprep.subr.bf16.mxu0 0
  %526 = vmatpush1.bf16.xpose.msra.mxu0 %v523
  %527 = vmatprep.subr.bf16.mxu0 0
  %528 = vmatpush1.bf16.xpose.msra.mxu0 0
  %529 = vmatprep.subr.bf16.mxu0 0
  %530 = vmatpush1.bf16.xpose.msra.mxu0 0
  %531 = vmatprep.subr.bf16.mxu0 0
  %532 = vmatpush1.bf16.xpose.msra.mxu0 0
  %533 = vmatprep.subr.bf16.mxu0 0
  %534 = vmatpush1.bf16.xpose.msra.mxu0 0
  %535 = vmatprep.subr.bf16.mxu0 0
  %536 = vmatpush1.bf16.xpose.msra.mxu0 0
  %537 = vmatprep.subr.bf16.mxu0 0
  %538 = vmatpush1.bf16.xpose.msra.mxu0 0
  %539 = vmatprep.subr.bf16.mxu0 0
  %540 = vmatpush1.bf16.xpose.msra.mxu0 0
  %541 = vmatprep.subr.bf16.mxu0 0
  %542 = vmatpush1.bf16.xpose.msra.mxu0 0
  %543 = vmatprep.subr.bf16.mxu0 0
  %544 = vmatpush1.bf16.xpose.msra.mxu0 0
  %545 = vmatprep.subr.bf16.mxu0 0
  %546 = vmatpush1.bf16.xpose.msra.mxu0 0
  %547 = vmatprep.subr.bf16.mxu0 0
  %548 = vmatpush1.bf16.xpose.msra.mxu0 0
  %549 = vmatprep.subr.bf16.mxu0 0
  %550 = vmatpush1.bf16.xpose.msra.mxu0 0
  %551 = vmatprep.subr.bf16.mxu0 0
  %552 = vmatpush1.bf16.xpose.msra.mxu0 0
  %553 = vmatprep.subr.bf16.mxu0 0
  %554 = vmatpush1.bf16.xpose.msra.mxu0 0
  %555 = vmatprep.subr.bf16.mxu0 0
  %556 = vmatpush1.bf16.xpose.msra.mxu0 0
  %557 = vmatprep.mubr.bf16.mxu0 0
  %558 = vmatmul.mubr.bf16.gmra.mrb[0].mxu0 %v520
  %v559 = vpop.f32.mrb[0].mxu0
  %v560 = vadd.f32 0.0, %v559
  %v561 = vpop.f32.mrb[0].mxu0
  %v562 = vpop.f32.mrb[0].mxu0
  %v563 = vpop.f32.mrb[0].mxu0
  %564 = vdwg.mxu0
  %566 = vrot.lane.b32.xlu0 %v164, 96
  %v567 = vpop.permute.xlu0 %566
  %v569 = vsel %vm175, %v164, 0
  %v572 = vsel %vm175, %v567, 0
  %574 = vmatprep.subr.bf16.mxu0 0
  %575 = vmatpush1.bf16.xpose.msra.mxu0 %v572
  %576 = vmatprep.subr.bf16.mxu0 0
  %577 = vmatpush1.bf16.xpose.msra.mxu0 0
  %578 = vmatprep.subr.bf16.mxu0 0
  %579 = vmatpush1.bf16.xpose.msra.mxu0 0
  %580 = vmatprep.subr.bf16.mxu0 0
  %581 = vmatpush1.bf16.xpose.msra.mxu0 0
  %582 = vmatprep.subr.bf16.mxu0 0
  %583 = vmatpush1.bf16.xpose.msra.mxu0 0
  %584 = vmatprep.subr.bf16.mxu0 0
  %585 = vmatpush1.bf16.xpose.msra.mxu0 0
  %586 = vmatprep.subr.bf16.mxu0 0
  %587 = vmatpush1.bf16.xpose.msra.mxu0 0
  %588 = vmatprep.subr.bf16.mxu0 0
  %589 = vmatpush1.bf16.xpose.msra.mxu0 0
  %590 = vmatprep.subr.bf16.mxu0 0
  %591 = vmatpush1.bf16.xpose.msra.mxu0 0
  %592 = vmatprep.subr.bf16.mxu0 0
  %593 = vmatpush1.bf16.xpose.msra.mxu0 0
  %594 = vmatprep.subr.bf16.mxu0 0
  %595 = vmatpush1.bf16.xpose.msra.mxu0 0
  %596 = vmatprep.subr.bf16.mxu0 0
  %597 = vmatpush1.bf16.xpose.msra.mxu0 0
  %598 = vmatprep.subr.bf16.mxu0 0
  %599 = vmatpush1.bf16.xpose.msra.mxu0 0
  %600 = vmatprep.subr.bf16.mxu0 0
  %601 = vmatpush1.bf16.xpose.msra.mxu0 0
  %602 = vmatprep.subr.bf16.mxu0 0
  %603 = vmatpush1.bf16.xpose.msra.mxu0 0
  %604 = vmatprep.subr.bf16.mxu0 0
  %605 = vmatpush1.bf16.xpose.msra.mxu0 0
  %606 = vmatprep.mubr.bf16.mxu0 0
  %607 = vmatmul.mubr.bf16.gmra.mrb[0].mxu0 %v569
  %v608 = vpop.f32.mrb[0].mxu0
  %v609 = vadd.f32 0.0, %v608
  %v610 = vpop.f32.mrb[0].mxu0
  %v611 = vpop.f32.mrb[0].mxu0
  %v612 = vpop.f32.mrb[0].mxu0
  %613 = vdwg.mxu0
  %615 = vrot.lane.b32.xlu0 %v165, 96
  %v616 = vpop.permute.xlu0 %615
  %v618 = vsel %vm175, %v165, 0
  %v621 = vsel %vm175, %v616, 0
  %623 = vmatprep.subr.bf16.mxu0 0
  %624 = vmatpush1.bf16.xpose.msra.mxu0 %v621
  %625 = vmatprep.subr.bf16.mxu0 0
  %626 = vmatpush1.bf16.xpose.msra.mxu0 0
  %627 = vmatprep.subr.bf16.mxu0 0
  %628 = vmatpush1.bf16.xpose.msra.mxu0 0
  %629 = vmatprep.subr.bf16.mxu0 0
  %630 = vmatpush1.bf16.xpose.msra.mxu0 0
  %631 = vmatprep.subr.bf16.mxu0 0
  %632 = vmatpush1.bf16.xpose.msra.mxu0 0
  %633 = vmatprep.subr.bf16.mxu0 0
  %634 = vmatpush1.bf16.xpose.msra.mxu0 0
  %635 = vmatprep.subr.bf16.mxu0 0
  %636 = vmatpush1.bf16.xpose.msra.mxu0 0
  %637 = vmatprep.subr.bf16.mxu0 0
  %638 = vmatpush1.bf16.xpose.msra.mxu0 0
  %639 = vmatprep.subr.bf16.mxu0 0
  %640 = vmatpush1.bf16.xpose.msra.mxu0 0
  %641 = vmatprep.subr.bf16.mxu0 0
  %642 = vmatpush1.bf16.xpose.msra.mxu0 0
  %643 = vmatprep.subr.bf16.mxu0 0
  %644 = vmatpush1.bf16.xpose.msra.mxu0 0
  %645 = vmatprep.subr.bf16.mxu0 0
  %646 = vmatpush1.bf16.xpose.msra.mxu0 0
  %647 = vmatprep.subr.bf16.mxu0 0
  %648 = vmatpush1.bf16.xpose.msra.mxu0 0
  %649 = vmatprep.subr.bf16.mxu0 0
  %650 = vmatpush1.bf16.xpose.msra.mxu0 0
  %651 = vmatprep.subr.bf16.mxu0 0
  %652 = vmatpush1.bf16.xpose.msra.mxu0 0
  %653 = vmatprep.subr.bf16.mxu0 0
  %654 = vmatpush1.bf16.xpose.msra.mxu0 0
  %655 = vmatprep.mubr.bf16.mxu0 0
  %656 = vmatmul.mubr.bf16.gmra.mrb[0].mxu0 %v618
  %v657 = vpop.f32.mrb[0].mxu0
  %v658 = vadd.f32 0.0, %v657
  %v659 = vpop.f32.mrb[0].mxu0
  %v660 = vpop.f32.mrb[0].mxu0
  %v661 = vpop.f32.mrb[0].mxu0
  %662 = vdwg.mxu0
  %664 = vrot.lane.b32.xlu0 %v166, 96
  %v665 = vpop.permute.xlu0 %664
  %v667 = vsel %vm175, %v166, 0
  %v670 = vsel %vm175, %v665, 0
  %672 = vmatprep.subr.bf16.mxu0 0
  %673 = vmatpush1.bf16.xpose.msra.mxu0 %v670
  %674 = vmatprep.subr.bf16.mxu0 0
  %675 = vmatpush1.bf16.xpose.msra.mxu0 0
  %676 = vmatprep.subr.bf16.mxu0 0
  %677 = vmatpush1.bf16.xpose.msra.mxu0 0
  %678 = vmatprep.subr.bf16.mxu0 0
  %679 = vmatpush1.bf16.xpose.msra.mxu0 0
  %680 = vmatprep.subr.bf16.mxu0 0
  %681 = vmatpush1.bf16.xpose.msra.mxu0 0
  %682 = vmatprep.subr.bf16.mxu0 0
  %683 = vmatpush1.bf16.xpose.msra.mxu0 0
  %684 = vmatprep.subr.bf16.mxu0 0
  %685 = vmatpush1.bf16.xpose.msra.mxu0 0
  %686 = vmatprep.subr.bf16.mxu0 0
  %687 = vmatpush1.bf16.xpose.msra.mxu0 0
  %688 = vmatprep.subr.bf16.mxu0 0
  %689 = vmatpush1.bf16.xpose.msra.mxu0 0
  %690 = vmatprep.subr.bf16.mxu0 0
  %691 = vmatpush1.bf16.xpose.msra.mxu0 0
  %692 = vmatprep.subr.bf16.mxu0 0
  %693 = vmatpush1.bf16.xpose.msra.mxu0 0
  %694 = vmatprep.subr.bf16.mxu0 0
  %695 = vmatpush1.bf16.xpose.msra.mxu0 0
  %696 = vmatprep.subr.bf16.mxu0 0
  %697 = vmatpush1.bf16.xpose.msra.mxu0 0
  %698 = vmatprep.subr.bf16.mxu0 0
  %699 = vmatpush1.bf16.xpose.msra.mxu0 0
  %700 = vmatprep.subr.bf16.mxu0 0
  %701 = vmatpush1.bf16.xpose.msra.mxu0 0
  %702 = vmatprep.subr.bf16.mxu0 0
  %703 = vmatpush1.bf16.xpose.msra.mxu0 0
  %704 = vmatprep.mubr.bf16.mxu0 0
  %705 = vmatmul.mubr.bf16.gmra.mrb[0].mxu0 %v667
  %v706 = vpop.f32.mrb[0].mxu0
  %v707 = vadd.f32 0.0, %v706
  %v708 = vpop.f32.mrb[0].mxu0
  %v709 = vpop.f32.mrb[0].mxu0
  %v710 = vpop.f32.mrb[0].mxu0
  %711 = vdwg.mxu0
  %713 = vrot.lane.b32.xlu0 %v167, 96
  %v714 = vpop.permute.xlu0 %713
  %v716 = vsel %vm175, %v167, 0
  %v719 = vsel %vm175, %v714, 0
  %721 = vmatprep.subr.bf16.mxu0 0
  %722 = vmatpush1.bf16.xpose.msra.mxu0 %v719
  %723 = vmatprep.subr.bf16.mxu0 0
  %724 = vmatpush1.bf16.xpose.msra.mxu0 0
  %725 = vmatprep.subr.bf16.mxu0 0
  %726 = vmatpush1.bf16.xpose.msra.mxu0 0
  %727 = vmatprep.subr.bf16.mxu0 0
  %728 = vmatpush1.bf16.xpose.msra.mxu0 0
  %729 = vmatprep.subr.bf16.mxu0 0
  %730 = vmatpush1.bf16.xpose.msra.mxu0 0
  %731 = vmatprep.subr.bf16.mxu0 0
  %732 = vmatpush1.bf16.xpose.msra.mxu0 0
  %733 = vmatprep.subr.bf16.mxu0 0
  %734 = vmatpush1.bf16.xpose.msra.mxu0 0
  %735 = vmatprep.subr.bf16.mxu0 0
  %736 = vmatpush1.bf16.xpose.msra.mxu0 0
  %737 = vmatprep.subr.bf16.mxu0 0
  %738 = vmatpush1.bf16.xpose.msra.mxu0 0
  %739 = vmatprep.subr.bf16.mxu0 0
  %740 = vmatpush1.bf16.xpose.msra.mxu0 0
  %741 = vmatprep.subr.bf16.mxu0 0
  %742 = vmatpush1.bf16.xpose.msra.mxu0 0
  %743 = vmatprep.subr.bf16.mxu0 0
  %744 = vmatpush1.bf16.xpose.msra.mxu0 0
  %745 = vmatprep.subr.bf16.mxu0 0
  %746 = vmatpush1.bf16.xpose.msra.mxu0 0
  %747 = vmatprep.subr.bf16.mxu0 0
  %748 = vmatpush1.bf16.xpose.msra.mxu0 0
  %749 = vmatprep.subr.bf16.mxu0 0
  %750 = vmatpush1.bf16.xpose.msra.mxu0 0
  %751 = vmatprep.subr.bf16.mxu0 0
  %752 = vmatpush1.bf16.xpose.msra.mxu0 0
  %753 = vmatprep.mubr.bf16.mxu0 0
  %754 = vmatmul.mubr.bf16.gmra.mrb[0].mxu0 %v716
  %v755 = vpop.f32.mrb[0].mxu0
  %v756 = vadd.f32 0.0, %v755
  %v757 = vpop.f32.mrb[0].mxu0
  %v758 = vpop.f32.mrb[0].mxu0
  %v759 = vpop.f32.mrb[0].mxu0
  %760 = vdwg.mxu0
  %762 = vrot.lane.b32.xlu0 %v168, 96
  %v763 = vpop.permute.xlu0 %762
  %v765 = vsel %vm175, %v168, 0
  %v768 = vsel %vm175, %v763, 0
  %770 = vmatprep.subr.bf16.mxu0 0
  %771 = vmatpush1.bf16.xpose.msra.mxu0 %v768
  %772 = vmatprep.subr.bf16.mxu0 0
  %773 = vmatpush1.bf16.xpose.msra.mxu0 0
  %774 = vmatprep.subr.bf16.mxu0 0
  %775 = vmatpush1.bf16.xpose.msra.mxu0 0
  %776 = vmatprep.subr.bf16.mxu0 0
  %777 = vmatpush1.bf16.xpose.msra.mxu0 0
  %778 = vmatprep.subr.bf16.mxu0 0
  %779 = vmatpush1.bf16.xpose.msra.mxu0 0
  %780 = vmatprep.subr.bf16.mxu0 0
  %781 = vmatpush1.bf16.xpose.msra.mxu0 0
  %782 = vmatprep.subr.bf16.mxu0 0
  %783 = vmatpush1.bf16.xpose.msra.mxu0 0
  %784 = vmatprep.subr.bf16.mxu0 0
  %785 = vmatpush1.bf16.xpose.msra.mxu0 0
  %786 = vmatprep.subr.bf16.mxu0 0
  %787 = vmatpush1.bf16.xpose.msra.mxu0 0
  %788 = vmatprep.subr.bf16.mxu0 0
  %789 = vmatpush1.bf16.xpose.msra.mxu0 0
  %790 = vmatprep.subr.bf16.mxu0 0
  %791 = vmatpush1.bf16.xpose.msra.mxu0 0
  %792 = vmatprep.subr.bf16.mxu0 0
  %793 = vmatpush1.bf16.xpose.msra.mxu0 0
  %794 = vmatprep.subr.bf16.mxu0 0
  %795 = vmatpush1.bf16.xpose.msra.mxu0 0
  %796 = vmatprep.subr.bf16.mxu0 0
  %797 = vmatpush1.bf16.xpose.msra.mxu0 0
  %798 = vmatprep.subr.bf16.mxu0 0
  %799 = vmatpush1.bf16.xpose.msra.mxu0 0
  %800 = vmatprep.subr.bf16.mxu0 0
  %801 = vmatpush1.bf16.xpose.msra.mxu0 0
  %802 = vmatprep.mubr.bf16.mxu0 0
  %803 = vmatmul.mubr.bf16.gmra.mrb[0].mxu0 %v765
  %v804 = vpop.f32.mrb[0].mxu0
  %v805 = vadd.f32 0.0, %v804
  %v806 = vpop.f32.mrb[0].mxu0
  %v807 = vpop.f32.mrb[0].mxu0
  %v808 = vpop.f32.mrb[0].mxu0
  %809 = vdwg.mxu0
  %811 = vrot.lane.b32.xlu0 %v169, 96
  %v812 = vpop.permute.xlu0 %811
  %v814 = vsel %vm175, %v169, 0
  %v817 = vsel %vm175, %v812, 0
  %819 = vmatprep.subr.bf16.mxu0 0
  %820 = vmatpush1.bf16.xpose.msra.mxu0 %v817
  %821 = vmatprep.subr.bf16.mxu0 0
  %822 = vmatpush1.bf16.xpose.msra.mxu0 0
  %823 = vmatprep.subr.bf16.mxu0 0
  %824 = vmatpush1.bf16.xpose.msra.mxu0 0
  %825 = vmatprep.subr.bf16.mxu0 0
  %826 = vmatpush1.bf16.xpose.msra.mxu0 0
  %827 = vmatprep.subr.bf16.mxu0 0
  %828 = vmatpush1.bf16.xpose.msra.mxu0 0
  %829 = vmatprep.subr.bf16.mxu0 0
  %830 = vmatpush1.bf16.xpose.msra.mxu0 0
  %831 = vmatprep.subr.bf16.mxu0 0
  %832 = vmatpush1.bf16.xpose.msra.mxu0 0
  %833 = vmatprep.subr.bf16.mxu0 0
  %834 = vmatpush1.bf16.xpose.msra.mxu0 0
  %835 = vmatprep.subr.bf16.mxu0 0
  %836 = vmatpush1.bf16.xpose.msra.mxu0 0
  %837 = vmatprep.subr.bf16.mxu0 0
  %838 = vmatpush1.bf16.xpose.msra.mxu0 0
  %839 = vmatprep.subr.bf16.mxu0 0
  %840 = vmatpush1.bf16.xpose.msra.mxu0 0
  %841 = vmatprep.subr.bf16.mxu0 0
  %842 = vmatpush1.bf16.xpose.msra.mxu0 0
  %843 = vmatprep.subr.bf16.mxu0 0
  %844 = vmatpush1.bf16.xpose.msra.mxu0 0
  %845 = vmatprep.subr.bf16.mxu0 0
  %846 = vmatpush1.bf16.xpose.msra.mxu0 0
  %847 = vmatprep.subr.bf16.mxu0 0
  %848 = vmatpush1.bf16.xpose.msra.mxu0 0
  %849 = vmatprep.subr.bf16.mxu0 0
  %850 = vmatpush1.bf16.xpose.msra.mxu0 0
  %851 = vmatprep.mubr.bf16.mxu0 0
  %852 = vmatmul.mubr.bf16.gmra.mrb[0].mxu0 %v814
  %v853 = vpop.f32.mrb[0].mxu0
  %v854 = vadd.f32 0.0, %v853
  %v855 = vpop.f32.mrb[0].mxu0
  %v856 = vpop.f32.mrb[0].mxu0
  %v857 = vpop.f32.mrb[0].mxu0
  %858 = vdwg.mxu0
  %860 = vrot.lane.b32.xlu0 %v170, 96
  %v861 = vpop.permute.xlu0 %860
  %v863 = vsel %vm175, %v170, 0
  %v866 = vsel %vm175, %v861, 0
  %868 = vmatprep.subr.bf16.mxu0 0
  %869 = vmatpush1.bf16.xpose.msra.mxu0 %v866
  %870 = vmatprep.subr.bf16.mxu0 0
  %871 = vmatpush1.bf16.xpose.msra.mxu0 0
  %872 = vmatprep.subr.bf16.mxu0 0
  %873 = vmatpush1.bf16.xpose.msra.mxu0 0
  %874 = vmatprep.subr.bf16.mxu0 0
  %875 = vmatpush1.bf16.xpose.msra.mxu0 0
  %876 = vmatprep.subr.bf16.mxu0 0
  %877 = vmatpush1.bf16.xpose.msra.mxu0 0
  %878 = vmatprep.subr.bf16.mxu0 0
  %879 = vmatpush1.bf16.xpose.msra.mxu0 0
  %880 = vmatprep.subr.bf16.mxu0 0
  %881 = vmatpush1.bf16.xpose.msra.mxu0 0
  %882 = vmatprep.subr.bf16.mxu0 0
  %883 = vmatpush1.bf16.xpose.msra.mxu0 0
  %884 = vmatprep.subr.bf16.mxu0 0
  %885 = vmatpush1.bf16.xpose.msra.mxu0 0
  %886 = vmatprep.subr.bf16.mxu0 0
  %887 = vmatpush1.bf16.xpose.msra.mxu0 0
  %888 = vmatprep.subr.bf16.mxu0 0
  %889 = vmatpush1.bf16.xpose.msra.mxu0 0
  %890 = vmatprep.subr.bf16.mxu0 0
  %891 = vmatpush1.bf16.xpose.msra.mxu0 0
  %892 = vmatprep.subr.bf16.mxu0 0
  %893 = vmatpush1.bf16.xpose.msra.mxu0 0
  %894 = vmatprep.subr.bf16.mxu0 0
  %895 = vmatpush1.bf16.xpose.msra.mxu0 0
  %896 = vmatprep.subr.bf16.mxu0 0
  %897 = vmatpush1.bf16.xpose.msra.mxu0 0
  %898 = vmatprep.subr.bf16.mxu0 0
  %899 = vmatpush1.bf16.xpose.msra.mxu0 0
  %900 = vmatprep.mubr.bf16.mxu0 0
  %901 = vmatmul.mubr.bf16.gmra.mrb[0].mxu0 %v863
  %v902 = vpop.f32.mrb[0].mxu0
  %v903 = vadd.f32 0.0, %v902
  %v904 = vpop.f32.mrb[0].mxu0
  %v905 = vpop.f32.mrb[0].mxu0
  %v906 = vpop.f32.mrb[0].mxu0
  %907 = vdwg.mxu0
  %909 = vrot.lane.b32.xlu0 %v171, 96
  %v910 = vpop.permute.xlu0 %909
  %v912 = vsel %vm175, %v171, 0
  %v915 = vsel %vm175, %v910, 0
  %917 = vmatprep.subr.bf16.mxu0 0
  %918 = vmatpush1.bf16.xpose.msra.mxu0 %v915
  %919 = vmatprep.subr.bf16.mxu0 0
  %920 = vmatpush1.bf16.xpose.msra.mxu0 0
  %921 = vmatprep.subr.bf16.mxu0 0
  %922 = vmatpush1.bf16.xpose.msra.mxu0 0
  %923 = vmatprep.subr.bf16.mxu0 0
  %924 = vmatpush1.bf16.xpose.msra.mxu0 0
  %925 = vmatprep.subr.bf16.mxu0 0
  %926 = vmatpush1.bf16.xpose.msra.mxu0 0
  %927 = vmatprep.subr.bf16.mxu0 0
  %928 = vmatpush1.bf16.xpose.msra.mxu0 0
  %929 = vmatprep.subr.bf16.mxu0 0
  %930 = vmatpush1.bf16.xpose.msra.mxu0 0
  %931 = vmatprep.subr.bf16.mxu0 0
  %932 = vmatpush1.bf16.xpose.msra.mxu0 0
  %933 = vmatprep.subr.bf16.mxu0 0
  %934 = vmatpush1.bf16.xpose.msra.mxu0 0
  %935 = vmatprep.subr.bf16.mxu0 0
  %936 = vmatpush1.bf16.xpose.msra.mxu0 0
  %937 = vmatprep.subr.bf16.mxu0 0
  %938 = vmatpush1.bf16.xpose.msra.mxu0 0
  %939 = vmatprep.subr.bf16.mxu0 0
  %940 = vmatpush1.bf16.xpose.msra.mxu0 0
  %941 = vmatprep.subr.bf16.mxu0 0
  %942 = vmatpush1.bf16.xpose.msra.mxu0 0
  %943 = vmatprep.subr.bf16.mxu0 0
  %944 = vmatpush1.bf16.xpose.msra.mxu0 0
  %945 = vmatprep.subr.bf16.mxu0 0
  %946 = vmatpush1.bf16.xpose.msra.mxu0 0
  %947 = vmatprep.subr.bf16.mxu0 0
  %948 = vmatpush1.bf16.xpose.msra.mxu0 0
  %949 = vmatprep.mubr.bf16.mxu0 0
  %950 = vmatmul.mubr.bf16.gmra.mrb[0].mxu0 %v912
  %v951 = vpop.f32.mrb[0].mxu0
  %v952 = vadd.f32 0.0, %v951
  %v953 = vpop.f32.mrb[0].mxu0
  %v954 = vpop.f32.mrb[0].mxu0
  %v955 = vpop.f32.mrb[0].mxu0
  %956 = vdwg.mxu0
  %vm957 = vcmask 64512
  %v958 = vsel %vm957, %v217, -inf
  %959 = vmax.xlane.f32.xlu0 %v958
  %v960 = vpop.xlane.xlu0 %959
  %v961 = vsel %vm957, %v266, -inf
  %962 = vmax.xlane.f32.xlu0 %v961
  %v963 = vpop.xlane.xlu0 %962
  %v964 = vsel %vm957, %v315, -inf
  %965 = vmax.xlane.f32.xlu0 %v964
  %v966 = vpop.xlane.xlu0 %965
  %v967 = vsel %vm957, %v364, -inf
  %968 = vmax.xlane.f32.xlu0 %v967
  %v969 = vpop.xlane.xlu0 %968
  %v970 = vsel %vm957, %v413, -inf
  %971 = vmax.xlane.f32.xlu0 %v970
  %v972 = vpop.xlane.xlu0 %971
  %v973 = vsel %vm957, %v462, -inf
  %974 = vmax.xlane.f32.xlu0 %v973
  %v975 = vpop.xlane.xlu0 %974
  %v976 = vsel %vm957, %v511, -inf
  %977 = vmax.xlane.f32.xlu0 %v976
  %v978 = vpop.xlane.xlu0 %977
  %v979 = vsel %vm957, %v560, -inf
  %980 = vmax.xlane.f32.xlu0 %v979
  %v981 = vpop.xlane.xlu0 %980
  %v982 = vsel %vm957, %v609, -inf
  %983 = vmax.xlane.f32.xlu0 %v982
  %v984 = vpop.xlane.xlu0 %983
  %v985 = vsel %vm957, %v658, -inf
  %986 = vmax.xlane.f32.xlu0 %v985
  %v987 = vpop.xlane.xlu0 %986
  %v988 = vsel %vm957, %v707, -inf
  %989 = vmax.xlane.f32.xlu0 %v988
  %v990 = vpop.xlane.xlu0 %989
  %v991 = vsel %vm957, %v756, -inf
  %992 = vmax.xlane.f32.xlu0 %v991
  %v993 = vpop.xlane.xlu0 %992
  %v994 = vsel %vm957, %v805, -inf
  %995 = vmax.xlane.f32.xlu0 %v994
  %v996 = vpop.xlane.xlu0 %995
  %v997 = vsel %vm957, %v854, -inf
  %998 = vmax.xlane.f32.xlu0 %v997
  %v999 = vpop.xlane.xlu0 %998
  %v1000 = vsel %vm957, %v903, -inf
  %1001 = vmax.xlane.f32.xlu0 %v1000
  %v1002 = vpop.xlane.xlu0 %1001
  %v1003 = vsel %vm957, %v952, -inf
  %1004 = vmax.xlane.f32.xlu0 %v1003
  %v1005 = vpop.xlane.xlu0 %1004
  %v1006 = vsub.f32 %v217, %v960
  %v1007 = vsub.f32 %v266, %v963
  %v1008 = vsub.f32 %v315, %v966
  %v1009 = vsub.f32 %v364, %v969
  %v1010 = vsub.f32 %v413, %v972
  %v1011 = vsub.f32 %v462, %v975
  %v1012 = vsub.f32 %v511, %v978
  %v1013 = vsub.f32 %v560, %v981
  %v1014 = vsub.f32 %v609, %v984
  %v1015 = vsub.f32 %v658, %v987
  %v1016 = vsub.f32 %v707, %v990
  %v1017 = vsub.f32 %v756, %v993
  %v1018 = vsub.f32 %v805, %v996
  %v1019 = vsub.f32 %v854, %v999
  %v1020 = vsub.f32 %v903, %v1002
  %v1021 = vsub.f32 %v952, %v1005
  %v1022 = vmul.f32 %v1006, 1.442695
  %v1023 = vpow.pop %v1022
  %v1024 = vmul.f32 %v1007, 1.442695
  %v1025 = vpow.pop %v1024
  %v1026 = vmul.f32 %v1008, 1.442695
  %v1027 = vpow.pop %v1026
  %v1028 = vmul.f32 %v1009, 1.442695
  %v1029 = vpow.pop %v1028
  %v1030 = vmul.f32 %v1010, 1.442695
  %v1031 = vpow.pop %v1030
  %v1032 = vmul.f32 %v1011, 1.442695
  %v1033 = vpow.pop %v1032
  %v1034 = vmul.f32 %v1012, 1.442695
  %v1035 = vpow.pop %v1034
  %v1036 = vmul.f32 %v1013, 1.442695
  %v1037 = vpow.pop %v1036
  %v1038 = vmul.f32 %v1014, 1.442695
  %v1039 = vpow.pop %v1038
  %v1040 = vmul.f32 %v1015, 1.442695
  %v1041 = vpow.pop %v1040
  %v1042 = vmul.f32 %v1016, 1.442695
  %v1043 = vpow.pop %v1042
  %v1044 = vmul.f32 %v1017, 1.442695
  %v1045 = vpow.pop %v1044
  %v1046 = vmul.f32 %v1018, 1.442695
  %v1047 = vpow.pop %v1046
  %v1048 = vmul.f32 %v1019, 1.442695
  %v1049 = vpow.pop %v1048
  %v1050 = vmul.f32 %v1020, 1.442695
  %v1051 = vpow.pop %v1050
  %v1052 = vmul.f32 %v1021, 1.442695
  %v1053 = vpow.pop %v1052
  %v1054 = vsel %vm957, %v1023, 0.0
  %1055 = vadd.xlane.f32.xlu0 %v1054
  %v1056 = vpop.xlane.xlu0 %1055
  %v1057 = vsel %vm957, %v1025, 0.0
  %1058 = vadd.xlane.f32.xlu0 %v1057
  %v1059 = vpop.xlane.xlu0 %1058
  %v1060 = vsel %vm957, %v1027, 0.0
  %1061 = vadd.xlane.f32.xlu0 %v1060
  %v1062 = vpop.xlane.xlu0 %1061
  %v1063 = vsel %vm957, %v1029, 0.0
  %1064 = vadd.xlane.f32.xlu0 %v1063
  %v1065 = vpop.xlane.xlu0 %1064
  %v1066 = vsel %vm957, %v1031, 0.0
  %1067 = vadd.xlane.f32.xlu0 %v1066
  %v1068 = vpop.xlane.xlu0 %1067
  %v1069 = vsel %vm957, %v1033, 0.0
  %1070 = vadd.xlane.f32.xlu0 %v1069
  %v1071 = vpop.xlane.xlu0 %1070
  %v1072 = vsel %vm957, %v1035, 0.0
  %1073 = vadd.xlane.f32.xlu0 %v1072
  %v1074 = vpop.xlane.xlu0 %1073
  %v1075 = vsel %vm957, %v1037, 0.0
  %1076 = vadd.xlane.f32.xlu0 %v1075
  %v1077 = vpop.xlane.xlu0 %1076
  %v1078 = vsel %vm957, %v1039, 0.0
  %1079 = vadd.xlane.f32.xlu0 %v1078
  %v1080 = vpop.xlane.xlu0 %1079
  %v1081 = vsel %vm957, %v1041, 0.0
  %1082 = vadd.xlane.f32.xlu0 %v1081
  %v1083 = vpop.xlane.xlu0 %1082
  %v1084 = vsel %vm957, %v1043, 0.0
  %1085 = vadd.xlane.f32.xlu0 %v1084
  %v1086 = vpop.xlane.xlu0 %1085
  %v1087 = vsel %vm957, %v1045, 0.0
  %1088 = vadd.xlane.f32.xlu0 %v1087
  %v1089 = vpop.xlane.xlu0 %1088
  %v1090 = vsel %vm957, %v1047, 0.0
  %1091 = vadd.xlane.f32.xlu0 %v1090
  %v1092 = vpop.xlane.xlu0 %1091
  %v1093 = vsel %vm957, %v1049, 0.0
  %1094 = vadd.xlane.f32.xlu0 %v1093
  %v1095 = vpop.xlane.xlu0 %1094
  %v1096 = vsel %vm957, %v1051, 0.0
  %1097 = vadd.xlane.f32.xlu0 %v1096
  %v1098 = vpop.xlane.xlu0 %1097
  %v1099 = vsel %vm957, %v1053, 0.0
  %1100 = vadd.xlane.f32.xlu0 %v1099
  %v1101 = vpop.xlane.xlu0 %1100
  %v1102 = vrcp.pop %v1056
  %v1103 = vrcp.pop %v1059
  %v1104 = vrcp.pop %v1062
  %v1105 = vrcp.pop %v1065
  %v1106 = vrcp.pop %v1068
  %v1107 = vrcp.pop %v1071
  %v1108 = vrcp.pop %v1074
  %v1109 = vrcp.pop %v1077
  %v1110 = vrcp.pop %v1080
  %v1111 = vrcp.pop %v1083
  %v1112 = vrcp.pop %v1086
  %v1113 = vrcp.pop %v1089
  %v1114 = vrcp.pop %v1092
  %v1115 = vrcp.pop %v1095
  %v1116 = vrcp.pop %v1098
  %v1117 = vrcp.pop %v1101
  %v1118 = vmul.f32 %v1023, %v1102
  %v1119 = vmul.f32 %v1025, %v1103
  %v1120 = vmul.f32 %v1027, %v1104
  %v1121 = vmul.f32 %v1029, %v1105
  %v1122 = vmul.f32 %v1031, %v1106
  %v1123 = vmul.f32 %v1033, %v1107
  %v1124 = vmul.f32 %v1035, %v1108
  %v1125 = vmul.f32 %v1037, %v1109
  %v1126 = vmul.f32 %v1039, %v1110
  %v1127 = vmul.f32 %v1041, %v1111
  %v1128 = vmul.f32 %v1043, %v1112
  %v1129 = vmul.f32 %v1045, %v1113
  %v1130 = vmul.f32 %v1047, %v1114
  %v1131 = vmul.f32 %v1049, %v1115
  %v1132 = vmul.f32 %v1051, %v1116
  %v1133 = vmul.f32 %v1053, %v1117
  %v1134 = vpack.c.bf16 %v1118, %v1118
  %v1135 = vpack.c.bf16 %v1119, %v1119
  %v1136 = vpack.c.bf16 %v1120, %v1120
  %v1137 = vpack.c.bf16 %v1121, %v1121
  %v1138 = vpack.c.bf16 %v1122, %v1122
  %v1139 = vpack.c.bf16 %v1123, %v1123
  %v1140 = vpack.c.bf16 %v1124, %v1124
  %v1141 = vpack.c.bf16 %v1125, %v1125
  %v1142 = vpack.c.bf16 %v1126, %v1126
  %v1143 = vpack.c.bf16 %v1127, %v1127
  %v1144 = vpack.c.bf16 %v1128, %v1128
  %v1145 = vpack.c.bf16 %v1129, %v1129
  %v1146 = vpack.c.bf16 %v1130, %v1130
  %v1147 = vpack.c.bf16 %v1131, %v1131
  %v1148 = vpack.c.bf16 %v1132, %v1132
  %v1149 = vpack.c.bf16 %v1133, %v1133
  %1150 = vrot.lane.b32.xlu0 %v156, 64
  %v1151 = vpop.permute.xlu0 %1150
  %v1153 = vsel %vm957, %v1134, 0
  %vm1155 = vcmask 1043456
  %v1157 = vsel %vm1155, %v1151, 0
  %1159 = vmatprep.subr.bf16.mxu0 0
  %1160 = vmatpush1.bf16.msra.mxu0 %v1157
  %1161 = vmatprep.subr.bf16.mxu0 0
  %1162 = vmatpush1.bf16.msra.mxu0 0
  %1163 = vmatprep.subr.bf16.mxu0 0
  %1164 = vmatpush1.bf16.msra.mxu0 0
  %1165 = vmatprep.subr.bf16.mxu0 0
  %1166 = vmatpush1.bf16.msra.mxu0 0
  %1167 = vmatprep.subr.bf16.mxu0 0
  %1168 = vmatpush1.bf16.msra.mxu0 0
  %1169 = vmatprep.subr.bf16.mxu0 0
  %1170 = vmatpush1.bf16.msra.mxu0 0
  %1171 = vmatprep.subr.bf16.mxu0 0
  %1172 = vmatpush1.bf16.msra.mxu0 0
  %1173 = vmatprep.subr.bf16.mxu0 0
  %1174 = vmatpush1.bf16.msra.mxu0 0
  %1175 = vmatprep.subr.bf16.mxu0 0
  %1176 = vmatpush1.bf16.msra.mxu0 0
  %1177 = vmatprep.subr.bf16.mxu0 0
  %1178 = vmatpush1.bf16.msra.mxu0 0
  %1179 = vmatprep.subr.bf16.mxu0 0
  %1180 = vmatpush1.bf16.msra.mxu0 0
  %1181 = vmatprep.subr.bf16.mxu0 0
  %1182 = vmatpush1.bf16.msra.mxu0 0
  %1183 = vmatprep.subr.bf16.mxu0 0
  %1184 = vmatpush1.bf16.msra.mxu0 0
  %1185 = vmatprep.subr.bf16.mxu0 0
  %1186 = vmatpush1.bf16.msra.mxu0 0
  %1187 = vmatprep.subr.bf16.mxu0 0
  %1188 = vmatpush1.bf16.msra.mxu0 0
  %1189 = vmatprep.subr.bf16.mxu0 0
  %1190 = vmatpush1.bf16.msra.mxu0 0
  %1191 = vmatprep.mubr.bf16.mxu0 0
  %1192 = vmatmul.mubr.bf16.gmra.mrb[0].mxu0 %v1153
  %v1193 = vpop.f32.mrb[0].mxu0
  %v1194 = vadd.f32 0.0, %v1193
  %v1195 = vpop.f32.mrb[0].mxu0
  %v1196 = vpop.f32.mrb[0].mxu0
  %v1197 = vpop.f32.mrb[0].mxu0
  %1198 = vdwg.mxu0
  %1199 = vrot.lane.b32.xlu0 %v157, 64
  %v1200 = vpop.permute.xlu0 %1199
  %v1202 = vsel %vm957, %v1135, 0
  %v1205 = vsel %vm1155, %v1200, 0
  %1207 = vmatprep.subr.bf16.mxu0 0
  %1208 = vmatpush1.bf16.msra.mxu0 %v1205
  %1209 = vmatprep.subr.bf16.mxu0 0
  %1210 = vmatpush1.bf16.msra.mxu0 0
  %1211 = vmatprep.subr.bf16.mxu0 0
  %1212 = vmatpush1.bf16.msra.mxu0 0
  %1213 = vmatprep.subr.bf16.mxu0 0
  %1214 = vmatpush1.bf16.msra.mxu0 0
  %1215 = vmatprep.subr.bf16.mxu0 0
  %1216 = vmatpush1.bf16.msra.mxu0 0
  %1217 = vmatprep.subr.bf16.mxu0 0
  %1218 = vmatpush1.bf16.msra.mxu0 0
  %1219 = vmatprep.subr.bf16.mxu0 0
  %1220 = vmatpush1.bf16.msra.mxu0 0
  %1221 = vmatprep.subr.bf16.mxu0 0
  %1222 = vmatpush1.bf16.msra.mxu0 0
  %1223 = vmatprep.subr.bf16.mxu0 0
  %1224 = vmatpush1.bf16.msra.mxu0 0
  %1225 = vmatprep.subr.bf16.mxu0 0
  %1226 = vmatpush1.bf16.msra.mxu0 0
  %1227 = vmatprep.subr.bf16.mxu0 0
  %1228 = vmatpush1.bf16.msra.mxu0 0
  %1229 = vmatprep.subr.bf16.mxu0 0
  %1230 = vmatpush1.bf16.msra.mxu0 0
  %1231 = vmatprep.subr.bf16.mxu0 0
  %1232 = vmatpush1.bf16.msra.mxu0 0
  %1233 = vmatprep.subr.bf16.mxu0 0
  %1234 = vmatpush1.bf16.msra.mxu0 0
  %1235 = vmatprep.subr.bf16.mxu0 0
  %1236 = vmatpush1.bf16.msra.mxu0 0
  %1237 = vmatprep.subr.bf16.mxu0 0
  %1238 = vmatpush1.bf16.msra.mxu0 0
  %1239 = vmatprep.mubr.bf16.mxu0 0
  %1240 = vmatmul.mubr.bf16.gmra.mrb[0].mxu0 %v1202
  %v1241 = vpop.f32.mrb[0].mxu0
  %v1242 = vadd.f32 0.0, %v1241
  %v1243 = vpop.f32.mrb[0].mxu0
  %v1244 = vpop.f32.mrb[0].mxu0
  %v1245 = vpop.f32.mrb[0].mxu0
  %1246 = vdwg.mxu0
  %1247 = vrot.lane.b32.xlu0 %v158, 64
  %v1248 = vpop.permute.xlu0 %1247
  %v1250 = vsel %vm957, %v1136, 0
  %v1253 = vsel %vm1155, %v1248, 0
  %1255 = vmatprep.subr.bf16.mxu0 0
  %1256 = vmatpush1.bf16.msra.mxu0 %v1253
  %1257 = vmatprep.subr.bf16.mxu0 0
  %1258 = vmatpush1.bf16.msra.mxu0 0
  %1259 = vmatprep.subr.bf16.mxu0 0
  %1260 = vmatpush1.bf16.msra.mxu0 0
  %1261 = vmatprep.subr.bf16.mxu0 0
  %1262 = vmatpush1.bf16.msra.mxu0 0
  %1263 = vmatprep.subr.bf16.mxu0 0
  %1264 = vmatpush1.bf16.msra.mxu0 0
  %1265 = vmatprep.subr.bf16.mxu0 0
  %1266 = vmatpush1.bf16.msra.mxu0 0
  %1267 = vmatprep.subr.bf16.mxu0 0
  %1268 = vmatpush1.bf16.msra.mxu0 0
  %1269 = vmatprep.subr.bf16.mxu0 0
  %1270 = vmatpush1.bf16.msra.mxu0 0
  %1271 = vmatprep.subr.bf16.mxu0 0
  %1272 = vmatpush1.bf16.msra.mxu0 0
  %1273 = vmatprep.subr.bf16.mxu0 0
  %1274 = vmatpush1.bf16.msra.mxu0 0
  %1275 = vmatprep.subr.bf16.mxu0 0
  %1276 = vmatpush1.bf16.msra.mxu0 0
  %1277 = vmatprep.subr.bf16.mxu0 0
  %1278 = vmatpush1.bf16.msra.mxu0 0
  %1279 = vmatprep.subr.bf16.mxu0 0
  %1280 = vmatpush1.bf16.msra.mxu0 0
  %1281 = vmatprep.subr.bf16.mxu0 0
  %1282 = vmatpush1.bf16.msra.mxu0 0
  %1283 = vmatprep.subr.bf16.mxu0 0
  %1284 = vmatpush1.bf16.msra.mxu0 0
  %1285 = vmatprep.subr.bf16.mxu0 0
  %1286 = vmatpush1.bf16.msra.mxu0 0
  %1287 = vmatprep.mubr.bf16.mxu0 0
  %1288 = vmatmul.mubr.bf16.gmra.mrb[0].mxu0 %v1250
  %v1289 = vpop.f32.mrb[0].mxu0
  %v1290 = vadd.f32 0.0, %v1289
  %v1291 = vpop.f32.mrb[0].mxu0
  %v1292 = vpop.f32.mrb[0].mxu0
  %v1293 = vpop.f32.mrb[0].mxu0
  %1294 = vdwg.mxu0
  %1295 = vrot.lane.b32.xlu0 %v159, 64
  %v1296 = vpop.permute.xlu0 %1295
  %v1298 = vsel %vm957, %v1137, 0
  %v1301 = vsel %vm1155, %v1296, 0
  %1303 = vmatprep.subr.bf16.mxu0 0
  %1304 = vmatpush1.bf16.msra.mxu0 %v1301
  %1305 = vmatprep.subr.bf16.mxu0 0
  %1306 = vmatpush1.bf16.msra.mxu0 0
  %1307 = vmatprep.subr.bf16.mxu0 0
  %1308 = vmatpush1.bf16.msra.mxu0 0
  %1309 = vmatprep.subr.bf16.mxu0 0
  %1310 = vmatpush1.bf16.msra.mxu0 0
  %1311 = vmatprep.subr.bf16.mxu0 0
  %1312 = vmatpush1.bf16.msra.mxu0 0
  %1313 = vmatprep.subr.bf16.mxu0 0
  %1314 = vmatpush1.bf16.msra.mxu0 0
  %1315 = vmatprep.subr.bf16.mxu0 0
  %1316 = vmatpush1.bf16.msra.mxu0 0
  %1317 = vmatprep.subr.bf16.mxu0 0
  %1318 = vmatpush1.bf16.msra.mxu0 0
  %1319 = vmatprep.subr.bf16.mxu0 0
  %1320 = vmatpush1.bf16.msra.mxu0 0
  %1321 = vmatprep.subr.bf16.mxu0 0
  %1322 = vmatpush1.bf16.msra.mxu0 0
  %1323 = vmatprep.subr.bf16.mxu0 0
  %1324 = vmatpush1.bf16.msra.mxu0 0
  %1325 = vmatprep.subr.bf16.mxu0 0
  %1326 = vmatpush1.bf16.msra.mxu0 0
  %1327 = vmatprep.subr.bf16.mxu0 0
  %1328 = vmatpush1.bf16.msra.mxu0 0
  %1329 = vmatprep.subr.bf16.mxu0 0
  %1330 = vmatpush1.bf16.msra.mxu0 0
  %1331 = vmatprep.subr.bf16.mxu0 0
  %1332 = vmatpush1.bf16.msra.mxu0 0
  %1333 = vmatprep.subr.bf16.mxu0 0
  %1334 = vmatpush1.bf16.msra.mxu0 0
  %1335 = vmatprep.mubr.bf16.mxu0 0
  %1336 = vmatmul.mubr.bf16.gmra.mrb[0].mxu0 %v1298
  %v1337 = vpop.f32.mrb[0].mxu0
  %v1338 = vadd.f32 0.0, %v1337
  %v1339 = vpop.f32.mrb[0].mxu0
  %v1340 = vpop.f32.mrb[0].mxu0
  %v1341 = vpop.f32.mrb[0].mxu0
  %1342 = vdwg.mxu0
  %1343 = vrot.lane.b32.xlu0 %v160, 64
  %v1344 = vpop.permute.xlu0 %1343
  %v1346 = vsel %vm957, %v1138, 0
  %v1349 = vsel %vm1155, %v1344, 0
  %1351 = vmatprep.subr.bf16.mxu0 0
  %1352 = vmatpush1.bf16.msra.mxu0 %v1349
  %1353 = vmatprep.subr.bf16.mxu0 0
  %1354 = vmatpush1.bf16.msra.mxu0 0
  %1355 = vmatprep.subr.bf16.mxu0 0
  %1356 = vmatpush1.bf16.msra.mxu0 0
  %1357 = vmatprep.subr.bf16.mxu0 0
  %1358 = vmatpush1.bf16.msra.mxu0 0
  %1359 = vmatprep.subr.bf16.mxu0 0
  %1360 = vmatpush1.bf16.msra.mxu0 0
  %1361 = vmatprep.subr.bf16.mxu0 0
  %1362 = vmatpush1.bf16.msra.mxu0 0
  %1363 = vmatprep.subr.bf16.mxu0 0
  %1364 = vmatpush1.bf16.msra.mxu0 0
  %1365 = vmatprep.subr.bf16.mxu0 0
  %1366 = vmatpush1.bf16.msra.mxu0 0
  %1367 = vmatprep.subr.bf16.mxu0 0
  %1368 = vmatpush1.bf16.msra.mxu0 0
  %1369 = vmatprep.subr.bf16.mxu0 0
  %1370 = vmatpush1.bf16.msra.mxu0 0
  %1371 = vmatprep.subr.bf16.mxu0 0
  %1372 = vmatpush1.bf16.msra.mxu0 0
  %1373 = vmatprep.subr.bf16.mxu0 0
  %1374 = vmatpush1.bf16.msra.mxu0 0
  %1375 = vmatprep.subr.bf16.mxu0 0
  %1376 = vmatpush1.bf16.msra.mxu0 0
  %1377 = vmatprep.subr.bf16.mxu0 0
  %1378 = vmatpush1.bf16.msra.mxu0 0
  %1379 = vmatprep.subr.bf16.mxu0 0
  %1380 = vmatpush1.bf16.msra.mxu0 0
  %1381 = vmatprep.subr.bf16.mxu0 0
  %1382 = vmatpush1.bf16.msra.mxu0 0
  %1383 = vmatprep.mubr.bf16.mxu0 0
  %1384 = vmatmul.mubr.bf16.gmra.mrb[0].mxu0 %v1346
  %v1385 = vpop.f32.mrb[0].mxu0
  %v1386 = vadd.f32 0.0, %v1385
  %v1387 = vpop.f32.mrb[0].mxu0
  %v1388 = vpop.f32.mrb[0].mxu0
  %v1389 = vpop.f32.mrb[0].mxu0
  %1390 = vdwg.mxu0
  %1391 = vrot.lane.b32.xlu0 %v161, 64
  %v1392 = vpop.permute.xlu0 %1391
  %v1394 = vsel %vm957, %v1139, 0
  %v1397 = vsel %vm1155, %v1392, 0
  %1399 = vmatprep.subr.bf16.mxu0 0
  %1400 = vmatpush1.bf16.msra.mxu0 %v1397
  %1401 = vmatprep.subr.bf16.mxu0 0
  %1402 = vmatpush1.bf16.msra.mxu0 0
  %1403 = vmatprep.subr.bf16.mxu0 0
  %1404 = vmatpush1.bf16.msra.mxu0 0
  %1405 = vmatprep.subr.bf16.mxu0 0
  %1406 = vmatpush1.bf16.msra.mxu0 0
  %1407 = vmatprep.subr.bf16.mxu0 0
  %1408 = vmatpush1.bf16.msra.mxu0 0
  %1409 = vmatprep.subr.bf16.mxu0 0
  %1410 = vmatpush1.bf16.msra.mxu0 0
  %1411 = vmatprep.subr.bf16.mxu0 0
  %1412 = vmatpush1.bf16.msra.mxu0 0
  %1413 = vmatprep.subr.bf16.mxu0 0
  %1414 = vmatpush1.bf16.msra.mxu0 0
  %1415 = vmatprep.subr.bf16.mxu0 0
  %1416 = vmatpush1.bf16.msra.mxu0 0
  %1417 = vmatprep.subr.bf16.mxu0 0
  %1418 = vmatpush1.bf16.msra.mxu0 0
  %1419 = vmatprep.subr.bf16.mxu0 0
  %1420 = vmatpush1.bf16.msra.mxu0 0
  %1421 = vmatprep.subr.bf16.mxu0 0
  %1422 = vmatpush1.bf16.msra.mxu0 0
  %1423 = vmatprep.subr.bf16.mxu0 0
  %1424 = vmatpush1.bf16.msra.mxu0 0
  %1425 = vmatprep.subr.bf16.mxu0 0
  %1426 = vmatpush1.bf16.msra.mxu0 0
  %1427 = vmatprep.subr.bf16.mxu0 0
  %1428 = vmatpush1.bf16.msra.mxu0 0
  %1429 = vmatprep.subr.bf16.mxu0 0
  %1430 = vmatpush1.bf16.msra.mxu0 0
  %1431 = vmatprep.mubr.bf16.mxu0 0
  %1432 = vmatmul.mubr.bf16.gmra.mrb[0].mxu0 %v1394
  %v1433 = vpop.f32.mrb[0].mxu0
  %v1434 = vadd.f32 0.0, %v1433
  %v1435 = vpop.f32.mrb[0].mxu0
  %v1436 = vpop.f32.mrb[0].mxu0
  %v1437 = vpop.f32.mrb[0].mxu0
  %1438 = vdwg.mxu0
  %1439 = vrot.lane.b32.xlu0 %v162, 64
  %v1440 = vpop.permute.xlu0 %1439
  %v1442 = vsel %vm957, %v1140, 0
  %v1445 = vsel %vm1155, %v1440, 0
  %1447 = vmatprep.subr.bf16.mxu0 0
  %1448 = vmatpush1.bf16.msra.mxu0 %v1445
  %1449 = vmatprep.subr.bf16.mxu0 0
  %1450 = vmatpush1.bf16.msra.mxu0 0
  %1451 = vmatprep.subr.bf16.mxu0 0
  %1452 = vmatpush1.bf16.msra.mxu0 0
  %1453 = vmatprep.subr.bf16.mxu0 0
  %1454 = vmatpush1.bf16.msra.mxu0 0
  %1455 = vmatprep.subr.bf16.mxu0 0
  %1456 = vmatpush1.bf16.msra.mxu0 0
  %1457 = vmatprep.subr.bf16.mxu0 0
  %1458 = vmatpush1.bf16.msra.mxu0 0
  %1459 = vmatprep.subr.bf16.mxu0 0
  %1460 = vmatpush1.bf16.msra.mxu0 0
  %1461 = vmatprep.subr.bf16.mxu0 0
  %1462 = vmatpush1.bf16.msra.mxu0 0
  %1463 = vmatprep.subr.bf16.mxu0 0
  %1464 = vmatpush1.bf16.msra.mxu0 0
  %1465 = vmatprep.subr.bf16.mxu0 0
  %1466 = vmatpush1.bf16.msra.mxu0 0
  %1467 = vmatprep.subr.bf16.mxu0 0
  %1468 = vmatpush1.bf16.msra.mxu0 0
  %1469 = vmatprep.subr.bf16.mxu0 0
  %1470 = vmatpush1.bf16.msra.mxu0 0
  %1471 = vmatprep.subr.bf16.mxu0 0
  %1472 = vmatpush1.bf16.msra.mxu0 0
  %1473 = vmatprep.subr.bf16.mxu0 0
  %1474 = vmatpush1.bf16.msra.mxu0 0
  %1475 = vmatprep.subr.bf16.mxu0 0
  %1476 = vmatpush1.bf16.msra.mxu0 0
  %1477 = vmatprep.subr.bf16.mxu0 0
  %1478 = vmatpush1.bf16.msra.mxu0 0
  %1479 = vmatprep.mubr.bf16.mxu0 0
  %1480 = vmatmul.mubr.bf16.gmra.mrb[0].mxu0 %v1442
  %v1481 = vpop.f32.mrb[0].mxu0
  %v1482 = vadd.f32 0.0, %v1481
  %v1483 = vpop.f32.mrb[0].mxu0
  %v1484 = vpop.f32.mrb[0].mxu0
  %v1485 = vpop.f32.mrb[0].mxu0
  %1486 = vdwg.mxu0
  %1487 = vrot.lane.b32.xlu0 %v163, 64
  %v1488 = vpop.permute.xlu0 %1487
  %v1490 = vsel %vm957, %v1141, 0
  %v1493 = vsel %vm1155, %v1488, 0
  %1495 = vmatprep.subr.bf16.mxu0 0
  %1496 = vmatpush1.bf16.msra.mxu0 %v1493
  %1497 = vmatprep.subr.bf16.mxu0 0
  %1498 = vmatpush1.bf16.msra.mxu0 0
  %1499 = vmatprep.subr.bf16.mxu0 0
  %1500 = vmatpush1.bf16.msra.mxu0 0
  %1501 = vmatprep.subr.bf16.mxu0 0
  %1502 = vmatpush1.bf16.msra.mxu0 0
  %1503 = vmatprep.subr.bf16.mxu0 0
  %1504 = vmatpush1.bf16.msra.mxu0 0
  %1505 = vmatprep.subr.bf16.mxu0 0
  %1506 = vmatpush1.bf16.msra.mxu0 0
  %1507 = vmatprep.subr.bf16.mxu0 0
  %1508 = vmatpush1.bf16.msra.mxu0 0
  %1509 = vmatprep.subr.bf16.mxu0 0
  %1510 = vmatpush1.bf16.msra.mxu0 0
  %1511 = vmatprep.subr.bf16.mxu0 0
  %1512 = vmatpush1.bf16.msra.mxu0 0
  %1513 = vmatprep.subr.bf16.mxu0 0
  %1514 = vmatpush1.bf16.msra.mxu0 0
  %1515 = vmatprep.subr.bf16.mxu0 0
  %1516 = vmatpush1.bf16.msra.mxu0 0
  %1517 = vmatprep.subr.bf16.mxu0 0
  %1518 = vmatpush1.bf16.msra.mxu0 0
  %1519 = vmatprep.subr.bf16.mxu0 0
  %1520 = vmatpush1.bf16.msra.mxu0 0
  %1521 = vmatprep.subr.bf16.mxu0 0
  %1522 = vmatpush1.bf16.msra.mxu0 0
  %1523 = vmatprep.subr.bf16.mxu0 0
  %1524 = vmatpush1.bf16.msra.mxu0 0
  %1525 = vmatprep.subr.bf16.mxu0 0
  %1526 = vmatpush1.bf16.msra.mxu0 0
  %1527 = vmatprep.mubr.bf16.mxu0 0
  %1528 = vmatmul.mubr.bf16.gmra.mrb[0].mxu0 %v1490
  %v1529 = vpop.f32.mrb[0].mxu0
  %v1530 = vadd.f32 0.0, %v1529
  %v1531 = vpop.f32.mrb[0].mxu0
  %v1532 = vpop.f32.mrb[0].mxu0
  %v1533 = vpop.f32.mrb[0].mxu0
  %1534 = vdwg.mxu0
  %1535 = vrot.lane.b32.xlu0 %v164, 64
  %v1536 = vpop.permute.xlu0 %1535
  %v1538 = vsel %vm957, %v1142, 0
  %v1541 = vsel %vm1155, %v1536, 0
  %1543 = vmatprep.subr.bf16.mxu0 0
  %1544 = vmatpush1.bf16.msra.mxu0 %v1541
  %1545 = vmatprep.subr.bf16.mxu0 0
  %1546 = vmatpush1.bf16.msra.mxu0 0
  %1547 = vmatprep.subr.bf16.mxu0 0
  %1548 = vmatpush1.bf16.msra.mxu0 0
  %1549 = vmatprep.subr.bf16.mxu0 0
  %1550 = vmatpush1.bf16.msra.mxu0 0
  %1551 = vmatprep.subr.bf16.mxu0 0
  %1552 = vmatpush1.bf16.msra.mxu0 0
  %1553 = vmatprep.subr.bf16.mxu0 0
  %1554 = vmatpush1.bf16.msra.mxu0 0
  %1555 = vmatprep.subr.bf16.mxu0 0
  %1556 = vmatpush1.bf16.msra.mxu0 0
  %1557 = vmatprep.subr.bf16.mxu0 0
  %1558 = vmatpush1.bf16.msra.mxu0 0
  %1559 = vmatprep.subr.bf16.mxu0 0
  %1560 = vmatpush1.bf16.msra.mxu0 0
  %1561 = vmatprep.subr.bf16.mxu0 0
  %1562 = vmatpush1.bf16.msra.mxu0 0
  %1563 = vmatprep.subr.bf16.mxu0 0
  %1564 = vmatpush1.bf16.msra.mxu0 0
  %1565 = vmatprep.subr.bf16.mxu0 0
  %1566 = vmatpush1.bf16.msra.mxu0 0
  %1567 = vmatprep.subr.bf16.mxu0 0
  %1568 = vmatpush1.bf16.msra.mxu0 0
  %1569 = vmatprep.subr.bf16.mxu0 0
  %1570 = vmatpush1.bf16.msra.mxu0 0
  %1571 = vmatprep.subr.bf16.mxu0 0
  %1572 = vmatpush1.bf16.msra.mxu0 0
  %1573 = vmatprep.subr.bf16.mxu0 0
  %1574 = vmatpush1.bf16.msra.mxu0 0
  %1575 = vmatprep.mubr.bf16.mxu0 0
  %1576 = vmatmul.mubr.bf16.gmra.mrb[0].mxu0 %v1538
  %v1577 = vpop.f32.mrb[0].mxu0
  %v1578 = vadd.f32 0.0, %v1577
  %v1579 = vpop.f32.mrb[0].mxu0
  %v1580 = vpop.f32.mrb[0].mxu0
  %v1581 = vpop.f32.mrb[0].mxu0
  %1582 = vdwg.mxu0
  %1583 = vrot.lane.b32.xlu0 %v165, 64
  %v1584 = vpop.permute.xlu0 %1583
  %v1586 = vsel %vm957, %v1143, 0
  %v1589 = vsel %vm1155, %v1584, 0
  %1591 = vmatprep.subr.bf16.mxu0 0
  %1592 = vmatpush1.bf16.msra.mxu0 %v1589
  %1593 = vmatprep.subr.bf16.mxu0 0
  %1594 = vmatpush1.bf16.msra.mxu0 0
  %1595 = vmatprep.subr.bf16.mxu0 0
  %1596 = vmatpush1.bf16.msra.mxu0 0
  %1597 = vmatprep.subr.bf16.mxu0 0
  %1598 = vmatpush1.bf16.msra.mxu0 0
  %1599 = vmatprep.subr.bf16.mxu0 0
  %1600 = vmatpush1.bf16.msra.mxu0 0
  %1601 = vmatprep.subr.bf16.mxu0 0
  %1602 = vmatpush1.bf16.msra.mxu0 0
  %1603 = vmatprep.subr.bf16.mxu0 0
  %1604 = vmatpush1.bf16.msra.mxu0 0
  %1605 = vmatprep.subr.bf16.mxu0 0
  %1606 = vmatpush1.bf16.msra.mxu0 0
  %1607 = vmatprep.subr.bf16.mxu0 0
  %1608 = vmatpush1.bf16.msra.mxu0 0
  %1609 = vmatprep.subr.bf16.mxu0 0
  %1610 = vmatpush1.bf16.msra.mxu0 0
  %1611 = vmatprep.subr.bf16.mxu0 0
  %1612 = vmatpush1.bf16.msra.mxu0 0
  %1613 = vmatprep.subr.bf16.mxu0 0
  %1614 = vmatpush1.bf16.msra.mxu0 0
  %1615 = vmatprep.subr.bf16.mxu0 0
  %1616 = vmatpush1.bf16.msra.mxu0 0
  %1617 = vmatprep.subr.bf16.mxu0 0
  %1618 = vmatpush1.bf16.msra.mxu0 0
  %1619 = vmatprep.subr.bf16.mxu0 0
  %1620 = vmatpush1.bf16.msra.mxu0 0
  %1621 = vmatprep.subr.bf16.mxu0 0
  %1622 = vmatpush1.bf16.msra.mxu0 0
  %1623 = vmatprep.mubr.bf16.mxu0 0
  %1624 = vmatmul.mubr.bf16.gmra.mrb[0].mxu0 %v1586
  %v1625 = vpop.f32.mrb[0].mxu0
  %v1626 = vadd.f32 0.0, %v1625
  %v1627 = vpop.f32.mrb[0].mxu0
  %v1628 = vpop.f32.mrb[0].mxu0
  %v1629 = vpop.f32.mrb[0].mxu0
  %1630 = vdwg.mxu0
  %1631 = vrot.lane.b32.xlu0 %v166, 64
  %v1632 = vpop.permute.xlu0 %1631
  %v1634 = vsel %vm957, %v1144, 0
  %v1637 = vsel %vm1155, %v1632, 0
  %1639 = vmatprep.subr.bf16.mxu0 0
  %1640 = vmatpush1.bf16.msra.mxu0 %v1637
  %1641 = vmatprep.subr.bf16.mxu0 0
  %1642 = vmatpush1.bf16.msra.mxu0 0
  %1643 = vmatprep.subr.bf16.mxu0 0
  %1644 = vmatpush1.bf16.msra.mxu0 0
  %1645 = vmatprep.subr.bf16.mxu0 0
  %1646 = vmatpush1.bf16.msra.mxu0 0
  %1647 = vmatprep.subr.bf16.mxu0 0
  %1648 = vmatpush1.bf16.msra.mxu0 0
  %1649 = vmatprep.subr.bf16.mxu0 0
  %1650 = vmatpush1.bf16.msra.mxu0 0
  %1651 = vmatprep.subr.bf16.mxu0 0
  %1652 = vmatpush1.bf16.msra.mxu0 0
  %1653 = vmatprep.subr.bf16.mxu0 0
  %1654 = vmatpush1.bf16.msra.mxu0 0
  %1655 = vmatprep.subr.bf16.mxu0 0
  %1656 = vmatpush1.bf16.msra.mxu0 0
  %1657 = vmatprep.subr.bf16.mxu0 0
  %1658 = vmatpush1.bf16.msra.mxu0 0
  %1659 = vmatprep.subr.bf16.mxu0 0
  %1660 = vmatpush1.bf16.msra.mxu0 0
  %1661 = vmatprep.subr.bf16.mxu0 0
  %1662 = vmatpush1.bf16.msra.mxu0 0
  %1663 = vmatprep.subr.bf16.mxu0 0
  %1664 = vmatpush1.bf16.msra.mxu0 0
  %1665 = vmatprep.subr.bf16.mxu0 0
  %1666 = vmatpush1.bf16.msra.mxu0 0
  %1667 = vmatprep.subr.bf16.mxu0 0
  %1668 = vmatpush1.bf16.msra.mxu0 0
  %1669 = vmatprep.subr.bf16.mxu0 0
  %1670 = vmatpush1.bf16.msra.mxu0 0
  %1671 = vmatprep.mubr.bf16.mxu0 0
  %1672 = vmatmul.mubr.bf16.gmra.mrb[0].mxu0 %v1634
  %v1673 = vpop.f32.mrb[0].mxu0
  %v1674 = vadd.f32 0.0, %v1673
  %v1675 = vpop.f32.mrb[0].mxu0
  %v1676 = vpop.f32.mrb[0].mxu0
  %v1677 = vpop.f32.mrb[0].mxu0
  %1678 = vdwg.mxu0
  %1679 = vrot.lane.b32.xlu0 %v167, 64
  %v1680 = vpop.permute.xlu0 %1679
  %v1682 = vsel %vm957, %v1145, 0
  %v1685 = vsel %vm1155, %v1680, 0
  %1687 = vmatprep.subr.bf16.mxu0 0
  %1688 = vmatpush1.bf16.msra.mxu0 %v1685
  %1689 = vmatprep.subr.bf16.mxu0 0
  %1690 = vmatpush1.bf16.msra.mxu0 0
  %1691 = vmatprep.subr.bf16.mxu0 0
  %1692 = vmatpush1.bf16.msra.mxu0 0
  %1693 = vmatprep.subr.bf16.mxu0 0
  %1694 = vmatpush1.bf16.msra.mxu0 0
  %1695 = vmatprep.subr.bf16.mxu0 0
  %1696 = vmatpush1.bf16.msra.mxu0 0
  %1697 = vmatprep.subr.bf16.mxu0 0
  %1698 = vmatpush1.bf16.msra.mxu0 0
  %1699 = vmatprep.subr.bf16.mxu0 0
  %1700 = vmatpush1.bf16.msra.mxu0 0
  %1701 = vmatprep.subr.bf16.mxu0 0
  %1702 = vmatpush1.bf16.msra.mxu0 0
  %1703 = vmatprep.subr.bf16.mxu0 0
  %1704 = vmatpush1.bf16.msra.mxu0 0
  %1705 = vmatprep.subr.bf16.mxu0 0
  %1706 = vmatpush1.bf16.msra.mxu0 0
  %1707 = vmatprep.subr.bf16.mxu0 0
  %1708 = vmatpush1.bf16.msra.mxu0 0
  %1709 = vmatprep.subr.bf16.mxu0 0
  %1710 = vmatpush1.bf16.msra.mxu0 0
  %1711 = vmatprep.subr.bf16.mxu0 0
  %1712 = vmatpush1.bf16.msra.mxu0 0
  %1713 = vmatprep.subr.bf16.mxu0 0
  %1714 = vmatpush1.bf16.msra.mxu0 0
  %1715 = vmatprep.subr.bf16.mxu0 0
  %1716 = vmatpush1.bf16.msra.mxu0 0
  %1717 = vmatprep.subr.bf16.mxu0 0
  %1718 = vmatpush1.bf16.msra.mxu0 0
  %1719 = vmatprep.mubr.bf16.mxu0 0
  %1720 = vmatmul.mubr.bf16.gmra.mrb[0].mxu0 %v1682
  %v1721 = vpop.f32.mrb[0].mxu0
  %v1722 = vadd.f32 0.0, %v1721
  %v1723 = vpop.f32.mrb[0].mxu0
  %v1724 = vpop.f32.mrb[0].mxu0
  %v1725 = vpop.f32.mrb[0].mxu0
  %1726 = vdwg.mxu0
  %1727 = vrot.lane.b32.xlu0 %v168, 64
  %v1728 = vpop.permute.xlu0 %1727
  %v1730 = vsel %vm957, %v1146, 0
  %v1733 = vsel %vm1155, %v1728, 0
  %1735 = vmatprep.subr.bf16.mxu0 0
  %1736 = vmatpush1.bf16.msra.mxu0 %v1733
  %1737 = vmatprep.subr.bf16.mxu0 0
  %1738 = vmatpush1.bf16.msra.mxu0 0
  %1739 = vmatprep.subr.bf16.mxu0 0
  %1740 = vmatpush1.bf16.msra.mxu0 0
  %1741 = vmatprep.subr.bf16.mxu0 0
  %1742 = vmatpush1.bf16.msra.mxu0 0
  %1743 = vmatprep.subr.bf16.mxu0 0
  %1744 = vmatpush1.bf16.msra.mxu0 0
  %1745 = vmatprep.subr.bf16.mxu0 0
  %1746 = vmatpush1.bf16.msra.mxu0 0
  %1747 = vmatprep.subr.bf16.mxu0 0
  %1748 = vmatpush1.bf16.msra.mxu0 0
  %1749 = vmatprep.subr.bf16.mxu0 0
  %1750 = vmatpush1.bf16.msra.mxu0 0
  %1751 = vmatprep.subr.bf16.mxu0 0
  %1752 = vmatpush1.bf16.msra.mxu0 0
  %1753 = vmatprep.subr.bf16.mxu0 0
  %1754 = vmatpush1.bf16.msra.mxu0 0
  %1755 = vmatprep.subr.bf16.mxu0 0
  %1756 = vmatpush1.bf16.msra.mxu0 0
  %1757 = vmatprep.subr.bf16.mxu0 0
  %1758 = vmatpush1.bf16.msra.mxu0 0
  %1759 = vmatprep.subr.bf16.mxu0 0
  %1760 = vmatpush1.bf16.msra.mxu0 0
  %1761 = vmatprep.subr.bf16.mxu0 0
  %1762 = vmatpush1.bf16.msra.mxu0 0
  %1763 = vmatprep.subr.bf16.mxu0 0
  %1764 = vmatpush1.bf16.msra.mxu0 0
  %1765 = vmatprep.subr.bf16.mxu0 0
  %1766 = vmatpush1.bf16.msra.mxu0 0
  %1767 = vmatprep.mubr.bf16.mxu0 0
  %1768 = vmatmul.mubr.bf16.gmra.mrb[0].mxu0 %v1730
  %v1769 = vpop.f32.mrb[0].mxu0
  %v1770 = vadd.f32 0.0, %v1769
  %v1771 = vpop.f32.mrb[0].mxu0
  %v1772 = vpop.f32.mrb[0].mxu0
  %v1773 = vpop.f32.mrb[0].mxu0
  %1774 = vdwg.mxu0
  %1775 = vrot.lane.b32.xlu0 %v169, 64
  %v1776 = vpop.permute.xlu0 %1775
  %v1778 = vsel %vm957, %v1147, 0
  %v1781 = vsel %vm1155, %v1776, 0
  %1783 = vmatprep.subr.bf16.mxu0 0
  %1784 = vmatpush1.bf16.msra.mxu0 %v1781
  %1785 = vmatprep.subr.bf16.mxu0 0
  %1786 = vmatpush1.bf16.msra.mxu0 0
  %1787 = vmatprep.subr.bf16.mxu0 0
  %1788 = vmatpush1.bf16.msra.mxu0 0
  %1789 = vmatprep.subr.bf16.mxu0 0
  %1790 = vmatpush1.bf16.msra.mxu0 0
  %1791 = vmatprep.subr.bf16.mxu0 0
  %1792 = vmatpush1.bf16.msra.mxu0 0
  %1793 = vmatprep.subr.bf16.mxu0 0
  %1794 = vmatpush1.bf16.msra.mxu0 0
  %1795 = vmatprep.subr.bf16.mxu0 0
  %1796 = vmatpush1.bf16.msra.mxu0 0
  %1797 = vmatprep.subr.bf16.mxu0 0
  %1798 = vmatpush1.bf16.msra.mxu0 0
  %1799 = vmatprep.subr.bf16.mxu0 0
  %1800 = vmatpush1.bf16.msra.mxu0 0
  %1801 = vmatprep.subr.bf16.mxu0 0
  %1802 = vmatpush1.bf16.msra.mxu0 0
  %1803 = vmatprep.subr.bf16.mxu0 0
  %1804 = vmatpush1.bf16.msra.mxu0 0
  %1805 = vmatprep.subr.bf16.mxu0 0
  %1806 = vmatpush1.bf16.msra.mxu0 0
  %1807 = vmatprep.subr.bf16.mxu0 0
  %1808 = vmatpush1.bf16.msra.mxu0 0
  %1809 = vmatprep.subr.bf16.mxu0 0
  %1810 = vmatpush1.bf16.msra.mxu0 0
  %1811 = vmatprep.subr.bf16.mxu0 0
  %1812 = vmatpush1.bf16.msra.mxu0 0
  %1813 = vmatprep.subr.bf16.mxu0 0
  %1814 = vmatpush1.bf16.msra.mxu0 0
  %1815 = vmatprep.mubr.bf16.mxu0 0
  %1816 = vmatmul.mubr.bf16.gmra.mrb[0].mxu0 %v1778
  %v1817 = vpop.f32.mrb[0].mxu0
  %v1818 = vadd.f32 0.0, %v1817
  %v1819 = vpop.f32.mrb[0].mxu0
  %v1820 = vpop.f32.mrb[0].mxu0
  %v1821 = vpop.f32.mrb[0].mxu0
  %1822 = vdwg.mxu0
  %1823 = vrot.lane.b32.xlu0 %v170, 64
  %v1824 = vpop.permute.xlu0 %1823
  %v1826 = vsel %vm957, %v1148, 0
  %v1829 = vsel %vm1155, %v1824, 0
  %1831 = vmatprep.subr.bf16.mxu0 0
  %1832 = vmatpush1.bf16.msra.mxu0 %v1829
  %1833 = vmatprep.subr.bf16.mxu0 0
  %1834 = vmatpush1.bf16.msra.mxu0 0
  %1835 = vmatprep.subr.bf16.mxu0 0
  %1836 = vmatpush1.bf16.msra.mxu0 0
  %1837 = vmatprep.subr.bf16.mxu0 0
  %1838 = vmatpush1.bf16.msra.mxu0 0
  %1839 = vmatprep.subr.bf16.mxu0 0
  %1840 = vmatpush1.bf16.msra.mxu0 0
  %1841 = vmatprep.subr.bf16.mxu0 0
  %1842 = vmatpush1.bf16.msra.mxu0 0
  %1843 = vmatprep.subr.bf16.mxu0 0
  %1844 = vmatpush1.bf16.msra.mxu0 0
  %1845 = vmatprep.subr.bf16.mxu0 0
  %1846 = vmatpush1.bf16.msra.mxu0 0
  %1847 = vmatprep.subr.bf16.mxu0 0
  %1848 = vmatpush1.bf16.msra.mxu0 0
  %1849 = vmatprep.subr.bf16.mxu0 0
  %1850 = vmatpush1.bf16.msra.mxu0 0
  %1851 = vmatprep.subr.bf16.mxu0 0
  %1852 = vmatpush1.bf16.msra.mxu0 0
  %1853 = vmatprep.subr.bf16.mxu0 0
  %1854 = vmatpush1.bf16.msra.mxu0 0
  %1855 = vmatprep.subr.bf16.mxu0 0
  %1856 = vmatpush1.bf16.msra.mxu0 0
  %1857 = vmatprep.subr.bf16.mxu0 0
  %1858 = vmatpush1.bf16.msra.mxu0 0
  %1859 = vmatprep.subr.bf16.mxu0 0
  %1860 = vmatpush1.bf16.msra.mxu0 0
  %1861 = vmatprep.subr.bf16.mxu0 0
  %1862 = vmatpush1.bf16.msra.mxu0 0
  %1863 = vmatprep.mubr.bf16.mxu0 0
  %1864 = vmatmul.mubr.bf16.gmra.mrb[0].mxu0 %v1826
  %v1865 = vpop.f32.mrb[0].mxu0
  %v1866 = vadd.f32 0.0, %v1865
  %v1867 = vpop.f32.mrb[0].mxu0
  %v1868 = vpop.f32.mrb[0].mxu0
  %v1869 = vpop.f32.mrb[0].mxu0
  %1870 = vdwg.mxu0
  %1871 = vrot.lane.b32.xlu0 %v171, 64
  %v1872 = vpop.permute.xlu0 %1871
  %v1874 = vsel %vm957, %v1149, 0
  %v1877 = vsel %vm1155, %v1872, 0
  %1879 = vmatprep.subr.bf16.mxu0 0
  %1880 = vmatpush1.bf16.msra.mxu0 %v1877
  %1881 = vmatprep.subr.bf16.mxu0 0
  %1882 = vmatpush1.bf16.msra.mxu0 0
  %1883 = vmatprep.subr.bf16.mxu0 0
  %1884 = vmatpush1.bf16.msra.mxu0 0
  %1885 = vmatprep.subr.bf16.mxu0 0
  %1886 = vmatpush1.bf16.msra.mxu0 0
  %1887 = vmatprep.subr.bf16.mxu0 0
  %1888 = vmatpush1.bf16.msra.mxu0 0
  %1889 = vmatprep.subr.bf16.mxu0 0
  %1890 = vmatpush1.bf16.msra.mxu0 0
  %1891 = vmatprep.subr.bf16.mxu0 0
  %1892 = vmatpush1.bf16.msra.mxu0 0
  %1893 = vmatprep.subr.bf16.mxu0 0
  %1894 = vmatpush1.bf16.msra.mxu0 0
  %1895 = vmatprep.subr.bf16.mxu0 0
  %1896 = vmatpush1.bf16.msra.mxu0 0
  %1897 = vmatprep.subr.bf16.mxu0 0
  %1898 = vmatpush1.bf16.msra.mxu0 0
  %1899 = vmatprep.subr.bf16.mxu0 0
  %1900 = vmatpush1.bf16.msra.mxu0 0
  %1901 = vmatprep.subr.bf16.mxu0 0
  %1902 = vmatpush1.bf16.msra.mxu0 0
  %1903 = vmatprep.subr.bf16.mxu0 0
  %1904 = vmatpush1.bf16.msra.mxu0 0
  %1905 = vmatprep.subr.bf16.mxu0 0
  %1906 = vmatpush1.bf16.msra.mxu0 0
  %1907 = vmatprep.subr.bf16.mxu0 0
  %1908 = vmatpush1.bf16.msra.mxu0 0
  %1909 = vmatprep.subr.bf16.mxu0 0
  %1910 = vmatpush1.bf16.msra.mxu0 0
  %1911 = vmatprep.mubr.bf16.mxu0 0
  %1912 = vmatmul.mubr.bf16.gmra.mrb[0].mxu0 %v1874
  %v1913 = vpop.f32.mrb[0].mxu0
  %v1914 = vadd.f32 0.0, %v1913
  %v1915 = vpop.f32.mrb[0].mxu0
  %v1916 = vpop.f32.mrb[0].mxu0
  %v1917 = vpop.f32.mrb[0].mxu0
  %1918 = vdwg.mxu0
  %v1919 = vpack.c.bf16 %v1242, %v1194
  %v1920 = vpack.c.bf16 %v1338, %v1290
  %v1921 = vpack.c.bf16 %v1434, %v1386
  %v1922 = vpack.c.bf16 %v1530, %v1482
  %v1923 = vpack.c.bf16 %v1626, %v1578
  %v1924 = vpack.c.bf16 %v1722, %v1674
  %v1925 = vpack.c.bf16 %v1818, %v1770
  %v1926 = vpack.c.bf16 %v1914, %v1866
  %v1927 = vld [vmem:[%s2] sm:$0xf]
  %v1928 = vld [vmem:[%s2 + $0x4] sm:$0xf]
  %v1929 = vld [vmem:[%s2 + $0x8] sm:$0xf]
  %v1930 = vld [vmem:[%s2 + $0xc] sm:$0xf]
  %v1933 = vunpack.c.l.b16 %v1927
  %v1934 = vunpack.c.l.b16 %v1928
  %v1935 = vpack.c.b16 %v1934, %v1933
  %v1938 = vsel %vm175, %v1919, 0
  %v1941 = vsel %vm175, %v1920, 0
  %v1944 = vsel %vm175, %v1921, 0
  %v1947 = vsel %vm175, %v1922, 0
  %1949 = vmatprep.subr.bf16.mxu0 0
  %1950 = vmatpush1.bf16.msra.mxu0 %v1935
  %1951 = vmatprep.subr.bf16.mxu0 0
  %1952 = vmatpush1.bf16.msra.mxu0 0
  %1953 = vmatprep.subr.bf16.mxu0 0
  %1954 = vmatpush1.bf16.msra.mxu0 0
  %1955 = vmatprep.subr.bf16.mxu0 0
  %1956 = vmatpush1.bf16.msra.mxu0 0
  %1957 = vmatprep.subr.bf16.mxu0 0
  %1958 = vmatpush1.bf16.msra.mxu0 0
  %1959 = vmatprep.subr.bf16.mxu0 0
  %1960 = vmatpush1.bf16.msra.mxu0 0
  %1961 = vmatprep.subr.bf16.mxu0 0
  %1962 = vmatpush1.bf16.msra.mxu0 0
  %1963 = vmatprep.subr.bf16.mxu0 0
  %1964 = vmatpush1.bf16.msra.mxu0 0
  %1965 = vmatprep.subr.bf16.mxu0 0
  %1966 = vmatpush1.bf16.msra.mxu0 0
  %1967 = vmatprep.subr.bf16.mxu0 0
  %1968 = vmatpush1.bf16.msra.mxu0 0
  %1969 = vmatprep.subr.bf16.mxu0 0
  %1970 = vmatpush1.bf16.msra.mxu0 0
  %1971 = vmatprep.subr.bf16.mxu0 0
  %1972 = vmatpush1.bf16.msra.mxu0 0
  %1973 = vmatprep.subr.bf16.mxu0 0
  %1974 = vmatpush1.bf16.msra.mxu0 0
  %1975 = vmatprep.subr.bf16.mxu0 0
  %1976 = vmatpush1.bf16.msra.mxu0 0
  %1977 = vmatprep.subr.bf16.mxu0 0
  %1978 = vmatpush1.bf16.msra.mxu0 0
  %1979 = vmatprep.subr.bf16.mxu0 0
  %1980 = vmatpush1.bf16.msra.mxu0 0
  %1981 = vmatprep.mubr.bf16.mxu0 0
  %1982 = vmatmul.mubr.bf16.gmra.mrb[0].mxu0 %v1938
  %v1983 = vpop.f32.mrb[0].mxu0
  %v1984 = vadd.f32 0.0, %v1983
  %v1985 = vpop.f32.mrb[0].mxu0
  %v1986 = vpop.f32.mrb[0].mxu0
  %v1987 = vadd.f32 0.0, %v1986
  %v1988 = vpop.f32.mrb[0].mxu0
  %1989 = vmatprep.mubr.bf16.mxu0 0
  %1990 = vmatmul.mubr.bf16.gmra.mrb[0].mxu0 %v1941
  %v1991 = vpop.f32.mrb[0].mxu0
  %v1992 = vadd.f32 0.0, %v1991
  %v1993 = vpop.f32.mrb[0].mxu0
  %v1994 = vpop.f32.mrb[0].mxu0
  %v1995 = vadd.f32 0.0, %v1994
  %v1996 = vpop.f32.mrb[0].mxu0
  %1997 = vmatprep.mubr.bf16.mxu0 0
  %1998 = vmatmul.mubr.bf16.gmra.mrb[0].mxu0 %v1944
  %v1999 = vpop.f32.mrb[0].mxu0
  %v2000 = vadd.f32 0.0, %v1999
  %v2001 = vpop.f32.mrb[0].mxu0
  %v2002 = vpop.f32.mrb[0].mxu0
  %v2003 = vadd.f32 0.0, %v2002
  %v2004 = vpop.f32.mrb[0].mxu0
  %2005 = vmatprep.mubr.bf16.mxu0 0
  %2006 = vmatmul.mubr.bf16.gmra.mrb[0].mxu0 %v1947
  %v2007 = vpop.f32.mrb[0].mxu0
  %v2008 = vadd.f32 0.0, %v2007
  %v2009 = vpop.f32.mrb[0].mxu0
  %v2010 = vpop.f32.mrb[0].mxu0
  %v2011 = vadd.f32 0.0, %v2010
  %v2012 = vpop.f32.mrb[0].mxu0
  %2013 = vdwg.mxu0
  %v2016 = vunpack.c.l.b16 %v1929
  %v2017 = vunpack.c.l.b16 %v1930
  %v2018 = vpack.c.b16 %v2017, %v2016
  %v2021 = vsel %vm175, %v1923, 0
  %v2024 = vsel %vm175, %v1924, 0
  %v2027 = vsel %vm175, %v1925, 0
  %v2030 = vsel %vm175, %v1926, 0
  %2032 = vmatprep.subr.bf16.mxu0 0
  %2033 = vmatpush1.bf16.msra.mxu0 %v2018
  %2034 = vmatprep.subr.bf16.mxu0 0
  %2035 = vmatpush1.bf16.msra.mxu0 0
  %2036 = vmatprep.subr.bf16.mxu0 0
  %2037 = vmatpush1.bf16.msra.mxu0 0
  %2038 = vmatprep.subr.bf16.mxu0 0
  %2039 = vmatpush1.bf16.msra.mxu0 0
  %2040 = vmatprep.subr.bf16.mxu0 0
  %2041 = vmatpush1.bf16.msra.mxu0 0
  %2042 = vmatprep.subr.bf16.mxu0 0
  %2043 = vmatpush1.bf16.msra.mxu0 0
  %2044 = vmatprep.subr.bf16.mxu0 0
  %2045 = vmatpush1.bf16.msra.mxu0 0
  %2046 = vmatprep.subr.bf16.mxu0 0
  %2047 = vmatpush1.bf16.msra.mxu0 0
  %2048 = vmatprep.subr.bf16.mxu0 0
  %2049 = vmatpush1.bf16.msra.mxu0 0
  %2050 = vmatprep.subr.bf16.mxu0 0
  %2051 = vmatpush1.bf16.msra.mxu0 0
  %2052 = vmatprep.subr.bf16.mxu0 0
  %2053 = vmatpush1.bf16.msra.mxu0 0
  %2054 = vmatprep.subr.bf16.mxu0 0
  %2055 = vmatpush1.bf16.msra.mxu0 0
  %2056 = vmatprep.subr.bf16.mxu0 0
  %2057 = vmatpush1.bf16.msra.mxu0 0
  %2058 = vmatprep.subr.bf16.mxu0 0
  %2059 = vmatpush1.bf16.msra.mxu0 0
  %2060 = vmatprep.subr.bf16.mxu0 0
  %2061 = vmatpush1.bf16.msra.mxu0 0
  %2062 = vmatprep.subr.bf16.mxu0 0
  %2063 = vmatpush1.bf16.msra.mxu0 0
  %2064 = vmatprep.mubr.bf16.mxu0 0
  %2065 = vmatmul.mubr.bf16.gmra.mrb[0].mxu0 %v2021
  %v2066 = vpop.f32.mrb[0].mxu0
  %v2067 = vadd.f32 0.0, %v2066
  %v2068 = vpop.f32.mrb[0].mxu0
  %v2069 = vpop.f32.mrb[0].mxu0
  %v2070 = vadd.f32 0.0, %v2069
  %v2071 = vpop.f32.mrb[0].mxu0
  %2072 = vmatprep.mubr.bf16.mxu0 0
  %2073 = vmatmul.mubr.bf16.gmra.mrb[0].mxu0 %v2024
  %v2074 = vpop.f32.mrb[0].mxu0
  %v2075 = vadd.f32 0.0, %v2074
  %v2076 = vpop.f32.mrb[0].mxu0
  %v2077 = vpop.f32.mrb[0].mxu0
  %v2078 = vadd.f32 0.0, %v2077
  %v2079 = vpop.f32.mrb[0].mxu0
  %2080 = vmatprep.mubr.bf16.mxu0 0
  %2081 = vmatmul.mubr.bf16.gmra.mrb[0].mxu0 %v2027
  %v2082 = vpop.f32.mrb[0].mxu0
  %v2083 = vadd.f32 0.0, %v2082
  %v2084 = vpop.f32.mrb[0].mxu0
  %v2085 = vpop.f32.mrb[0].mxu0
  %v2086 = vadd.f32 0.0, %v2085
  %v2087 = vpop.f32.mrb[0].mxu0
  %2088 = vmatprep.mubr.bf16.mxu0 0
  %2089 = vmatmul.mubr.bf16.gmra.mrb[0].mxu0 %v2030
  %v2090 = vpop.f32.mrb[0].mxu0
  %v2091 = vadd.f32 0.0, %v2090
  %v2092 = vpop.f32.mrb[0].mxu0
  %v2093 = vpop.f32.mrb[0].mxu0
  %v2094 = vadd.f32 0.0, %v2093
  %v2095 = vpop.f32.mrb[0].mxu0
  %2096 = vdwg.mxu0
  %v2097 = vsel %vm46, %v1984, 0.0
  %v2098 = vsel %vm46, %v2067, 0.0
  %v2099 = vadd.f32 %v2097, %v2098
  %v2100 = vsel %vm46, %v1987, 0.0
  %v2101 = vsel %vm46, %v2070, 0.0
  %v2102 = vadd.f32 %v2100, %v2101
  %v2103 = vsel %vm46, %v1992, 0.0
  %v2104 = vsel %vm46, %v2075, 0.0
  %v2105 = vadd.f32 %v2103, %v2104
  %v2106 = vsel %vm46, %v1995, 0.0
  %v2107 = vsel %vm46, %v2078, 0.0
  %v2108 = vadd.f32 %v2106, %v2107
  %v2109 = vsel %vm46, %v2000, 0.0
  %v2110 = vsel %vm46, %v2083, 0.0
  %v2111 = vadd.f32 %v2109, %v2110
  %v2112 = vsel %vm46, %v2003, 0.0
  %v2113 = vsel %vm46, %v2086, 0.0
  %v2114 = vadd.f32 %v2112, %v2113
  %v2115 = vsel %vm46, %v2008, 0.0
  %v2116 = vsel %vm46, %v2091, 0.0
  %v2117 = vadd.f32 %v2115, %v2116
  %v2118 = vsel %vm46, %v2011, 0.0
  %v2119 = vsel %vm46, %v2094, 0.0
  %v2120 = vadd.f32 %v2118, %v2119
  %v2121 = vld [vmem:[%s3] sm:$0x1]
  %v2123 = vlaneseq
  %v2124 = vshrl.u32 %v2123, 7
  %v2125 = vsub.s32 0, %v2124
  %v2126 = vrot.slane %v2121, %v2125
  %v2128 = vadd.f32 %v2099, %v2126
  %v2129 = vadd.f32 %v2102, %v2126
  %v2130 = vadd.f32 %v2105, %v2126
  %v2131 = vadd.f32 %v2108, %v2126
  %v2132 = vadd.f32 %v2111, %v2126
  %v2133 = vadd.f32 %v2114, %v2126
  %v2134 = vadd.f32 %v2117, %v2126
  %v2135 = vadd.f32 %v2120, %v2126
  %2136 = vst.msk [vmem:[%s4] sm:$0xff] %vm46, %v2128
  %2137 = vst.msk [vmem:[%s4 + $0x8] sm:$0xff] %vm46, %v2129
  %2138 = vst.msk [vmem:[%s4 + $0x10] sm:$0xff] %vm46, %v2130
  %2139 = vst.msk [vmem:[%s4 + $0x18] sm:$0xff] %vm46, %v2131
  %2140 = vst.msk [vmem:[%s4 + $0x20] sm:$0xff] %vm46, %v2132
  %2141 = vst.msk [vmem:[%s4 + $0x28] sm:$0xff] %vm46, %v2133
  %2142 = vst.msk [vmem:[%s4 + $0x30] sm:$0xff] %vm46, %v2134
  %2143 = vst.msk [vmem:[%s4 + $0x38] sm:$0xff] %vm46, %v2135
  // Predicated region
  $region18: #{tpu_custom_call.1} parent=0 // pred_check
    _
  $region19: #{tpu_custom_call.1} parent=0 // pred_check_branch
    %2145 = sbr.rel (0) target = $region21
  $region20: #{tpu_custom_call.1} parent=0 // pred_region
    _
  $region21: #{tpu_custom_call.1} parent=0 // pred_fallthru
    _
  // Predicated region
  $region22: #{tpu_custom_call.1} parent=0 // pred_check
    _
  $region23: #{tpu_custom_call.1} parent=0 // pred_check_branch
    %2147 = sbr.rel (0) target = $region25
  $region24: #{tpu_custom_call.1} parent=0 // pred_region
    _
  $region25: #{tpu_custom_call.1} parent=0 // pred_fallthru
    _

</llo_original>
